<compile_context>
chip_gen: v7x
topology: tpu7x:2x2x1
jax: 0.10.0
libtpu: 0.0.40
codegen_flags: <defaults>
</compile_context>

<pallas_src>
import functools
import math

import numpy as np
import jax
import jax.numpy as jnp
from jax.experimental import pallas as pl
from jax.experimental.pallas import tpu as pltpu

BN_EPS = 1e-5
BN_SCALE = 1.0 / math.sqrt(1.0 + BN_EPS)   # gamma/sqrt(var+eps) for fresh stats
STEM_CIN = 16                              # stem input channels zero-padded 3 -> 16
LANE = 128


def _round_up(x, m):
    return (x + m - 1) // m * m


# ----------------------------------------------------------------------------
# Host-side constant builders (trace-time, numpy)
# ----------------------------------------------------------------------------
def _interior_mask(h, w, mp_pad):
    """(1, mp_pad) f32 mask: 1 on interior pixels of the padded-flat layout."""
    wp = w + 2
    m = np.zeros((1, mp_pad), np.float32)
    for i in range(1, h + 1):
        m[0, i * wp + 1: i * wp + 1 + w] = 1.0
    return jnp.asarray(m)


def _stride2_sel(d_in, d_out):
    """(9, Mp_in_pad, Mp_out_pad) 0/1 tap-selection matrices for a stride-2
    3x3 conv (and the AvgPool2d(3,2,1) sharing the same taps)."""
    sel = np.zeros((9, d_in["mp_pad"], d_out["mp_pad"]), np.float32)
    wp_i, wp_o = d_in["wp"], d_out["wp"]
    for t in range(9):
        di, dj = t // 3, t % 3
        for oi in range(d_out["h"]):
            for oj in range(d_out["w"]):
                m_out = (oi + 1) * wp_o + (oj + 1)
                m_in = (2 * oi + di) * wp_i + (2 * oj + dj)
                sel[t, m_in, m_out] = 1.0
    return jnp.asarray(sel, jnp.bfloat16)


# ----------------------------------------------------------------------------
# In-kernel helpers
# ----------------------------------------------------------------------------
def _slab9(x_f32, wp, mp_pad):
    """3x3 stride-1 im2col slab built with lane rolls.

    x_f32: (Cin, mp_pad) f32 padded-flat activation with exact-zero halo/tail
    columns.  Returns (9*Cin, mp_pad) bf16, row order t*Cin + ci.  Roll
    wraparound only contaminates halo/tail output columns, which every
    consumer multiplies by the interior mask.
    """
    pieces = []
    for di in range(3):
        for dj in range(3):
            off = (di - 1) * wp + (dj - 1)
            if off == 0:
                pieces.append(x_f32)
            else:
                pieces.append(pltpu.roll(x_f32, (-off) % mp_pad, axis=1))
    return jnp.concatenate(pieces, axis=0).astype(jnp.bfloat16)


# ----------------------------------------------------------------------------
# The fused backbone kernel (one grid step == one image)
# ----------------------------------------------------------------------------
def _backbone_kernel(*refs, plan, n_masks):
    x_ref = refs[0]
    mask_refs = refs[1:1 + n_masks]
    w_refs = refs[1 + n_masks:-1]
    o_ref = refs[-1]

    wi = [0]

    def take():
        r = w_refs[wi[0]]
        wi[0] += 1
        return r

    act = x_ref[0].astype(jnp.float32)            # (C, Mp_pad), f32 in VMEM

    for step in plan:
        kind = step["kind"]
        mask = mask_refs[step["mask"]][...]       # (1, Mp_out_pad), zero on halo/tail
        wp, mp_pad = step["wp"], step["mp_pad"]

        if kind == "stem":
            w = take()
            b = take()
            a = jnp.dot(w[...], _slab9(act, wp, mp_pad),
                        preferred_element_type=jnp.float32)
            act = jnp.maximum(a + b[...], 0.0) * mask
            continue

        cout = step["cout"]
        if kind == "block_s1":
            w1s = take()
            b1 = take()
            dsb = take() if step["has_ds"] else None
            w2 = take()
            b2 = take()
            slab1 = _slab9(act, wp, mp_pad)                        # (9*Cin, Mp)
        else:  # "block_s2": stride-2 first block of a layer
            sel = take()
            w1s = take()
            b1 = take()
            dsb = take()
            w2 = take()
            b2 = take()
            x_bf = act.astype(jnp.bfloat16)
            # 9 tap-selection GEMMs (exact gathers) -> stride-2 im2col slab.
            taps = [jnp.dot(x_bf, sel[t], preferred_element_type=jnp.float32)
                    for t in range(9)]
            slab1 = jnp.concatenate(taps, axis=0).astype(jnp.bfloat16)

        # conv1 (+ stacked 1x1 downsample / folded avgpool) in ONE GEMM.
        a_all = jnp.dot(w1s[...], slab1, preferred_element_type=jnp.float32)
        # mask is required here: roll/selection garbage + bias lives in halo cols.
        y = jnp.maximum(a_all[:cout] + b1[...], 0.0) * mask
        a2 = jnp.dot(w2[...], _slab9(y, wp, mp_pad),
                     preferred_element_type=jnp.float32)
        ident = (a_all[cout:] + dsb[...]) if dsb is not None else act
        act = jnp.maximum(a2 + b2[...] + ident, 0.0) * mask

    o_ref[0] = act.astype(o_ref.dtype)


# ----------------------------------------------------------------------------
# Parameters (BN scale folded into weights; raw folded weights kept in f32)
# ----------------------------------------------------------------------------
def _kaiming_conv3x3(key, cin, cout):
    # kaiming_normal_(mode='fan_out', nonlinearity='relu'); BN scale folded.
    std = math.sqrt(2.0 / (cout * 9))
    w = jax.random.normal(key, (cout, cin, 3, 3), jnp.float32) * std
    wf = jnp.transpose(w, (0, 2, 3, 1)).reshape(cout, 9 * cin)   # [co, t*cin+ci]
    return wf * BN_SCALE


def _kaiming_conv1x1(key, cin, cout):
    std = math.sqrt(2.0 / cout)
    return jax.random.normal(key, (cout, cin), jnp.float32) * std * BN_SCALE


def make_params(key, layers=(1, 1, 1), num_classes=100, width=1,
                patch_groups=1, mask_size1=4, mask_size2=1):
    ks = jax.random.split(key, 8)

    # Stem: 3 real input channels embedded in a 16-channel zero-padded layout.
    w3 = _kaiming_conv3x3(ks[0], 3, 16)                           # (16, 27)
    stem = jnp.zeros((16, 9, STEM_CIN), jnp.float32)
    stem = stem.at[:, :, :3].set(w3.reshape(16, 9, 3))
    p = {"conv1_w": stem.reshape(16, 9 * STEM_CIN),
         "conv1_b": jnp.zeros((16, 1), jnp.float32)}

    def make_block(k, cin, cout, stride, do_patch, mask_size):
        k1, k2, k3 = jax.random.split(k, 3)
        blk = dict(w1=_kaiming_conv3x3(k1, cin, cout),
                   b1=jnp.zeros((cout, 1), jnp.float32),
                   w2=_kaiming_conv3x3(k2, cout, cout),
                   b2=jnp.zeros((cout, 1), jnp.float32),
                   cin=cin, cout=cout, stride=stride, do_patch=do_patch,
                   mask_size=mask_size, patch_groups=patch_groups,
                   ds_w=None, ds_b=None)
        if cin != cout:   # 1x1 conv + BN in the downsample branch
            blk["ds_w"] = _kaiming_conv1x1(k3, cin, cout)
            blk["ds_b"] = jnp.zeros((cout, 1), jnp.float32)
        return blk

    def make_layer(k, cin, cout, nblocks, stride, mask_size, do_patch=True):
        kk = jax.random.split(k, nblocks)
        first_do_patch = do_patch if stride == 1 else False   # per _make_layer
        blocks = [make_block(kk[0], cin, cout, stride, first_do_patch, mask_size)]
        for i in range(1, nblocks):
            blocks.append(make_block(kk[i], cout, cout, 1, do_patch, mask_size))
        return blocks

    p["layer1"] = make_layer(ks[1], 16, 16 * width, layers[0], 1, mask_size1)
    p["layer2"] = make_layer(ks[2], 16 * width, 32 * width, layers[1], 2, mask_size1)
    p["layer3"] = make_layer(ks[3], 32 * width, 64 * width, layers[2], 2, mask_size2)

    fan_in = 64 * width
    p["fc_w"] = jax.random.normal(ks[4], (fan_in, num_classes), jnp.float32) / math.sqrt(fan_in)
    p["fc_b"] = jnp.zeros((num_classes,), jnp.float32)
    return p


# ----------------------------------------------------------------------------
# Program builder: static plan + flat operand list for the fused kernel
# ----------------------------------------------------------------------------
def _build_program(params, h, w):
    dims = []
    ch, cw = h, w
    for _ in range(3):
        wp = cw + 2
        mp = (ch + 2) * wp
        dims.append(dict(h=ch, w=cw, wp=wp, mp=mp,
                         mp_pad=max(_round_up(mp, LANE), LANE)))
        ch, cw = (ch - 1) // 2 + 1, (cw - 1) // 2 + 1   # conv3x3/s2/p1 output size
    masks = [_interior_mask(d["h"], d["w"], d["mp_pad"]) for d in dims]

    plan, weights = [], []
    plan.append(dict(kind="stem", mask=0, wp=dims[0]["wp"], mp_pad=dims[0]["mp_pad"]))
    weights += [params["conv1_w"].astype(jnp.bfloat16), params["conv1_b"]]

    for li, name in enumerate(("layer1", "layer2", "layer3")):
        for blk in params[name]:
            cin, cout = blk["cin"], blk["cout"]
            if blk["stride"] == 1:
                d = dims[li]
                has_ds = blk["ds_w"] is not None
                if has_ds:
                    # Embed the 1x1 downsample as the center tap and stack on conv1.
                    ds_emb = jnp.zeros((cout, 9 * cin), jnp.float32)
                    ds_emb = ds_emb.at[:, 4 * cin:5 * cin].set(blk["ds_w"])
                    w1s = jnp.concatenate([blk["w1"], ds_emb], axis=0)
                else:
                    w1s = blk["w1"]
                plan.append(dict(kind="block_s1", mask=li, wp=d["wp"],
                                 mp_pad=d["mp_pad"], cout=cout, has_ds=has_ds))
                weights += [w1s.astype(jnp.bfloat16), blk["b1"]]
                if has_ds:
                    weights.append(blk["ds_b"])
                weights += [blk["w2"].astype(jnp.bfloat16), blk["b2"]]
            else:
                din, dout = dims[li - 1], dims[li]
                sel = _stride2_sel(din, dout)
                ds_w = blk["ds_w"] if blk["ds_w"] is not None else jnp.eye(
                    cout, cin, dtype=jnp.float32)
                ds_b = blk["ds_b"] if blk["ds_b"] is not None else jnp.zeros(
                    (cout, 1), jnp.float32)
                # AvgPool2d(3,2,1) (count_include_pad) folded into the 1x1 ds conv,
                # then stacked on conv1's weight -> one GEMM per block.
                dsp = jnp.tile(ds_w, (1, 9)) * (1.0 / 9.0)
                w1s = jnp.concatenate([blk["w1"], dsp], axis=0)
                plan.append(dict(kind="block_s2", mask=li, wp=dout["wp"],
                                 mp_pad=dout["mp_pad"], cout=cout))
                weights += [sel, w1s.astype(jnp.bfloat16), blk["b1"], ds_b,
                            blk["w2"].astype(jnp.bfloat16), blk["b2"]]
    return tuple(plan), masks, weights, dims


def _zero_map(*_, ndim):
    return (0,) * ndim


# ----------------------------------------------------------------------------
# Forward pass
# ----------------------------------------------------------------------------
def sar_resnet_forward(x_nchw, params, temperature=1.0, inference=False):
    del temperature, inference   # sar gating is stubbed (all-ones masks)
    n, cin, h, w = x_nchw.shape
    plan, masks, weights, dims = _build_program(params, h, w)
    d1, d3 = dims[0], dims[2]

    # NCHW -> padded-flat channel-major (N, 16, Mp1_pad); halo, tail columns and
    # channels 3..15 are exact zeros (required by the roll-slab and GAP).
    x = x_nchw.astype(jnp.float32)
    xp = jnp.pad(x, ((0, 0), (0, 0), (1, 1), (1, 1)))
    xp = xp.reshape(n, cin, (d1["h"] + 2) * d1["wp"])
    xp = jnp.pad(xp, ((0, 0), (0, STEM_CIN - cin),
                      (0, d1["mp_pad"] - xp.shape[-1])))

    c_out = params["layer3"][-1]["cout"]
    const_args = list(masks) + list(weights)

    in_specs = [pl.BlockSpec((1, STEM_CIN, d1["mp_pad"]), lambda b: (b, 0, 0))]
    in_specs += [pl.BlockSpec(a.shape, functools.partial(_zero_map, ndim=a.ndim))
                 for a in const_args]
    out_specs = pl.BlockSpec((1, c_out, d3["mp_pad"]), lambda b: (b, 0, 0))

    feat_map = pl.pallas_call(
        functools.partial(_backbone_kernel, plan=plan, n_masks=len(masks)),
        out_shape=jax.ShapeDtypeStruct((n, c_out, d3["mp_pad"]), jnp.float32),
        grid=(n,),
        in_specs=in_specs,
        out_specs=out_specs,
        compiler_params=pltpu.CompilerParams(
            dimension_semantics=("parallel",),        # 1 image / TensorCore on v7x
            vmem_limit_bytes=32 * 1024 * 1024),       # headroom guard (v7x: 64 MiB phys)
    )(xp, *const_args)

    # GAP + FC: tiny -> plain jnp (halo/tail columns are exact zeros).
    feat = jnp.sum(feat_map, axis=-1) * (1.0 / float(d3["h"] * d3["w"]))
    logits = feat @ params["fc_w"] + params["fc_b"]

    # TODO(synk): real sar gating masks ("gs" convs + gumbel softmax) live
    # outside this file; emit deterministic all-ones masks for do_patch blocks
    # (layer2[0]/layer3[0] have do_patch=False and are discarded, as in the
    # reference forward).
    _masks = []
    for name in ("layer1", "layer2", "layer3"):
        for blk in params[name]:
            if blk["do_patch"]:
                _masks.append(jnp.ones((n, blk["patch_groups"], blk["mask_size"],
                                        blk["mask_size"]), jnp.float32))
    return logits, _masks


# ----------------------------------------------------------------------------
if __name__ == "__main__":
    key = jax.random.PRNGKey(0)
    kx, kp = jax.random.split(key)

    # small CIFAR-like input: batch=2, 3 channels, 16x16 spatial (NCHW)
    x = jax.random.normal(kx, (2, 3, 16, 16), jnp.float32)
    params = make_params(kp, layers=(1, 1, 1), num_classes=100, width=1,
                         patch_groups=1, mask_size1=4, mask_size2=1)

    fwd = jax.jit(lambda inp: sar_resnet_forward(inp, params,
                                                 temperature=1.0, inference=False))
    logits, masks = fwd(x)
    jax.block_until_ready(logits)
    for m in masks:
        jax.block_until_ready(m)

    assert logits.shape == (2, 100), logits.shape
    assert bool(jnp.all(jnp.isfinite(logits)))
    print("KERNEL_OK")
</pallas_src>

<mosaic_0001>
module attributes {stable_mosaic.version = 11 : i64} {
  func.func @_backbone_kernel(%arg0: i32, %arg1: memref<1x16x384xf32, #tpu.memory_space<vmem>>, %arg2: memref<1x384xf32, #tpu.memory_space<vmem>>, %arg3: memref<1x128xf32, #tpu.memory_space<vmem>>, %arg4: memref<1x128xf32, #tpu.memory_space<vmem>>, %arg5: memref<16x144xbf16, #tpu.memory_space<vmem>>, %arg6: memref<16x1xf32, #tpu.memory_space<vmem>>, %arg7: memref<16x144xbf16, #tpu.memory_space<vmem>>, %arg8: memref<16x1xf32, #tpu.memory_space<vmem>>, %arg9: memref<16x144xbf16, #tpu.memory_space<vmem>>, %arg10: memref<16x1xf32, #tpu.memory_space<vmem>>, %arg11: memref<9x384x128xbf16, #tpu.memory_space<vmem>>, %arg12: memref<64x144xbf16, #tpu.memory_space<vmem>>, %arg13: memref<32x1xf32, #tpu.memory_space<vmem>>, %arg14: memref<32x1xf32, #tpu.memory_space<vmem>>, %arg15: memref<32x288xbf16, #tpu.memory_space<vmem>>, %arg16: memref<32x1xf32, #tpu.memory_space<vmem>>, %arg17: memref<9x128x128xbf16, #tpu.memory_space<vmem>>, %arg18: memref<128x288xbf16, #tpu.memory_space<vmem>>, %arg19: memref<64x1xf32, #tpu.memory_space<vmem>>, %arg20: memref<64x1xf32, #tpu.memory_space<vmem>>, %arg21: memref<64x576xbf16, #tpu.memory_space<vmem>>, %arg22: memref<64x1xf32, #tpu.memory_space<vmem>>, %arg23: memref<1x64x128xf32, #tpu.memory_space<vmem>>) attributes {dimension_semantics = [#tpu.dimension_semantics<parallel>], iteration_bounds = array<i64: 2>, scalar_prefetch = 0 : i64, scratch_operands = 0 : i64, tpu.core_type = #tpu.core_type<tc>, window_params = [{transform_indices = @transform_0, window_bounds = array<i64: 1, 16, 384>}, {pipeline_mode = #tpu.pipeline_mode<synchronous>, transform_indices = @transform_1, window_bounds = array<i64: 1, 384>}, {pipeline_mode = #tpu.pipeline_mode<synchronous>, transform_indices = @transform_2, window_bounds = array<i64: 1, 128>}, {pipeline_mode = #tpu.pipeline_mode<synchronous>, transform_indices = @transform_3, window_bounds = array<i64: 1, 128>}, {pipeline_mode = #tpu.pipeline_mode<synchronous>, transform_indices = @transform_4, window_bounds = array<i64: 16, 144>}, {pipeline_mode = #tpu.pipeline_mode<synchronous>, transform_indices = @transform_5, window_bounds = array<i64: 16, 1>}, {pipeline_mode = #tpu.pipeline_mode<synchronous>, transform_indices = @transform_6, window_bounds = array<i64: 16, 144>}, {pipeline_mode = #tpu.pipeline_mode<synchronous>, transform_indices = @transform_7, window_bounds = array<i64: 16, 1>}, {pipeline_mode = #tpu.pipeline_mode<synchronous>, transform_indices = @transform_8, window_bounds = array<i64: 16, 144>}, {pipeline_mode = #tpu.pipeline_mode<synchronous>, transform_indices = @transform_9, window_bounds = array<i64: 16, 1>}, {pipeline_mode = #tpu.pipeline_mode<synchronous>, transform_indices = @transform_10, window_bounds = array<i64: 9, 384, 128>}, {pipeline_mode = #tpu.pipeline_mode<synchronous>, transform_indices = @transform_11, window_bounds = array<i64: 64, 144>}, {pipeline_mode = #tpu.pipeline_mode<synchronous>, transform_indices = @transform_12, window_bounds = array<i64: 32, 1>}, {pipeline_mode = #tpu.pipeline_mode<synchronous>, transform_indices = @transform_13, window_bounds = array<i64: 32, 1>}, {pipeline_mode = #tpu.pipeline_mode<synchronous>, transform_indices = @transform_14, window_bounds = array<i64: 32, 288>}, {pipeline_mode = #tpu.pipeline_mode<synchronous>, transform_indices = @transform_15, window_bounds = array<i64: 32, 1>}, {pipeline_mode = #tpu.pipeline_mode<synchronous>, transform_indices = @transform_16, window_bounds = array<i64: 9, 128, 128>}, {pipeline_mode = #tpu.pipeline_mode<synchronous>, transform_indices = @transform_17, window_bounds = array<i64: 128, 288>}, {pipeline_mode = #tpu.pipeline_mode<synchronous>, transform_indices = @transform_18, window_bounds = array<i64: 64, 1>}, {pipeline_mode = #tpu.pipeline_mode<synchronous>, transform_indices = @transform_19, window_bounds = array<i64: 64, 1>}, {pipeline_mode = #tpu.pipeline_mode<synchronous>, transform_indices = @transform_20, window_bounds = array<i64: 64, 576>}, {pipeline_mode = #tpu.pipeline_mode<synchronous>, transform_indices = @transform_21, window_bounds = array<i64: 64, 1>}, {transform_indices = @transform_22, window_bounds = array<i64: 1, 64, 128>}]} {
    %c0 = arith.constant 0 : index
    %c0_0 = arith.constant 0 : index
    %c0_1 = arith.constant 0 : index
    %0 = vector.load %arg1[%c0, %c0_0, %c0_1] : memref<1x16x384xf32, #tpu.memory_space<vmem>>, vector<1x16x384xf32>
    %1 = vector.shape_cast %0 : vector<1x16x384xf32> to vector<16x384xf32>
    %c0_2 = arith.constant 0 : index
    %c0_3 = arith.constant 0 : index
    %2 = vector.load %arg2[%c0_2, %c0_3] : memref<1x384xf32, #tpu.memory_space<vmem>>, vector<1x384xf32>
    %c0_4 = arith.constant 0 : index
    %c0_5 = arith.constant 0 : index
    %3 = vector.load %arg5[%c0_4, %c0_5] : memref<16x144xbf16, #tpu.memory_space<vmem>>, vector<16x144xbf16>
    %c19_i32 = arith.constant 19 : i32
    %4 = tpu.dynamic_rotate %1 by %c19_i32 dim 1 : vector<16x384xf32>, i32 -> vector<16x384xf32>
    %c18_i32 = arith.constant 18 : i32
    %5 = tpu.dynamic_rotate %1 by %c18_i32 dim 1 : vector<16x384xf32>, i32 -> vector<16x384xf32>
    %c17_i32 = arith.constant 17 : i32
    %6 = tpu.dynamic_rotate %1 by %c17_i32 dim 1 : vector<16x384xf32>, i32 -> vector<16x384xf32>
    %c1_i32 = arith.constant 1 : i32
    %7 = tpu.dynamic_rotate %1 by %c1_i32 dim 1 : vector<16x384xf32>, i32 -> vector<16x384xf32>
    %c383_i32 = arith.constant 383 : i32
    %8 = tpu.dynamic_rotate %1 by %c383_i32 dim 1 : vector<16x384xf32>, i32 -> vector<16x384xf32>
    %c367_i32 = arith.constant 367 : i32
    %9 = tpu.dynamic_rotate %1 by %c367_i32 dim 1 : vector<16x384xf32>, i32 -> vector<16x384xf32>
    %c366_i32 = arith.constant 366 : i32
    %10 = tpu.dynamic_rotate %1 by %c366_i32 dim 1 : vector<16x384xf32>, i32 -> vector<16x384xf32>
    %c365_i32 = arith.constant 365 : i32
    %11 = tpu.dynamic_rotate %1 by %c365_i32 dim 1 : vector<16x384xf32>, i32 -> vector<16x384xf32>
    %12 = tpu.concatenate %4, %5, %6, %7, %1, %8, %9, %10, %11 in 0 : vector<16x384xf32>, vector<16x384xf32>, vector<16x384xf32>, vector<16x384xf32>, vector<16x384xf32>, vector<16x384xf32>, vector<16x384xf32>, vector<16x384xf32>, vector<16x384xf32> -> vector<144x384xf32>
    %13 = arith.truncf %12 : vector<144x384xf32> to vector<144x384xbf16>
    %cst = arith.constant dense<0.000000e+00> : vector<16x384xf32>
    %14 = tpu.matmul %3, %13, %cst {dimension_numbers = #tpu.dot_dimension_numbers<[1], [0], [0], [1], [0, 0, 1, 1], [], []>} : vector<16x144xbf16>, vector<144x384xbf16>, vector<16x384xf32> -> vector<16x384xf32>
    %c0_6 = arith.constant 0 : index
    %c0_7 = arith.constant 0 : index
    %15 = vector.load %arg6[%c0_6, %c0_7] : memref<16x1xf32, #tpu.memory_space<vmem>>, vector<16x1xf32>
    %16 = vector.broadcast %15 : vector<16x1xf32> to vector<16x384xf32>
    %17 = arith.addf %14, %16 : vector<16x384xf32>
    %cst_8 = arith.constant 0.000000e+00 : f32
    %18 = vector.broadcast %cst_8 : f32 to vector<16x384xf32>
    %19 = arith.maximumf %17, %18 : vector<16x384xf32>
    %20 = vector.broadcast %2 : vector<1x384xf32> to vector<16x384xf32>
    %21 = arith.mulf %19, %20 : vector<16x384xf32>
    %c0_9 = arith.constant 0 : index
    %c0_10 = arith.constant 0 : index
    %22 = vector.load %arg2[%c0_9, %c0_10] : memref<1x384xf32, #tpu.memory_space<vmem>>, vector<1x384xf32>
    %c19_i32_11 = arith.constant 19 : i32
    %23 = tpu.dynamic_rotate %21 by %c19_i32_11 dim 1 : vector<16x384xf32>, i32 -> vector<16x384xf32>
    %c18_i32_12 = arith.constant 18 : i32
    %24 = tpu.dynamic_rotate %21 by %c18_i32_12 dim 1 : vector<16x384xf32>, i32 -> vector<16x384xf32>
    %c17_i32_13 = arith.constant 17 : i32
    %25 = tpu.dynamic_rotate %21 by %c17_i32_13 dim 1 : vector<16x384xf32>, i32 -> vector<16x384xf32>
    %c1_i32_14 = arith.constant 1 : i32
    %26 = tpu.dynamic_rotate %21 by %c1_i32_14 dim 1 : vector<16x384xf32>, i32 -> vector<16x384xf32>
    %c383_i32_15 = arith.constant 383 : i32
    %27 = tpu.dynamic_rotate %21 by %c383_i32_15 dim 1 : vector<16x384xf32>, i32 -> vector<16x384xf32>
    %c367_i32_16 = arith.constant 367 : i32
    %28 = tpu.dynamic_rotate %21 by %c367_i32_16 dim 1 : vector<16x384xf32>, i32 -> vector<16x384xf32>
    %c366_i32_17 = arith.constant 366 : i32
    %29 = tpu.dynamic_rotate %21 by %c366_i32_17 dim 1 : vector<16x384xf32>, i32 -> vector<16x384xf32>
    %c365_i32_18 = arith.constant 365 : i32
    %30 = tpu.dynamic_rotate %21 by %c365_i32_18 dim 1 : vector<16x384xf32>, i32 -> vector<16x384xf32>
    %31 = tpu.concatenate %23, %24, %25, %26, %21, %27, %28, %29, %30 in 0 : vector<16x384xf32>, vector<16x384xf32>, vector<16x384xf32>, vector<16x384xf32>, vector<16x384xf32>, vector<16x384xf32>, vector<16x384xf32>, vector<16x384xf32>, vector<16x384xf32> -> vector<144x384xf32>
    %32 = arith.truncf %31 : vector<144x384xf32> to vector<144x384xbf16>
    %c0_19 = arith.constant 0 : index
    %c0_20 = arith.constant 0 : index
    %33 = vector.load %arg7[%c0_19, %c0_20] : memref<16x144xbf16, #tpu.memory_space<vmem>>, vector<16x144xbf16>
    %cst_21 = arith.constant dense<0.000000e+00> : vector<16x384xf32>
    %34 = tpu.matmul %33, %32, %cst_21 {dimension_numbers = #tpu.dot_dimension_numbers<[1], [0], [0], [1], [0, 0, 1, 1], [], []>} : vector<16x144xbf16>, vector<144x384xbf16>, vector<16x384xf32> -> vector<16x384xf32>
    %c0_22 = arith.constant 0 : index
    %c0_23 = arith.constant 0 : index
    %35 = vector.load %arg8[%c0_22, %c0_23] : memref<16x1xf32, #tpu.memory_space<vmem>>, vector<16x1xf32>
    %36 = vector.broadcast %35 : vector<16x1xf32> to vector<16x384xf32>
    %37 = arith.addf %34, %36 : vector<16x384xf32>
    %cst_24 = arith.constant 0.000000e+00 : f32
    %38 = vector.broadcast %cst_24 : f32 to vector<16x384xf32>
    %39 = arith.maximumf %37, %38 : vector<16x384xf32>
    %40 = vector.broadcast %22 : vector<1x384xf32> to vector<16x384xf32>
    %41 = arith.mulf %39, %40 : vector<16x384xf32>
    %c0_25 = arith.constant 0 : index
    %c0_26 = arith.constant 0 : index
    %42 = vector.load %arg9[%c0_25, %c0_26] : memref<16x144xbf16, #tpu.memory_space<vmem>>, vector<16x144xbf16>
    %c19_i32_27 = arith.constant 19 : i32
    %43 = tpu.dynamic_rotate %41 by %c19_i32_27 dim 1 : vector<16x384xf32>, i32 -> vector<16x384xf32>
    %c18_i32_28 = arith.constant 18 : i32
    %44 = tpu.dynamic_rotate %41 by %c18_i32_28 dim 1 : vector<16x384xf32>, i32 -> vector<16x384xf32>
    %c17_i32_29 = arith.constant 17 : i32
    %45 = tpu.dynamic_rotate %41 by %c17_i32_29 dim 1 : vector<16x384xf32>, i32 -> vector<16x384xf32>
    %c1_i32_30 = arith.constant 1 : i32
    %46 = tpu.dynamic_rotate %41 by %c1_i32_30 dim 1 : vector<16x384xf32>, i32 -> vector<16x384xf32>
    %c383_i32_31 = arith.constant 383 : i32
    %47 = tpu.dynamic_rotate %41 by %c383_i32_31 dim 1 : vector<16x384xf32>, i32 -> vector<16x384xf32>
    %c367_i32_32 = arith.constant 367 : i32
    %48 = tpu.dynamic_rotate %41 by %c367_i32_32 dim 1 : vector<16x384xf32>, i32 -> vector<16x384xf32>
    %c366_i32_33 = arith.constant 366 : i32
    %49 = tpu.dynamic_rotate %41 by %c366_i32_33 dim 1 : vector<16x384xf32>, i32 -> vector<16x384xf32>
    %c365_i32_34 = arith.constant 365 : i32
    %50 = tpu.dynamic_rotate %41 by %c365_i32_34 dim 1 : vector<16x384xf32>, i32 -> vector<16x384xf32>
    %51 = tpu.concatenate %43, %44, %45, %46, %41, %47, %48, %49, %50 in 0 : vector<16x384xf32>, vector<16x384xf32>, vector<16x384xf32>, vector<16x384xf32>, vector<16x384xf32>, vector<16x384xf32>, vector<16x384xf32>, vector<16x384xf32>, vector<16x384xf32> -> vector<144x384xf32>
    %52 = arith.truncf %51 : vector<144x384xf32> to vector<144x384xbf16>
    %cst_35 = arith.constant dense<0.000000e+00> : vector<16x384xf32>
    %53 = tpu.matmul %42, %52, %cst_35 {dimension_numbers = #tpu.dot_dimension_numbers<[1], [0], [0], [1], [0, 0, 1, 1], [], []>} : vector<16x144xbf16>, vector<144x384xbf16>, vector<16x384xf32> -> vector<16x384xf32>
    %c0_36 = arith.constant 0 : index
    %c0_37 = arith.constant 0 : index
    %54 = vector.load %arg10[%c0_36, %c0_37] : memref<16x1xf32, #tpu.memory_space<vmem>>, vector<16x1xf32>
    %55 = vector.broadcast %54 : vector<16x1xf32> to vector<16x384xf32>
    %56 = arith.addf %53, %55 : vector<16x384xf32>
    %57 = arith.addf %56, %21 : vector<16x384xf32>
    %cst_38 = arith.constant 0.000000e+00 : f32
    %58 = vector.broadcast %cst_38 : f32 to vector<16x384xf32>
    %59 = arith.maximumf %57, %58 : vector<16x384xf32>
    %60 = vector.broadcast %22 : vector<1x384xf32> to vector<16x384xf32>
    %61 = arith.mulf %59, %60 : vector<16x384xf32>
    %c0_39 = arith.constant 0 : index
    %c0_40 = arith.constant 0 : index
    %62 = vector.load %arg3[%c0_39, %c0_40] : memref<1x128xf32, #tpu.memory_space<vmem>>, vector<1x128xf32>
    %63 = arith.truncf %61 : vector<16x384xf32> to vector<16x384xbf16>
    %c0_41 = arith.constant 0 : index
    %c0_42 = arith.constant 0 : index
    %c0_43 = arith.constant 0 : index
    %64 = vector.load %arg11[%c0_41, %c0_42, %c0_43] : memref<9x384x128xbf16, #tpu.memory_space<vmem>>, vector<1x384x128xbf16>
    %65 = vector.shape_cast %64 : vector<1x384x128xbf16> to vector<384x128xbf16>
    %cst_44 = arith.constant dense<0.000000e+00> : vector<16x128xf32>
    %66 = tpu.matmul %63, %65, %cst_44 {dimension_numbers = #tpu.dot_dimension_numbers<[1], [0], [0], [1], [0, 0, 1, 1], [], []>} : vector<16x384xbf16>, vector<384x128xbf16>, vector<16x128xf32> -> vector<16x128xf32>
    %c1 = arith.constant 1 : index
    %c0_45 = arith.constant 0 : index
    %c0_46 = arith.constant 0 : index
    %67 = vector.load %arg11[%c1, %c0_45, %c0_46] : memref<9x384x128xbf16, #tpu.memory_space<vmem>>, vector<1x384x128xbf16>
    %68 = vector.shape_cast %67 : vector<1x384x128xbf16> to vector<384x128xbf16>
    %cst_47 = arith.constant dense<0.000000e+00> : vector<16x128xf32>
    %69 = tpu.matmul %63, %68, %cst_47 {dimension_numbers = #tpu.dot_dimension_numbers<[1], [0], [0], [1], [0, 0, 1, 1], [], []>} : vector<16x384xbf16>, vector<384x128xbf16>, vector<16x128xf32> -> vector<16x128xf32>
    %c2 = arith.constant 2 : index
    %c0_48 = arith.constant 0 : index
    %c0_49 = arith.constant 0 : index
    %70 = vector.load %arg11[%c2, %c0_48, %c0_49] : memref<9x384x128xbf16, #tpu.memory_space<vmem>>, vector<1x384x128xbf16>
    %71 = vector.shape_cast %70 : vector<1x384x128xbf16> to vector<384x128xbf16>
    %cst_50 = arith.constant dense<0.000000e+00> : vector<16x128xf32>
    %72 = tpu.matmul %63, %71, %cst_50 {dimension_numbers = #tpu.dot_dimension_numbers<[1], [0], [0], [1], [0, 0, 1, 1], [], []>} : vector<16x384xbf16>, vector<384x128xbf16>, vector<16x128xf32> -> vector<16x128xf32>
    %c3 = arith.constant 3 : index
    %c0_51 = arith.constant 0 : index
    %c0_52 = arith.constant 0 : index
    %73 = vector.load %arg11[%c3, %c0_51, %c0_52] : memref<9x384x128xbf16, #tpu.memory_space<vmem>>, vector<1x384x128xbf16>
    %74 = vector.shape_cast %73 : vector<1x384x128xbf16> to vector<384x128xbf16>
    %cst_53 = arith.constant dense<0.000000e+00> : vector<16x128xf32>
    %75 = tpu.matmul %63, %74, %cst_53 {dimension_numbers = #tpu.dot_dimension_numbers<[1], [0], [0], [1], [0, 0, 1, 1], [], []>} : vector<16x384xbf16>, vector<384x128xbf16>, vector<16x128xf32> -> vector<16x128xf32>
    %c4 = arith.constant 4 : index
    %c0_54 = arith.constant 0 : index
    %c0_55 = arith.constant 0 : index
    %76 = vector.load %arg11[%c4, %c0_54, %c0_55] : memref<9x384x128xbf16, #tpu.memory_space<vmem>>, vector<1x384x128xbf16>
    %77 = vector.shape_cast %76 : vector<1x384x128xbf16> to vector<384x128xbf16>
    %cst_56 = arith.constant dense<0.000000e+00> : vector<16x128xf32>
    %78 = tpu.matmul %63, %77, %cst_56 {dimension_numbers = #tpu.dot_dimension_numbers<[1], [0], [0], [1], [0, 0, 1, 1], [], []>} : vector<16x384xbf16>, vector<384x128xbf16>, vector<16x128xf32> -> vector<16x128xf32>
    %c5 = arith.constant 5 : index
    %c0_57 = arith.constant 0 : index
    %c0_58 = arith.constant 0 : index
    %79 = vector.load %arg11[%c5, %c0_57, %c0_58] : memref<9x384x128xbf16, #tpu.memory_space<vmem>>, vector<1x384x128xbf16>
    %80 = vector.shape_cast %79 : vector<1x384x128xbf16> to vector<384x128xbf16>
    %cst_59 = arith.constant dense<0.000000e+00> : vector<16x128xf32>
    %81 = tpu.matmul %63, %80, %cst_59 {dimension_numbers = #tpu.dot_dimension_numbers<[1], [0], [0], [1], [0, 0, 1, 1], [], []>} : vector<16x384xbf16>, vector<384x128xbf16>, vector<16x128xf32> -> vector<16x128xf32>
    %c6 = arith.constant 6 : index
    %c0_60 = arith.constant 0 : index
    %c0_61 = arith.constant 0 : index
    %82 = vector.load %arg11[%c6, %c0_60, %c0_61] : memref<9x384x128xbf16, #tpu.memory_space<vmem>>, vector<1x384x128xbf16>
    %83 = vector.shape_cast %82 : vector<1x384x128xbf16> to vector<384x128xbf16>
    %cst_62 = arith.constant dense<0.000000e+00> : vector<16x128xf32>
    %84 = tpu.matmul %63, %83, %cst_62 {dimension_numbers = #tpu.dot_dimension_numbers<[1], [0], [0], [1], [0, 0, 1, 1], [], []>} : vector<16x384xbf16>, vector<384x128xbf16>, vector<16x128xf32> -> vector<16x128xf32>
    %c7 = arith.constant 7 : index
    %c0_63 = arith.constant 0 : index
    %c0_64 = arith.constant 0 : index
    %85 = vector.load %arg11[%c7, %c0_63, %c0_64] : memref<9x384x128xbf16, #tpu.memory_space<vmem>>, vector<1x384x128xbf16>
    %86 = vector.shape_cast %85 : vector<1x384x128xbf16> to vector<384x128xbf16>
    %cst_65 = arith.constant dense<0.000000e+00> : vector<16x128xf32>
    %87 = tpu.matmul %63, %86, %cst_65 {dimension_numbers = #tpu.dot_dimension_numbers<[1], [0], [0], [1], [0, 0, 1, 1], [], []>} : vector<16x384xbf16>, vector<384x128xbf16>, vector<16x128xf32> -> vector<16x128xf32>
    %c8 = arith.constant 8 : index
    %c0_66 = arith.constant 0 : index
    %c0_67 = arith.constant 0 : index
    %88 = vector.load %arg11[%c8, %c0_66, %c0_67] : memref<9x384x128xbf16, #tpu.memory_space<vmem>>, vector<1x384x128xbf16>
    %89 = vector.shape_cast %88 : vector<1x384x128xbf16> to vector<384x128xbf16>
    %cst_68 = arith.constant dense<0.000000e+00> : vector<16x128xf32>
    %90 = tpu.matmul %63, %89, %cst_68 {dimension_numbers = #tpu.dot_dimension_numbers<[1], [0], [0], [1], [0, 0, 1, 1], [], []>} : vector<16x384xbf16>, vector<384x128xbf16>, vector<16x128xf32> -> vector<16x128xf32>
    %91 = tpu.concatenate %66, %69, %72, %75, %78, %81, %84, %87, %90 in 0 : vector<16x128xf32>, vector<16x128xf32>, vector<16x128xf32>, vector<16x128xf32>, vector<16x128xf32>, vector<16x128xf32>, vector<16x128xf32>, vector<16x128xf32>, vector<16x128xf32> -> vector<144x128xf32>
    %92 = arith.truncf %91 : vector<144x128xf32> to vector<144x128xbf16>
    %c0_69 = arith.constant 0 : index
    %c0_70 = arith.constant 0 : index
    %93 = vector.load %arg12[%c0_69, %c0_70] : memref<64x144xbf16, #tpu.memory_space<vmem>>, vector<64x144xbf16>
    %cst_71 = arith.constant dense<0.000000e+00> : vector<64x128xf32>
    %94 = tpu.matmul %93, %92, %cst_71 {dimension_numbers = #tpu.dot_dimension_numbers<[1], [0], [0], [1], [0, 0, 1, 1], [], []>} : vector<64x144xbf16>, vector<144x128xbf16>, vector<64x128xf32> -> vector<64x128xf32>
    %95 = vector.extract_strided_slice %94 {offsets = [0, 0], sizes = [32, 128], strides = [1, 1]} : vector<64x128xf32> to vector<32x128xf32>
    %c0_72 = arith.constant 0 : index
    %c0_73 = arith.constant 0 : index
    %96 = vector.load %arg13[%c0_72, %c0_73] : memref<32x1xf32, #tpu.memory_space<vmem>>, vector<32x1xf32>
    %97 = vector.broadcast %96 : vector<32x1xf32> to vector<32x128xf32>
    %98 = arith.addf %95, %97 : vector<32x128xf32>
    %cst_74 = arith.constant 0.000000e+00 : f32
    %99 = vector.broadcast %cst_74 : f32 to vector<32x128xf32>
    %100 = arith.maximumf %98, %99 : vector<32x128xf32>
    %101 = vector.broadcast %62 : vector<1x128xf32> to vector<32x128xf32>
    %102 = arith.mulf %100, %101 : vector<32x128xf32>
    %c0_75 = arith.constant 0 : index
    %c0_76 = arith.constant 0 : index
    %103 = vector.load %arg15[%c0_75, %c0_76] : memref<32x288xbf16, #tpu.memory_space<vmem>>, vector<32x288xbf16>
    %c11_i32 = arith.constant 11 : i32
    %104 = tpu.dynamic_rotate %102 by %c11_i32 dim 1 : vector<32x128xf32>, i32 -> vector<32x128xf32>
    %c10_i32 = arith.constant 10 : i32
    %105 = tpu.dynamic_rotate %102 by %c10_i32 dim 1 : vector<32x128xf32>, i32 -> vector<32x128xf32>
    %c9_i32 = arith.constant 9 : i32
    %106 = tpu.dynamic_rotate %102 by %c9_i32 dim 1 : vector<32x128xf32>, i32 -> vector<32x128xf32>
    %c1_i32_77 = arith.constant 1 : i32
    %107 = tpu.dynamic_rotate %102 by %c1_i32_77 dim 1 : vector<32x128xf32>, i32 -> vector<32x128xf32>
    %c127_i32 = arith.constant 127 : i32
    %108 = tpu.dynamic_rotate %102 by %c127_i32 dim 1 : vector<32x128xf32>, i32 -> vector<32x128xf32>
    %c119_i32 = arith.constant 119 : i32
    %109 = tpu.dynamic_rotate %102 by %c119_i32 dim 1 : vector<32x128xf32>, i32 -> vector<32x128xf32>
    %c118_i32 = arith.constant 118 : i32
    %110 = tpu.dynamic_rotate %102 by %c118_i32 dim 1 : vector<32x128xf32>, i32 -> vector<32x128xf32>
    %c117_i32 = arith.constant 117 : i32
    %111 = tpu.dynamic_rotate %102 by %c117_i32 dim 1 : vector<32x128xf32>, i32 -> vector<32x128xf32>
    %112 = tpu.concatenate %104, %105, %106, %107, %102, %108, %109, %110, %111 in 0 : vector<32x128xf32>, vector<32x128xf32>, vector<32x128xf32>, vector<32x128xf32>, vector<32x128xf32>, vector<32x128xf32>, vector<32x128xf32>, vector<32x128xf32>, vector<32x128xf32> -> vector<288x128xf32>
    %113 = arith.truncf %112 : vector<288x128xf32> to vector<288x128xbf16>
    %cst_78 = arith.constant dense<0.000000e+00> : vector<32x128xf32>
    %114 = tpu.matmul %103, %113, %cst_78 {dimension_numbers = #tpu.dot_dimension_numbers<[1], [0], [0], [1], [0, 0, 1, 1], [], []>} : vector<32x288xbf16>, vector<288x128xbf16>, vector<32x128xf32> -> vector<32x128xf32>
    %115 = vector.extract_strided_slice %94 {offsets = [32, 0], sizes = [32, 128], strides = [1, 1]} : vector<64x128xf32> to vector<32x128xf32>
    %c0_79 = arith.constant 0 : index
    %c0_80 = arith.constant 0 : index
    %116 = vector.load %arg14[%c0_79, %c0_80] : memref<32x1xf32, #tpu.memory_space<vmem>>, vector<32x1xf32>
    %117 = vector.broadcast %116 : vector<32x1xf32> to vector<32x128xf32>
    %118 = arith.addf %115, %117 : vector<32x128xf32>
    %c0_81 = arith.constant 0 : index
    %c0_82 = arith.constant 0 : index
    %119 = vector.load %arg16[%c0_81, %c0_82] : memref<32x1xf32, #tpu.memory_space<vmem>>, vector<32x1xf32>
    %120 = vector.broadcast %119 : vector<32x1xf32> to vector<32x128xf32>
    %121 = arith.addf %114, %120 : vector<32x128xf32>
    %122 = arith.addf %121, %118 : vector<32x128xf32>
    %cst_83 = arith.constant 0.000000e+00 : f32
    %123 = vector.broadcast %cst_83 : f32 to vector<32x128xf32>
    %124 = arith.maximumf %122, %123 : vector<32x128xf32>
    %125 = vector.broadcast %62 : vector<1x128xf32> to vector<32x128xf32>
    %126 = arith.mulf %124, %125 : vector<32x128xf32>
    %c0_84 = arith.constant 0 : index
    %c0_85 = arith.constant 0 : index
    %127 = vector.load %arg4[%c0_84, %c0_85] : memref<1x128xf32, #tpu.memory_space<vmem>>, vector<1x128xf32>
    %128 = arith.truncf %126 : vector<32x128xf32> to vector<32x128xbf16>
    %c0_86 = arith.constant 0 : index
    %c0_87 = arith.constant 0 : index
    %c0_88 = arith.constant 0 : index
    %129 = vector.load %arg17[%c0_86, %c0_87, %c0_88] : memref<9x128x128xbf16, #tpu.memory_space<vmem>>, vector<1x128x128xbf16>
    %130 = vector.shape_cast %129 : vector<1x128x128xbf16> to vector<128x128xbf16>
    %cst_89 = arith.constant dense<0.000000e+00> : vector<32x128xf32>
    %131 = tpu.matmul %128, %130, %cst_89 {dimension_numbers = #tpu.dot_dimension_numbers<[1], [0], [0], [1], [0, 0, 1, 1], [], []>} : vector<32x128xbf16>, vector<128x128xbf16>, vector<32x128xf32> -> vector<32x128xf32>
    %c1_90 = arith.constant 1 : index
    %c0_91 = arith.constant 0 : index
    %c0_92 = arith.constant 0 : index
    %132 = vector.load %arg17[%c1_90, %c0_91, %c0_92] : memref<9x128x128xbf16, #tpu.memory_space<vmem>>, vector<1x128x128xbf16>
    %133 = vector.shape_cast %132 : vector<1x128x128xbf16> to vector<128x128xbf16>
    %cst_93 = arith.constant dense<0.000000e+00> : vector<32x128xf32>
    %134 = tpu.matmul %128, %133, %cst_93 {dimension_numbers = #tpu.dot_dimension_numbers<[1], [0], [0], [1], [0, 0, 1, 1], [], []>} : vector<32x128xbf16>, vector<128x128xbf16>, vector<32x128xf32> -> vector<32x128xf32>
    %c2_94 = arith.constant 2 : index
    %c0_95 = arith.constant 0 : index
    %c0_96 = arith.constant 0 : index
    %135 = vector.load %arg17[%c2_94, %c0_95, %c0_96] : memref<9x128x128xbf16, #tpu.memory_space<vmem>>, vector<1x128x128xbf16>
    %136 = vector.shape_cast %135 : vector<1x128x128xbf16> to vector<128x128xbf16>
    %cst_97 = arith.constant dense<0.000000e+00> : vector<32x128xf32>
    %137 = tpu.matmul %128, %136, %cst_97 {dimension_numbers = #tpu.dot_dimension_numbers<[1], [0], [0], [1], [0, 0, 1, 1], [], []>} : vector<32x128xbf16>, vector<128x128xbf16>, vector<32x128xf32> -> vector<32x128xf32>
    %c3_98 = arith.constant 3 : index
    %c0_99 = arith.constant 0 : index
    %c0_100 = arith.constant 0 : index
    %138 = vector.load %arg17[%c3_98, %c0_99, %c0_100] : memref<9x128x128xbf16, #tpu.memory_space<vmem>>, vector<1x128x128xbf16>
    %139 = vector.shape_cast %138 : vector<1x128x128xbf16> to vector<128x128xbf16>
    %cst_101 = arith.constant dense<0.000000e+00> : vector<32x128xf32>
    %140 = tpu.matmul %128, %139, %cst_101 {dimension_numbers = #tpu.dot_dimension_numbers<[1], [0], [0], [1], [0, 0, 1, 1], [], []>} : vector<32x128xbf16>, vector<128x128xbf16>, vector<32x128xf32> -> vector<32x128xf32>
    %c4_102 = arith.constant 4 : index
    %c0_103 = arith.constant 0 : index
    %c0_104 = arith.constant 0 : index
    %141 = vector.load %arg17[%c4_102, %c0_103, %c0_104] : memref<9x128x128xbf16, #tpu.memory_space<vmem>>, vector<1x128x128xbf16>
    %142 = vector.shape_cast %141 : vector<1x128x128xbf16> to vector<128x128xbf16>
    %cst_105 = arith.constant dense<0.000000e+00> : vector<32x128xf32>
    %143 = tpu.matmul %128, %142, %cst_105 {dimension_numbers = #tpu.dot_dimension_numbers<[1], [0], [0], [1], [0, 0, 1, 1], [], []>} : vector<32x128xbf16>, vector<128x128xbf16>, vector<32x128xf32> -> vector<32x128xf32>
    %c5_106 = arith.constant 5 : index
    %c0_107 = arith.constant 0 : index
    %c0_108 = arith.constant 0 : index
    %144 = vector.load %arg17[%c5_106, %c0_107, %c0_108] : memref<9x128x128xbf16, #tpu.memory_space<vmem>>, vector<1x128x128xbf16>
    %145 = vector.shape_cast %144 : vector<1x128x128xbf16> to vector<128x128xbf16>
    %cst_109 = arith.constant dense<0.000000e+00> : vector<32x128xf32>
    %146 = tpu.matmul %128, %145, %cst_109 {dimension_numbers = #tpu.dot_dimension_numbers<[1], [0], [0], [1], [0, 0, 1, 1], [], []>} : vector<32x128xbf16>, vector<128x128xbf16>, vector<32x128xf32> -> vector<32x128xf32>
    %c6_110 = arith.constant 6 : index
    %c0_111 = arith.constant 0 : index
    %c0_112 = arith.constant 0 : index
    %147 = vector.load %arg17[%c6_110, %c0_111, %c0_112] : memref<9x128x128xbf16, #tpu.memory_space<vmem>>, vector<1x128x128xbf16>
    %148 = vector.shape_cast %147 : vector<1x128x128xbf16> to vector<128x128xbf16>
    %cst_113 = arith.constant dense<0.000000e+00> : vector<32x128xf32>
    %149 = tpu.matmul %128, %148, %cst_113 {dimension_numbers = #tpu.dot_dimension_numbers<[1], [0], [0], [1], [0, 0, 1, 1], [], []>} : vector<32x128xbf16>, vector<128x128xbf16>, vector<32x128xf32> -> vector<32x128xf32>
    %c7_114 = arith.constant 7 : index
    %c0_115 = arith.constant 0 : index
    %c0_116 = arith.constant 0 : index
    %150 = vector.load %arg17[%c7_114, %c0_115, %c0_116] : memref<9x128x128xbf16, #tpu.memory_space<vmem>>, vector<1x128x128xbf16>
    %151 = vector.shape_cast %150 : vector<1x128x128xbf16> to vector<128x128xbf16>
    %cst_117 = arith.constant dense<0.000000e+00> : vector<32x128xf32>
    %152 = tpu.matmul %128, %151, %cst_117 {dimension_numbers = #tpu.dot_dimension_numbers<[1], [0], [0], [1], [0, 0, 1, 1], [], []>} : vector<32x128xbf16>, vector<128x128xbf16>, vector<32x128xf32> -> vector<32x128xf32>
    %c8_118 = arith.constant 8 : index
    %c0_119 = arith.constant 0 : index
    %c0_120 = arith.constant 0 : index
    %153 = vector.load %arg17[%c8_118, %c0_119, %c0_120] : memref<9x128x128xbf16, #tpu.memory_space<vmem>>, vector<1x128x128xbf16>
    %154 = vector.shape_cast %153 : vector<1x128x128xbf16> to vector<128x128xbf16>
    %cst_121 = arith.constant dense<0.000000e+00> : vector<32x128xf32>
    %155 = tpu.matmul %128, %154, %cst_121 {dimension_numbers = #tpu.dot_dimension_numbers<[1], [0], [0], [1], [0, 0, 1, 1], [], []>} : vector<32x128xbf16>, vector<128x128xbf16>, vector<32x128xf32> -> vector<32x128xf32>
    %156 = tpu.concatenate %131, %134, %137, %140, %143, %146, %149, %152, %155 in 0 : vector<32x128xf32>, vector<32x128xf32>, vector<32x128xf32>, vector<32x128xf32>, vector<32x128xf32>, vector<32x128xf32>, vector<32x128xf32>, vector<32x128xf32>, vector<32x128xf32> -> vector<288x128xf32>
    %157 = arith.truncf %156 : vector<288x128xf32> to vector<288x128xbf16>
    %c0_122 = arith.constant 0 : index
    %c0_123 = arith.constant 0 : index
    %158 = vector.load %arg18[%c0_122, %c0_123] : memref<128x288xbf16, #tpu.memory_space<vmem>>, vector<128x288xbf16>
    %cst_124 = arith.constant dense<0.000000e+00> : vector<128x128xf32>
    %159 = tpu.matmul %158, %157, %cst_124 {dimension_numbers = #tpu.dot_dimension_numbers<[1], [0], [0], [1], [0, 0, 1, 1], [], []>} : vector<128x288xbf16>, vector<288x128xbf16>, vector<128x128xf32> -> vector<128x128xf32>
    %160 = vector.extract_strided_slice %159 {offsets = [0, 0], sizes = [64, 128], strides = [1, 1]} : vector<128x128xf32> to vector<64x128xf32>
    %c0_125 = arith.constant 0 : index
    %c0_126 = arith.constant 0 : index
    %161 = vector.load %arg19[%c0_125, %c0_126] : memref<64x1xf32, #tpu.memory_space<vmem>>, vector<64x1xf32>
    %162 = vector.broadcast %161 : vector<64x1xf32> to vector<64x128xf32>
    %163 = arith.addf %160, %162 : vector<64x128xf32>
    %cst_127 = arith.constant 0.000000e+00 : f32
    %164 = vector.broadcast %cst_127 : f32 to vector<64x128xf32>
    %165 = arith.maximumf %163, %164 : vector<64x128xf32>
    %166 = vector.broadcast %127 : vector<1x128xf32> to vector<64x128xf32>
    %167 = arith.mulf %165, %166 : vector<64x128xf32>
    %c0_128 = arith.constant 0 : index
    %c0_129 = arith.constant 0 : index
    %168 = vector.load %arg21[%c0_128, %c0_129] : memref<64x576xbf16, #tpu.memory_space<vmem>>, vector<64x576xbf16>
    %c7_i32 = arith.constant 7 : i32
    %169 = tpu.dynamic_rotate %167 by %c7_i32 dim 1 : vector<64x128xf32>, i32 -> vector<64x128xf32>
    %c6_i32 = arith.constant 6 : i32
    %170 = tpu.dynamic_rotate %167 by %c6_i32 dim 1 : vector<64x128xf32>, i32 -> vector<64x128xf32>
    %c5_i32 = arith.constant 5 : i32
    %171 = tpu.dynamic_rotate %167 by %c5_i32 dim 1 : vector<64x128xf32>, i32 -> vector<64x128xf32>
    %c1_i32_130 = arith.constant 1 : i32
    %172 = tpu.dynamic_rotate %167 by %c1_i32_130 dim 1 : vector<64x128xf32>, i32 -> vector<64x128xf32>
    %c127_i32_131 = arith.constant 127 : i32
    %173 = tpu.dynamic_rotate %167 by %c127_i32_131 dim 1 : vector<64x128xf32>, i32 -> vector<64x128xf32>
    %c123_i32 = arith.constant 123 : i32
    %174 = tpu.dynamic_rotate %167 by %c123_i32 dim 1 : vector<64x128xf32>, i32 -> vector<64x128xf32>
    %c122_i32 = arith.constant 122 : i32
    %175 = tpu.dynamic_rotate %167 by %c122_i32 dim 1 : vector<64x128xf32>, i32 -> vector<64x128xf32>
    %c121_i32 = arith.constant 121 : i32
    %176 = tpu.dynamic_rotate %167 by %c121_i32 dim 1 : vector<64x128xf32>, i32 -> vector<64x128xf32>
    %177 = tpu.concatenate %169, %170, %171, %172, %167, %173, %174, %175, %176 in 0 : vector<64x128xf32>, vector<64x128xf32>, vector<64x128xf32>, vector<64x128xf32>, vector<64x128xf32>, vector<64x128xf32>, vector<64x128xf32>, vector<64x128xf32>, vector<64x128xf32> -> vector<576x128xf32>
    %178 = arith.truncf %177 : vector<576x128xf32> to vector<576x128xbf16>
    %cst_132 = arith.constant dense<0.000000e+00> : vector<64x128xf32>
    %179 = tpu.matmul %168, %178, %cst_132 {dimension_numbers = #tpu.dot_dimension_numbers<[1], [0], [0], [1], [0, 0, 1, 1], [], []>} : vector<64x576xbf16>, vector<576x128xbf16>, vector<64x128xf32> -> vector<64x128xf32>
    %180 = vector.extract_strided_slice %159 {offsets = [64, 0], sizes = [64, 128], strides = [1, 1]} : vector<128x128xf32> to vector<64x128xf32>
    %c0_133 = arith.constant 0 : index
    %c0_134 = arith.constant 0 : index
    %181 = vector.load %arg20[%c0_133, %c0_134] : memref<64x1xf32, #tpu.memory_space<vmem>>, vector<64x1xf32>
    %182 = vector.broadcast %181 : vector<64x1xf32> to vector<64x128xf32>
    %183 = arith.addf %180, %182 : vector<64x128xf32>
    %c0_135 = arith.constant 0 : index
    %c0_136 = arith.constant 0 : index
    %184 = vector.load %arg22[%c0_135, %c0_136] : memref<64x1xf32, #tpu.memory_space<vmem>>, vector<64x1xf32>
    %185 = vector.broadcast %184 : vector<64x1xf32> to vector<64x128xf32>
    %186 = arith.addf %179, %185 : vector<64x128xf32>
    %187 = arith.addf %186, %183 : vector<64x128xf32>
    %cst_137 = arith.constant 0.000000e+00 : f32
    %188 = vector.broadcast %cst_137 : f32 to vector<64x128xf32>
    %189 = arith.maximumf %187, %188 : vector<64x128xf32>
    %190 = vector.broadcast %127 : vector<1x128xf32> to vector<64x128xf32>
    %191 = arith.mulf %189, %190 : vector<64x128xf32>
    %c0_138 = arith.constant 0 : index
    %c0_139 = arith.constant 0 : index
    %c0_140 = arith.constant 0 : index
    %192 = vector.load %arg23[%c0_138, %c0_139, %c0_140] : memref<1x64x128xf32, #tpu.memory_space<vmem>>, vector<1x64x128xf32>
    %193 = vector.shape_cast %192 : vector<1x64x128xf32> to vector<64x128xf32>
    %194 = vector.shape_cast %191 : vector<64x128xf32> to vector<1x64x128xf32>
    tpu.vector_store %arg23[%c0_138, %c0_139, %c0_140], %194 {strides = array<i32>} : memref<1x64x128xf32, #tpu.memory_space<vmem>>, vector<1x64x128xf32>,
    return
  }
  func.func @transform_0(%arg0: i32) -> (i32, i32, i32) {
    %c0_i32 = arith.constant 0 : i32
    %c0_i32_0 = arith.constant 0 : i32
    %c0_i32_1 = arith.constant 0 : i32
    return %arg0, %c0_i32, %c0_i32_0 : i32, i32, i32
  }
  func.func @transform_1(%arg0: i32) -> (i32, i32) {
    %c0_i32 = arith.constant 0 : i32
    %c0_i32_0 = arith.constant 0 : i32
    %c0_i32_1 = arith.constant 0 : i32
    return %c0_i32, %c0_i32_0 : i32, i32
  }
  func.func @transform_2(%arg0: i32) -> (i32, i32) {
    %c0_i32 = arith.constant 0 : i32
    %c0_i32_0 = arith.constant 0 : i32
    %c0_i32_1 = arith.constant 0 : i32
    return %c0_i32, %c0_i32_0 : i32, i32
  }
  func.func @transform_3(%arg0: i32) -> (i32, i32) {
    %c0_i32 = arith.constant 0 : i32
    %c0_i32_0 = arith.constant 0 : i32
    %c0_i32_1 = arith.constant 0 : i32
    return %c0_i32, %c0_i32_0 : i32, i32
  }
  func.func @transform_4(%arg0: i32) -> (i32, i32) {
    %c0_i32 = arith.constant 0 : i32
    %c0_i32_0 = arith.constant 0 : i32
    %c0_i32_1 = arith.constant 0 : i32
    return %c0_i32, %c0_i32_0 : i32, i32
  }
  func.func @transform_5(%arg0: i32) -> (i32, i32) {
    %c0_i32 = arith.constant 0 : i32
    %c0_i32_0 = arith.constant 0 : i32
    %c0_i32_1 = arith.constant 0 : i32
    return %c0_i32, %c0_i32_0 : i32, i32
  }
  func.func @transform_6(%arg0: i32) -> (i32, i32) {
    %c0_i32 = arith.constant 0 : i32
    %c0_i32_0 = arith.constant 0 : i32
    %c0_i32_1 = arith.constant 0 : i32
    return %c0_i32, %c0_i32_0 : i32, i32
  }
  func.func @transform_7(%arg0: i32) -> (i32, i32) {
    %c0_i32 = arith.constant 0 : i32
    %c0_i32_0 = arith.constant 0 : i32
    %c0_i32_1 = arith.constant 0 : i32
    return %c0_i32, %c0_i32_0 : i32, i32
  }
  func.func @transform_8(%arg0: i32) -> (i32, i32) {
    %c0_i32 = arith.constant 0 : i32
    %c0_i32_0 = arith.constant 0 : i32
    %c0_i32_1 = arith.constant 0 : i32
    return %c0_i32, %c0_i32_0 : i32, i32
  }
  func.func @transform_9(%arg0: i32) -> (i32, i32) {
    %c0_i32 = arith.constant 0 : i32
    %c0_i32_0 = arith.constant 0 : i32
    %c0_i32_1 = arith.constant 0 : i32
    return %c0_i32, %c0_i32_0 : i32, i32
  }
  func.func @transform_10(%arg0: i32) -> (i32, i32, i32) {
    %c0_i32 = arith.constant 0 : i32
    %c0_i32_0 = arith.constant 0 : i32
    %c0_i32_1 = arith.constant 0 : i32
    %c0_i32_2 = arith.constant 0 : i32
    return %c0_i32, %c0_i32_0, %c0_i32_1 : i32, i32, i32
  }
  func.func @transform_11(%arg0: i32) -> (i32, i32) {
    %c0_i32 = arith.constant 0 : i32
    %c0_i32_0 = arith.constant 0 : i32
    %c0_i32_1 = arith.constant 0 : i32
    return %c0_i32, %c0_i32_0 : i32, i32
  }
  func.func @transform_12(%arg0: i32) -> (i32, i32) {
    %c0_i32 = arith.constant 0 : i32
    %c0_i32_0 = arith.constant 0 : i32
    %c0_i32_1 = arith.constant 0 : i32
    return %c0_i32, %c0_i32_0 : i32, i32
  }
  func.func @transform_13(%arg0: i32) -> (i32, i32) {
    %c0_i32 = arith.constant 0 : i32
    %c0_i32_0 = arith.constant 0 : i32
    %c0_i32_1 = arith.constant 0 : i32
    return %c0_i32, %c0_i32_0 : i32, i32
  }
  func.func @transform_14(%arg0: i32) -> (i32, i32) {
    %c0_i32 = arith.constant 0 : i32
    %c0_i32_0 = arith.constant 0 : i32
    %c0_i32_1 = arith.constant 0 : i32
    return %c0_i32, %c0_i32_0 : i32, i32
  }
  func.func @transform_15(%arg0: i32) -> (i32, i32) {
    %c0_i32 = arith.constant 0 : i32
    %c0_i32_0 = arith.constant 0 : i32
    %c0_i32_1 = arith.constant 0 : i32
    return %c0_i32, %c0_i32_0 : i32, i32
  }
  func.func @transform_16(%arg0: i32) -> (i32, i32, i32) {
    %c0_i32 = arith.constant 0 : i32
    %c0_i32_0 = arith.constant 0 : i32
    %c0_i32_1 = arith.constant 0 : i32
    %c0_i32_2 = arith.constant 0 : i32
    return %c0_i32, %c0_i32_0, %c0_i32_1 : i32, i32, i32
  }
  func.func @transform_17(%arg0: i32) -> (i32, i32) {
    %c0_i32 = arith.constant 0 : i32
    %c0_i32_0 = arith.constant 0 : i32
    %c0_i32_1 = arith.constant 0 : i32
    return %c0_i32, %c0_i32_0 : i32, i32
  }
  func.func @transform_18(%arg0: i32) -> (i32, i32) {
    %c0_i32 = arith.constant 0 : i32
    %c0_i32_0 = arith.constant 0 : i32
    %c0_i32_1 = arith.constant 0 : i32
    return %c0_i32, %c0_i32_0 : i32, i32
  }
  func.func @transform_19(%arg0: i32) -> (i32, i32) {
    %c0_i32 = arith.constant 0 : i32
    %c0_i32_0 = arith.constant 0 : i32
    %c0_i32_1 = arith.constant 0 : i32
    return %c0_i32, %c0_i32_0 : i32, i32
  }
  func.func @transform_20(%arg0: i32) -> (i32, i32) {
    %c0_i32 = arith.constant 0 : i32
    %c0_i32_0 = arith.constant 0 : i32
    %c0_i32_1 = arith.constant 0 : i32
    return %c0_i32, %c0_i32_0 : i32, i32
  }
  func.func @transform_21(%arg0: i32) -> (i32, i32) {
    %c0_i32 = arith.constant 0 : i32
    %c0_i32_0 = arith.constant 0 : i32
    %c0_i32_1 = arith.constant 0 : i32
    return %c0_i32, %c0_i32_0 : i32, i32
  }
  func.func @transform_22(%arg0: i32) -> (i32, i32, i32) {
    %c0_i32 = arith.constant 0 : i32
    %c0_i32_0 = arith.constant 0 : i32
    %c0_i32_1 = arith.constant 0 : i32
    return %arg0, %c0_i32, %c0_i32_0 : i32, i32, i32
  }
}

</mosaic_0001>

<llo_original>
// kernel: _lambda_.1
$region0: #{_lambda_.1}
  #allocation0 [shape = 'u32[]', space=smem, size = 0x4, offset = 0x4, fixed_abs, tag = 'smem constant byte address 0x4 - core index']
  #allocation1 [shape = 'u32[144,128]{1,0:T(1,128)}', space=vmem, size = 0x12000, scoped, tag = 'internal scratch']
  %s0 = inlined_call_operand.vmem [shape: f32[2,16,384], index: 0, kind: input, shape index: {}]
  %s1 = inlined_call_operand.vmem [shape: f32[1,384], index: 1, kind: input, shape index: {}]
  %s2 = inlined_call_operand.vmem [shape: f32[1,128], index: 2, kind: input, shape index: {}]
  %s3 = inlined_call_operand.vmem [shape: f32[1,128], index: 3, kind: input, shape index: {}]
  %s4 = inlined_call_operand.vmem [shape: bf16[16,144], index: 4, kind: input, shape index: {}]
  %s5 = inlined_call_operand.vmem [shape: f32[16,1], index: 5, kind: input, shape index: {}, may-alias: {5,7,9}]
  %s6 = inlined_call_operand.vmem [shape: bf16[16,144], index: 6, kind: input, shape index: {}]
  %s7 = inlined_call_operand.vmem [shape: f32[16,1], index: 7, kind: input, shape index: {}, may-alias: {5,7,9}]
  %s8 = inlined_call_operand.vmem [shape: bf16[16,144], index: 8, kind: input, shape index: {}]
  %s9 = inlined_call_operand.vmem [shape: f32[16,1], index: 9, kind: input, shape index: {}, may-alias: {5,7,9}]
  %s10 = inlined_call_operand.vmem [shape: bf16[9,384,128], index: 10, kind: input, shape index: {}]
  %s11 = inlined_call_operand.vmem [shape: bf16[64,144], index: 11, kind: input, shape index: {}]
  %s12 = inlined_call_operand.vmem [shape: f32[32,1], index: 12, kind: input, shape index: {}, may-alias: {12,13,15}]
  %s13 = inlined_call_operand.vmem [shape: f32[32,1], index: 13, kind: input, shape index: {}, may-alias: {12,13,15}]
  %s14 = inlined_call_operand.vmem [shape: bf16[32,288], index: 14, kind: input, shape index: {}]
  %s15 = inlined_call_operand.vmem [shape: f32[32,1], index: 15, kind: input, shape index: {}, may-alias: {12,13,15}]
  %s16 = inlined_call_operand.hbm [shape: bf16[9,128,128], index: 16, kind: input, shape index: {}]
  %s17 = inlined_call_operand.vmem [shape: bf16[128,288], index: 17, kind: input, shape index: {}]
  %s18 = inlined_call_operand.vmem [shape: f32[64,1], index: 18, kind: input, shape index: {}, may-alias: {18,19,21}]
  %s19 = inlined_call_operand.vmem [shape: f32[64,1], index: 19, kind: input, shape index: {}, may-alias: {18,19,21}]
  %s20 = inlined_call_operand.vmem [shape: bf16[64,576], index: 20, kind: input, shape index: {}]
  %s21 = inlined_call_operand.vmem [shape: f32[64,1], index: 21, kind: input, shape index: {}, may-alias: {18,19,21}]
  %s22 = inlined_call_operand.vmem [shape: f32[2,64,128], index: 22, kind: output, shape index: {}]
  %s23 = sld [smem:[#allocation0]]
  $region125: #{_lambda_.1} parent=0
    _
  %s25 = ssub.s32 1, %s23
  %s26 = scalar_select 0, %s25, %s23
  $region1: #{_lambda_.1} parent=0
    #allocation2 [shape = 'u8[294912]{0}', space=vmem, size = 0x48000, scoped, tag = 'input window, operand 16, single buffered']
    #allocation3 [shape = 's32[2]{0}', space=sflag, size = 0x8, scoped, tag = 'scoped memory for _lambda_.1']
    %27 = vsyncpa [#allocation3], 0
    loop: start=0, step=1, limit=4
    $region2: #{_lambda_.1} parent=1 // loop_pre_header
      _
    $region3: #{_lambda_.1} parent=1 // loop_header
      %s29 = sphi 0, %s33
      %p30 = scmp.ge.s32.totalorder %s29, 4
      %s39 = sphi 0, %s41
      %s42 = sphi 0, %s39
      %s43 = sphi 0, %s42
      %s59 = sphi 0, %s43
      %s63 = sphi 0, %s63
      %s65 = sphi 0, %s63
      %s66 = sphi 0, %s65
      %s80 = sphi 0, %s66
      %s84 = sphi 0, %s84
      %s86 = sphi 0, %s84
      %s87 = sphi 0, %s86
      %s101 = sphi 0, %s87
      %s105 = sphi 0, %s105
      %s107 = sphi 0, %s105
      %s108 = sphi 0, %s107
      %s122 = sphi 0, %s108
      %s126 = sphi 0, %s126
      %s128 = sphi 0, %s126
      %s129 = sphi 0, %s128
      %s143 = sphi 0, %s129
      %s147 = sphi 0, %s147
      %s149 = sphi 0, %s147
      %s150 = sphi 0, %s149
      %s164 = sphi 0, %s150
      %s168 = sphi 0, %s168
      %s170 = sphi 0, %s168
      %s171 = sphi 0, %s170
      %s185 = sphi 0, %s171
      %s189 = sphi 0, %s189
      %s191 = sphi 0, %s189
      %s192 = sphi 0, %s191
      %s206 = sphi 0, %s192
      %s210 = sphi 0, %s210
      %s212 = sphi 0, %s210
      %s213 = sphi 0, %s212
      %s227 = sphi 0, %s213
      %s231 = sphi 0, %s231
      %s233 = sphi 0, %s231
      %s234 = sphi 0, %s233
      %s248 = sphi 0, %s234
      %s252 = sphi 0, %s252
      %s254 = sphi 0, %s252
      %s255 = sphi 0, %s254
      %s269 = sphi 0, %s255
      %s273 = sphi 0, %s273
      %s275 = sphi 0, %s273
      %s276 = sphi 0, %s275
      %s290 = sphi 0, %s276
      %s294 = sphi 0, %s294
      %s296 = sphi 0, %s294
      %s297 = sphi 0, %s296
      %s311 = sphi 0, %s297
      %s315 = sphi 0, %s315
      %s317 = sphi 0, %s315
      %s318 = sphi 0, %s317
      %s332 = sphi 0, %s318
      %s336 = sphi 0, %s336
      %s338 = sphi 0, %s336
      %s339 = sphi 0, %s338
      %s353 = sphi 0, %s339
      %s357 = sphi 0, %s357
      %s359 = sphi 0, %s357
      %s360 = sphi 0, %s359
      %s374 = sphi 0, %s360
      %s378 = sphi 0, %s378
      %s380 = sphi 0, %s378
      %s381 = sphi 0, %s380
      %s395 = sphi 0, %s381
      %s399 = sphi 0, %s399
      %s401 = sphi 0, %s399
      %s402 = sphi 0, %s401
      %s416 = sphi 0, %s402
      %s420 = sphi 0, %s420
      %s422 = sphi 0, %s420
      %s423 = sphi 0, %s422
      %s437 = sphi 0, %s423
      %s441 = sphi 0, %s441
      %s443 = sphi 0, %s441
      %s444 = sphi 0, %s443
      %s458 = sphi 0, %s444
      %s462 = sphi 0, %s462
      %s464 = sphi 0, %s462
      %s465 = sphi 0, %s464
      %s479 = sphi 0, %s465
      %s483 = sphi 0, %s483
      %s485 = sphi 0, %s483
      %s486 = sphi 0, %s485
      %s500 = sphi 0, %s486
      %s506 = sphi 0, %s508
      %s509 = sphi 0, %s506
      %s510 = sphi 0, %s509
      %s526 = sphi 0, %s510
    $region4: #{_lambda_.1} parent=1 // loop_header_branch
      %32 = sbr.rel (%p30) target = $region8
    $region5: #{_lambda_.1} parent=1 // loop_body
      %s34 = ssub.s32 %s29, 1
      %s35 = ssub.s32 %s29, 2
      %s36 = sadd.s32 %s29, 1
      %s37 = ssub.s32 %s29, %s36
      %p38 = scmp.eq.s32.totalorder %s37, 0
      %s40 = sadd.s32 %s39, 1
      %s41 = scalar_select %p38, %s39, %s40
      %p44 = pneg %p38
      %p45 = scmp.eq.s32.totalorder %s29, 1
      %p46 = por %p44, %p45
      %p47 = scmp.ne.s32.totalorder %s39, %s42
      %p48 = scmp.eq.s32.totalorder %s29, 0
      %p49 = por %p47, %p48
      %p50 = scmp.ne.s32.totalorder %s39, %s42
      %p51 = scmp.eq.s32.totalorder %s34, 1
      %p52 = por %p50, %p51
      %p53 = scmp.ne.s32.totalorder %s42, %s43
      %p54 = scmp.eq.s32.totalorder %s34, 0
      %p55 = por %p53, %p54
      %p56 = scmp.ne.s32.totalorder %s42, %s43
      %p57 = scmp.eq.s32.totalorder %s35, 1
      %p58 = por %p56, %p57
      %p60 = scmp.ne.s32.totalorder %s43, %s59
      %p61 = scmp.eq.s32.totalorder %s35, 0
      %p62 = por %p60, %p61
      %s64 = sadd.s32 %s63, 1
      %p67 = scmp.eq.s32.totalorder %s29, 1
      %p68 = scmp.ne.s32.totalorder %s63, %s65
      %p69 = scmp.eq.s32.totalorder %s29, 0
      %p70 = por %p68, %p69
      %p71 = scmp.ne.s32.totalorder %s63, %s65
      %p72 = scmp.eq.s32.totalorder %s34, 1
      %p73 = por %p71, %p72
      %p74 = scmp.ne.s32.totalorder %s65, %s66
      %p75 = scmp.eq.s32.totalorder %s34, 0
      %p76 = por %p74, %p75
      %p77 = scmp.ne.s32.totalorder %s65, %s66
      %p78 = scmp.eq.s32.totalorder %s35, 1
      %p79 = por %p77, %p78
      %p81 = scmp.ne.s32.totalorder %s66, %s80
      %p82 = scmp.eq.s32.totalorder %s35, 0
      %p83 = por %p81, %p82
      %s85 = sadd.s32 %s84, 1
      %p88 = scmp.eq.s32.totalorder %s29, 1
      %p89 = scmp.ne.s32.totalorder %s84, %s86
      %p90 = scmp.eq.s32.totalorder %s29, 0
      %p91 = por %p89, %p90
      %p92 = scmp.ne.s32.totalorder %s84, %s86
      %p93 = scmp.eq.s32.totalorder %s34, 1
      %p94 = por %p92, %p93
      %p95 = scmp.ne.s32.totalorder %s86, %s87
      %p96 = scmp.eq.s32.totalorder %s34, 0
      %p97 = por %p95, %p96
      %p98 = scmp.ne.s32.totalorder %s86, %s87
      %p99 = scmp.eq.s32.totalorder %s35, 1
      %p100 = por %p98, %p99
      %p102 = scmp.ne.s32.totalorder %s87, %s101
      %p103 = scmp.eq.s32.totalorder %s35, 0
      %p104 = por %p102, %p103
      %s106 = sadd.s32 %s105, 1
      %p109 = scmp.eq.s32.totalorder %s29, 1
      %p110 = scmp.ne.s32.totalorder %s105, %s107
      %p111 = scmp.eq.s32.totalorder %s29, 0
      %p112 = por %p110, %p111
      %p113 = scmp.ne.s32.totalorder %s105, %s107
      %p114 = scmp.eq.s32.totalorder %s34, 1
      %p115 = por %p113, %p114
      %p116 = scmp.ne.s32.totalorder %s107, %s108
      %p117 = scmp.eq.s32.totalorder %s34, 0
      %p118 = por %p116, %p117
      %p119 = scmp.ne.s32.totalorder %s107, %s108
      %p120 = scmp.eq.s32.totalorder %s35, 1
      %p121 = por %p119, %p120
      %p123 = scmp.ne.s32.totalorder %s108, %s122
      %p124 = scmp.eq.s32.totalorder %s35, 0
      %p125 = por %p123, %p124
      %s127 = sadd.s32 %s126, 1
      %p130 = scmp.eq.s32.totalorder %s29, 1
      %p131 = scmp.ne.s32.totalorder %s126, %s128
      %p132 = scmp.eq.s32.totalorder %s29, 0
      %p133 = por %p131, %p132
      %p134 = scmp.ne.s32.totalorder %s126, %s128
      %p135 = scmp.eq.s32.totalorder %s34, 1
      %p136 = por %p134, %p135
      %p137 = scmp.ne.s32.totalorder %s128, %s129
      %p138 = scmp.eq.s32.totalorder %s34, 0
      %p139 = por %p137, %p138
      %p140 = scmp.ne.s32.totalorder %s128, %s129
      %p141 = scmp.eq.s32.totalorder %s35, 1
      %p142 = por %p140, %p141
      %p144 = scmp.ne.s32.totalorder %s129, %s143
      %p145 = scmp.eq.s32.totalorder %s35, 0
      %p146 = por %p144, %p145
      %s148 = sadd.s32 %s147, 1
      %p151 = scmp.eq.s32.totalorder %s29, 1
      %p152 = scmp.ne.s32.totalorder %s147, %s149
      %p153 = scmp.eq.s32.totalorder %s29, 0
      %p154 = por %p152, %p153
      %p155 = scmp.ne.s32.totalorder %s147, %s149
      %p156 = scmp.eq.s32.totalorder %s34, 1
      %p157 = por %p155, %p156
      %p158 = scmp.ne.s32.totalorder %s149, %s150
      %p159 = scmp.eq.s32.totalorder %s34, 0
      %p160 = por %p158, %p159
      %p161 = scmp.ne.s32.totalorder %s149, %s150
      %p162 = scmp.eq.s32.totalorder %s35, 1
      %p163 = por %p161, %p162
      %p165 = scmp.ne.s32.totalorder %s150, %s164
      %p166 = scmp.eq.s32.totalorder %s35, 0
      %p167 = por %p165, %p166
      %s169 = sadd.s32 %s168, 1
      %p172 = scmp.eq.s32.totalorder %s29, 1
      %p173 = scmp.ne.s32.totalorder %s168, %s170
      %p174 = scmp.eq.s32.totalorder %s29, 0
      %p175 = por %p173, %p174
      %p176 = scmp.ne.s32.totalorder %s168, %s170
      %p177 = scmp.eq.s32.totalorder %s34, 1
      %p178 = por %p176, %p177
      %p179 = scmp.ne.s32.totalorder %s170, %s171
      %p180 = scmp.eq.s32.totalorder %s34, 0
      %p181 = por %p179, %p180
      %p182 = scmp.ne.s32.totalorder %s170, %s171
      %p183 = scmp.eq.s32.totalorder %s35, 1
      %p184 = por %p182, %p183
      %p186 = scmp.ne.s32.totalorder %s171, %s185
      %p187 = scmp.eq.s32.totalorder %s35, 0
      %p188 = por %p186, %p187
      %s190 = sadd.s32 %s189, 1
      %p193 = scmp.eq.s32.totalorder %s29, 1
      %p194 = scmp.ne.s32.totalorder %s189, %s191
      %p195 = scmp.eq.s32.totalorder %s29, 0
      %p196 = por %p194, %p195
      %p197 = scmp.ne.s32.totalorder %s189, %s191
      %p198 = scmp.eq.s32.totalorder %s34, 1
      %p199 = por %p197, %p198
      %p200 = scmp.ne.s32.totalorder %s191, %s192
      %p201 = scmp.eq.s32.totalorder %s34, 0
      %p202 = por %p200, %p201
      %p203 = scmp.ne.s32.totalorder %s191, %s192
      %p204 = scmp.eq.s32.totalorder %s35, 1
      %p205 = por %p203, %p204
      %p207 = scmp.ne.s32.totalorder %s192, %s206
      %p208 = scmp.eq.s32.totalorder %s35, 0
      %p209 = por %p207, %p208
      %s211 = sadd.s32 %s210, 1
      %p214 = scmp.eq.s32.totalorder %s29, 1
      %p215 = scmp.ne.s32.totalorder %s210, %s212
      %p216 = scmp.eq.s32.totalorder %s29, 0
      %p217 = por %p215, %p216
      %p218 = scmp.ne.s32.totalorder %s210, %s212
      %p219 = scmp.eq.s32.totalorder %s34, 1
      %p220 = por %p218, %p219
      %p221 = scmp.ne.s32.totalorder %s212, %s213
      %p222 = scmp.eq.s32.totalorder %s34, 0
      %p223 = por %p221, %p222
      %p224 = scmp.ne.s32.totalorder %s212, %s213
      %p225 = scmp.eq.s32.totalorder %s35, 1
      %p226 = por %p224, %p225
      %p228 = scmp.ne.s32.totalorder %s213, %s227
      %p229 = scmp.eq.s32.totalorder %s35, 0
      %p230 = por %p228, %p229
      %s232 = sadd.s32 %s231, 1
      %p235 = scmp.eq.s32.totalorder %s29, 1
      %p236 = scmp.ne.s32.totalorder %s231, %s233
      %p237 = scmp.eq.s32.totalorder %s29, 0
      %p238 = por %p236, %p237
      %p239 = scmp.ne.s32.totalorder %s231, %s233
      %p240 = scmp.eq.s32.totalorder %s34, 1
      %p241 = por %p239, %p240
      %p242 = scmp.ne.s32.totalorder %s233, %s234
      %p243 = scmp.eq.s32.totalorder %s34, 0
      %p244 = por %p242, %p243
      %p245 = scmp.ne.s32.totalorder %s233, %s234
      %p246 = scmp.eq.s32.totalorder %s35, 1
      %p247 = por %p245, %p246
      %p249 = scmp.ne.s32.totalorder %s234, %s248
      %p250 = scmp.eq.s32.totalorder %s35, 0
      %p251 = por %p249, %p250
      %s253 = sadd.s32 %s252, 1
      %p256 = scmp.eq.s32.totalorder %s29, 1
      %p257 = scmp.ne.s32.totalorder %s252, %s254
      %p258 = scmp.eq.s32.totalorder %s29, 0
      %p259 = por %p257, %p258
      %p260 = scmp.ne.s32.totalorder %s252, %s254
      %p261 = scmp.eq.s32.totalorder %s34, 1
      %p262 = por %p260, %p261
      %p263 = scmp.ne.s32.totalorder %s254, %s255
      %p264 = scmp.eq.s32.totalorder %s34, 0
      %p265 = por %p263, %p264
      %p266 = scmp.ne.s32.totalorder %s254, %s255
      %p267 = scmp.eq.s32.totalorder %s35, 1
      %p268 = por %p266, %p267
      %p270 = scmp.ne.s32.totalorder %s255, %s269
      %p271 = scmp.eq.s32.totalorder %s35, 0
      %p272 = por %p270, %p271
      %s274 = sadd.s32 %s273, 1
      %p277 = scmp.eq.s32.totalorder %s29, 1
      %p278 = scmp.ne.s32.totalorder %s273, %s275
      %p279 = scmp.eq.s32.totalorder %s29, 0
      %p280 = por %p278, %p279
      %p281 = scmp.ne.s32.totalorder %s273, %s275
      %p282 = scmp.eq.s32.totalorder %s34, 1
      %p283 = por %p281, %p282
      %p284 = scmp.ne.s32.totalorder %s275, %s276
      %p285 = scmp.eq.s32.totalorder %s34, 0
      %p286 = por %p284, %p285
      %p287 = scmp.ne.s32.totalorder %s275, %s276
      %p288 = scmp.eq.s32.totalorder %s35, 1
      %p289 = por %p287, %p288
      %p291 = scmp.ne.s32.totalorder %s276, %s290
      %p292 = scmp.eq.s32.totalorder %s35, 0
      %p293 = por %p291, %p292
      %s295 = sadd.s32 %s294, 1
      %p298 = scmp.eq.s32.totalorder %s29, 1
      %p299 = scmp.ne.s32.totalorder %s294, %s296
      %p300 = scmp.eq.s32.totalorder %s29, 0
      %p301 = por %p299, %p300
      %p302 = scmp.ne.s32.totalorder %s294, %s296
      %p303 = scmp.eq.s32.totalorder %s34, 1
      %p304 = por %p302, %p303
      %p305 = scmp.ne.s32.totalorder %s296, %s297
      %p306 = scmp.eq.s32.totalorder %s34, 0
      %p307 = por %p305, %p306
      %p308 = scmp.ne.s32.totalorder %s296, %s297
      %p309 = scmp.eq.s32.totalorder %s35, 1
      %p310 = por %p308, %p309
      %p312 = scmp.ne.s32.totalorder %s297, %s311
      %p313 = scmp.eq.s32.totalorder %s35, 0
      %p314 = por %p312, %p313
      %s316 = sadd.s32 %s315, 1
      %p319 = scmp.eq.s32.totalorder %s29, 1
      %p320 = scmp.ne.s32.totalorder %s315, %s317
      %p321 = scmp.eq.s32.totalorder %s29, 0
      %p322 = por %p320, %p321
      %p323 = scmp.ne.s32.totalorder %s315, %s317
      %p324 = scmp.eq.s32.totalorder %s34, 1
      %p325 = por %p323, %p324
      %p326 = scmp.ne.s32.totalorder %s317, %s318
      %p327 = scmp.eq.s32.totalorder %s34, 0
      %p328 = por %p326, %p327
      %p329 = scmp.ne.s32.totalorder %s317, %s318
      %p330 = scmp.eq.s32.totalorder %s35, 1
      %p331 = por %p329, %p330
      %p333 = scmp.ne.s32.totalorder %s318, %s332
      %p334 = scmp.eq.s32.totalorder %s35, 0
      %p335 = por %p333, %p334
      %s337 = sadd.s32 %s336, 1
      %p340 = scmp.eq.s32.totalorder %s29, 1
      %p341 = scmp.ne.s32.totalorder %s336, %s338
      %p342 = scmp.eq.s32.totalorder %s29, 0
      %p343 = por %p341, %p342
      %p344 = scmp.ne.s32.totalorder %s336, %s338
      %p345 = scmp.eq.s32.totalorder %s34, 1
      %p346 = por %p344, %p345
      %p347 = scmp.ne.s32.totalorder %s338, %s339
      %p348 = scmp.eq.s32.totalorder %s34, 0
      %p349 = por %p347, %p348
      %p350 = scmp.ne.s32.totalorder %s338, %s339
      %p351 = scmp.eq.s32.totalorder %s35, 1
      %p352 = por %p350, %p351
      %p354 = scmp.ne.s32.totalorder %s339, %s353
      %p355 = scmp.eq.s32.totalorder %s35, 0
      %p356 = por %p354, %p355
      %s358 = sadd.s32 %s357, 1
      %p361 = scmp.eq.s32.totalorder %s29, 1
      %p362 = scmp.ne.s32.totalorder %s357, %s359
      %p363 = scmp.eq.s32.totalorder %s29, 0
      %p364 = por %p362, %p363
      %p365 = scmp.ne.s32.totalorder %s357, %s359
      %p366 = scmp.eq.s32.totalorder %s34, 1
      %p367 = por %p365, %p366
      %p368 = scmp.ne.s32.totalorder %s359, %s360
      %p369 = scmp.eq.s32.totalorder %s34, 0
      %p370 = por %p368, %p369
      %p371 = scmp.ne.s32.totalorder %s359, %s360
      %p372 = scmp.eq.s32.totalorder %s35, 1
      %p373 = por %p371, %p372
      %p375 = scmp.ne.s32.totalorder %s360, %s374
      %p376 = scmp.eq.s32.totalorder %s35, 0
      %p377 = por %p375, %p376
      %s379 = sadd.s32 %s378, 1
      %p382 = scmp.eq.s32.totalorder %s29, 1
      %p383 = scmp.ne.s32.totalorder %s378, %s380
      %p384 = scmp.eq.s32.totalorder %s29, 0
      %p385 = por %p383, %p384
      %p386 = scmp.ne.s32.totalorder %s378, %s380
      %p387 = scmp.eq.s32.totalorder %s34, 1
      %p388 = por %p386, %p387
      %p389 = scmp.ne.s32.totalorder %s380, %s381
      %p390 = scmp.eq.s32.totalorder %s34, 0
      %p391 = por %p389, %p390
      %p392 = scmp.ne.s32.totalorder %s380, %s381
      %p393 = scmp.eq.s32.totalorder %s35, 1
      %p394 = por %p392, %p393
      %p396 = scmp.ne.s32.totalorder %s381, %s395
      %p397 = scmp.eq.s32.totalorder %s35, 0
      %p398 = por %p396, %p397
      %s400 = sadd.s32 %s399, 1
      %p403 = scmp.eq.s32.totalorder %s29, 1
      %p404 = scmp.ne.s32.totalorder %s399, %s401
      %p405 = scmp.eq.s32.totalorder %s29, 0
      %p406 = por %p404, %p405
      %p407 = scmp.ne.s32.totalorder %s399, %s401
      %p408 = scmp.eq.s32.totalorder %s34, 1
      %p409 = por %p407, %p408
      %p410 = scmp.ne.s32.totalorder %s401, %s402
      %p411 = scmp.eq.s32.totalorder %s34, 0
      %p412 = por %p410, %p411
      %p413 = scmp.ne.s32.totalorder %s401, %s402
      %p414 = scmp.eq.s32.totalorder %s35, 1
      %p415 = por %p413, %p414
      %p417 = scmp.ne.s32.totalorder %s402, %s416
      %p418 = scmp.eq.s32.totalorder %s35, 0
      %p419 = por %p417, %p418
      %s421 = sadd.s32 %s420, 1
      %p424 = scmp.eq.s32.totalorder %s29, 1
      %p425 = scmp.ne.s32.totalorder %s420, %s422
      %p426 = scmp.eq.s32.totalorder %s29, 0
      %p427 = por %p425, %p426
      %p428 = scmp.ne.s32.totalorder %s420, %s422
      %p429 = scmp.eq.s32.totalorder %s34, 1
      %p430 = por %p428, %p429
      %p431 = scmp.ne.s32.totalorder %s422, %s423
      %p432 = scmp.eq.s32.totalorder %s34, 0
      %p433 = por %p431, %p432
      %p434 = scmp.ne.s32.totalorder %s422, %s423
      %p435 = scmp.eq.s32.totalorder %s35, 1
      %p436 = por %p434, %p435
      %p438 = scmp.ne.s32.totalorder %s423, %s437
      %p439 = scmp.eq.s32.totalorder %s35, 0
      %p440 = por %p438, %p439
      %s442 = sadd.s32 %s441, 1
      %p445 = scmp.eq.s32.totalorder %s29, 1
      %p446 = scmp.ne.s32.totalorder %s441, %s443
      %p447 = scmp.eq.s32.totalorder %s29, 0
      %p448 = por %p446, %p447
      %p449 = scmp.ne.s32.totalorder %s441, %s443
      %p450 = scmp.eq.s32.totalorder %s34, 1
      %p451 = por %p449, %p450
      %p452 = scmp.ne.s32.totalorder %s443, %s444
      %p453 = scmp.eq.s32.totalorder %s34, 0
      %p454 = por %p452, %p453
      %p455 = scmp.ne.s32.totalorder %s443, %s444
      %p456 = scmp.eq.s32.totalorder %s35, 1
      %p457 = por %p455, %p456
      %p459 = scmp.ne.s32.totalorder %s444, %s458
      %p460 = scmp.eq.s32.totalorder %s35, 0
      %p461 = por %p459, %p460
      %s463 = sadd.s32 %s462, 1
      %p466 = scmp.eq.s32.totalorder %s29, 1
      %p467 = scmp.ne.s32.totalorder %s462, %s464
      %p468 = scmp.eq.s32.totalorder %s29, 0
      %p469 = por %p467, %p468
      %p470 = scmp.ne.s32.totalorder %s462, %s464
      %p471 = scmp.eq.s32.totalorder %s34, 1
      %p472 = por %p470, %p471
      %p473 = scmp.ne.s32.totalorder %s464, %s465
      %p474 = scmp.eq.s32.totalorder %s34, 0
      %p475 = por %p473, %p474
      %p476 = scmp.ne.s32.totalorder %s464, %s465
      %p477 = scmp.eq.s32.totalorder %s35, 1
      %p478 = por %p476, %p477
      %p480 = scmp.ne.s32.totalorder %s465, %s479
      %p481 = scmp.eq.s32.totalorder %s35, 0
      %p482 = por %p480, %p481
      %s484 = sadd.s32 %s483, 1
      %p487 = scmp.eq.s32.totalorder %s29, 1
      %p488 = scmp.ne.s32.totalorder %s483, %s485
      %p489 = scmp.eq.s32.totalorder %s29, 0
      %p490 = por %p488, %p489
      %p491 = scmp.ne.s32.totalorder %s483, %s485
      %p492 = scmp.eq.s32.totalorder %s34, 1
      %p493 = por %p491, %p492
      %p494 = scmp.ne.s32.totalorder %s485, %s486
      %p495 = scmp.eq.s32.totalorder %s34, 0
      %p496 = por %p494, %p495
      %p497 = scmp.ne.s32.totalorder %s485, %s486
      %p498 = scmp.eq.s32.totalorder %s35, 1
      %p499 = por %p497, %p498
      %p501 = scmp.ne.s32.totalorder %s486, %s500
      %p502 = scmp.eq.s32.totalorder %s35, 0
      %p503 = por %p501, %p502
      %s504 = ssub.s32 %s29, %s36
      %p505 = scmp.eq.s32.totalorder %s504, 0
      %s507 = sadd.s32 %s506, 1
      %s508 = scalar_select %p505, %s506, %s507
      %p511 = pneg %p505
      %p512 = scmp.eq.s32.totalorder %s29, 1
      %p513 = por %p511, %p512
      %p514 = scmp.ne.s32.totalorder %s506, %s509
      %p515 = scmp.eq.s32.totalorder %s29, 0
      %p516 = por %p514, %p515
      %p517 = scmp.ne.s32.totalorder %s506, %s509
      %p518 = scmp.eq.s32.totalorder %s34, 1
      %p519 = por %p517, %p518
      %p520 = scmp.ne.s32.totalorder %s509, %s510
      %p521 = scmp.eq.s32.totalorder %s34, 0
      %p522 = por %p520, %p521
      %p523 = scmp.ne.s32.totalorder %s509, %s510
      %p524 = scmp.eq.s32.totalorder %s35, 1
      %p525 = por %p523, %p524
      %p527 = scmp.ne.s32.totalorder %s510, %s526
      %p528 = scmp.eq.s32.totalorder %s35, 0
      %p529 = por %p527, %p528
      %p530 = scmp.le.s32.totalorder 1, %s29
      %p531 = scmp.lt.s32.totalorder %s29, 3
      %p532 = pnand %p530, %p531
      %p533 = pneg %p532
      // Predicated region
      $region9: #{_lambda_.1} parent=5 // pred_check
        _
      $region10: #{_lambda_.1} parent=5 // pred_check_branch
        %535 = sbr.rel (%p532) target = $region12
      $region11: #{_lambda_.1} parent=5 // pred_region
        %s536 = ssub.s32 %s29, 1
        // Predicated region
        $region13: #{_lambda_.1} parent=11 // pred_check
          %p537 = pneg %p76
        $region14: #{_lambda_.1} parent=11 // pred_check_branch
          %539 = sbr.rel (%p537) target = $region16
        $region15: #{_lambda_.1} parent=11 // pred_region
          _
        $region16: #{_lambda_.1} parent=11 // pred_fallthru
          _
        // Predicated region
        $region17: #{_lambda_.1} parent=11 // pred_check
          %p540 = pneg %p97
        $region18: #{_lambda_.1} parent=11 // pred_check_branch
          %542 = sbr.rel (%p540) target = $region20
        $region19: #{_lambda_.1} parent=11 // pred_region
          _
        $region20: #{_lambda_.1} parent=11 // pred_fallthru
          _
        // Predicated region
        $region21: #{_lambda_.1} parent=11 // pred_check
          %p543 = pneg %p118
        $region22: #{_lambda_.1} parent=11 // pred_check_branch
          %545 = sbr.rel (%p543) target = $region24
        $region23: #{_lambda_.1} parent=11 // pred_region
          _
        $region24: #{_lambda_.1} parent=11 // pred_fallthru
          _
        // Predicated region
        $region25: #{_lambda_.1} parent=11 // pred_check
          %p546 = pneg %p139
        $region26: #{_lambda_.1} parent=11 // pred_check_branch
          %548 = sbr.rel (%p546) target = $region28
        $region27: #{_lambda_.1} parent=11 // pred_region
          _
        $region28: #{_lambda_.1} parent=11 // pred_fallthru
          _
        // Predicated region
        $region29: #{_lambda_.1} parent=11 // pred_check
          %p549 = pneg %p160
        $region30: #{_lambda_.1} parent=11 // pred_check_branch
          %551 = sbr.rel (%p549) target = $region32
        $region31: #{_lambda_.1} parent=11 // pred_region
          _
        $region32: #{_lambda_.1} parent=11 // pred_fallthru
          _
        // Predicated region
        $region33: #{_lambda_.1} parent=11 // pred_check
          %p552 = pneg %p181
        $region34: #{_lambda_.1} parent=11 // pred_check_branch
          %554 = sbr.rel (%p552) target = $region36
        $region35: #{_lambda_.1} parent=11 // pred_region
          _
        $region36: #{_lambda_.1} parent=11 // pred_fallthru
          _
        // Predicated region
        $region37: #{_lambda_.1} parent=11 // pred_check
          %p555 = pneg %p202
        $region38: #{_lambda_.1} parent=11 // pred_check_branch
          %557 = sbr.rel (%p555) target = $region40
        $region39: #{_lambda_.1} parent=11 // pred_region
          _
        $region40: #{_lambda_.1} parent=11 // pred_fallthru
          _
        // Predicated region
        $region41: #{_lambda_.1} parent=11 // pred_check
          %p558 = pneg %p223
        $region42: #{_lambda_.1} parent=11 // pred_check_branch
          %560 = sbr.rel (%p558) target = $region44
        $region43: #{_lambda_.1} parent=11 // pred_region
          _
        $region44: #{_lambda_.1} parent=11 // pred_fallthru
          _
        // Predicated region
        $region45: #{_lambda_.1} parent=11 // pred_check
          %p561 = pneg %p244
        $region46: #{_lambda_.1} parent=11 // pred_check_branch
          %563 = sbr.rel (%p561) target = $region48
        $region47: #{_lambda_.1} parent=11 // pred_region
          _
        $region48: #{_lambda_.1} parent=11 // pred_fallthru
          _
        // Predicated region
        $region49: #{_lambda_.1} parent=11 // pred_check
          %p564 = pneg %p265
        $region50: #{_lambda_.1} parent=11 // pred_check_branch
          %566 = sbr.rel (%p564) target = $region52
        $region51: #{_lambda_.1} parent=11 // pred_region
          _
        $region52: #{_lambda_.1} parent=11 // pred_fallthru
          _
        // Predicated region
        $region53: #{_lambda_.1} parent=11 // pred_check
          %p567 = pneg %p286
        $region54: #{_lambda_.1} parent=11 // pred_check_branch
          %569 = sbr.rel (%p567) target = $region56
        $region55: #{_lambda_.1} parent=11 // pred_region
          _
        $region56: #{_lambda_.1} parent=11 // pred_fallthru
          _
        // Predicated region
        $region57: #{_lambda_.1} parent=11 // pred_check
          %p570 = pneg %p307
        $region58: #{_lambda_.1} parent=11 // pred_check_branch
          %572 = sbr.rel (%p570) target = $region60
        $region59: #{_lambda_.1} parent=11 // pred_region
          _
        $region60: #{_lambda_.1} parent=11 // pred_fallthru
          _
        // Predicated region
        $region61: #{_lambda_.1} parent=11 // pred_check
          %p573 = pneg %p328
        $region62: #{_lambda_.1} parent=11 // pred_check_branch
          %575 = sbr.rel (%p573) target = $region64
        $region63: #{_lambda_.1} parent=11 // pred_region
          _
        $region64: #{_lambda_.1} parent=11 // pred_fallthru
          _
        // Predicated region
        $region65: #{_lambda_.1} parent=11 // pred_check
          %p576 = pneg %p349
        $region66: #{_lambda_.1} parent=11 // pred_check_branch
          %578 = sbr.rel (%p576) target = $region68
        $region67: #{_lambda_.1} parent=11 // pred_region
          _
        $region68: #{_lambda_.1} parent=11 // pred_fallthru
          _
        // Predicated region
        $region69: #{_lambda_.1} parent=11 // pred_check
          %p579 = pneg %p370
        $region70: #{_lambda_.1} parent=11 // pred_check_branch
          %581 = sbr.rel (%p579) target = $region72
        $region71: #{_lambda_.1} parent=11 // pred_region
          _
        $region72: #{_lambda_.1} parent=11 // pred_fallthru
          _
        // Predicated region
        $region73: #{_lambda_.1} parent=11 // pred_check
          %p582 = pneg %p391
        $region74: #{_lambda_.1} parent=11 // pred_check_branch
          %584 = sbr.rel (%p582) target = $region76
        $region75: #{_lambda_.1} parent=11 // pred_region
          %s586 = ssub.s32 9216, 9216
          %587 = vsyncadd [#allocation3], %s586
          %s588 = sshll.u32 [#allocation2], 4
          %s589 = int_to_ptr.vmem [resolvable:$true] %s588
          %594 = dma.hbm_to_vmem [thread:$0]  %s16, 9216, %s589, [#allocation3], 64, 64, 4
        $region76: #{_lambda_.1} parent=11 // pred_fallthru
          _
        // Predicated region
        $region77: #{_lambda_.1} parent=11 // pred_check
          %p595 = pneg %p412
        $region78: #{_lambda_.1} parent=11 // pred_check_branch
          %597 = sbr.rel (%p595) target = $region80
        $region79: #{_lambda_.1} parent=11 // pred_region
          _
        $region80: #{_lambda_.1} parent=11 // pred_fallthru
          _
        // Predicated region
        $region81: #{_lambda_.1} parent=11 // pred_check
          %p598 = pneg %p433
        $region82: #{_lambda_.1} parent=11 // pred_check_branch
          %600 = sbr.rel (%p598) target = $region84
        $region83: #{_lambda_.1} parent=11 // pred_region
          _
        $region84: #{_lambda_.1} parent=11 // pred_fallthru
          _
        // Predicated region
        $region85: #{_lambda_.1} parent=11 // pred_check
          %p601 = pneg %p454
        $region86: #{_lambda_.1} parent=11 // pred_check_branch
          %603 = sbr.rel (%p601) target = $region88
        $region87: #{_lambda_.1} parent=11 // pred_region
          _
        $region88: #{_lambda_.1} parent=11 // pred_fallthru
          _
        // Predicated region
        $region89: #{_lambda_.1} parent=11 // pred_check
          %p604 = pneg %p475
        $region90: #{_lambda_.1} parent=11 // pred_check_branch
          %606 = sbr.rel (%p604) target = $region92
        $region91: #{_lambda_.1} parent=11 // pred_region
          _
        $region92: #{_lambda_.1} parent=11 // pred_fallthru
          _
        // Predicated region
        $region93: #{_lambda_.1} parent=11 // pred_check
          %p607 = pneg %p496
        $region94: #{_lambda_.1} parent=11 // pred_check_branch
          %609 = sbr.rel (%p607) target = $region96
        $region95: #{_lambda_.1} parent=11 // pred_region
          _
        $region96: #{_lambda_.1} parent=11 // pred_fallthru
          _
      $region12: #{_lambda_.1} parent=5 // pred_fallthru
        _
      %p610 = scmp.lt.s32.totalorder %s29, 2
      // Predicated region
      $region97: #{_lambda_.1} parent=5 // pred_check
        %p611 = pneg %p610
      $region98: #{_lambda_.1} parent=5 // pred_check_branch
        %613 = sbr.rel (%p611) target = $region100
      $region99: #{_lambda_.1} parent=5 // pred_region
        // Predicated region
        $region101: #{_lambda_.1} parent=99 // pred_check
          %p614 = pneg %p49
        $region102: #{_lambda_.1} parent=99 // pred_check_branch
          %616 = sbr.rel (%p614) target = $region104
        $region103: #{_lambda_.1} parent=99 // pred_region
          %p617 = scmp.lt.s32.totalorder %s29, 1
          %s618 = scalar_select %p617, %s29, 1
          %s619 = smul.addr %s618, 6
          %s620 = smul.addr %s619, 8
          %s621 = scalar_lea.vmem %s0, %s620
        $region104: #{_lambda_.1} parent=99 // pred_fallthru
          _
      $region100: #{_lambda_.1} parent=5 // pred_fallthru
        _
      %p622 = scmp.le.s32.totalorder 1, %s29
      %p623 = scmp.lt.s32.totalorder %s29, 3
      %p624 = pnand %p622, %p623
      %p625 = pneg %p624
      // Predicated region
      $region105: #{_lambda_.1} parent=5 // pred_check
        _
      $region106: #{_lambda_.1} parent=5 // pred_check_branch
        %627 = sbr.rel (%p624) target = $region108
      $region107: #{_lambda_.1} parent=5 // pred_region
        %s628 = ssub.s32 %s29, 1
        // Predicated region
        $region109: #{_lambda_.1} parent=107 // pred_check
          %p629 = pneg %p391
        $region110: #{_lambda_.1} parent=107 // pred_check_branch
          %631 = sbr.rel (%p629) target = $region112
        $region111: #{_lambda_.1} parent=107 // pred_region
          %632 = dma.done [#allocation3], 9216
        $region112: #{_lambda_.1} parent=107 // pred_fallthru
          _
        %p633 = scmp.lt.s32.totalorder %s34, 1
        %s634 = scalar_select %p633, %s34, 1
        %s635 = smul.addr %s634, 6
        %s636 = smul.addr %s635, 8
        %s637 = scalar_lea.vmem %s0, %s636
        %p638 = pneg %p55
        %p639 = pneg %p52
        %p640 = pneg %p76
        %p641 = pneg %p73
        %p642 = pneg %p97
        %p643 = pneg %p94
        %p644 = pneg %p118
        %p645 = pneg %p115
        %p646 = pneg %p139
        %p647 = pneg %p136
        %p648 = pneg %p160
        %p649 = pneg %p157
        %p650 = pneg %p181
        %p651 = pneg %p178
        %p652 = pneg %p202
        %p653 = pneg %p199
        %p654 = pneg %p223
        %p655 = pneg %p220
        %p656 = pneg %p244
        %p657 = pneg %p241
        %p658 = pneg %p265
        %p659 = pneg %p262
        %p660 = pneg %p286
        %p661 = pneg %p283
        %p662 = pneg %p307
        %p663 = pneg %p304
        %p664 = pneg %p328
        %p665 = pneg %p325
        %p666 = pneg %p349
        %p667 = pneg %p346
        %p668 = pneg %p370
        %p669 = pneg %p367
        %p670 = pneg %p391
        %p671 = pneg %p388
        %p672 = pneg %p412
        %p673 = pneg %p409
        %p674 = pneg %p433
        %p675 = pneg %p430
        %p676 = pneg %p454
        %p677 = pneg %p451
        %p678 = pneg %p475
        %p679 = pneg %p472
        %p680 = pneg %p496
        %p681 = pneg %p493
        %p682 = pneg %p522
        %p683 = pneg %p519
        %p684 = scmp.lt.s32.totalorder %s34, 1
        %s685 = scalar_select %p684, %s34, 1
        %s686 = smul.addr %s685, 8
        %s687 = smul.addr %s686, 8
        %s688 = scalar_lea.vmem %s22, %s687
        %p689 = scmp.lt.s32.totalorder %s34, 1
        %s690 = scalar_select %p689, %s34, 1
        %s691 = smul.addr %s690, 6
        %s692 = smul.addr %s691, 8
        %s693 = scalar_lea.vmem %s0, %s692
        %p694 = scmp.lt.s32.totalorder %s34, 1
        %s695 = scalar_select %p694, %s34, 1
        %s696 = smul.addr %s695, 8
        %s697 = smul.addr %s696, 8
        %s698 = scalar_lea.vmem %s22, %s697
        %v700 = vld [vmem:[%s693] sm:$0xff]
        %v701 = vld [vmem:[%s693 + $0x8] sm:$0xff]
        %v702 = vld [vmem:[%s693 + $0x10] sm:$0xff]
        %v703 = vld [vmem:[%s693 + $0x18] sm:$0xff]
        %v704 = vld [vmem:[%s693 + $0x20] sm:$0xff]
        %v705 = vld [vmem:[%s693 + $0x28] sm:$0xff]
        %v706 = vld [vmem:[%s1] sm:$0x7]
        %v707 = vld [vmem:[%s4] sm:$0xff]
        %v708 = vld [vmem:[%s4 + $0x8] sm:$0xff]
        %709 = vrot.lane.b32.xlu0 %v700, 19
        %v710 = vpop.permute.xlu0 %709
        %711 = vrot.lane.b32.xlu0 %v703, 19
        %v712 = vpop.permute.xlu0 %711
        %713 = vrot.lane.b32.xlu0 %v701, 19
        %v714 = vpop.permute.xlu0 %713
        %715 = vrot.lane.b32.xlu0 %v704, 19
        %v716 = vpop.permute.xlu0 %715
        %717 = vrot.lane.b32.xlu0 %v702, 19
        %v718 = vpop.permute.xlu0 %717
        %719 = vrot.lane.b32.xlu0 %v705, 19
        %v720 = vpop.permute.xlu0 %719
        %v721 = vlaneseq
        %v722 = vand.u32 %v721, 127
        %vm723 = vcmp.lt.s32.totalorder %v722, 19
        %v724 = vsel %vm723, %v714, %v718
        %v725 = vsel %vm723, %v716, %v720
        %v726 = vsel %vm723, %v710, %v714
        %v727 = vsel %vm723, %v712, %v716
        %v728 = vsel %vm723, %v718, %v710
        %v729 = vsel %vm723, %v720, %v712
        %730 = vrot.lane.b32.xlu0 %v700, 18
        %v731 = vpop.permute.xlu0 %730
        %732 = vrot.lane.b32.xlu0 %v703, 18
        %v733 = vpop.permute.xlu0 %732
        %734 = vrot.lane.b32.xlu0 %v701, 18
        %v735 = vpop.permute.xlu0 %734
        %736 = vrot.lane.b32.xlu0 %v704, 18
        %v737 = vpop.permute.xlu0 %736
        %738 = vrot.lane.b32.xlu0 %v702, 18
        %v739 = vpop.permute.xlu0 %738
        %740 = vrot.lane.b32.xlu0 %v705, 18
        %v741 = vpop.permute.xlu0 %740
        %vm742 = vcmp.lt.s32.totalorder %v722, 18
        %v743 = vsel %vm742, %v735, %v739
        %v744 = vsel %vm742, %v737, %v741
        %v745 = vsel %vm742, %v731, %v735
        %v746 = vsel %vm742, %v733, %v737
        %v747 = vsel %vm742, %v739, %v731
        %v748 = vsel %vm742, %v741, %v733
        %749 = vrot.lane.b32.xlu0 %v700, 17
        %v750 = vpop.permute.xlu0 %749
        %751 = vrot.lane.b32.xlu0 %v703, 17
        %v752 = vpop.permute.xlu0 %751
        %753 = vrot.lane.b32.xlu0 %v701, 17
        %v754 = vpop.permute.xlu0 %753
        %755 = vrot.lane.b32.xlu0 %v704, 17
        %v756 = vpop.permute.xlu0 %755
        %757 = vrot.lane.b32.xlu0 %v702, 17
        %v758 = vpop.permute.xlu0 %757
        %759 = vrot.lane.b32.xlu0 %v705, 17
        %v760 = vpop.permute.xlu0 %759
        %vm761 = vcmp.lt.s32.totalorder %v722, 17
        %v762 = vsel %vm761, %v754, %v758
        %v763 = vsel %vm761, %v756, %v760
        %v764 = vsel %vm761, %v750, %v754
        %v765 = vsel %vm761, %v752, %v756
        %v766 = vsel %vm761, %v758, %v750
        %v767 = vsel %vm761, %v760, %v752
        %768 = vrot.lane.b32.xlu0 %v700, 1
        %v769 = vpop.permute.xlu0 %768
        %770 = vrot.lane.b32.xlu0 %v703, 1
        %v771 = vpop.permute.xlu0 %770
        %772 = vrot.lane.b32.xlu0 %v701, 1
        %v773 = vpop.permute.xlu0 %772
        %774 = vrot.lane.b32.xlu0 %v704, 1
        %v775 = vpop.permute.xlu0 %774
        %776 = vrot.lane.b32.xlu0 %v702, 1
        %v777 = vpop.permute.xlu0 %776
        %778 = vrot.lane.b32.xlu0 %v705, 1
        %v779 = vpop.permute.xlu0 %778
        %vm780 = vcmp.lt.s32.totalorder %v722, 1
        %v781 = vsel %vm780, %v773, %v777
        %v782 = vsel %vm780, %v775, %v779
        %v783 = vsel %vm780, %v769, %v773
        %v784 = vsel %vm780, %v771, %v775
        %v785 = vsel %vm780, %v777, %v769
        %v786 = vsel %vm780, %v779, %v771
        %787 = vrot.lane.b32.xlu0 %v700, 127
        %v788 = vpop.permute.xlu0 %787
        %789 = vrot.lane.b32.xlu0 %v703, 127
        %v790 = vpop.permute.xlu0 %789
        %791 = vrot.lane.b32.xlu0 %v701, 127
        %v792 = vpop.permute.xlu0 %791
        %793 = vrot.lane.b32.xlu0 %v704, 127
        %v794 = vpop.permute.xlu0 %793
        %795 = vrot.lane.b32.xlu0 %v702, 127
        %v796 = vpop.permute.xlu0 %795
        %797 = vrot.lane.b32.xlu0 %v705, 127
        %v798 = vpop.permute.xlu0 %797
        %vm799 = vcmp.lt.s32.totalorder %v722, 127
        %v800 = vsel %vm799, %v792, %v796
        %v801 = vsel %vm799, %v794, %v798
        %v802 = vsel %vm799, %v788, %v792
        %v803 = vsel %vm799, %v790, %v794
        %v804 = vsel %vm799, %v796, %v788
        %v805 = vsel %vm799, %v798, %v790
        %806 = vrot.lane.b32.xlu0 %v700, 111
        %v807 = vpop.permute.xlu0 %806
        %808 = vrot.lane.b32.xlu0 %v703, 111
        %v809 = vpop.permute.xlu0 %808
        %810 = vrot.lane.b32.xlu0 %v701, 111
        %v811 = vpop.permute.xlu0 %810
        %812 = vrot.lane.b32.xlu0 %v704, 111
        %v813 = vpop.permute.xlu0 %812
        %814 = vrot.lane.b32.xlu0 %v702, 111
        %v815 = vpop.permute.xlu0 %814
        %816 = vrot.lane.b32.xlu0 %v705, 111
        %v817 = vpop.permute.xlu0 %816
        %vm818 = vcmp.lt.s32.totalorder %v722, 111
        %v819 = vsel %vm818, %v811, %v815
        %v820 = vsel %vm818, %v813, %v817
        %v821 = vsel %vm818, %v807, %v811
        %v822 = vsel %vm818, %v809, %v813
        %v823 = vsel %vm818, %v815, %v807
        %v824 = vsel %vm818, %v817, %v809
        %825 = vrot.lane.b32.xlu0 %v700, 110
        %v826 = vpop.permute.xlu0 %825
        %827 = vrot.lane.b32.xlu0 %v703, 110
        %v828 = vpop.permute.xlu0 %827
        %829 = vrot.lane.b32.xlu0 %v701, 110
        %v830 = vpop.permute.xlu0 %829
        %831 = vrot.lane.b32.xlu0 %v704, 110
        %v832 = vpop.permute.xlu0 %831
        %833 = vrot.lane.b32.xlu0 %v702, 110
        %v834 = vpop.permute.xlu0 %833
        %835 = vrot.lane.b32.xlu0 %v705, 110
        %v836 = vpop.permute.xlu0 %835
        %vm837 = vcmp.lt.s32.totalorder %v722, 110
        %v838 = vsel %vm837, %v830, %v834
        %v839 = vsel %vm837, %v832, %v836
        %v840 = vsel %vm837, %v826, %v830
        %v841 = vsel %vm837, %v828, %v832
        %v842 = vsel %vm837, %v834, %v826
        %v843 = vsel %vm837, %v836, %v828
        %844 = vrot.lane.b32.xlu0 %v700, 109
        %v845 = vpop.permute.xlu0 %844
        %846 = vrot.lane.b32.xlu0 %v703, 109
        %v847 = vpop.permute.xlu0 %846
        %848 = vrot.lane.b32.xlu0 %v701, 109
        %v849 = vpop.permute.xlu0 %848
        %850 = vrot.lane.b32.xlu0 %v704, 109
        %v851 = vpop.permute.xlu0 %850
        %852 = vrot.lane.b32.xlu0 %v702, 109
        %v853 = vpop.permute.xlu0 %852
        %854 = vrot.lane.b32.xlu0 %v705, 109
        %v855 = vpop.permute.xlu0 %854
        %vm856 = vcmp.lt.s32.totalorder %v722, 109
        %v857 = vsel %vm856, %v849, %v853
        %v858 = vsel %vm856, %v851, %v855
        %v859 = vsel %vm856, %v845, %v849
        %v860 = vsel %vm856, %v847, %v851
        %v861 = vsel %vm856, %v853, %v845
        %v862 = vsel %vm856, %v855, %v847
        %v863 = vpack.c.bf16 %v729, %v728
        %v864 = vpack.c.bf16 %v727, %v726
        %v865 = vpack.c.bf16 %v725, %v724
        %v866 = vpack.c.bf16 %v748, %v747
        %v867 = vpack.c.bf16 %v746, %v745
        %v868 = vpack.c.bf16 %v744, %v743
        %v869 = vpack.c.bf16 %v767, %v766
        %v870 = vpack.c.bf16 %v765, %v764
        %v871 = vpack.c.bf16 %v763, %v762
        %v872 = vpack.c.bf16 %v786, %v785
        %v873 = vpack.c.bf16 %v784, %v783
        %v874 = vpack.c.bf16 %v782, %v781
        %v875 = vpack.c.bf16 %v703, %v700
        %v876 = vpack.c.bf16 %v704, %v701
        %v877 = vpack.c.bf16 %v705, %v702
        %v878 = vpack.c.bf16 %v803, %v802
        %v879 = vpack.c.bf16 %v801, %v800
        %v880 = vpack.c.bf16 %v805, %v804
        %v881 = vpack.c.bf16 %v822, %v821
        %v882 = vpack.c.bf16 %v820, %v819
        %v883 = vpack.c.bf16 %v824, %v823
        %v884 = vpack.c.bf16 %v841, %v840
        %v885 = vpack.c.bf16 %v839, %v838
        %v886 = vpack.c.bf16 %v843, %v842
        %v887 = vpack.c.bf16 %v860, %v859
        %v888 = vpack.c.bf16 %v858, %v857
        %v889 = vpack.c.bf16 %v862, %v861
        %v890 = vld [vmem:[%s5] sm:$0xff]
        %v891 = vld [vmem:[%s5 + $0x8] sm:$0xff]
        %893 = vset.pattern.permute.xlu0 0
        %894 = vperm.xlu0 %893, %v890
        %v895 = vpop.permute.xlu0 %894
        %898 = vset.pattern.permute.xlu0 0
        %899 = vperm.xlu0 %898, %v891
        %v900 = vpop.permute.xlu0 %899
        %v904 = vunpack.c.l.b16 %v707
        %v905 = vunpack.c.h.b16 %v707
        %v906 = vunpack.c.l.b16 %v708
        %v907 = vunpack.c.h.b16 %v708
        %v908 = vpack.c.b16 %v906, %v904
        %v909 = vpack.c.b16 %v907, %v905
        %vm911 = vcmask 130048
        %v913 = vsel %vm911, %v909, 0
        %915 = vmatprep.subr.bf16.mxu0 %v864
        %916 = vmatpush1.bf16.msra.mxu0 %v863
        %917 = vmatprep.subr.bf16.mxu0 %v867
        %918 = vmatpush1.bf16.msra.mxu0 %v866
        %919 = vmatprep.subr.bf16.mxu0 %v870
        %920 = vmatpush1.bf16.msra.mxu0 %v869
        %921 = vmatprep.subr.bf16.mxu0 %v873
        %922 = vmatpush1.bf16.msra.mxu0 %v872
        %923 = vmatprep.subr.bf16.mxu0 %v876
        %924 = vmatpush1.bf16.msra.mxu0 %v875
        %925 = vmatprep.subr.bf16.mxu0 %v879
        %926 = vmatpush1.bf16.msra.mxu0 %v878
        %927 = vmatprep.subr.bf16.mxu0 %v882
        %928 = vmatpush1.bf16.msra.mxu0 %v881
        %929 = vmatprep.subr.bf16.mxu0 %v885
        %930 = vmatpush1.bf16.msra.mxu0 %v884
        %931 = vmatprep.subr.bf16.mxu0 %v888
        %932 = vmatpush1.bf16.msra.mxu0 %v887
        %933 = vmatprep.subr.bf16.mxu0 0
        %934 = vmatpush1.bf16.msra.mxu0 0
        %935 = vmatprep.subr.bf16.mxu0 0
        %936 = vmatpush1.bf16.msra.mxu0 0
        %937 = vmatprep.subr.bf16.mxu0 0
        %938 = vmatpush1.bf16.msra.mxu0 0
        %939 = vmatprep.subr.bf16.mxu0 0
        %940 = vmatpush1.bf16.msra.mxu0 0
        %941 = vmatprep.subr.bf16.mxu0 0
        %942 = vmatpush1.bf16.msra.mxu0 0
        %943 = vmatprep.subr.bf16.mxu0 0
        %944 = vmatpush1.bf16.msra.mxu0 0
        %945 = vmatprep.subr.bf16.mxu0 0
        %946 = vmatpush1.bf16.msra.mxu0 0
        %947 = vmatprep.mubr.bf16.mxu0 %v913
        %948 = vmatmul.mubr.bf16.gmra.mrb[0].mxu0 %v908
        %v949 = vpop.f32.mrb[0].mxu0
        %v950 = vadd.f32 %v895, %v949
        %v951 = vpop.f32.mrb[0].mxu0
        %v952 = vadd.f32 %v895, %v951
        %v953 = vpop.f32.mrb[0].mxu0
        %v954 = vadd.f32 %v900, %v953
        %v955 = vpop.f32.mrb[0].mxu0
        %v956 = vadd.f32 %v900, %v955
        %957 = vdwg.mxu0
        %958 = vmatprep.subr.bf16.mxu0 0
        %959 = vmatpush1.bf16.msra.mxu0 %v865
        %960 = vmatprep.subr.bf16.mxu0 0
        %961 = vmatpush1.bf16.msra.mxu0 %v868
        %962 = vmatprep.subr.bf16.mxu0 0
        %963 = vmatpush1.bf16.msra.mxu0 %v871
        %964 = vmatprep.subr.bf16.mxu0 0
        %965 = vmatpush1.bf16.msra.mxu0 %v874
        %966 = vmatprep.subr.bf16.mxu0 0
        %967 = vmatpush1.bf16.msra.mxu0 %v877
        %968 = vmatprep.subr.bf16.mxu0 0
        %969 = vmatpush1.bf16.msra.mxu0 %v880
        %970 = vmatprep.subr.bf16.mxu0 0
        %971 = vmatpush1.bf16.msra.mxu0 %v883
        %972 = vmatprep.subr.bf16.mxu0 0
        %973 = vmatpush1.bf16.msra.mxu0 %v886
        %974 = vmatprep.subr.bf16.mxu0 0
        %975 = vmatpush1.bf16.msra.mxu0 %v889
        %976 = vmatprep.subr.bf16.mxu0 0
        %977 = vmatpush1.bf16.msra.mxu0 0
        %978 = vmatprep.subr.bf16.mxu0 0
        %979 = vmatpush1.bf16.msra.mxu0 0
        %980 = vmatprep.subr.bf16.mxu0 0
        %981 = vmatpush1.bf16.msra.mxu0 0
        %982 = vmatprep.subr.bf16.mxu0 0
        %983 = vmatpush1.bf16.msra.mxu0 0
        %984 = vmatprep.subr.bf16.mxu0 0
        %985 = vmatpush1.bf16.msra.mxu0 0
        %986 = vmatprep.subr.bf16.mxu0 0
        %987 = vmatpush1.bf16.msra.mxu0 0
        %988 = vmatprep.subr.bf16.mxu0 0
        %989 = vmatpush1.bf16.msra.mxu0 0
        %990 = vmatprep.mubr.bf16.mxu0 %v913
        %991 = vmatmul.mubr.bf16.gmra.mrb[0].mxu0 %v908
        %v992 = vpop.f32.mrb[0].mxu0
        %v993 = vadd.f32 %v895, %v992
        %v994 = vpop.f32.mrb[0].mxu0
        %v995 = vpop.f32.mrb[0].mxu0
        %v996 = vadd.f32 %v900, %v995
        %v997 = vpop.f32.mrb[0].mxu0
        %998 = vdwg.mxu0
        %v999 = vmax.f32 %v950, 0.0
        %v1000 = vmax.f32 %v952, 0.0
        %v1001 = vmax.f32 %v993, 0.0
        %v1002 = vmax.f32 %v954, 0.0
        %v1003 = vmax.f32 %v956, 0.0
        %v1004 = vmax.f32 %v996, 0.0
        %v1006 = vlaneseq
        %v1007 = vshrl.u32 %v1006, 7
        %v1008 = vsub.s32 0, %v1007
        %v1009 = vrot.slane %v706, %v1008
        %v1010 = vlaneseq
        %v1011 = vshrl.u32 %v1010, 7
        %v1012 = vsub.s32 1, %v1011
        %v1013 = vrot.slane %v706, %v1012
        %v1014 = vlaneseq
        %v1015 = vshrl.u32 %v1014, 7
        %v1016 = vsub.s32 2, %v1015
        %v1017 = vrot.slane %v706, %v1016
        %v1021 = vmul.f32 %v999, %v1009
        %v1022 = vmul.f32 %v1000, %v1013
        %v1023 = vmul.f32 %v1001, %v1017
        %v1024 = vmul.f32 %v1002, %v1009
        %v1025 = vmul.f32 %v1003, %v1013
        %v1026 = vmul.f32 %v1004, %v1017
        %1027 = vrot.lane.b32.xlu0 %v1021, 19
        %v1028 = vpop.permute.xlu0 %1027
        %1029 = vrot.lane.b32.xlu0 %v1024, 19
        %v1030 = vpop.permute.xlu0 %1029
        %1031 = vrot.lane.b32.xlu0 %v1022, 19
        %v1032 = vpop.permute.xlu0 %1031
        %1033 = vrot.lane.b32.xlu0 %v1025, 19
        %v1034 = vpop.permute.xlu0 %1033
        %1035 = vrot.lane.b32.xlu0 %v1023, 19
        %v1036 = vpop.permute.xlu0 %1035
        %1037 = vrot.lane.b32.xlu0 %v1026, 19
        %v1038 = vpop.permute.xlu0 %1037
        %v1039 = vsel %vm723, %v1032, %v1036
        %v1040 = vsel %vm723, %v1034, %v1038
        %v1041 = vsel %vm723, %v1028, %v1032
        %v1042 = vsel %vm723, %v1030, %v1034
        %v1043 = vsel %vm723, %v1036, %v1028
        %v1044 = vsel %vm723, %v1038, %v1030
        %1045 = vrot.lane.b32.xlu0 %v1021, 18
        %v1046 = vpop.permute.xlu0 %1045
        %1047 = vrot.lane.b32.xlu0 %v1024, 18
        %v1048 = vpop.permute.xlu0 %1047
        %1049 = vrot.lane.b32.xlu0 %v1022, 18
        %v1050 = vpop.permute.xlu0 %1049
        %1051 = vrot.lane.b32.xlu0 %v1025, 18
        %v1052 = vpop.permute.xlu0 %1051
        %1053 = vrot.lane.b32.xlu0 %v1023, 18
        %v1054 = vpop.permute.xlu0 %1053
        %1055 = vrot.lane.b32.xlu0 %v1026, 18
        %v1056 = vpop.permute.xlu0 %1055
        %v1057 = vsel %vm742, %v1050, %v1054
        %v1058 = vsel %vm742, %v1052, %v1056
        %v1059 = vsel %vm742, %v1046, %v1050
        %v1060 = vsel %vm742, %v1048, %v1052
        %v1061 = vsel %vm742, %v1054, %v1046
        %v1062 = vsel %vm742, %v1056, %v1048
        %1063 = vrot.lane.b32.xlu0 %v1021, 17
        %v1064 = vpop.permute.xlu0 %1063
        %1065 = vrot.lane.b32.xlu0 %v1024, 17
        %v1066 = vpop.permute.xlu0 %1065
        %1067 = vrot.lane.b32.xlu0 %v1022, 17
        %v1068 = vpop.permute.xlu0 %1067
        %1069 = vrot.lane.b32.xlu0 %v1025, 17
        %v1070 = vpop.permute.xlu0 %1069
        %1071 = vrot.lane.b32.xlu0 %v1023, 17
        %v1072 = vpop.permute.xlu0 %1071
        %1073 = vrot.lane.b32.xlu0 %v1026, 17
        %v1074 = vpop.permute.xlu0 %1073
        %v1075 = vsel %vm761, %v1068, %v1072
        %v1076 = vsel %vm761, %v1070, %v1074
        %v1077 = vsel %vm761, %v1064, %v1068
        %v1078 = vsel %vm761, %v1066, %v1070
        %v1079 = vsel %vm761, %v1072, %v1064
        %v1080 = vsel %vm761, %v1074, %v1066
        %1081 = vrot.lane.b32.xlu0 %v1021, 1
        %v1082 = vpop.permute.xlu0 %1081
        %1083 = vrot.lane.b32.xlu0 %v1024, 1
        %v1084 = vpop.permute.xlu0 %1083
        %1085 = vrot.lane.b32.xlu0 %v1022, 1
        %v1086 = vpop.permute.xlu0 %1085
        %1087 = vrot.lane.b32.xlu0 %v1025, 1
        %v1088 = vpop.permute.xlu0 %1087
        %1089 = vrot.lane.b32.xlu0 %v1023, 1
        %v1090 = vpop.permute.xlu0 %1089
        %1091 = vrot.lane.b32.xlu0 %v1026, 1
        %v1092 = vpop.permute.xlu0 %1091
        %v1093 = vsel %vm780, %v1086, %v1090
        %v1094 = vsel %vm780, %v1088, %v1092
        %v1095 = vsel %vm780, %v1082, %v1086
        %v1096 = vsel %vm780, %v1084, %v1088
        %v1097 = vsel %vm780, %v1090, %v1082
        %v1098 = vsel %vm780, %v1092, %v1084
        %1099 = vrot.lane.b32.xlu0 %v1021, 127
        %v1100 = vpop.permute.xlu0 %1099
        %1101 = vrot.lane.b32.xlu0 %v1024, 127
        %v1102 = vpop.permute.xlu0 %1101
        %1103 = vrot.lane.b32.xlu0 %v1022, 127
        %v1104 = vpop.permute.xlu0 %1103
        %1105 = vrot.lane.b32.xlu0 %v1025, 127
        %v1106 = vpop.permute.xlu0 %1105
        %1107 = vrot.lane.b32.xlu0 %v1023, 127
        %v1108 = vpop.permute.xlu0 %1107
        %1109 = vrot.lane.b32.xlu0 %v1026, 127
        %v1110 = vpop.permute.xlu0 %1109
        %v1111 = vsel %vm799, %v1104, %v1108
        %v1112 = vsel %vm799, %v1106, %v1110
        %v1113 = vsel %vm799, %v1100, %v1104
        %v1114 = vsel %vm799, %v1102, %v1106
        %v1115 = vsel %vm799, %v1108, %v1100
        %v1116 = vsel %vm799, %v1110, %v1102
        %1117 = vrot.lane.b32.xlu0 %v1021, 111
        %v1118 = vpop.permute.xlu0 %1117
        %1119 = vrot.lane.b32.xlu0 %v1024, 111
        %v1120 = vpop.permute.xlu0 %1119
        %1121 = vrot.lane.b32.xlu0 %v1022, 111
        %v1122 = vpop.permute.xlu0 %1121
        %1123 = vrot.lane.b32.xlu0 %v1025, 111
        %v1124 = vpop.permute.xlu0 %1123
        %1125 = vrot.lane.b32.xlu0 %v1023, 111
        %v1126 = vpop.permute.xlu0 %1125
        %1127 = vrot.lane.b32.xlu0 %v1026, 111
        %v1128 = vpop.permute.xlu0 %1127
        %v1129 = vsel %vm818, %v1122, %v1126
        %v1130 = vsel %vm818, %v1124, %v1128
        %v1131 = vsel %vm818, %v1118, %v1122
        %v1132 = vsel %vm818, %v1120, %v1124
        %v1133 = vsel %vm818, %v1126, %v1118
        %v1134 = vsel %vm818, %v1128, %v1120
        %1135 = vrot.lane.b32.xlu0 %v1021, 110
        %v1136 = vpop.permute.xlu0 %1135
        %1137 = vrot.lane.b32.xlu0 %v1024, 110
        %v1138 = vpop.permute.xlu0 %1137
        %1139 = vrot.lane.b32.xlu0 %v1022, 110
        %v1140 = vpop.permute.xlu0 %1139
        %1141 = vrot.lane.b32.xlu0 %v1025, 110
        %v1142 = vpop.permute.xlu0 %1141
        %1143 = vrot.lane.b32.xlu0 %v1023, 110
        %v1144 = vpop.permute.xlu0 %1143
        %1145 = vrot.lane.b32.xlu0 %v1026, 110
        %v1146 = vpop.permute.xlu0 %1145
        %v1147 = vsel %vm837, %v1140, %v1144
        %v1148 = vsel %vm837, %v1142, %v1146
        %v1149 = vsel %vm837, %v1136, %v1140
        %v1150 = vsel %vm837, %v1138, %v1142
        %v1151 = vsel %vm837, %v1144, %v1136
        %v1152 = vsel %vm837, %v1146, %v1138
        %1153 = vrot.lane.b32.xlu0 %v1021, 109
        %v1154 = vpop.permute.xlu0 %1153
        %1155 = vrot.lane.b32.xlu0 %v1024, 109
        %v1156 = vpop.permute.xlu0 %1155
        %1157 = vrot.lane.b32.xlu0 %v1022, 109
        %v1158 = vpop.permute.xlu0 %1157
        %1159 = vrot.lane.b32.xlu0 %v1025, 109
        %v1160 = vpop.permute.xlu0 %1159
        %1161 = vrot.lane.b32.xlu0 %v1023, 109
        %v1162 = vpop.permute.xlu0 %1161
        %1163 = vrot.lane.b32.xlu0 %v1026, 109
        %v1164 = vpop.permute.xlu0 %1163
        %v1165 = vsel %vm856, %v1158, %v1162
        %v1166 = vsel %vm856, %v1160, %v1164
        %v1167 = vsel %vm856, %v1154, %v1158
        %v1168 = vsel %vm856, %v1156, %v1160
        %v1169 = vsel %vm856, %v1162, %v1154
        %v1170 = vsel %vm856, %v1164, %v1156
        %v1171 = vpack.c.bf16 %v1044, %v1043
        %v1172 = vpack.c.bf16 %v1042, %v1041
        %v1173 = vpack.c.bf16 %v1040, %v1039
        %v1174 = vpack.c.bf16 %v1062, %v1061
        %v1175 = vpack.c.bf16 %v1060, %v1059
        %v1176 = vpack.c.bf16 %v1058, %v1057
        %v1177 = vpack.c.bf16 %v1080, %v1079
        %v1178 = vpack.c.bf16 %v1078, %v1077
        %v1179 = vpack.c.bf16 %v1076, %v1075
        %v1180 = vpack.c.bf16 %v1098, %v1097
        %v1181 = vpack.c.bf16 %v1096, %v1095
        %v1182 = vpack.c.bf16 %v1094, %v1093
        %v1183 = vpack.c.bf16 %v1024, %v1021
        %v1184 = vpack.c.bf16 %v1025, %v1022
        %v1185 = vpack.c.bf16 %v1026, %v1023
        %v1186 = vpack.c.bf16 %v1114, %v1113
        %v1187 = vpack.c.bf16 %v1112, %v1111
        %v1188 = vpack.c.bf16 %v1116, %v1115
        %v1189 = vpack.c.bf16 %v1132, %v1131
        %v1190 = vpack.c.bf16 %v1130, %v1129
        %v1191 = vpack.c.bf16 %v1134, %v1133
        %v1192 = vpack.c.bf16 %v1150, %v1149
        %v1193 = vpack.c.bf16 %v1148, %v1147
        %v1194 = vpack.c.bf16 %v1152, %v1151
        %v1195 = vpack.c.bf16 %v1168, %v1167
        %v1196 = vpack.c.bf16 %v1166, %v1165
        %v1197 = vpack.c.bf16 %v1170, %v1169
        %v1198 = vld [vmem:[%s6] sm:$0xff]
        %v1199 = vld [vmem:[%s6 + $0x8] sm:$0xff]
        %v1200 = vld [vmem:[%s7] sm:$0xff]
        %v1201 = vld [vmem:[%s7 + $0x8] sm:$0xff]
        %1203 = vset.pattern.permute.xlu0 0
        %1204 = vperm.xlu0 %1203, %v1200
        %v1205 = vpop.permute.xlu0 %1204
        %1208 = vset.pattern.permute.xlu0 0
        %1209 = vperm.xlu0 %1208, %v1201
        %v1210 = vpop.permute.xlu0 %1209
        %v1214 = vunpack.c.l.b16 %v1198
        %v1215 = vunpack.c.h.b16 %v1198
        %v1216 = vunpack.c.l.b16 %v1199
        %v1217 = vunpack.c.h.b16 %v1199
        %v1218 = vpack.c.b16 %v1216, %v1214
        %v1219 = vpack.c.b16 %v1217, %v1215
        %v1222 = vsel %vm911, %v1219, 0
        %1224 = vmatprep.subr.bf16.mxu0 %v1172
        %1225 = vmatpush1.bf16.msra.mxu0 %v1171
        %1226 = vmatprep.subr.bf16.mxu0 %v1175
        %1227 = vmatpush1.bf16.msra.mxu0 %v1174
        %1228 = vmatprep.subr.bf16.mxu0 %v1178
        %1229 = vmatpush1.bf16.msra.mxu0 %v1177
        %1230 = vmatprep.subr.bf16.mxu0 %v1181
        %1231 = vmatpush1.bf16.msra.mxu0 %v1180
        %1232 = vmatprep.subr.bf16.mxu0 %v1184
        %1233 = vmatpush1.bf16.msra.mxu0 %v1183
        %1234 = vmatprep.subr.bf16.mxu0 %v1187
        %1235 = vmatpush1.bf16.msra.mxu0 %v1186
        %1236 = vmatprep.subr.bf16.mxu0 %v1190
        %1237 = vmatpush1.bf16.msra.mxu0 %v1189
        %1238 = vmatprep.subr.bf16.mxu0 %v1193
        %1239 = vmatpush1.bf16.msra.mxu0 %v1192
        %1240 = vmatprep.subr.bf16.mxu0 %v1196
        %1241 = vmatpush1.bf16.msra.mxu0 %v1195
        %1242 = vmatprep.subr.bf16.mxu0 0
        %1243 = vmatpush1.bf16.msra.mxu0 0
        %1244 = vmatprep.subr.bf16.mxu0 0
        %1245 = vmatpush1.bf16.msra.mxu0 0
        %1246 = vmatprep.subr.bf16.mxu0 0
        %1247 = vmatpush1.bf16.msra.mxu0 0
        %1248 = vmatprep.subr.bf16.mxu0 0
        %1249 = vmatpush1.bf16.msra.mxu0 0
        %1250 = vmatprep.subr.bf16.mxu0 0
        %1251 = vmatpush1.bf16.msra.mxu0 0
        %1252 = vmatprep.subr.bf16.mxu0 0
        %1253 = vmatpush1.bf16.msra.mxu0 0
        %1254 = vmatprep.subr.bf16.mxu0 0
        %1255 = vmatpush1.bf16.msra.mxu0 0
        %1256 = vmatprep.mubr.bf16.mxu0 %v1222
        %1257 = vmatmul.mubr.bf16.gmra.mrb[0].mxu0 %v1218
        %v1258 = vpop.f32.mrb[0].mxu0
        %v1259 = vadd.f32 %v1205, %v1258
        %v1260 = vpop.f32.mrb[0].mxu0
        %v1261 = vadd.f32 %v1205, %v1260
        %v1262 = vpop.f32.mrb[0].mxu0
        %v1263 = vadd.f32 %v1210, %v1262
        %v1264 = vpop.f32.mrb[0].mxu0
        %v1265 = vadd.f32 %v1210, %v1264
        %1266 = vdwg.mxu0
        %1267 = vmatprep.subr.bf16.mxu0 0
        %1268 = vmatpush1.bf16.msra.mxu0 %v1173
        %1269 = vmatprep.subr.bf16.mxu0 0
        %1270 = vmatpush1.bf16.msra.mxu0 %v1176
        %1271 = vmatprep.subr.bf16.mxu0 0
        %1272 = vmatpush1.bf16.msra.mxu0 %v1179
        %1273 = vmatprep.subr.bf16.mxu0 0
        %1274 = vmatpush1.bf16.msra.mxu0 %v1182
        %1275 = vmatprep.subr.bf16.mxu0 0
        %1276 = vmatpush1.bf16.msra.mxu0 %v1185
        %1277 = vmatprep.subr.bf16.mxu0 0
        %1278 = vmatpush1.bf16.msra.mxu0 %v1188
        %1279 = vmatprep.subr.bf16.mxu0 0
        %1280 = vmatpush1.bf16.msra.mxu0 %v1191
        %1281 = vmatprep.subr.bf16.mxu0 0
        %1282 = vmatpush1.bf16.msra.mxu0 %v1194
        %1283 = vmatprep.subr.bf16.mxu0 0
        %1284 = vmatpush1.bf16.msra.mxu0 %v1197
        %1285 = vmatprep.subr.bf16.mxu0 0
        %1286 = vmatpush1.bf16.msra.mxu0 0
        %1287 = vmatprep.subr.bf16.mxu0 0
        %1288 = vmatpush1.bf16.msra.mxu0 0
        %1289 = vmatprep.subr.bf16.mxu0 0
        %1290 = vmatpush1.bf16.msra.mxu0 0
        %1291 = vmatprep.subr.bf16.mxu0 0
        %1292 = vmatpush1.bf16.msra.mxu0 0
        %1293 = vmatprep.subr.bf16.mxu0 0
        %1294 = vmatpush1.bf16.msra.mxu0 0
        %1295 = vmatprep.subr.bf16.mxu0 0
        %1296 = vmatpush1.bf16.msra.mxu0 0
        %1297 = vmatprep.subr.bf16.mxu0 0
        %1298 = vmatpush1.bf16.msra.mxu0 0
        %1299 = vmatprep.mubr.bf16.mxu0 %v1222
        %1300 = vmatmul.mubr.bf16.gmra.mrb[0].mxu0 %v1218
        %v1301 = vpop.f32.mrb[0].mxu0
        %v1302 = vadd.f32 %v1205, %v1301
        %v1303 = vpop.f32.mrb[0].mxu0
        %v1304 = vpop.f32.mrb[0].mxu0
        %v1305 = vadd.f32 %v1210, %v1304
        %v1306 = vpop.f32.mrb[0].mxu0
        %1307 = vdwg.mxu0
        %v1308 = vmax.f32 %v1259, 0.0
        %v1309 = vmax.f32 %v1261, 0.0
        %v1310 = vmax.f32 %v1302, 0.0
        %v1311 = vmax.f32 %v1263, 0.0
        %v1312 = vmax.f32 %v1265, 0.0
        %v1313 = vmax.f32 %v1305, 0.0
        %v1314 = vmul.f32 %v1308, %v1009
        %v1315 = vmul.f32 %v1309, %v1013
        %v1316 = vmul.f32 %v1310, %v1017
        %v1317 = vmul.f32 %v1311, %v1009
        %v1318 = vmul.f32 %v1312, %v1013
        %v1319 = vmul.f32 %v1313, %v1017
        %v1320 = vld [vmem:[%s8] sm:$0xff]
        %v1321 = vld [vmem:[%s8 + $0x8] sm:$0xff]
        %1322 = vrot.lane.b32.xlu0 %v1314, 19
        %v1323 = vpop.permute.xlu0 %1322
        %1324 = vrot.lane.b32.xlu0 %v1317, 19
        %v1325 = vpop.permute.xlu0 %1324
        %1326 = vrot.lane.b32.xlu0 %v1315, 19
        %v1327 = vpop.permute.xlu0 %1326
        %1328 = vrot.lane.b32.xlu0 %v1318, 19
        %v1329 = vpop.permute.xlu0 %1328
        %1330 = vrot.lane.b32.xlu0 %v1316, 19
        %v1331 = vpop.permute.xlu0 %1330
        %1332 = vrot.lane.b32.xlu0 %v1319, 19
        %v1333 = vpop.permute.xlu0 %1332
        %v1334 = vsel %vm723, %v1327, %v1331
        %v1335 = vsel %vm723, %v1329, %v1333
        %v1336 = vsel %vm723, %v1323, %v1327
        %v1337 = vsel %vm723, %v1325, %v1329
        %v1338 = vsel %vm723, %v1331, %v1323
        %v1339 = vsel %vm723, %v1333, %v1325
        %1340 = vrot.lane.b32.xlu0 %v1314, 18
        %v1341 = vpop.permute.xlu0 %1340
        %1342 = vrot.lane.b32.xlu0 %v1317, 18
        %v1343 = vpop.permute.xlu0 %1342
        %1344 = vrot.lane.b32.xlu0 %v1315, 18
        %v1345 = vpop.permute.xlu0 %1344
        %1346 = vrot.lane.b32.xlu0 %v1318, 18
        %v1347 = vpop.permute.xlu0 %1346
        %1348 = vrot.lane.b32.xlu0 %v1316, 18
        %v1349 = vpop.permute.xlu0 %1348
        %1350 = vrot.lane.b32.xlu0 %v1319, 18
        %v1351 = vpop.permute.xlu0 %1350
        %v1352 = vsel %vm742, %v1345, %v1349
        %v1353 = vsel %vm742, %v1347, %v1351
        %v1354 = vsel %vm742, %v1341, %v1345
        %v1355 = vsel %vm742, %v1343, %v1347
        %v1356 = vsel %vm742, %v1349, %v1341
        %v1357 = vsel %vm742, %v1351, %v1343
        %1358 = vrot.lane.b32.xlu0 %v1314, 17
        %v1359 = vpop.permute.xlu0 %1358
        %1360 = vrot.lane.b32.xlu0 %v1317, 17
        %v1361 = vpop.permute.xlu0 %1360
        %1362 = vrot.lane.b32.xlu0 %v1315, 17
        %v1363 = vpop.permute.xlu0 %1362
        %1364 = vrot.lane.b32.xlu0 %v1318, 17
        %v1365 = vpop.permute.xlu0 %1364
        %1366 = vrot.lane.b32.xlu0 %v1316, 17
        %v1367 = vpop.permute.xlu0 %1366
        %1368 = vrot.lane.b32.xlu0 %v1319, 17
        %v1369 = vpop.permute.xlu0 %1368
        %v1370 = vsel %vm761, %v1363, %v1367
        %v1371 = vsel %vm761, %v1365, %v1369
        %v1372 = vsel %vm761, %v1359, %v1363
        %v1373 = vsel %vm761, %v1361, %v1365
        %v1374 = vsel %vm761, %v1367, %v1359
        %v1375 = vsel %vm761, %v1369, %v1361
        %1376 = vrot.lane.b32.xlu0 %v1314, 1
        %v1377 = vpop.permute.xlu0 %1376
        %1378 = vrot.lane.b32.xlu0 %v1317, 1
        %v1379 = vpop.permute.xlu0 %1378
        %1380 = vrot.lane.b32.xlu0 %v1315, 1
        %v1381 = vpop.permute.xlu0 %1380
        %1382 = vrot.lane.b32.xlu0 %v1318, 1
        %v1383 = vpop.permute.xlu0 %1382
        %1384 = vrot.lane.b32.xlu0 %v1316, 1
        %v1385 = vpop.permute.xlu0 %1384
        %1386 = vrot.lane.b32.xlu0 %v1319, 1
        %v1387 = vpop.permute.xlu0 %1386
        %v1388 = vsel %vm780, %v1381, %v1385
        %v1389 = vsel %vm780, %v1383, %v1387
        %v1390 = vsel %vm780, %v1377, %v1381
        %v1391 = vsel %vm780, %v1379, %v1383
        %v1392 = vsel %vm780, %v1385, %v1377
        %v1393 = vsel %vm780, %v1387, %v1379
        %1394 = vrot.lane.b32.xlu0 %v1314, 127
        %v1395 = vpop.permute.xlu0 %1394
        %1396 = vrot.lane.b32.xlu0 %v1317, 127
        %v1397 = vpop.permute.xlu0 %1396
        %1398 = vrot.lane.b32.xlu0 %v1315, 127
        %v1399 = vpop.permute.xlu0 %1398
        %1400 = vrot.lane.b32.xlu0 %v1318, 127
        %v1401 = vpop.permute.xlu0 %1400
        %1402 = vrot.lane.b32.xlu0 %v1316, 127
        %v1403 = vpop.permute.xlu0 %1402
        %1404 = vrot.lane.b32.xlu0 %v1319, 127
        %v1405 = vpop.permute.xlu0 %1404
        %v1406 = vsel %vm799, %v1399, %v1403
        %v1407 = vsel %vm799, %v1401, %v1405
        %v1408 = vsel %vm799, %v1395, %v1399
        %v1409 = vsel %vm799, %v1397, %v1401
        %v1410 = vsel %vm799, %v1403, %v1395
        %v1411 = vsel %vm799, %v1405, %v1397
        %1412 = vrot.lane.b32.xlu0 %v1314, 111
        %v1413 = vpop.permute.xlu0 %1412
        %1414 = vrot.lane.b32.xlu0 %v1317, 111
        %v1415 = vpop.permute.xlu0 %1414
        %1416 = vrot.lane.b32.xlu0 %v1315, 111
        %v1417 = vpop.permute.xlu0 %1416
        %1418 = vrot.lane.b32.xlu0 %v1318, 111
        %v1419 = vpop.permute.xlu0 %1418
        %1420 = vrot.lane.b32.xlu0 %v1316, 111
        %v1421 = vpop.permute.xlu0 %1420
        %1422 = vrot.lane.b32.xlu0 %v1319, 111
        %v1423 = vpop.permute.xlu0 %1422
        %v1424 = vsel %vm818, %v1417, %v1421
        %v1425 = vsel %vm818, %v1419, %v1423
        %v1426 = vsel %vm818, %v1413, %v1417
        %v1427 = vsel %vm818, %v1415, %v1419
        %v1428 = vsel %vm818, %v1421, %v1413
        %v1429 = vsel %vm818, %v1423, %v1415
        %1430 = vrot.lane.b32.xlu0 %v1314, 110
        %v1431 = vpop.permute.xlu0 %1430
        %1432 = vrot.lane.b32.xlu0 %v1317, 110
        %v1433 = vpop.permute.xlu0 %1432
        %1434 = vrot.lane.b32.xlu0 %v1315, 110
        %v1435 = vpop.permute.xlu0 %1434
        %1436 = vrot.lane.b32.xlu0 %v1318, 110
        %v1437 = vpop.permute.xlu0 %1436
        %1438 = vrot.lane.b32.xlu0 %v1316, 110
        %v1439 = vpop.permute.xlu0 %1438
        %1440 = vrot.lane.b32.xlu0 %v1319, 110
        %v1441 = vpop.permute.xlu0 %1440
        %v1442 = vsel %vm837, %v1435, %v1439
        %v1443 = vsel %vm837, %v1437, %v1441
        %v1444 = vsel %vm837, %v1431, %v1435
        %v1445 = vsel %vm837, %v1433, %v1437
        %v1446 = vsel %vm837, %v1439, %v1431
        %v1447 = vsel %vm837, %v1441, %v1433
        %1448 = vrot.lane.b32.xlu0 %v1314, 109
        %v1449 = vpop.permute.xlu0 %1448
        %1450 = vrot.lane.b32.xlu0 %v1317, 109
        %v1451 = vpop.permute.xlu0 %1450
        %1452 = vrot.lane.b32.xlu0 %v1315, 109
        %v1453 = vpop.permute.xlu0 %1452
        %1454 = vrot.lane.b32.xlu0 %v1318, 109
        %v1455 = vpop.permute.xlu0 %1454
        %1456 = vrot.lane.b32.xlu0 %v1316, 109
        %v1457 = vpop.permute.xlu0 %1456
        %1458 = vrot.lane.b32.xlu0 %v1319, 109
        %v1459 = vpop.permute.xlu0 %1458
        %v1460 = vsel %vm856, %v1453, %v1457
        %v1461 = vsel %vm856, %v1455, %v1459
        %v1462 = vsel %vm856, %v1449, %v1453
        %v1463 = vsel %vm856, %v1451, %v1455
        %v1464 = vsel %vm856, %v1457, %v1449
        %v1465 = vsel %vm856, %v1459, %v1451
        %v1466 = vpack.c.bf16 %v1339, %v1338
        %v1467 = vpack.c.bf16 %v1337, %v1336
        %v1468 = vpack.c.bf16 %v1335, %v1334
        %v1469 = vpack.c.bf16 %v1357, %v1356
        %v1470 = vpack.c.bf16 %v1355, %v1354
        %v1471 = vpack.c.bf16 %v1353, %v1352
        %v1472 = vpack.c.bf16 %v1375, %v1374
        %v1473 = vpack.c.bf16 %v1373, %v1372
        %v1474 = vpack.c.bf16 %v1371, %v1370
        %v1475 = vpack.c.bf16 %v1393, %v1392
        %v1476 = vpack.c.bf16 %v1391, %v1390
        %v1477 = vpack.c.bf16 %v1389, %v1388
        %v1478 = vpack.c.bf16 %v1317, %v1314
        %v1479 = vpack.c.bf16 %v1318, %v1315
        %v1480 = vpack.c.bf16 %v1319, %v1316
        %v1481 = vpack.c.bf16 %v1409, %v1408
        %v1482 = vpack.c.bf16 %v1407, %v1406
        %v1483 = vpack.c.bf16 %v1411, %v1410
        %v1484 = vpack.c.bf16 %v1427, %v1426
        %v1485 = vpack.c.bf16 %v1425, %v1424
        %v1486 = vpack.c.bf16 %v1429, %v1428
        %v1487 = vpack.c.bf16 %v1445, %v1444
        %v1488 = vpack.c.bf16 %v1443, %v1442
        %v1489 = vpack.c.bf16 %v1447, %v1446
        %v1490 = vpack.c.bf16 %v1463, %v1462
        %v1491 = vpack.c.bf16 %v1461, %v1460
        %v1492 = vpack.c.bf16 %v1465, %v1464
        %v1493 = vld [vmem:[%s9] sm:$0xff]
        %v1494 = vld [vmem:[%s9 + $0x8] sm:$0xff]
        %1496 = vset.pattern.permute.xlu0 0
        %1497 = vperm.xlu0 %1496, %v1493
        %v1498 = vpop.permute.xlu0 %1497
        %1501 = vset.pattern.permute.xlu0 0
        %1502 = vperm.xlu0 %1501, %v1494
        %v1503 = vpop.permute.xlu0 %1502
        %v1507 = vunpack.c.l.b16 %v1320
        %v1508 = vunpack.c.h.b16 %v1320
        %v1509 = vunpack.c.l.b16 %v1321
        %v1510 = vunpack.c.h.b16 %v1321
        %v1511 = vpack.c.b16 %v1509, %v1507
        %v1512 = vpack.c.b16 %v1510, %v1508
        %v1515 = vsel %vm911, %v1512, 0
        %1517 = vmatprep.subr.bf16.mxu0 %v1467
        %1518 = vmatpush1.bf16.msra.mxu0 %v1466
        %1519 = vmatprep.subr.bf16.mxu0 %v1470
        %1520 = vmatpush1.bf16.msra.mxu0 %v1469
        %1521 = vmatprep.subr.bf16.mxu0 %v1473
        %1522 = vmatpush1.bf16.msra.mxu0 %v1472
        %1523 = vmatprep.subr.bf16.mxu0 %v1476
        %1524 = vmatpush1.bf16.msra.mxu0 %v1475
        %1525 = vmatprep.subr.bf16.mxu0 %v1479
        %1526 = vmatpush1.bf16.msra.mxu0 %v1478
        %1527 = vmatprep.subr.bf16.mxu0 %v1482
        %1528 = vmatpush1.bf16.msra.mxu0 %v1481
        %1529 = vmatprep.subr.bf16.mxu0 %v1485
        %1530 = vmatpush1.bf16.msra.mxu0 %v1484
        %1531 = vmatprep.subr.bf16.mxu0 %v1488
        %1532 = vmatpush1.bf16.msra.mxu0 %v1487
        %1533 = vmatprep.subr.bf16.mxu0 %v1491
        %1534 = vmatpush1.bf16.msra.mxu0 %v1490
        %1535 = vmatprep.subr.bf16.mxu0 0
        %1536 = vmatpush1.bf16.msra.mxu0 0
        %1537 = vmatprep.subr.bf16.mxu0 0
        %1538 = vmatpush1.bf16.msra.mxu0 0
        %1539 = vmatprep.subr.bf16.mxu0 0
        %1540 = vmatpush1.bf16.msra.mxu0 0
        %1541 = vmatprep.subr.bf16.mxu0 0
        %1542 = vmatpush1.bf16.msra.mxu0 0
        %1543 = vmatprep.subr.bf16.mxu0 0
        %1544 = vmatpush1.bf16.msra.mxu0 0
        %1545 = vmatprep.subr.bf16.mxu0 0
        %1546 = vmatpush1.bf16.msra.mxu0 0
        %1547 = vmatprep.subr.bf16.mxu0 0
        %1548 = vmatpush1.bf16.msra.mxu0 0
        %1549 = vmatprep.mubr.bf16.mxu0 %v1515
        %1550 = vmatmul.mubr.bf16.gmra.mrb[0].mxu0 %v1511
        %v1551 = vpop.f32.mrb[0].mxu0
        %v1552 = vadd.f32 %v1498, %v1551
        %v1553 = vpop.f32.mrb[0].mxu0
        %v1554 = vadd.f32 %v1498, %v1553
        %v1555 = vpop.f32.mrb[0].mxu0
        %v1556 = vadd.f32 %v1503, %v1555
        %v1557 = vpop.f32.mrb[0].mxu0
        %v1558 = vadd.f32 %v1503, %v1557
        %1559 = vdwg.mxu0
        %1560 = vmatprep.subr.bf16.mxu0 0
        %1561 = vmatpush1.bf16.msra.mxu0 %v1468
        %1562 = vmatprep.subr.bf16.mxu0 0
        %1563 = vmatpush1.bf16.msra.mxu0 %v1471
        %1564 = vmatprep.subr.bf16.mxu0 0
        %1565 = vmatpush1.bf16.msra.mxu0 %v1474
        %1566 = vmatprep.subr.bf16.mxu0 0
        %1567 = vmatpush1.bf16.msra.mxu0 %v1477
        %1568 = vmatprep.subr.bf16.mxu0 0
        %1569 = vmatpush1.bf16.msra.mxu0 %v1480
        %1570 = vmatprep.subr.bf16.mxu0 0
        %1571 = vmatpush1.bf16.msra.mxu0 %v1483
        %1572 = vmatprep.subr.bf16.mxu0 0
        %1573 = vmatpush1.bf16.msra.mxu0 %v1486
        %1574 = vmatprep.subr.bf16.mxu0 0
        %1575 = vmatpush1.bf16.msra.mxu0 %v1489
        %1576 = vmatprep.subr.bf16.mxu0 0
        %1577 = vmatpush1.bf16.msra.mxu0 %v1492
        %1578 = vmatprep.subr.bf16.mxu0 0
        %1579 = vmatpush1.bf16.msra.mxu0 0
        %1580 = vmatprep.subr.bf16.mxu0 0
        %1581 = vmatpush1.bf16.msra.mxu0 0
        %1582 = vmatprep.subr.bf16.mxu0 0
        %1583 = vmatpush1.bf16.msra.mxu0 0
        %1584 = vmatprep.subr.bf16.mxu0 0
        %1585 = vmatpush1.bf16.msra.mxu0 0
        %1586 = vmatprep.subr.bf16.mxu0 0
        %1587 = vmatpush1.bf16.msra.mxu0 0
        %1588 = vmatprep.subr.bf16.mxu0 0
        %1589 = vmatpush1.bf16.msra.mxu0 0
        %1590 = vmatprep.subr.bf16.mxu0 0
        %1591 = vmatpush1.bf16.msra.mxu0 0
        %1592 = vmatprep.mubr.bf16.mxu0 %v1515
        %1593 = vmatmul.mubr.bf16.gmra.mrb[0].mxu0 %v1511
        %v1594 = vpop.f32.mrb[0].mxu0
        %v1595 = vadd.f32 %v1498, %v1594
        %v1596 = vpop.f32.mrb[0].mxu0
        %v1597 = vpop.f32.mrb[0].mxu0
        %v1598 = vadd.f32 %v1503, %v1597
        %v1599 = vpop.f32.mrb[0].mxu0
        %1600 = vdwg.mxu0
        %v1601 = vadd.f32 %v1552, %v1021
        %v1602 = vadd.f32 %v1554, %v1022
        %v1603 = vadd.f32 %v1595, %v1023
        %v1604 = vadd.f32 %v1556, %v1024
        %v1605 = vadd.f32 %v1558, %v1025
        %v1606 = vadd.f32 %v1598, %v1026
        %v1607 = vmax.f32 %v1601, 0.0
        %v1608 = vmax.f32 %v1602, 0.0
        %v1609 = vmax.f32 %v1603, 0.0
        %v1610 = vmax.f32 %v1604, 0.0
        %v1611 = vmax.f32 %v1605, 0.0
        %v1612 = vmax.f32 %v1606, 0.0
        %v1613 = vmul.f32 %v1607, %v1009
        %v1614 = vmul.f32 %v1608, %v1013
        %v1615 = vmul.f32 %v1609, %v1017
        %v1616 = vmul.f32 %v1610, %v1009
        %v1617 = vmul.f32 %v1611, %v1013
        %v1618 = vmul.f32 %v1612, %v1017
        %v1619 = vld [vmem:[%s2] sm:$0x1]
        %v1620 = vpack.c.bf16 %v1616, %v1613
        %v1621 = vpack.c.bf16 %v1617, %v1614
        %v1622 = vpack.c.bf16 %v1618, %v1615
        %v1623 = vld [vmem:[%s10] sm:$0xf]
        %v1624 = vld [vmem:[%s10 + $0x4] sm:$0xf]
        %v1625 = vld [vmem:[%s10 + $0x8] sm:$0xf]
        %v1626 = vld [vmem:[%s10 + $0xc] sm:$0xf]
        %v1627 = vld [vmem:[%s10 + $0x10] sm:$0xf]
        %v1628 = vld [vmem:[%s10 + $0x14] sm:$0xf]
        %v1629 = vld [vmem:[%s10 + $0x18] sm:$0xf]
        %v1630 = vld [vmem:[%s10 + $0x1c] sm:$0xf]
        %v1631 = vld [vmem:[%s10 + $0x20] sm:$0xf]
        %v1632 = vld [vmem:[%s10 + $0x24] sm:$0xf]
        %v1633 = vld [vmem:[%s10 + $0x28] sm:$0xf]
        %v1634 = vld [vmem:[%s10 + $0x2c] sm:$0xf]
        %v1635 = vld [vmem:[%s10 + $0x30] sm:$0xf]
        %v1636 = vld [vmem:[%s10 + $0x34] sm:$0xf]
        %v1637 = vld [vmem:[%s10 + $0x38] sm:$0xf]
        %v1638 = vld [vmem:[%s10 + $0x3c] sm:$0xf]
        %v1639 = vld [vmem:[%s10 + $0x40] sm:$0xf]
        %v1640 = vld [vmem:[%s10 + $0x44] sm:$0xf]
        %v1641 = vld [vmem:[%s10 + $0x48] sm:$0xf]
        %v1642 = vld [vmem:[%s10 + $0x4c] sm:$0xf]
        %v1643 = vld [vmem:[%s10 + $0x50] sm:$0xf]
        %v1644 = vld [vmem:[%s10 + $0x54] sm:$0xf]
        %v1645 = vld [vmem:[%s10 + $0x58] sm:$0xf]
        %v1646 = vld [vmem:[%s10 + $0x5c] sm:$0xf]
        %v1647 = vld [vmem:[%s10 + $0x60] sm:$0xf]
        %v1648 = vld [vmem:[%s10 + $0x64] sm:$0xf]
        %v1649 = vld [vmem:[%s10 + $0x68] sm:$0xf]
        %v1650 = vld [vmem:[%s10 + $0x6c] sm:$0xf]
        %v1651 = vld [vmem:[%s10 + $0x70] sm:$0xf]
        %v1652 = vld [vmem:[%s10 + $0x74] sm:$0xf]
        %v1653 = vld [vmem:[%s10 + $0x78] sm:$0xf]
        %v1654 = vld [vmem:[%s10 + $0x7c] sm:$0xf]
        %v1655 = vld [vmem:[%s10 + $0x80] sm:$0xf]
        %v1656 = vld [vmem:[%s10 + $0x84] sm:$0xf]
        %v1657 = vld [vmem:[%s10 + $0x88] sm:$0xf]
        %v1658 = vld [vmem:[%s10 + $0x8c] sm:$0xf]
        %v1659 = vld [vmem:[%s10 + $0x90] sm:$0xf]
        %v1660 = vld [vmem:[%s10 + $0x94] sm:$0xf]
        %v1661 = vld [vmem:[%s10 + $0x98] sm:$0xf]
        %v1662 = vld [vmem:[%s10 + $0x9c] sm:$0xf]
        %v1663 = vld [vmem:[%s10 + $0xa0] sm:$0xf]
        %v1664 = vld [vmem:[%s10 + $0xa4] sm:$0xf]
        %v1665 = vld [vmem:[%s10 + $0xa8] sm:$0xf]
        %v1666 = vld [vmem:[%s10 + $0xac] sm:$0xf]
        %v1667 = vld [vmem:[%s10 + $0xb0] sm:$0xf]
        %v1668 = vld [vmem:[%s10 + $0xb4] sm:$0xf]
        %v1669 = vld [vmem:[%s10 + $0xb8] sm:$0xf]
        %v1670 = vld [vmem:[%s10 + $0xbc] sm:$0xf]
        %v1719 = vunpack.c.l.b16 %v1623
        %v1720 = vunpack.c.l.b16 %v1624
        %v1721 = vunpack.c.l.b16 %v1625
        %v1722 = vunpack.c.l.b16 %v1626
        %v1723 = vunpack.c.l.b16 %v1627
        %v1724 = vunpack.c.l.b16 %v1628
        %v1725 = vunpack.c.l.b16 %v1629
        %v1726 = vunpack.c.l.b16 %v1630
        %v1727 = vunpack.c.l.b16 %v1631
        %v1728 = vunpack.c.l.b16 %v1632
        %v1729 = vunpack.c.l.b16 %v1633
        %v1730 = vunpack.c.l.b16 %v1634
        %v1731 = vunpack.c.l.b16 %v1635
        %v1732 = vunpack.c.l.b16 %v1636
        %v1733 = vunpack.c.l.b16 %v1637
        %v1734 = vunpack.c.l.b16 %v1638
        %v1735 = vunpack.c.l.b16 %v1639
        %v1736 = vunpack.c.l.b16 %v1640
        %v1737 = vunpack.c.l.b16 %v1641
        %v1738 = vunpack.c.l.b16 %v1642
        %v1739 = vunpack.c.l.b16 %v1643
        %v1740 = vunpack.c.l.b16 %v1644
        %v1741 = vunpack.c.l.b16 %v1645
        %v1742 = vunpack.c.l.b16 %v1646
        %v1743 = vunpack.c.l.b16 %v1647
        %v1744 = vunpack.c.l.b16 %v1648
        %v1745 = vunpack.c.l.b16 %v1649
        %v1746 = vunpack.c.l.b16 %v1650
        %v1747 = vunpack.c.l.b16 %v1651
        %v1748 = vunpack.c.l.b16 %v1652
        %v1749 = vunpack.c.l.b16 %v1653
        %v1750 = vunpack.c.l.b16 %v1654
        %v1751 = vunpack.c.l.b16 %v1655
        %v1752 = vunpack.c.l.b16 %v1656
        %v1753 = vunpack.c.l.b16 %v1657
        %v1754 = vunpack.c.l.b16 %v1658
        %v1755 = vunpack.c.l.b16 %v1659
        %v1756 = vunpack.c.l.b16 %v1660
        %v1757 = vunpack.c.l.b16 %v1661
        %v1758 = vunpack.c.l.b16 %v1662
        %v1759 = vunpack.c.l.b16 %v1663
        %v1760 = vunpack.c.l.b16 %v1664
        %v1761 = vunpack.c.l.b16 %v1665
        %v1762 = vunpack.c.l.b16 %v1666
        %v1763 = vunpack.c.l.b16 %v1667
        %v1764 = vunpack.c.l.b16 %v1668
        %v1765 = vunpack.c.l.b16 %v1669
        %v1766 = vunpack.c.l.b16 %v1670
        %v1767 = vpack.c.b16 %v1720, %v1719
        %v1768 = vpack.c.b16 %v1722, %v1721
        %v1769 = vpack.c.b16 %v1724, %v1723
        %v1770 = vpack.c.b16 %v1726, %v1725
        %v1771 = vpack.c.b16 %v1728, %v1727
        %v1772 = vpack.c.b16 %v1730, %v1729
        %v1773 = vpack.c.b16 %v1732, %v1731
        %v1774 = vpack.c.b16 %v1734, %v1733
        %v1775 = vpack.c.b16 %v1736, %v1735
        %v1776 = vpack.c.b16 %v1738, %v1737
        %v1777 = vpack.c.b16 %v1740, %v1739
        %v1778 = vpack.c.b16 %v1742, %v1741
        %v1779 = vpack.c.b16 %v1744, %v1743
        %v1780 = vpack.c.b16 %v1746, %v1745
        %v1781 = vpack.c.b16 %v1748, %v1747
        %v1782 = vpack.c.b16 %v1750, %v1749
        %v1783 = vpack.c.b16 %v1752, %v1751
        %v1784 = vpack.c.b16 %v1754, %v1753
        %v1785 = vpack.c.b16 %v1756, %v1755
        %v1786 = vpack.c.b16 %v1758, %v1757
        %v1787 = vpack.c.b16 %v1760, %v1759
        %v1788 = vpack.c.b16 %v1762, %v1761
        %v1789 = vpack.c.b16 %v1764, %v1763
        %v1790 = vpack.c.b16 %v1766, %v1765
        %1815 = vmatprep.subr.bf16.mxu0 0
        %1816 = vmatpush1.bf16.msra.mxu0 %v1767
        %1817 = vmatprep.subr.bf16.mxu0 0
        %1818 = vmatpush1.bf16.msra.mxu0 %v1768
        %1819 = vmatprep.subr.bf16.mxu0 0
        %1820 = vmatpush1.bf16.msra.mxu0 %v1769
        %1821 = vmatprep.subr.bf16.mxu0 0
        %1822 = vmatpush1.bf16.msra.mxu0 %v1770
        %1823 = vmatprep.subr.bf16.mxu0 0
        %1824 = vmatpush1.bf16.msra.mxu0 %v1771
        %1825 = vmatprep.subr.bf16.mxu0 0
        %1826 = vmatpush1.bf16.msra.mxu0 %v1772
        %1827 = vmatprep.subr.bf16.mxu0 0
        %1828 = vmatpush1.bf16.msra.mxu0 %v1773
        %1829 = vmatprep.subr.bf16.mxu0 0
        %1830 = vmatpush1.bf16.msra.mxu0 %v1774
        %1831 = vmatprep.subr.bf16.mxu0 0
        %1832 = vmatpush1.bf16.msra.mxu0 %v1775
        %1833 = vmatprep.subr.bf16.mxu0 0
        %1834 = vmatpush1.bf16.msra.mxu0 %v1776
        %1835 = vmatprep.subr.bf16.mxu0 0
        %1836 = vmatpush1.bf16.msra.mxu0 %v1777
        %1837 = vmatprep.subr.bf16.mxu0 0
        %1838 = vmatpush1.bf16.msra.mxu0 %v1778
        %1839 = vmatprep.subr.bf16.mxu0 0
        %1840 = vmatpush1.bf16.msra.mxu0 %v1779
        %1841 = vmatprep.subr.bf16.mxu0 0
        %1842 = vmatpush1.bf16.msra.mxu0 %v1780
        %1843 = vmatprep.subr.bf16.mxu0 0
        %1844 = vmatpush1.bf16.msra.mxu0 %v1781
        %1845 = vmatprep.subr.bf16.mxu0 0
        %1846 = vmatpush1.bf16.msra.mxu0 %v1782
        %1847 = vmatprep.mubr.bf16.mxu0 %v1621
        %1848 = vmatmul.mubr.bf16.gmra.mrb[0].mxu0 %v1620
        %v1849 = vpop.f32.mrb[0].mxu0
        %v1850 = vadd.f32 0.0, %v1849
        %v1851 = vpop.f32.mrb[0].mxu0
        %v1852 = vpop.f32.mrb[0].mxu0
        %v1853 = vadd.f32 0.0, %v1852
        %v1854 = vpop.f32.mrb[0].mxu0
        %1855 = vdwg.mxu0
        %1856 = vmatprep.subr.bf16.mxu0 0
        %1857 = vmatpush1.bf16.msra.mxu0 %v1783
        %1858 = vmatprep.subr.bf16.mxu0 0
        %1859 = vmatpush1.bf16.msra.mxu0 %v1784
        %1860 = vmatprep.subr.bf16.mxu0 0
        %1861 = vmatpush1.bf16.msra.mxu0 %v1785
        %1862 = vmatprep.subr.bf16.mxu0 0
        %1863 = vmatpush1.bf16.msra.mxu0 %v1786
        %1864 = vmatprep.subr.bf16.mxu0 0
        %1865 = vmatpush1.bf16.msra.mxu0 %v1787
        %1866 = vmatprep.subr.bf16.mxu0 0
        %1867 = vmatpush1.bf16.msra.mxu0 %v1788
        %1868 = vmatprep.subr.bf16.mxu0 0
        %1869 = vmatpush1.bf16.msra.mxu0 %v1789
        %1870 = vmatprep.subr.bf16.mxu0 0
        %1871 = vmatpush1.bf16.msra.mxu0 %v1790
        %1872 = vmatprep.subr.bf16.mxu0 0
        %1873 = vmatpush1.bf16.msra.mxu0 0
        %1874 = vmatprep.subr.bf16.mxu0 0
        %1875 = vmatpush1.bf16.msra.mxu0 0
        %1876 = vmatprep.subr.bf16.mxu0 0
        %1877 = vmatpush1.bf16.msra.mxu0 0
        %1878 = vmatprep.subr.bf16.mxu0 0
        %1879 = vmatpush1.bf16.msra.mxu0 0
        %1880 = vmatprep.subr.bf16.mxu0 0
        %1881 = vmatpush1.bf16.msra.mxu0 0
        %1882 = vmatprep.subr.bf16.mxu0 0
        %1883 = vmatpush1.bf16.msra.mxu0 0
        %1884 = vmatprep.subr.bf16.mxu0 0
        %1885 = vmatpush1.bf16.msra.mxu0 0
        %1886 = vmatprep.subr.bf16.mxu0 0
        %1887 = vmatpush1.bf16.msra.mxu0 0
        %1888 = vmatprep.mubr.bf16.mxu0 0
        %1889 = vmatmul.mubr.bf16.gmra.mrb[0].mxu0 %v1622
        %v1890 = vpop.f32.mrb[0].mxu0
        %v1891 = vadd.f32 %v1850, %v1890
        %v1892 = vpop.f32.mrb[0].mxu0
        %v1893 = vpop.f32.mrb[0].mxu0
        %v1894 = vadd.f32 %v1853, %v1893
        %v1895 = vpop.f32.mrb[0].mxu0
        %1896 = vdwg.mxu0
        %s1897 = scalar_lea.vmem %s10, 192
        %v1898 = vld [vmem:[%s1897] sm:$0xf]
        %v1899 = vld [vmem:[%s1897 + $0x4] sm:$0xf]
        %v1900 = vld [vmem:[%s1897 + $0x8] sm:$0xf]
        %v1901 = vld [vmem:[%s1897 + $0xc] sm:$0xf]
        %v1902 = vld [vmem:[%s1897 + $0x10] sm:$0xf]
        %v1903 = vld [vmem:[%s1897 + $0x14] sm:$0xf]
        %v1904 = vld [vmem:[%s1897 + $0x18] sm:$0xf]
        %v1905 = vld [vmem:[%s1897 + $0x1c] sm:$0xf]
        %v1906 = vld [vmem:[%s1897 + $0x20] sm:$0xf]
        %v1907 = vld [vmem:[%s1897 + $0x24] sm:$0xf]
        %v1908 = vld [vmem:[%s1897 + $0x28] sm:$0xf]
        %v1909 = vld [vmem:[%s1897 + $0x2c] sm:$0xf]
        %v1910 = vld [vmem:[%s1897 + $0x30] sm:$0xf]
        %v1911 = vld [vmem:[%s1897 + $0x34] sm:$0xf]
        %v1912 = vld [vmem:[%s1897 + $0x38] sm:$0xf]
        %v1913 = vld [vmem:[%s1897 + $0x3c] sm:$0xf]
        %v1914 = vld [vmem:[%s1897 + $0x40] sm:$0xf]
        %v1915 = vld [vmem:[%s1897 + $0x44] sm:$0xf]
        %v1916 = vld [vmem:[%s1897 + $0x48] sm:$0xf]
        %v1917 = vld [vmem:[%s1897 + $0x4c] sm:$0xf]
        %v1918 = vld [vmem:[%s1897 + $0x50] sm:$0xf]
        %v1919 = vld [vmem:[%s1897 + $0x54] sm:$0xf]
        %v1920 = vld [vmem:[%s1897 + $0x58] sm:$0xf]
        %v1921 = vld [vmem:[%s1897 + $0x5c] sm:$0xf]
        %v1922 = vld [vmem:[%s1897 + $0x60] sm:$0xf]
        %v1923 = vld [vmem:[%s1897 + $0x64] sm:$0xf]
        %v1924 = vld [vmem:[%s1897 + $0x68] sm:$0xf]
        %v1925 = vld [vmem:[%s1897 + $0x6c] sm:$0xf]
        %v1926 = vld [vmem:[%s1897 + $0x70] sm:$0xf]
        %v1927 = vld [vmem:[%s1897 + $0x74] sm:$0xf]
        %v1928 = vld [vmem:[%s1897 + $0x78] sm:$0xf]
        %v1929 = vld [vmem:[%s1897 + $0x7c] sm:$0xf]
        %v1930 = vld [vmem:[%s1897 + $0x80] sm:$0xf]
        %v1931 = vld [vmem:[%s1897 + $0x84] sm:$0xf]
        %v1932 = vld [vmem:[%s1897 + $0x88] sm:$0xf]
        %v1933 = vld [vmem:[%s1897 + $0x8c] sm:$0xf]
        %v1934 = vld [vmem:[%s1897 + $0x90] sm:$0xf]
        %v1935 = vld [vmem:[%s1897 + $0x94] sm:$0xf]
        %v1936 = vld [vmem:[%s1897 + $0x98] sm:$0xf]
        %v1937 = vld [vmem:[%s1897 + $0x9c] sm:$0xf]
        %v1938 = vld [vmem:[%s1897 + $0xa0] sm:$0xf]
        %v1939 = vld [vmem:[%s1897 + $0xa4] sm:$0xf]
        %v1940 = vld [vmem:[%s1897 + $0xa8] sm:$0xf]
        %v1941 = vld [vmem:[%s1897 + $0xac] sm:$0xf]
        %v1942 = vld [vmem:[%s1897 + $0xb0] sm:$0xf]
        %v1943 = vld [vmem:[%s1897 + $0xb4] sm:$0xf]
        %v1944 = vld [vmem:[%s1897 + $0xb8] sm:$0xf]
        %v1945 = vld [vmem:[%s1897 + $0xbc] sm:$0xf]
        %v1994 = vunpack.c.l.b16 %v1898
        %v1995 = vunpack.c.l.b16 %v1899
        %v1996 = vunpack.c.l.b16 %v1900
        %v1997 = vunpack.c.l.b16 %v1901
        %v1998 = vunpack.c.l.b16 %v1902
        %v1999 = vunpack.c.l.b16 %v1903
        %v2000 = vunpack.c.l.b16 %v1904
        %v2001 = vunpack.c.l.b16 %v1905
        %v2002 = vunpack.c.l.b16 %v1906
        %v2003 = vunpack.c.l.b16 %v1907
        %v2004 = vunpack.c.l.b16 %v1908
        %v2005 = vunpack.c.l.b16 %v1909
        %v2006 = vunpack.c.l.b16 %v1910
        %v2007 = vunpack.c.l.b16 %v1911
        %v2008 = vunpack.c.l.b16 %v1912
        %v2009 = vunpack.c.l.b16 %v1913
        %v2010 = vunpack.c.l.b16 %v1914
        %v2011 = vunpack.c.l.b16 %v1915
        %v2012 = vunpack.c.l.b16 %v1916
        %v2013 = vunpack.c.l.b16 %v1917
        %v2014 = vunpack.c.l.b16 %v1918
        %v2015 = vunpack.c.l.b16 %v1919
        %v2016 = vunpack.c.l.b16 %v1920
        %v2017 = vunpack.c.l.b16 %v1921
        %v2018 = vunpack.c.l.b16 %v1922
        %v2019 = vunpack.c.l.b16 %v1923
        %v2020 = vunpack.c.l.b16 %v1924
        %v2021 = vunpack.c.l.b16 %v1925
        %v2022 = vunpack.c.l.b16 %v1926
        %v2023 = vunpack.c.l.b16 %v1927
        %v2024 = vunpack.c.l.b16 %v1928
        %v2025 = vunpack.c.l.b16 %v1929
        %v2026 = vunpack.c.l.b16 %v1930
        %v2027 = vunpack.c.l.b16 %v1931
        %v2028 = vunpack.c.l.b16 %v1932
        %v2029 = vunpack.c.l.b16 %v1933
        %v2030 = vunpack.c.l.b16 %v1934
        %v2031 = vunpack.c.l.b16 %v1935
        %v2032 = vunpack.c.l.b16 %v1936
        %v2033 = vunpack.c.l.b16 %v1937
        %v2034 = vunpack.c.l.b16 %v1938
        %v2035 = vunpack.c.l.b16 %v1939
        %v2036 = vunpack.c.l.b16 %v1940
        %v2037 = vunpack.c.l.b16 %v1941
        %v2038 = vunpack.c.l.b16 %v1942
        %v2039 = vunpack.c.l.b16 %v1943
        %v2040 = vunpack.c.l.b16 %v1944
        %v2041 = vunpack.c.l.b16 %v1945
        %v2042 = vpack.c.b16 %v1995, %v1994
        %v2043 = vpack.c.b16 %v1997, %v1996
        %v2044 = vpack.c.b16 %v1999, %v1998
        %v2045 = vpack.c.b16 %v2001, %v2000
        %v2046 = vpack.c.b16 %v2003, %v2002
        %v2047 = vpack.c.b16 %v2005, %v2004
        %v2048 = vpack.c.b16 %v2007, %v2006
        %v2049 = vpack.c.b16 %v2009, %v2008
        %v2050 = vpack.c.b16 %v2011, %v2010
        %v2051 = vpack.c.b16 %v2013, %v2012
        %v2052 = vpack.c.b16 %v2015, %v2014
        %v2053 = vpack.c.b16 %v2017, %v2016
        %v2054 = vpack.c.b16 %v2019, %v2018
        %v2055 = vpack.c.b16 %v2021, %v2020
        %v2056 = vpack.c.b16 %v2023, %v2022
        %v2057 = vpack.c.b16 %v2025, %v2024
        %v2058 = vpack.c.b16 %v2027, %v2026
        %v2059 = vpack.c.b16 %v2029, %v2028
        %v2060 = vpack.c.b16 %v2031, %v2030
        %v2061 = vpack.c.b16 %v2033, %v2032
        %v2062 = vpack.c.b16 %v2035, %v2034
        %v2063 = vpack.c.b16 %v2037, %v2036
        %v2064 = vpack.c.b16 %v2039, %v2038
        %v2065 = vpack.c.b16 %v2041, %v2040
        %2090 = vmatprep.subr.bf16.mxu0 0
        %2091 = vmatpush1.bf16.msra.mxu0 %v2042
        %2092 = vmatprep.subr.bf16.mxu0 0
        %2093 = vmatpush1.bf16.msra.mxu0 %v2043
        %2094 = vmatprep.subr.bf16.mxu0 0
        %2095 = vmatpush1.bf16.msra.mxu0 %v2044
        %2096 = vmatprep.subr.bf16.mxu0 0
        %2097 = vmatpush1.bf16.msra.mxu0 %v2045
        %2098 = vmatprep.subr.bf16.mxu0 0
        %2099 = vmatpush1.bf16.msra.mxu0 %v2046
        %2100 = vmatprep.subr.bf16.mxu0 0
        %2101 = vmatpush1.bf16.msra.mxu0 %v2047
        %2102 = vmatprep.subr.bf16.mxu0 0
        %2103 = vmatpush1.bf16.msra.mxu0 %v2048
        %2104 = vmatprep.subr.bf16.mxu0 0
        %2105 = vmatpush1.bf16.msra.mxu0 %v2049
        %2106 = vmatprep.subr.bf16.mxu0 0
        %2107 = vmatpush1.bf16.msra.mxu0 %v2050
        %2108 = vmatprep.subr.bf16.mxu0 0
        %2109 = vmatpush1.bf16.msra.mxu0 %v2051
        %2110 = vmatprep.subr.bf16.mxu0 0
        %2111 = vmatpush1.bf16.msra.mxu0 %v2052
        %2112 = vmatprep.subr.bf16.mxu0 0
        %2113 = vmatpush1.bf16.msra.mxu0 %v2053
        %2114 = vmatprep.subr.bf16.mxu0 0
        %2115 = vmatpush1.bf16.msra.mxu0 %v2054
        %2116 = vmatprep.subr.bf16.mxu0 0
        %2117 = vmatpush1.bf16.msra.mxu0 %v2055
        %2118 = vmatprep.subr.bf16.mxu0 0
        %2119 = vmatpush1.bf16.msra.mxu0 %v2056
        %2120 = vmatprep.subr.bf16.mxu0 0
        %2121 = vmatpush1.bf16.msra.mxu0 %v2057
        %2122 = vmatprep.mubr.bf16.mxu0 %v1621
        %2123 = vmatmul.mubr.bf16.gmra.mrb[0].mxu0 %v1620
        %v2124 = vpop.f32.mrb[0].mxu0
        %v2125 = vadd.f32 0.0, %v2124
        %v2126 = vpop.f32.mrb[0].mxu0
        %v2127 = vpop.f32.mrb[0].mxu0
        %v2128 = vadd.f32 0.0, %v2127
        %v2129 = vpop.f32.mrb[0].mxu0
        %2130 = vdwg.mxu0
        %2131 = vmatprep.subr.bf16.mxu0 0
        %2132 = vmatpush1.bf16.msra.mxu0 %v2058
        %2133 = vmatprep.subr.bf16.mxu0 0
        %2134 = vmatpush1.bf16.msra.mxu0 %v2059
        %2135 = vmatprep.subr.bf16.mxu0 0
        %2136 = vmatpush1.bf16.msra.mxu0 %v2060
        %2137 = vmatprep.subr.bf16.mxu0 0
        %2138 = vmatpush1.bf16.msra.mxu0 %v2061
        %2139 = vmatprep.subr.bf16.mxu0 0
        %2140 = vmatpush1.bf16.msra.mxu0 %v2062
        %2141 = vmatprep.subr.bf16.mxu0 0
        %2142 = vmatpush1.bf16.msra.mxu0 %v2063
        %2143 = vmatprep.subr.bf16.mxu0 0
        %2144 = vmatpush1.bf16.msra.mxu0 %v2064
        %2145 = vmatprep.subr.bf16.mxu0 0
        %2146 = vmatpush1.bf16.msra.mxu0 %v2065
        %2147 = vmatprep.subr.bf16.mxu0 0
        %2148 = vmatpush1.bf16.msra.mxu0 0
        %2149 = vmatprep.subr.bf16.mxu0 0
        %2150 = vmatpush1.bf16.msra.mxu0 0
        %2151 = vmatprep.subr.bf16.mxu0 0
        %2152 = vmatpush1.bf16.msra.mxu0 0
        %2153 = vmatprep.subr.bf16.mxu0 0
        %2154 = vmatpush1.bf16.msra.mxu0 0
        %2155 = vmatprep.subr.bf16.mxu0 0
        %2156 = vmatpush1.bf16.msra.mxu0 0
        %2157 = vmatprep.subr.bf16.mxu0 0
        %2158 = vmatpush1.bf16.msra.mxu0 0
        %2159 = vmatprep.subr.bf16.mxu0 0
        %2160 = vmatpush1.bf16.msra.mxu0 0
        %2161 = vmatprep.subr.bf16.mxu0 0
        %2162 = vmatpush1.bf16.msra.mxu0 0
        %2163 = vmatprep.mubr.bf16.mxu0 0
        %2164 = vmatmul.mubr.bf16.gmra.mrb[0].mxu0 %v1622
        %v2165 = vpop.f32.mrb[0].mxu0
        %v2166 = vadd.f32 %v2125, %v2165
        %v2167 = vpop.f32.mrb[0].mxu0
        %v2168 = vpop.f32.mrb[0].mxu0
        %v2169 = vadd.f32 %v2128, %v2168
        %v2170 = vpop.f32.mrb[0].mxu0
        %2171 = vdwg.mxu0
        %s2172 = scalar_lea.vmem %s10, 384
        %v2173 = vld [vmem:[%s2172] sm:$0xf]
        %v2174 = vld [vmem:[%s2172 + $0x4] sm:$0xf]
        %v2175 = vld [vmem:[%s2172 + $0x8] sm:$0xf]
        %v2176 = vld [vmem:[%s2172 + $0xc] sm:$0xf]
        %v2177 = vld [vmem:[%s2172 + $0x10] sm:$0xf]
        %v2178 = vld [vmem:[%s2172 + $0x14] sm:$0xf]
        %v2179 = vld [vmem:[%s2172 + $0x18] sm:$0xf]
        %v2180 = vld [vmem:[%s2172 + $0x1c] sm:$0xf]
        %v2181 = vld [vmem:[%s2172 + $0x20] sm:$0xf]
        %v2182 = vld [vmem:[%s2172 + $0x24] sm:$0xf]
        %v2183 = vld [vmem:[%s2172 + $0x28] sm:$0xf]
        %v2184 = vld [vmem:[%s2172 + $0x2c] sm:$0xf]
        %v2185 = vld [vmem:[%s2172 + $0x30] sm:$0xf]
        %v2186 = vld [vmem:[%s2172 + $0x34] sm:$0xf]
        %v2187 = vld [vmem:[%s2172 + $0x38] sm:$0xf]
        %v2188 = vld [vmem:[%s2172 + $0x3c] sm:$0xf]
        %v2189 = vld [vmem:[%s2172 + $0x40] sm:$0xf]
        %v2190 = vld [vmem:[%s2172 + $0x44] sm:$0xf]
        %v2191 = vld [vmem:[%s2172 + $0x48] sm:$0xf]
        %v2192 = vld [vmem:[%s2172 + $0x4c] sm:$0xf]
        %v2193 = vld [vmem:[%s2172 + $0x50] sm:$0xf]
        %v2194 = vld [vmem:[%s2172 + $0x54] sm:$0xf]
        %v2195 = vld [vmem:[%s2172 + $0x58] sm:$0xf]
        %v2196 = vld [vmem:[%s2172 + $0x5c] sm:$0xf]
        %v2197 = vld [vmem:[%s2172 + $0x60] sm:$0xf]
        %v2198 = vld [vmem:[%s2172 + $0x64] sm:$0xf]
        %v2199 = vld [vmem:[%s2172 + $0x68] sm:$0xf]
        %v2200 = vld [vmem:[%s2172 + $0x6c] sm:$0xf]
        %v2201 = vld [vmem:[%s2172 + $0x70] sm:$0xf]
        %v2202 = vld [vmem:[%s2172 + $0x74] sm:$0xf]
        %v2203 = vld [vmem:[%s2172 + $0x78] sm:$0xf]
        %v2204 = vld [vmem:[%s2172 + $0x7c] sm:$0xf]
        %v2205 = vld [vmem:[%s2172 + $0x80] sm:$0xf]
        %v2206 = vld [vmem:[%s2172 + $0x84] sm:$0xf]
        %v2207 = vld [vmem:[%s2172 + $0x88] sm:$0xf]
        %v2208 = vld [vmem:[%s2172 + $0x8c] sm:$0xf]
        %v2209 = vld [vmem:[%s2172 + $0x90] sm:$0xf]
        %v2210 = vld [vmem:[%s2172 + $0x94] sm:$0xf]
        %v2211 = vld [vmem:[%s2172 + $0x98] sm:$0xf]
        %v2212 = vld [vmem:[%s2172 + $0x9c] sm:$0xf]
        %v2213 = vld [vmem:[%s2172 + $0xa0] sm:$0xf]
        %v2214 = vld [vmem:[%s2172 + $0xa4] sm:$0xf]
        %v2215 = vld [vmem:[%s2172 + $0xa8] sm:$0xf]
        %v2216 = vld [vmem:[%s2172 + $0xac] sm:$0xf]
        %v2217 = vld [vmem:[%s2172 + $0xb0] sm:$0xf]
        %v2218 = vld [vmem:[%s2172 + $0xb4] sm:$0xf]
        %v2219 = vld [vmem:[%s2172 + $0xb8] sm:$0xf]
        %v2220 = vld [vmem:[%s2172 + $0xbc] sm:$0xf]
        %v2269 = vunpack.c.l.b16 %v2173
        %v2270 = vunpack.c.l.b16 %v2174
        %v2271 = vunpack.c.l.b16 %v2175
        %v2272 = vunpack.c.l.b16 %v2176
        %v2273 = vunpack.c.l.b16 %v2177
        %v2274 = vunpack.c.l.b16 %v2178
        %v2275 = vunpack.c.l.b16 %v2179
        %v2276 = vunpack.c.l.b16 %v2180
        %v2277 = vunpack.c.l.b16 %v2181
        %v2278 = vunpack.c.l.b16 %v2182
        %v2279 = vunpack.c.l.b16 %v2183
        %v2280 = vunpack.c.l.b16 %v2184
        %v2281 = vunpack.c.l.b16 %v2185
        %v2282 = vunpack.c.l.b16 %v2186
        %v2283 = vunpack.c.l.b16 %v2187
        %v2284 = vunpack.c.l.b16 %v2188
        %v2285 = vunpack.c.l.b16 %v2189
        %v2286 = vunpack.c.l.b16 %v2190
        %v2287 = vunpack.c.l.b16 %v2191
        %v2288 = vunpack.c.l.b16 %v2192
        %v2289 = vunpack.c.l.b16 %v2193
        %v2290 = vunpack.c.l.b16 %v2194
        %v2291 = vunpack.c.l.b16 %v2195
        %v2292 = vunpack.c.l.b16 %v2196
        %v2293 = vunpack.c.l.b16 %v2197
        %v2294 = vunpack.c.l.b16 %v2198
        %v2295 = vunpack.c.l.b16 %v2199
        %v2296 = vunpack.c.l.b16 %v2200
        %v2297 = vunpack.c.l.b16 %v2201
        %v2298 = vunpack.c.l.b16 %v2202
        %v2299 = vunpack.c.l.b16 %v2203
        %v2300 = vunpack.c.l.b16 %v2204
        %v2301 = vunpack.c.l.b16 %v2205
        %v2302 = vunpack.c.l.b16 %v2206
        %v2303 = vunpack.c.l.b16 %v2207
        %v2304 = vunpack.c.l.b16 %v2208
        %v2305 = vunpack.c.l.b16 %v2209
        %v2306 = vunpack.c.l.b16 %v2210
        %v2307 = vunpack.c.l.b16 %v2211
        %v2308 = vunpack.c.l.b16 %v2212
        %v2309 = vunpack.c.l.b16 %v2213
        %v2310 = vunpack.c.l.b16 %v2214
        %v2311 = vunpack.c.l.b16 %v2215
        %v2312 = vunpack.c.l.b16 %v2216
        %v2313 = vunpack.c.l.b16 %v2217
        %v2314 = vunpack.c.l.b16 %v2218
        %v2315 = vunpack.c.l.b16 %v2219
        %v2316 = vunpack.c.l.b16 %v2220
        %v2317 = vpack.c.b16 %v2270, %v2269
        %v2318 = vpack.c.b16 %v2272, %v2271
        %v2319 = vpack.c.b16 %v2274, %v2273
        %v2320 = vpack.c.b16 %v2276, %v2275
        %v2321 = vpack.c.b16 %v2278, %v2277
        %v2322 = vpack.c.b16 %v2280, %v2279
        %v2323 = vpack.c.b16 %v2282, %v2281
        %v2324 = vpack.c.b16 %v2284, %v2283
        %v2325 = vpack.c.b16 %v2286, %v2285
        %v2326 = vpack.c.b16 %v2288, %v2287
        %v2327 = vpack.c.b16 %v2290, %v2289
        %v2328 = vpack.c.b16 %v2292, %v2291
        %v2329 = vpack.c.b16 %v2294, %v2293
        %v2330 = vpack.c.b16 %v2296, %v2295
        %v2331 = vpack.c.b16 %v2298, %v2297
        %v2332 = vpack.c.b16 %v2300, %v2299
        %v2333 = vpack.c.b16 %v2302, %v2301
        %v2334 = vpack.c.b16 %v2304, %v2303
        %v2335 = vpack.c.b16 %v2306, %v2305
        %v2336 = vpack.c.b16 %v2308, %v2307
        %v2337 = vpack.c.b16 %v2310, %v2309
        %v2338 = vpack.c.b16 %v2312, %v2311
        %v2339 = vpack.c.b16 %v2314, %v2313
        %v2340 = vpack.c.b16 %v2316, %v2315
        %2365 = vmatprep.subr.bf16.mxu0 0
        %2366 = vmatpush1.bf16.msra.mxu0 %v2317
        %2367 = vmatprep.subr.bf16.mxu0 0
        %2368 = vmatpush1.bf16.msra.mxu0 %v2318
        %2369 = vmatprep.subr.bf16.mxu0 0
        %2370 = vmatpush1.bf16.msra.mxu0 %v2319
        %2371 = vmatprep.subr.bf16.mxu0 0
        %2372 = vmatpush1.bf16.msra.mxu0 %v2320
        %2373 = vmatprep.subr.bf16.mxu0 0
        %2374 = vmatpush1.bf16.msra.mxu0 %v2321
        %2375 = vmatprep.subr.bf16.mxu0 0
        %2376 = vmatpush1.bf16.msra.mxu0 %v2322
        %2377 = vmatprep.subr.bf16.mxu0 0
        %2378 = vmatpush1.bf16.msra.mxu0 %v2323
        %2379 = vmatprep.subr.bf16.mxu0 0
        %2380 = vmatpush1.bf16.msra.mxu0 %v2324
        %2381 = vmatprep.subr.bf16.mxu0 0
        %2382 = vmatpush1.bf16.msra.mxu0 %v2325
        %2383 = vmatprep.subr.bf16.mxu0 0
        %2384 = vmatpush1.bf16.msra.mxu0 %v2326
        %2385 = vmatprep.subr.bf16.mxu0 0
        %2386 = vmatpush1.bf16.msra.mxu0 %v2327
        %2387 = vmatprep.subr.bf16.mxu0 0
        %2388 = vmatpush1.bf16.msra.mxu0 %v2328
        %2389 = vmatprep.subr.bf16.mxu0 0
        %2390 = vmatpush1.bf16.msra.mxu0 %v2329
        %2391 = vmatprep.subr.bf16.mxu0 0
        %2392 = vmatpush1.bf16.msra.mxu0 %v2330
        %2393 = vmatprep.subr.bf16.mxu0 0
        %2394 = vmatpush1.bf16.msra.mxu0 %v2331
        %2395 = vmatprep.subr.bf16.mxu0 0
        %2396 = vmatpush1.bf16.msra.mxu0 %v2332
        %2397 = vmatprep.mubr.bf16.mxu0 %v1621
        %2398 = vmatmul.mubr.bf16.gmra.mrb[0].mxu0 %v1620
        %v2399 = vpop.f32.mrb[0].mxu0
        %v2400 = vadd.f32 0.0, %v2399
        %v2401 = vpop.f32.mrb[0].mxu0
        %v2402 = vpop.f32.mrb[0].mxu0
        %v2403 = vadd.f32 0.0, %v2402
        %v2404 = vpop.f32.mrb[0].mxu0
        %2405 = vdwg.mxu0
        %2406 = vmatprep.subr.bf16.mxu0 0
        %2407 = vmatpush1.bf16.msra.mxu0 %v2333
        %2408 = vmatprep.subr.bf16.mxu0 0
        %2409 = vmatpush1.bf16.msra.mxu0 %v2334
        %2410 = vmatprep.subr.bf16.mxu0 0
        %2411 = vmatpush1.bf16.msra.mxu0 %v2335
        %2412 = vmatprep.subr.bf16.mxu0 0
        %2413 = vmatpush1.bf16.msra.mxu0 %v2336
        %2414 = vmatprep.subr.bf16.mxu0 0
        %2415 = vmatpush1.bf16.msra.mxu0 %v2337
        %2416 = vmatprep.subr.bf16.mxu0 0
        %2417 = vmatpush1.bf16.msra.mxu0 %v2338
        %2418 = vmatprep.subr.bf16.mxu0 0
        %2419 = vmatpush1.bf16.msra.mxu0 %v2339
        %2420 = vmatprep.subr.bf16.mxu0 0
        %2421 = vmatpush1.bf16.msra.mxu0 %v2340
        %2422 = vmatprep.subr.bf16.mxu0 0
        %2423 = vmatpush1.bf16.msra.mxu0 0
        %2424 = vmatprep.subr.bf16.mxu0 0
        %2425 = vmatpush1.bf16.msra.mxu0 0
        %2426 = vmatprep.subr.bf16.mxu0 0
        %2427 = vmatpush1.bf16.msra.mxu0 0
        %2428 = vmatprep.subr.bf16.mxu0 0
        %2429 = vmatpush1.bf16.msra.mxu0 0
        %2430 = vmatprep.subr.bf16.mxu0 0
        %2431 = vmatpush1.bf16.msra.mxu0 0
        %2432 = vmatprep.subr.bf16.mxu0 0
        %2433 = vmatpush1.bf16.msra.mxu0 0
        %2434 = vmatprep.subr.bf16.mxu0 0
        %2435 = vmatpush1.bf16.msra.mxu0 0
        %2436 = vmatprep.subr.bf16.mxu0 0
        %2437 = vmatpush1.bf16.msra.mxu0 0
        %2438 = vmatprep.mubr.bf16.mxu0 0
        %2439 = vmatmul.mubr.bf16.gmra.mrb[0].mxu0 %v1622
        %v2440 = vpop.f32.mrb[0].mxu0
        %v2441 = vadd.f32 %v2400, %v2440
        %v2442 = vpop.f32.mrb[0].mxu0
        %v2443 = vpop.f32.mrb[0].mxu0
        %v2444 = vadd.f32 %v2403, %v2443
        %v2445 = vpop.f32.mrb[0].mxu0
        %2446 = vdwg.mxu0
        %s2447 = scalar_lea.vmem %s10, 576
        %v2448 = vld [vmem:[%s2447] sm:$0xf]
        %v2449 = vld [vmem:[%s2447 + $0x4] sm:$0xf]
        %v2450 = vld [vmem:[%s2447 + $0x8] sm:$0xf]
        %v2451 = vld [vmem:[%s2447 + $0xc] sm:$0xf]
        %v2452 = vld [vmem:[%s2447 + $0x10] sm:$0xf]
        %v2453 = vld [vmem:[%s2447 + $0x14] sm:$0xf]
        %v2454 = vld [vmem:[%s2447 + $0x18] sm:$0xf]
        %v2455 = vld [vmem:[%s2447 + $0x1c] sm:$0xf]
        %v2456 = vld [vmem:[%s2447 + $0x20] sm:$0xf]
        %v2457 = vld [vmem:[%s2447 + $0x24] sm:$0xf]
        %v2458 = vld [vmem:[%s2447 + $0x28] sm:$0xf]
        %v2459 = vld [vmem:[%s2447 + $0x2c] sm:$0xf]
        %v2460 = vld [vmem:[%s2447 + $0x30] sm:$0xf]
        %v2461 = vld [vmem:[%s2447 + $0x34] sm:$0xf]
        %v2462 = vld [vmem:[%s2447 + $0x38] sm:$0xf]
        %v2463 = vld [vmem:[%s2447 + $0x3c] sm:$0xf]
        %v2464 = vld [vmem:[%s2447 + $0x40] sm:$0xf]
        %v2465 = vld [vmem:[%s2447 + $0x44] sm:$0xf]
        %v2466 = vld [vmem:[%s2447 + $0x48] sm:$0xf]
        %v2467 = vld [vmem:[%s2447 + $0x4c] sm:$0xf]
        %v2468 = vld [vmem:[%s2447 + $0x50] sm:$0xf]
        %v2469 = vld [vmem:[%s2447 + $0x54] sm:$0xf]
        %v2470 = vld [vmem:[%s2447 + $0x58] sm:$0xf]
        %v2471 = vld [vmem:[%s2447 + $0x5c] sm:$0xf]
        %v2472 = vld [vmem:[%s2447 + $0x60] sm:$0xf]
        %v2473 = vld [vmem:[%s2447 + $0x64] sm:$0xf]
        %v2474 = vld [vmem:[%s2447 + $0x68] sm:$0xf]
        %v2475 = vld [vmem:[%s2447 + $0x6c] sm:$0xf]
        %v2476 = vld [vmem:[%s2447 + $0x70] sm:$0xf]
        %v2477 = vld [vmem:[%s2447 + $0x74] sm:$0xf]
        %v2478 = vld [vmem:[%s2447 + $0x78] sm:$0xf]
        %v2479 = vld [vmem:[%s2447 + $0x7c] sm:$0xf]
        %v2480 = vld [vmem:[%s2447 + $0x80] sm:$0xf]
        %v2481 = vld [vmem:[%s2447 + $0x84] sm:$0xf]
        %v2482 = vld [vmem:[%s2447 + $0x88] sm:$0xf]
        %v2483 = vld [vmem:[%s2447 + $0x8c] sm:$0xf]
        %v2484 = vld [vmem:[%s2447 + $0x90] sm:$0xf]
        %v2485 = vld [vmem:[%s2447 + $0x94] sm:$0xf]
        %v2486 = vld [vmem:[%s2447 + $0x98] sm:$0xf]
        %v2487 = vld [vmem:[%s2447 + $0x9c] sm:$0xf]
        %v2488 = vld [vmem:[%s2447 + $0xa0] sm:$0xf]
        %v2489 = vld [vmem:[%s2447 + $0xa4] sm:$0xf]
        %v2490 = vld [vmem:[%s2447 + $0xa8] sm:$0xf]
        %v2491 = vld [vmem:[%s2447 + $0xac] sm:$0xf]
        %v2492 = vld [vmem:[%s2447 + $0xb0] sm:$0xf]
        %v2493 = vld [vmem:[%s2447 + $0xb4] sm:$0xf]
        %v2494 = vld [vmem:[%s2447 + $0xb8] sm:$0xf]
        %v2495 = vld [vmem:[%s2447 + $0xbc] sm:$0xf]
        %v2544 = vunpack.c.l.b16 %v2448
        %v2545 = vunpack.c.l.b16 %v2449
        %v2546 = vunpack.c.l.b16 %v2450
        %v2547 = vunpack.c.l.b16 %v2451
        %v2548 = vunpack.c.l.b16 %v2452
        %v2549 = vunpack.c.l.b16 %v2453
        %v2550 = vunpack.c.l.b16 %v2454
        %v2551 = vunpack.c.l.b16 %v2455
        %v2552 = vunpack.c.l.b16 %v2456
        %v2553 = vunpack.c.l.b16 %v2457
        %v2554 = vunpack.c.l.b16 %v2458
        %v2555 = vunpack.c.l.b16 %v2459
        %v2556 = vunpack.c.l.b16 %v2460
        %v2557 = vunpack.c.l.b16 %v2461
        %v2558 = vunpack.c.l.b16 %v2462
        %v2559 = vunpack.c.l.b16 %v2463
        %v2560 = vunpack.c.l.b16 %v2464
        %v2561 = vunpack.c.l.b16 %v2465
        %v2562 = vunpack.c.l.b16 %v2466
        %v2563 = vunpack.c.l.b16 %v2467
        %v2564 = vunpack.c.l.b16 %v2468
        %v2565 = vunpack.c.l.b16 %v2469
        %v2566 = vunpack.c.l.b16 %v2470
        %v2567 = vunpack.c.l.b16 %v2471
        %v2568 = vunpack.c.l.b16 %v2472
        %v2569 = vunpack.c.l.b16 %v2473
        %v2570 = vunpack.c.l.b16 %v2474
        %v2571 = vunpack.c.l.b16 %v2475
        %v2572 = vunpack.c.l.b16 %v2476
        %v2573 = vunpack.c.l.b16 %v2477
        %v2574 = vunpack.c.l.b16 %v2478
        %v2575 = vunpack.c.l.b16 %v2479
        %v2576 = vunpack.c.l.b16 %v2480
        %v2577 = vunpack.c.l.b16 %v2481
        %v2578 = vunpack.c.l.b16 %v2482
        %v2579 = vunpack.c.l.b16 %v2483
        %v2580 = vunpack.c.l.b16 %v2484
        %v2581 = vunpack.c.l.b16 %v2485
        %v2582 = vunpack.c.l.b16 %v2486
        %v2583 = vunpack.c.l.b16 %v2487
        %v2584 = vunpack.c.l.b16 %v2488
        %v2585 = vunpack.c.l.b16 %v2489
        %v2586 = vunpack.c.l.b16 %v2490
        %v2587 = vunpack.c.l.b16 %v2491
        %v2588 = vunpack.c.l.b16 %v2492
        %v2589 = vunpack.c.l.b16 %v2493
        %v2590 = vunpack.c.l.b16 %v2494
        %v2591 = vunpack.c.l.b16 %v2495
        %v2592 = vpack.c.b16 %v2545, %v2544
        %v2593 = vpack.c.b16 %v2547, %v2546
        %v2594 = vpack.c.b16 %v2549, %v2548
        %v2595 = vpack.c.b16 %v2551, %v2550
        %v2596 = vpack.c.b16 %v2553, %v2552
        %v2597 = vpack.c.b16 %v2555, %v2554
        %v2598 = vpack.c.b16 %v2557, %v2556
        %v2599 = vpack.c.b16 %v2559, %v2558
        %v2600 = vpack.c.b16 %v2561, %v2560
        %v2601 = vpack.c.b16 %v2563, %v2562
        %v2602 = vpack.c.b16 %v2565, %v2564
        %v2603 = vpack.c.b16 %v2567, %v2566
        %v2604 = vpack.c.b16 %v2569, %v2568
        %v2605 = vpack.c.b16 %v2571, %v2570
        %v2606 = vpack.c.b16 %v2573, %v2572
        %v2607 = vpack.c.b16 %v2575, %v2574
        %v2608 = vpack.c.b16 %v2577, %v2576
        %v2609 = vpack.c.b16 %v2579, %v2578
        %v2610 = vpack.c.b16 %v2581, %v2580
        %v2611 = vpack.c.b16 %v2583, %v2582
        %v2612 = vpack.c.b16 %v2585, %v2584
        %v2613 = vpack.c.b16 %v2587, %v2586
        %v2614 = vpack.c.b16 %v2589, %v2588
        %v2615 = vpack.c.b16 %v2591, %v2590
        %2640 = vmatprep.subr.bf16.mxu0 0
        %2641 = vmatpush1.bf16.msra.mxu0 %v2592
        %2642 = vmatprep.subr.bf16.mxu0 0
        %2643 = vmatpush1.bf16.msra.mxu0 %v2593
        %2644 = vmatprep.subr.bf16.mxu0 0
        %2645 = vmatpush1.bf16.msra.mxu0 %v2594
        %2646 = vmatprep.subr.bf16.mxu0 0
        %2647 = vmatpush1.bf16.msra.mxu0 %v2595
        %2648 = vmatprep.subr.bf16.mxu0 0
        %2649 = vmatpush1.bf16.msra.mxu0 %v2596
        %2650 = vmatprep.subr.bf16.mxu0 0
        %2651 = vmatpush1.bf16.msra.mxu0 %v2597
        %2652 = vmatprep.subr.bf16.mxu0 0
        %2653 = vmatpush1.bf16.msra.mxu0 %v2598
        %2654 = vmatprep.subr.bf16.mxu0 0
        %2655 = vmatpush1.bf16.msra.mxu0 %v2599
        %2656 = vmatprep.subr.bf16.mxu0 0
        %2657 = vmatpush1.bf16.msra.mxu0 %v2600
        %2658 = vmatprep.subr.bf16.mxu0 0
        %2659 = vmatpush1.bf16.msra.mxu0 %v2601
        %2660 = vmatprep.subr.bf16.mxu0 0
        %2661 = vmatpush1.bf16.msra.mxu0 %v2602
        %2662 = vmatprep.subr.bf16.mxu0 0
        %2663 = vmatpush1.bf16.msra.mxu0 %v2603
        %2664 = vmatprep.subr.bf16.mxu0 0
        %2665 = vmatpush1.bf16.msra.mxu0 %v2604
        %2666 = vmatprep.subr.bf16.mxu0 0
        %2667 = vmatpush1.bf16.msra.mxu0 %v2605
        %2668 = vmatprep.subr.bf16.mxu0 0
        %2669 = vmatpush1.bf16.msra.mxu0 %v2606
        %2670 = vmatprep.subr.bf16.mxu0 0
        %2671 = vmatpush1.bf16.msra.mxu0 %v2607
        %2672 = vmatprep.mubr.bf16.mxu0 %v1621
        %2673 = vmatmul.mubr.bf16.gmra.mrb[0].mxu0 %v1620
        %v2674 = vpop.f32.mrb[0].mxu0
        %v2675 = vadd.f32 0.0, %v2674
        %v2676 = vpop.f32.mrb[0].mxu0
        %v2677 = vpop.f32.mrb[0].mxu0
        %v2678 = vadd.f32 0.0, %v2677
        %v2679 = vpop.f32.mrb[0].mxu0
        %2680 = vdwg.mxu0
        %2681 = vmatprep.subr.bf16.mxu0 0
        %2682 = vmatpush1.bf16.msra.mxu0 %v2608
        %2683 = vmatprep.subr.bf16.mxu0 0
        %2684 = vmatpush1.bf16.msra.mxu0 %v2609
        %2685 = vmatprep.subr.bf16.mxu0 0
        %2686 = vmatpush1.bf16.msra.mxu0 %v2610
        %2687 = vmatprep.subr.bf16.mxu0 0
        %2688 = vmatpush1.bf16.msra.mxu0 %v2611
        %2689 = vmatprep.subr.bf16.mxu0 0
        %2690 = vmatpush1.bf16.msra.mxu0 %v2612
        %2691 = vmatprep.subr.bf16.mxu0 0
        %2692 = vmatpush1.bf16.msra.mxu0 %v2613
        %2693 = vmatprep.subr.bf16.mxu0 0
        %2694 = vmatpush1.bf16.msra.mxu0 %v2614
        %2695 = vmatprep.subr.bf16.mxu0 0
        %2696 = vmatpush1.bf16.msra.mxu0 %v2615
        %2697 = vmatprep.subr.bf16.mxu0 0
        %2698 = vmatpush1.bf16.msra.mxu0 0
        %2699 = vmatprep.subr.bf16.mxu0 0
        %2700 = vmatpush1.bf16.msra.mxu0 0
        %2701 = vmatprep.subr.bf16.mxu0 0
        %2702 = vmatpush1.bf16.msra.mxu0 0
        %2703 = vmatprep.subr.bf16.mxu0 0
        %2704 = vmatpush1.bf16.msra.mxu0 0
        %2705 = vmatprep.subr.bf16.mxu0 0
        %2706 = vmatpush1.bf16.msra.mxu0 0
        %2707 = vmatprep.subr.bf16.mxu0 0
        %2708 = vmatpush1.bf16.msra.mxu0 0
        %2709 = vmatprep.subr.bf16.mxu0 0
        %2710 = vmatpush1.bf16.msra.mxu0 0
        %2711 = vmatprep.subr.bf16.mxu0 0
        %2712 = vmatpush1.bf16.msra.mxu0 0
        %2713 = vmatprep.mubr.bf16.mxu0 0
        %2714 = vmatmul.mubr.bf16.gmra.mrb[0].mxu0 %v1622
        %v2715 = vpop.f32.mrb[0].mxu0
        %v2716 = vadd.f32 %v2675, %v2715
        %v2717 = vpop.f32.mrb[0].mxu0
        %v2718 = vpop.f32.mrb[0].mxu0
        %v2719 = vadd.f32 %v2678, %v2718
        %v2720 = vpop.f32.mrb[0].mxu0
        %2721 = vdwg.mxu0
        %s2722 = scalar_lea.vmem %s10, 768
        %v2723 = vld [vmem:[%s2722] sm:$0xf]
        %v2724 = vld [vmem:[%s2722 + $0x4] sm:$0xf]
        %v2725 = vld [vmem:[%s2722 + $0x8] sm:$0xf]
        %v2726 = vld [vmem:[%s2722 + $0xc] sm:$0xf]
        %v2727 = vld [vmem:[%s2722 + $0x10] sm:$0xf]
        %v2728 = vld [vmem:[%s2722 + $0x14] sm:$0xf]
        %v2729 = vld [vmem:[%s2722 + $0x18] sm:$0xf]
        %v2730 = vld [vmem:[%s2722 + $0x1c] sm:$0xf]
        %v2731 = vld [vmem:[%s2722 + $0x20] sm:$0xf]
        %v2732 = vld [vmem:[%s2722 + $0x24] sm:$0xf]
        %v2733 = vld [vmem:[%s2722 + $0x28] sm:$0xf]
        %v2734 = vld [vmem:[%s2722 + $0x2c] sm:$0xf]
        %v2735 = vld [vmem:[%s2722 + $0x30] sm:$0xf]
        %v2736 = vld [vmem:[%s2722 + $0x34] sm:$0xf]
        %v2737 = vld [vmem:[%s2722 + $0x38] sm:$0xf]
        %v2738 = vld [vmem:[%s2722 + $0x3c] sm:$0xf]
        %v2739 = vld [vmem:[%s2722 + $0x40] sm:$0xf]
        %v2740 = vld [vmem:[%s2722 + $0x44] sm:$0xf]
        %v2741 = vld [vmem:[%s2722 + $0x48] sm:$0xf]
        %v2742 = vld [vmem:[%s2722 + $0x4c] sm:$0xf]
        %v2743 = vld [vmem:[%s2722 + $0x50] sm:$0xf]
        %v2744 = vld [vmem:[%s2722 + $0x54] sm:$0xf]
        %v2745 = vld [vmem:[%s2722 + $0x58] sm:$0xf]
        %v2746 = vld [vmem:[%s2722 + $0x5c] sm:$0xf]
        %v2747 = vld [vmem:[%s2722 + $0x60] sm:$0xf]
        %v2748 = vld [vmem:[%s2722 + $0x64] sm:$0xf]
        %v2749 = vld [vmem:[%s2722 + $0x68] sm:$0xf]
        %v2750 = vld [vmem:[%s2722 + $0x6c] sm:$0xf]
        %v2751 = vld [vmem:[%s2722 + $0x70] sm:$0xf]
        %v2752 = vld [vmem:[%s2722 + $0x74] sm:$0xf]
        %v2753 = vld [vmem:[%s2722 + $0x78] sm:$0xf]
        %v2754 = vld [vmem:[%s2722 + $0x7c] sm:$0xf]
        %v2755 = vld [vmem:[%s2722 + $0x80] sm:$0xf]
        %v2756 = vld [vmem:[%s2722 + $0x84] sm:$0xf]
        %v2757 = vld [vmem:[%s2722 + $0x88] sm:$0xf]
        %v2758 = vld [vmem:[%s2722 + $0x8c] sm:$0xf]
        %v2759 = vld [vmem:[%s2722 + $0x90] sm:$0xf]
        %v2760 = vld [vmem:[%s2722 + $0x94] sm:$0xf]
        %v2761 = vld [vmem:[%s2722 + $0x98] sm:$0xf]
        %v2762 = vld [vmem:[%s2722 + $0x9c] sm:$0xf]
        %v2763 = vld [vmem:[%s2722 + $0xa0] sm:$0xf]
        %v2764 = vld [vmem:[%s2722 + $0xa4] sm:$0xf]
        %v2765 = vld [vmem:[%s2722 + $0xa8] sm:$0xf]
        %v2766 = vld [vmem:[%s2722 + $0xac] sm:$0xf]
        %v2767 = vld [vmem:[%s2722 + $0xb0] sm:$0xf]
        %v2768 = vld [vmem:[%s2722 + $0xb4] sm:$0xf]
        %v2769 = vld [vmem:[%s2722 + $0xb8] sm:$0xf]
        %v2770 = vld [vmem:[%s2722 + $0xbc] sm:$0xf]
        %v2819 = vunpack.c.l.b16 %v2723
        %v2820 = vunpack.c.l.b16 %v2724
        %v2821 = vunpack.c.l.b16 %v2725
        %v2822 = vunpack.c.l.b16 %v2726
        %v2823 = vunpack.c.l.b16 %v2727
        %v2824 = vunpack.c.l.b16 %v2728
        %v2825 = vunpack.c.l.b16 %v2729
        %v2826 = vunpack.c.l.b16 %v2730
        %v2827 = vunpack.c.l.b16 %v2731
        %v2828 = vunpack.c.l.b16 %v2732
        %v2829 = vunpack.c.l.b16 %v2733
        %v2830 = vunpack.c.l.b16 %v2734
        %v2831 = vunpack.c.l.b16 %v2735
        %v2832 = vunpack.c.l.b16 %v2736
        %v2833 = vunpack.c.l.b16 %v2737
        %v2834 = vunpack.c.l.b16 %v2738
        %v2835 = vunpack.c.l.b16 %v2739
        %v2836 = vunpack.c.l.b16 %v2740
        %v2837 = vunpack.c.l.b16 %v2741
        %v2838 = vunpack.c.l.b16 %v2742
        %v2839 = vunpack.c.l.b16 %v2743
        %v2840 = vunpack.c.l.b16 %v2744
        %v2841 = vunpack.c.l.b16 %v2745
        %v2842 = vunpack.c.l.b16 %v2746
        %v2843 = vunpack.c.l.b16 %v2747
        %v2844 = vunpack.c.l.b16 %v2748
        %v2845 = vunpack.c.l.b16 %v2749
        %v2846 = vunpack.c.l.b16 %v2750
        %v2847 = vunpack.c.l.b16 %v2751
        %v2848 = vunpack.c.l.b16 %v2752
        %v2849 = vunpack.c.l.b16 %v2753
        %v2850 = vunpack.c.l.b16 %v2754
        %v2851 = vunpack.c.l.b16 %v2755
        %v2852 = vunpack.c.l.b16 %v2756
        %v2853 = vunpack.c.l.b16 %v2757
        %v2854 = vunpack.c.l.b16 %v2758
        %v2855 = vunpack.c.l.b16 %v2759
        %v2856 = vunpack.c.l.b16 %v2760
        %v2857 = vunpack.c.l.b16 %v2761
        %v2858 = vunpack.c.l.b16 %v2762
        %v2859 = vunpack.c.l.b16 %v2763
        %v2860 = vunpack.c.l.b16 %v2764
        %v2861 = vunpack.c.l.b16 %v2765
        %v2862 = vunpack.c.l.b16 %v2766
        %v2863 = vunpack.c.l.b16 %v2767
        %v2864 = vunpack.c.l.b16 %v2768
        %v2865 = vunpack.c.l.b16 %v2769
        %v2866 = vunpack.c.l.b16 %v2770
        %v2867 = vpack.c.b16 %v2820, %v2819
        %v2868 = vpack.c.b16 %v2822, %v2821
        %v2869 = vpack.c.b16 %v2824, %v2823
        %v2870 = vpack.c.b16 %v2826, %v2825
        %v2871 = vpack.c.b16 %v2828, %v2827
        %v2872 = vpack.c.b16 %v2830, %v2829
        %v2873 = vpack.c.b16 %v2832, %v2831
        %v2874 = vpack.c.b16 %v2834, %v2833
        %v2875 = vpack.c.b16 %v2836, %v2835
        %v2876 = vpack.c.b16 %v2838, %v2837
        %v2877 = vpack.c.b16 %v2840, %v2839
        %v2878 = vpack.c.b16 %v2842, %v2841
        %v2879 = vpack.c.b16 %v2844, %v2843
        %v2880 = vpack.c.b16 %v2846, %v2845
        %v2881 = vpack.c.b16 %v2848, %v2847
        %v2882 = vpack.c.b16 %v2850, %v2849
        %v2883 = vpack.c.b16 %v2852, %v2851
        %v2884 = vpack.c.b16 %v2854, %v2853
        %v2885 = vpack.c.b16 %v2856, %v2855
        %v2886 = vpack.c.b16 %v2858, %v2857
        %v2887 = vpack.c.b16 %v2860, %v2859
        %v2888 = vpack.c.b16 %v2862, %v2861
        %v2889 = vpack.c.b16 %v2864, %v2863
        %v2890 = vpack.c.b16 %v2866, %v2865
        %2915 = vmatprep.subr.bf16.mxu0 0
        %2916 = vmatpush1.bf16.msra.mxu0 %v2867
        %2917 = vmatprep.subr.bf16.mxu0 0
        %2918 = vmatpush1.bf16.msra.mxu0 %v2868
        %2919 = vmatprep.subr.bf16.mxu0 0
        %2920 = vmatpush1.bf16.msra.mxu0 %v2869
        %2921 = vmatprep.subr.bf16.mxu0 0
        %2922 = vmatpush1.bf16.msra.mxu0 %v2870
        %2923 = vmatprep.subr.bf16.mxu0 0
        %2924 = vmatpush1.bf16.msra.mxu0 %v2871
        %2925 = vmatprep.subr.bf16.mxu0 0
        %2926 = vmatpush1.bf16.msra.mxu0 %v2872
        %2927 = vmatprep.subr.bf16.mxu0 0
        %2928 = vmatpush1.bf16.msra.mxu0 %v2873
        %2929 = vmatprep.subr.bf16.mxu0 0
        %2930 = vmatpush1.bf16.msra.mxu0 %v2874
        %2931 = vmatprep.subr.bf16.mxu0 0
        %2932 = vmatpush1.bf16.msra.mxu0 %v2875
        %2933 = vmatprep.subr.bf16.mxu0 0
        %2934 = vmatpush1.bf16.msra.mxu0 %v2876
        %2935 = vmatprep.subr.bf16.mxu0 0
        %2936 = vmatpush1.bf16.msra.mxu0 %v2877
        %2937 = vmatprep.subr.bf16.mxu0 0
        %2938 = vmatpush1.bf16.msra.mxu0 %v2878
        %2939 = vmatprep.subr.bf16.mxu0 0
        %2940 = vmatpush1.bf16.msra.mxu0 %v2879
        %2941 = vmatprep.subr.bf16.mxu0 0
        %2942 = vmatpush1.bf16.msra.mxu0 %v2880
        %2943 = vmatprep.subr.bf16.mxu0 0
        %2944 = vmatpush1.bf16.msra.mxu0 %v2881
        %2945 = vmatprep.subr.bf16.mxu0 0
        %2946 = vmatpush1.bf16.msra.mxu0 %v2882
        %2947 = vmatprep.mubr.bf16.mxu0 %v1621
        %2948 = vmatmul.mubr.bf16.gmra.mrb[0].mxu0 %v1620
        %v2949 = vpop.f32.mrb[0].mxu0
        %v2950 = vadd.f32 0.0, %v2949
        %v2951 = vpop.f32.mrb[0].mxu0
        %v2952 = vpop.f32.mrb[0].mxu0
        %v2953 = vadd.f32 0.0, %v2952
        %v2954 = vpop.f32.mrb[0].mxu0
        %2955 = vdwg.mxu0
        %2956 = vmatprep.subr.bf16.mxu0 0
        %2957 = vmatpush1.bf16.msra.mxu0 %v2883
        %2958 = vmatprep.subr.bf16.mxu0 0
        %2959 = vmatpush1.bf16.msra.mxu0 %v2884
        %2960 = vmatprep.subr.bf16.mxu0 0
        %2961 = vmatpush1.bf16.msra.mxu0 %v2885
        %2962 = vmatprep.subr.bf16.mxu0 0
        %2963 = vmatpush1.bf16.msra.mxu0 %v2886
        %2964 = vmatprep.subr.bf16.mxu0 0
        %2965 = vmatpush1.bf16.msra.mxu0 %v2887
        %2966 = vmatprep.subr.bf16.mxu0 0
        %2967 = vmatpush1.bf16.msra.mxu0 %v2888
        %2968 = vmatprep.subr.bf16.mxu0 0
        %2969 = vmatpush1.bf16.msra.mxu0 %v2889
        %2970 = vmatprep.subr.bf16.mxu0 0
        %2971 = vmatpush1.bf16.msra.mxu0 %v2890
        %2972 = vmatprep.subr.bf16.mxu0 0
        %2973 = vmatpush1.bf16.msra.mxu0 0
        %2974 = vmatprep.subr.bf16.mxu0 0
        %2975 = vmatpush1.bf16.msra.mxu0 0
        %2976 = vmatprep.subr.bf16.mxu0 0
        %2977 = vmatpush1.bf16.msra.mxu0 0
        %2978 = vmatprep.subr.bf16.mxu0 0
        %2979 = vmatpush1.bf16.msra.mxu0 0
        %2980 = vmatprep.subr.bf16.mxu0 0
        %2981 = vmatpush1.bf16.msra.mxu0 0
        %2982 = vmatprep.subr.bf16.mxu0 0
        %2983 = vmatpush1.bf16.msra.mxu0 0
        %2984 = vmatprep.subr.bf16.mxu0 0
        %2985 = vmatpush1.bf16.msra.mxu0 0
        %2986 = vmatprep.subr.bf16.mxu0 0
        %2987 = vmatpush1.bf16.msra.mxu0 0
        %2988 = vmatprep.mubr.bf16.mxu0 0
        %2989 = vmatmul.mubr.bf16.gmra.mrb[0].mxu0 %v1622
        %v2990 = vpop.f32.mrb[0].mxu0
        %v2991 = vadd.f32 %v2950, %v2990
        %v2992 = vpop.f32.mrb[0].mxu0
        %v2993 = vpop.f32.mrb[0].mxu0
        %v2994 = vadd.f32 %v2953, %v2993
        %v2995 = vpop.f32.mrb[0].mxu0
        %2996 = vdwg.mxu0
        %s2997 = scalar_lea.vmem %s10, 960
        %v2998 = vld [vmem:[%s2997] sm:$0xf]
        %v2999 = vld [vmem:[%s2997 + $0x4] sm:$0xf]
        %v3000 = vld [vmem:[%s2997 + $0x8] sm:$0xf]
        %v3001 = vld [vmem:[%s2997 + $0xc] sm:$0xf]
        %v3002 = vld [vmem:[%s2997 + $0x10] sm:$0xf]
        %v3003 = vld [vmem:[%s2997 + $0x14] sm:$0xf]
        %v3004 = vld [vmem:[%s2997 + $0x18] sm:$0xf]
        %v3005 = vld [vmem:[%s2997 + $0x1c] sm:$0xf]
        %v3006 = vld [vmem:[%s2997 + $0x20] sm:$0xf]
        %v3007 = vld [vmem:[%s2997 + $0x24] sm:$0xf]
        %v3008 = vld [vmem:[%s2997 + $0x28] sm:$0xf]
        %v3009 = vld [vmem:[%s2997 + $0x2c] sm:$0xf]
        %v3010 = vld [vmem:[%s2997 + $0x30] sm:$0xf]
        %v3011 = vld [vmem:[%s2997 + $0x34] sm:$0xf]
        %v3012 = vld [vmem:[%s2997 + $0x38] sm:$0xf]
        %v3013 = vld [vmem:[%s2997 + $0x3c] sm:$0xf]
        %v3014 = vld [vmem:[%s2997 + $0x40] sm:$0xf]
        %v3015 = vld [vmem:[%s2997 + $0x44] sm:$0xf]
        %v3016 = vld [vmem:[%s2997 + $0x48] sm:$0xf]
        %v3017 = vld [vmem:[%s2997 + $0x4c] sm:$0xf]
        %v3018 = vld [vmem:[%s2997 + $0x50] sm:$0xf]
        %v3019 = vld [vmem:[%s2997 + $0x54] sm:$0xf]
        %v3020 = vld [vmem:[%s2997 + $0x58] sm:$0xf]
        %v3021 = vld [vmem:[%s2997 + $0x5c] sm:$0xf]
        %v3022 = vld [vmem:[%s2997 + $0x60] sm:$0xf]
        %v3023 = vld [vmem:[%s2997 + $0x64] sm:$0xf]
        %v3024 = vld [vmem:[%s2997 + $0x68] sm:$0xf]
        %v3025 = vld [vmem:[%s2997 + $0x6c] sm:$0xf]
        %v3026 = vld [vmem:[%s2997 + $0x70] sm:$0xf]
        %v3027 = vld [vmem:[%s2997 + $0x74] sm:$0xf]
        %v3028 = vld [vmem:[%s2997 + $0x78] sm:$0xf]
        %v3029 = vld [vmem:[%s2997 + $0x7c] sm:$0xf]
        %v3030 = vld [vmem:[%s2997 + $0x80] sm:$0xf]
        %v3031 = vld [vmem:[%s2997 + $0x84] sm:$0xf]
        %v3032 = vld [vmem:[%s2997 + $0x88] sm:$0xf]
        %v3033 = vld [vmem:[%s2997 + $0x8c] sm:$0xf]
        %v3034 = vld [vmem:[%s2997 + $0x90] sm:$0xf]
        %v3035 = vld [vmem:[%s2997 + $0x94] sm:$0xf]
        %v3036 = vld [vmem:[%s2997 + $0x98] sm:$0xf]
        %v3037 = vld [vmem:[%s2997 + $0x9c] sm:$0xf]
        %v3038 = vld [vmem:[%s2997 + $0xa0] sm:$0xf]
        %v3039 = vld [vmem:[%s2997 + $0xa4] sm:$0xf]
        %v3040 = vld [vmem:[%s2997 + $0xa8] sm:$0xf]
        %v3041 = vld [vmem:[%s2997 + $0xac] sm:$0xf]
        %v3042 = vld [vmem:[%s2997 + $0xb0] sm:$0xf]
        %v3043 = vld [vmem:[%s2997 + $0xb4] sm:$0xf]
        %v3044 = vld [vmem:[%s2997 + $0xb8] sm:$0xf]
        %v3045 = vld [vmem:[%s2997 + $0xbc] sm:$0xf]
        %v3094 = vunpack.c.l.b16 %v2998
        %v3095 = vunpack.c.l.b16 %v2999
        %v3096 = vunpack.c.l.b16 %v3000
        %v3097 = vunpack.c.l.b16 %v3001
        %v3098 = vunpack.c.l.b16 %v3002
        %v3099 = vunpack.c.l.b16 %v3003
        %v3100 = vunpack.c.l.b16 %v3004
        %v3101 = vunpack.c.l.b16 %v3005
        %v3102 = vunpack.c.l.b16 %v3006
        %v3103 = vunpack.c.l.b16 %v3007
        %v3104 = vunpack.c.l.b16 %v3008
        %v3105 = vunpack.c.l.b16 %v3009
        %v3106 = vunpack.c.l.b16 %v3010
        %v3107 = vunpack.c.l.b16 %v3011
        %v3108 = vunpack.c.l.b16 %v3012
        %v3109 = vunpack.c.l.b16 %v3013
        %v3110 = vunpack.c.l.b16 %v3014
        %v3111 = vunpack.c.l.b16 %v3015
        %v3112 = vunpack.c.l.b16 %v3016
        %v3113 = vunpack.c.l.b16 %v3017
        %v3114 = vunpack.c.l.b16 %v3018
        %v3115 = vunpack.c.l.b16 %v3019
        %v3116 = vunpack.c.l.b16 %v3020
        %v3117 = vunpack.c.l.b16 %v3021
        %v3118 = vunpack.c.l.b16 %v3022
        %v3119 = vunpack.c.l.b16 %v3023
        %v3120 = vunpack.c.l.b16 %v3024
        %v3121 = vunpack.c.l.b16 %v3025
        %v3122 = vunpack.c.l.b16 %v3026
        %v3123 = vunpack.c.l.b16 %v3027
        %v3124 = vunpack.c.l.b16 %v3028
        %v3125 = vunpack.c.l.b16 %v3029
        %v3126 = vunpack.c.l.b16 %v3030
        %v3127 = vunpack.c.l.b16 %v3031
        %v3128 = vunpack.c.l.b16 %v3032
        %v3129 = vunpack.c.l.b16 %v3033
        %v3130 = vunpack.c.l.b16 %v3034
        %v3131 = vunpack.c.l.b16 %v3035
        %v3132 = vunpack.c.l.b16 %v3036
        %v3133 = vunpack.c.l.b16 %v3037
        %v3134 = vunpack.c.l.b16 %v3038
        %v3135 = vunpack.c.l.b16 %v3039
        %v3136 = vunpack.c.l.b16 %v3040
        %v3137 = vunpack.c.l.b16 %v3041
        %v3138 = vunpack.c.l.b16 %v3042
        %v3139 = vunpack.c.l.b16 %v3043
        %v3140 = vunpack.c.l.b16 %v3044
        %v3141 = vunpack.c.l.b16 %v3045
        %v3142 = vpack.c.b16 %v3095, %v3094
        %v3143 = vpack.c.b16 %v3097, %v3096
        %v3144 = vpack.c.b16 %v3099, %v3098
        %v3145 = vpack.c.b16 %v3101, %v3100
        %v3146 = vpack.c.b16 %v3103, %v3102
        %v3147 = vpack.c.b16 %v3105, %v3104
        %v3148 = vpack.c.b16 %v3107, %v3106
        %v3149 = vpack.c.b16 %v3109, %v3108
        %v3150 = vpack.c.b16 %v3111, %v3110
        %v3151 = vpack.c.b16 %v3113, %v3112
        %v3152 = vpack.c.b16 %v3115, %v3114
        %v3153 = vpack.c.b16 %v3117, %v3116
        %v3154 = vpack.c.b16 %v3119, %v3118
        %v3155 = vpack.c.b16 %v3121, %v3120
        %v3156 = vpack.c.b16 %v3123, %v3122
        %v3157 = vpack.c.b16 %v3125, %v3124
        %v3158 = vpack.c.b16 %v3127, %v3126
        %v3159 = vpack.c.b16 %v3129, %v3128
        %v3160 = vpack.c.b16 %v3131, %v3130
        %v3161 = vpack.c.b16 %v3133, %v3132
        %v3162 = vpack.c.b16 %v3135, %v3134
        %v3163 = vpack.c.b16 %v3137, %v3136
        %v3164 = vpack.c.b16 %v3139, %v3138
        %v3165 = vpack.c.b16 %v3141, %v3140
        %3190 = vmatprep.subr.bf16.mxu0 0
        %3191 = vmatpush1.bf16.msra.mxu0 %v3142
        %3192 = vmatprep.subr.bf16.mxu0 0
        %3193 = vmatpush1.bf16.msra.mxu0 %v3143
        %3194 = vmatprep.subr.bf16.mxu0 0
        %3195 = vmatpush1.bf16.msra.mxu0 %v3144
        %3196 = vmatprep.subr.bf16.mxu0 0
        %3197 = vmatpush1.bf16.msra.mxu0 %v3145
        %3198 = vmatprep.subr.bf16.mxu0 0
        %3199 = vmatpush1.bf16.msra.mxu0 %v3146
        %3200 = vmatprep.subr.bf16.mxu0 0
        %3201 = vmatpush1.bf16.msra.mxu0 %v3147
        %3202 = vmatprep.subr.bf16.mxu0 0
        %3203 = vmatpush1.bf16.msra.mxu0 %v3148
        %3204 = vmatprep.subr.bf16.mxu0 0
        %3205 = vmatpush1.bf16.msra.mxu0 %v3149
        %3206 = vmatprep.subr.bf16.mxu0 0
        %3207 = vmatpush1.bf16.msra.mxu0 %v3150
        %3208 = vmatprep.subr.bf16.mxu0 0
        %3209 = vmatpush1.bf16.msra.mxu0 %v3151
        %3210 = vmatprep.subr.bf16.mxu0 0
        %3211 = vmatpush1.bf16.msra.mxu0 %v3152
        %3212 = vmatprep.subr.bf16.mxu0 0
        %3213 = vmatpush1.bf16.msra.mxu0 %v3153
        %3214 = vmatprep.subr.bf16.mxu0 0
        %3215 = vmatpush1.bf16.msra.mxu0 %v3154
        %3216 = vmatprep.subr.bf16.mxu0 0
        %3217 = vmatpush1.bf16.msra.mxu0 %v3155
        %3218 = vmatprep.subr.bf16.mxu0 0
        %3219 = vmatpush1.bf16.msra.mxu0 %v3156
        %3220 = vmatprep.subr.bf16.mxu0 0
        %3221 = vmatpush1.bf16.msra.mxu0 %v3157
        %3222 = vmatprep.mubr.bf16.mxu0 %v1621
        %3223 = vmatmul.mubr.bf16.gmra.mrb[0].mxu0 %v1620
        %v3224 = vpop.f32.mrb[0].mxu0
        %v3225 = vadd.f32 0.0, %v3224
        %v3226 = vpop.f32.mrb[0].mxu0
        %v3227 = vpop.f32.mrb[0].mxu0
        %v3228 = vadd.f32 0.0, %v3227
        %v3229 = vpop.f32.mrb[0].mxu0
        %3230 = vdwg.mxu0
        %3231 = vmatprep.subr.bf16.mxu0 0
        %3232 = vmatpush1.bf16.msra.mxu0 %v3158
        %3233 = vmatprep.subr.bf16.mxu0 0
        %3234 = vmatpush1.bf16.msra.mxu0 %v3159
        %3235 = vmatprep.subr.bf16.mxu0 0
        %3236 = vmatpush1.bf16.msra.mxu0 %v3160
        %3237 = vmatprep.subr.bf16.mxu0 0
        %3238 = vmatpush1.bf16.msra.mxu0 %v3161
        %3239 = vmatprep.subr.bf16.mxu0 0
        %3240 = vmatpush1.bf16.msra.mxu0 %v3162
        %3241 = vmatprep.subr.bf16.mxu0 0
        %3242 = vmatpush1.bf16.msra.mxu0 %v3163
        %3243 = vmatprep.subr.bf16.mxu0 0
        %3244 = vmatpush1.bf16.msra.mxu0 %v3164
        %3245 = vmatprep.subr.bf16.mxu0 0
        %3246 = vmatpush1.bf16.msra.mxu0 %v3165
        %3247 = vmatprep.subr.bf16.mxu0 0
        %3248 = vmatpush1.bf16.msra.mxu0 0
        %3249 = vmatprep.subr.bf16.mxu0 0
        %3250 = vmatpush1.bf16.msra.mxu0 0
        %3251 = vmatprep.subr.bf16.mxu0 0
        %3252 = vmatpush1.bf16.msra.mxu0 0
        %3253 = vmatprep.subr.bf16.mxu0 0
        %3254 = vmatpush1.bf16.msra.mxu0 0
        %3255 = vmatprep.subr.bf16.mxu0 0
        %3256 = vmatpush1.bf16.msra.mxu0 0
        %3257 = vmatprep.subr.bf16.mxu0 0
        %3258 = vmatpush1.bf16.msra.mxu0 0
        %3259 = vmatprep.subr.bf16.mxu0 0
        %3260 = vmatpush1.bf16.msra.mxu0 0
        %3261 = vmatprep.subr.bf16.mxu0 0
        %3262 = vmatpush1.bf16.msra.mxu0 0
        %3263 = vmatprep.mubr.bf16.mxu0 0
        %3264 = vmatmul.mubr.bf16.gmra.mrb[0].mxu0 %v1622
        %v3265 = vpop.f32.mrb[0].mxu0
        %v3266 = vadd.f32 %v3225, %v3265
        %v3267 = vpop.f32.mrb[0].mxu0
        %v3268 = vpop.f32.mrb[0].mxu0
        %v3269 = vadd.f32 %v3228, %v3268
        %v3270 = vpop.f32.mrb[0].mxu0
        %3271 = vdwg.mxu0
        %s3272 = scalar_lea.vmem %s10, 1152
        %v3273 = vld [vmem:[%s3272] sm:$0xf]
        %v3274 = vld [vmem:[%s3272 + $0x4] sm:$0xf]
        %v3275 = vld [vmem:[%s3272 + $0x8] sm:$0xf]
        %v3276 = vld [vmem:[%s3272 + $0xc] sm:$0xf]
        %v3277 = vld [vmem:[%s3272 + $0x10] sm:$0xf]
        %v3278 = vld [vmem:[%s3272 + $0x14] sm:$0xf]
        %v3279 = vld [vmem:[%s3272 + $0x18] sm:$0xf]
        %v3280 = vld [vmem:[%s3272 + $0x1c] sm:$0xf]
        %v3281 = vld [vmem:[%s3272 + $0x20] sm:$0xf]
        %v3282 = vld [vmem:[%s3272 + $0x24] sm:$0xf]
        %v3283 = vld [vmem:[%s3272 + $0x28] sm:$0xf]
        %v3284 = vld [vmem:[%s3272 + $0x2c] sm:$0xf]
        %v3285 = vld [vmem:[%s3272 + $0x30] sm:$0xf]
        %v3286 = vld [vmem:[%s3272 + $0x34] sm:$0xf]
        %v3287 = vld [vmem:[%s3272 + $0x38] sm:$0xf]
        %v3288 = vld [vmem:[%s3272 + $0x3c] sm:$0xf]
        %v3289 = vld [vmem:[%s3272 + $0x40] sm:$0xf]
        %v3290 = vld [vmem:[%s3272 + $0x44] sm:$0xf]
        %v3291 = vld [vmem:[%s3272 + $0x48] sm:$0xf]
        %v3292 = vld [vmem:[%s3272 + $0x4c] sm:$0xf]
        %v3293 = vld [vmem:[%s3272 + $0x50] sm:$0xf]
        %v3294 = vld [vmem:[%s3272 + $0x54] sm:$0xf]
        %v3295 = vld [vmem:[%s3272 + $0x58] sm:$0xf]
        %v3296 = vld [vmem:[%s3272 + $0x5c] sm:$0xf]
        %v3297 = vld [vmem:[%s3272 + $0x60] sm:$0xf]
        %v3298 = vld [vmem:[%s3272 + $0x64] sm:$0xf]
        %v3299 = vld [vmem:[%s3272 + $0x68] sm:$0xf]
        %v3300 = vld [vmem:[%s3272 + $0x6c] sm:$0xf]
        %v3301 = vld [vmem:[%s3272 + $0x70] sm:$0xf]
        %v3302 = vld [vmem:[%s3272 + $0x74] sm:$0xf]
        %v3303 = vld [vmem:[%s3272 + $0x78] sm:$0xf]
        %v3304 = vld [vmem:[%s3272 + $0x7c] sm:$0xf]
        %v3305 = vld [vmem:[%s3272 + $0x80] sm:$0xf]
        %v3306 = vld [vmem:[%s3272 + $0x84] sm:$0xf]
        %v3307 = vld [vmem:[%s3272 + $0x88] sm:$0xf]
        %v3308 = vld [vmem:[%s3272 + $0x8c] sm:$0xf]
        %v3309 = vld [vmem:[%s3272 + $0x90] sm:$0xf]
        %v3310 = vld [vmem:[%s3272 + $0x94] sm:$0xf]
        %v3311 = vld [vmem:[%s3272 + $0x98] sm:$0xf]
        %v3312 = vld [vmem:[%s3272 + $0x9c] sm:$0xf]
        %v3313 = vld [vmem:[%s3272 + $0xa0] sm:$0xf]
        %v3314 = vld [vmem:[%s3272 + $0xa4] sm:$0xf]
        %v3315 = vld [vmem:[%s3272 + $0xa8] sm:$0xf]
        %v3316 = vld [vmem:[%s3272 + $0xac] sm:$0xf]
        %v3317 = vld [vmem:[%s3272 + $0xb0] sm:$0xf]
        %v3318 = vld [vmem:[%s3272 + $0xb4] sm:$0xf]
        %v3319 = vld [vmem:[%s3272 + $0xb8] sm:$0xf]
        %v3320 = vld [vmem:[%s3272 + $0xbc] sm:$0xf]
        %v3369 = vunpack.c.l.b16 %v3273
        %v3370 = vunpack.c.l.b16 %v3274
        %v3371 = vunpack.c.l.b16 %v3275
        %v3372 = vunpack.c.l.b16 %v3276
        %v3373 = vunpack.c.l.b16 %v3277
        %v3374 = vunpack.c.l.b16 %v3278
        %v3375 = vunpack.c.l.b16 %v3279
        %v3376 = vunpack.c.l.b16 %v3280
        %v3377 = vunpack.c.l.b16 %v3281
        %v3378 = vunpack.c.l.b16 %v3282
        %v3379 = vunpack.c.l.b16 %v3283
        %v3380 = vunpack.c.l.b16 %v3284
        %v3381 = vunpack.c.l.b16 %v3285
        %v3382 = vunpack.c.l.b16 %v3286
        %v3383 = vunpack.c.l.b16 %v3287
        %v3384 = vunpack.c.l.b16 %v3288
        %v3385 = vunpack.c.l.b16 %v3289
        %v3386 = vunpack.c.l.b16 %v3290
        %v3387 = vunpack.c.l.b16 %v3291
        %v3388 = vunpack.c.l.b16 %v3292
        %v3389 = vunpack.c.l.b16 %v3293
        %v3390 = vunpack.c.l.b16 %v3294
        %v3391 = vunpack.c.l.b16 %v3295
        %v3392 = vunpack.c.l.b16 %v3296
        %v3393 = vunpack.c.l.b16 %v3297
        %v3394 = vunpack.c.l.b16 %v3298
        %v3395 = vunpack.c.l.b16 %v3299
        %v3396 = vunpack.c.l.b16 %v3300
        %v3397 = vunpack.c.l.b16 %v3301
        %v3398 = vunpack.c.l.b16 %v3302
        %v3399 = vunpack.c.l.b16 %v3303
        %v3400 = vunpack.c.l.b16 %v3304
        %v3401 = vunpack.c.l.b16 %v3305
        %v3402 = vunpack.c.l.b16 %v3306
        %v3403 = vunpack.c.l.b16 %v3307
        %v3404 = vunpack.c.l.b16 %v3308
        %v3405 = vunpack.c.l.b16 %v3309
        %v3406 = vunpack.c.l.b16 %v3310
        %v3407 = vunpack.c.l.b16 %v3311
        %v3408 = vunpack.c.l.b16 %v3312
        %v3409 = vunpack.c.l.b16 %v3313
        %v3410 = vunpack.c.l.b16 %v3314
        %v3411 = vunpack.c.l.b16 %v3315
        %v3412 = vunpack.c.l.b16 %v3316
        %v3413 = vunpack.c.l.b16 %v3317
        %v3414 = vunpack.c.l.b16 %v3318
        %v3415 = vunpack.c.l.b16 %v3319
        %v3416 = vunpack.c.l.b16 %v3320
        %v3417 = vpack.c.b16 %v3370, %v3369
        %v3418 = vpack.c.b16 %v3372, %v3371
        %v3419 = vpack.c.b16 %v3374, %v3373
        %v3420 = vpack.c.b16 %v3376, %v3375
        %v3421 = vpack.c.b16 %v3378, %v3377
        %v3422 = vpack.c.b16 %v3380, %v3379
        %v3423 = vpack.c.b16 %v3382, %v3381
        %v3424 = vpack.c.b16 %v3384, %v3383
        %v3425 = vpack.c.b16 %v3386, %v3385
        %v3426 = vpack.c.b16 %v3388, %v3387
        %v3427 = vpack.c.b16 %v3390, %v3389
        %v3428 = vpack.c.b16 %v3392, %v3391
        %v3429 = vpack.c.b16 %v3394, %v3393
        %v3430 = vpack.c.b16 %v3396, %v3395
        %v3431 = vpack.c.b16 %v3398, %v3397
        %v3432 = vpack.c.b16 %v3400, %v3399
        %v3433 = vpack.c.b16 %v3402, %v3401
        %v3434 = vpack.c.b16 %v3404, %v3403
        %v3435 = vpack.c.b16 %v3406, %v3405
        %v3436 = vpack.c.b16 %v3408, %v3407
        %v3437 = vpack.c.b16 %v3410, %v3409
        %v3438 = vpack.c.b16 %v3412, %v3411
        %v3439 = vpack.c.b16 %v3414, %v3413
        %v3440 = vpack.c.b16 %v3416, %v3415
        %3465 = vmatprep.subr.bf16.mxu0 0
        %3466 = vmatpush1.bf16.msra.mxu0 %v3417
        %3467 = vmatprep.subr.bf16.mxu0 0
        %3468 = vmatpush1.bf16.msra.mxu0 %v3418
        %3469 = vmatprep.subr.bf16.mxu0 0
        %3470 = vmatpush1.bf16.msra.mxu0 %v3419
        %3471 = vmatprep.subr.bf16.mxu0 0
        %3472 = vmatpush1.bf16.msra.mxu0 %v3420
        %3473 = vmatprep.subr.bf16.mxu0 0
        %3474 = vmatpush1.bf16.msra.mxu0 %v3421
        %3475 = vmatprep.subr.bf16.mxu0 0
        %3476 = vmatpush1.bf16.msra.mxu0 %v3422
        %3477 = vmatprep.subr.bf16.mxu0 0
        %3478 = vmatpush1.bf16.msra.mxu0 %v3423
        %3479 = vmatprep.subr.bf16.mxu0 0
        %3480 = vmatpush1.bf16.msra.mxu0 %v3424
        %3481 = vmatprep.subr.bf16.mxu0 0
        %3482 = vmatpush1.bf16.msra.mxu0 %v3425
        %3483 = vmatprep.subr.bf16.mxu0 0
        %3484 = vmatpush1.bf16.msra.mxu0 %v3426
        %3485 = vmatprep.subr.bf16.mxu0 0
        %3486 = vmatpush1.bf16.msra.mxu0 %v3427
        %3487 = vmatprep.subr.bf16.mxu0 0
        %3488 = vmatpush1.bf16.msra.mxu0 %v3428
        %3489 = vmatprep.subr.bf16.mxu0 0
        %3490 = vmatpush1.bf16.msra.mxu0 %v3429
        %3491 = vmatprep.subr.bf16.mxu0 0
        %3492 = vmatpush1.bf16.msra.mxu0 %v3430
        %3493 = vmatprep.subr.bf16.mxu0 0
        %3494 = vmatpush1.bf16.msra.mxu0 %v3431
        %3495 = vmatprep.subr.bf16.mxu0 0
        %3496 = vmatpush1.bf16.msra.mxu0 %v3432
        %3497 = vmatprep.mubr.bf16.mxu0 %v1621
        %3498 = vmatmul.mubr.bf16.gmra.mrb[0].mxu0 %v1620
        %v3499 = vpop.f32.mrb[0].mxu0
        %v3500 = vadd.f32 0.0, %v3499
        %v3501 = vpop.f32.mrb[0].mxu0
        %v3502 = vpop.f32.mrb[0].mxu0
        %v3503 = vadd.f32 0.0, %v3502
        %v3504 = vpop.f32.mrb[0].mxu0
        %3505 = vdwg.mxu0
        %3506 = vmatprep.subr.bf16.mxu0 0
        %3507 = vmatpush1.bf16.msra.mxu0 %v3433
        %3508 = vmatprep.subr.bf16.mxu0 0
        %3509 = vmatpush1.bf16.msra.mxu0 %v3434
        %3510 = vmatprep.subr.bf16.mxu0 0
        %3511 = vmatpush1.bf16.msra.mxu0 %v3435
        %3512 = vmatprep.subr.bf16.mxu0 0
        %3513 = vmatpush1.bf16.msra.mxu0 %v3436
        %3514 = vmatprep.subr.bf16.mxu0 0
        %3515 = vmatpush1.bf16.msra.mxu0 %v3437
        %3516 = vmatprep.subr.bf16.mxu0 0
        %3517 = vmatpush1.bf16.msra.mxu0 %v3438
        %3518 = vmatprep.subr.bf16.mxu0 0
        %3519 = vmatpush1.bf16.msra.mxu0 %v3439
        %3520 = vmatprep.subr.bf16.mxu0 0
        %3521 = vmatpush1.bf16.msra.mxu0 %v3440
        %3522 = vmatprep.subr.bf16.mxu0 0
        %3523 = vmatpush1.bf16.msra.mxu0 0
        %3524 = vmatprep.subr.bf16.mxu0 0
        %3525 = vmatpush1.bf16.msra.mxu0 0
        %3526 = vmatprep.subr.bf16.mxu0 0
        %3527 = vmatpush1.bf16.msra.mxu0 0
        %3528 = vmatprep.subr.bf16.mxu0 0
        %3529 = vmatpush1.bf16.msra.mxu0 0
        %3530 = vmatprep.subr.bf16.mxu0 0
        %3531 = vmatpush1.bf16.msra.mxu0 0
        %3532 = vmatprep.subr.bf16.mxu0 0
        %3533 = vmatpush1.bf16.msra.mxu0 0
        %3534 = vmatprep.subr.bf16.mxu0 0
        %3535 = vmatpush1.bf16.msra.mxu0 0
        %3536 = vmatprep.subr.bf16.mxu0 0
        %3537 = vmatpush1.bf16.msra.mxu0 0
        %3538 = vmatprep.mubr.bf16.mxu0 0
        %3539 = vmatmul.mubr.bf16.gmra.mrb[0].mxu0 %v1622
        %v3540 = vpop.f32.mrb[0].mxu0
        %v3541 = vadd.f32 %v3500, %v3540
        %v3542 = vpop.f32.mrb[0].mxu0
        %v3543 = vpop.f32.mrb[0].mxu0
        %v3544 = vadd.f32 %v3503, %v3543
        %v3545 = vpop.f32.mrb[0].mxu0
        %3546 = vdwg.mxu0
        %s3547 = scalar_lea.vmem %s10, 1344
        %v3548 = vld [vmem:[%s3547] sm:$0xf]
        %v3549 = vld [vmem:[%s3547 + $0x4] sm:$0xf]
        %v3550 = vld [vmem:[%s3547 + $0x8] sm:$0xf]
        %v3551 = vld [vmem:[%s3547 + $0xc] sm:$0xf]
        %v3552 = vld [vmem:[%s3547 + $0x10] sm:$0xf]
        %v3553 = vld [vmem:[%s3547 + $0x14] sm:$0xf]
        %v3554 = vld [vmem:[%s3547 + $0x18] sm:$0xf]
        %v3555 = vld [vmem:[%s3547 + $0x1c] sm:$0xf]
        %v3556 = vld [vmem:[%s3547 + $0x20] sm:$0xf]
        %v3557 = vld [vmem:[%s3547 + $0x24] sm:$0xf]
        %v3558 = vld [vmem:[%s3547 + $0x28] sm:$0xf]
        %v3559 = vld [vmem:[%s3547 + $0x2c] sm:$0xf]
        %v3560 = vld [vmem:[%s3547 + $0x30] sm:$0xf]
        %v3561 = vld [vmem:[%s3547 + $0x34] sm:$0xf]
        %v3562 = vld [vmem:[%s3547 + $0x38] sm:$0xf]
        %v3563 = vld [vmem:[%s3547 + $0x3c] sm:$0xf]
        %v3564 = vld [vmem:[%s3547 + $0x40] sm:$0xf]
        %v3565 = vld [vmem:[%s3547 + $0x44] sm:$0xf]
        %v3566 = vld [vmem:[%s3547 + $0x48] sm:$0xf]
        %v3567 = vld [vmem:[%s3547 + $0x4c] sm:$0xf]
        %v3568 = vld [vmem:[%s3547 + $0x50] sm:$0xf]
        %v3569 = vld [vmem:[%s3547 + $0x54] sm:$0xf]
        %v3570 = vld [vmem:[%s3547 + $0x58] sm:$0xf]
        %v3571 = vld [vmem:[%s3547 + $0x5c] sm:$0xf]
        %v3572 = vld [vmem:[%s3547 + $0x60] sm:$0xf]
        %v3573 = vld [vmem:[%s3547 + $0x64] sm:$0xf]
        %v3574 = vld [vmem:[%s3547 + $0x68] sm:$0xf]
        %v3575 = vld [vmem:[%s3547 + $0x6c] sm:$0xf]
        %v3576 = vld [vmem:[%s3547 + $0x70] sm:$0xf]
        %v3577 = vld [vmem:[%s3547 + $0x74] sm:$0xf]
        %v3578 = vld [vmem:[%s3547 + $0x78] sm:$0xf]
        %v3579 = vld [vmem:[%s3547 + $0x7c] sm:$0xf]
        %v3580 = vld [vmem:[%s3547 + $0x80] sm:$0xf]
        %v3581 = vld [vmem:[%s3547 + $0x84] sm:$0xf]
        %v3582 = vld [vmem:[%s3547 + $0x88] sm:$0xf]
        %v3583 = vld [vmem:[%s3547 + $0x8c] sm:$0xf]
        %v3584 = vld [vmem:[%s3547 + $0x90] sm:$0xf]
        %v3585 = vld [vmem:[%s3547 + $0x94] sm:$0xf]
        %v3586 = vld [vmem:[%s3547 + $0x98] sm:$0xf]
        %v3587 = vld [vmem:[%s3547 + $0x9c] sm:$0xf]
        %v3588 = vld [vmem:[%s3547 + $0xa0] sm:$0xf]
        %v3589 = vld [vmem:[%s3547 + $0xa4] sm:$0xf]
        %v3590 = vld [vmem:[%s3547 + $0xa8] sm:$0xf]
        %v3591 = vld [vmem:[%s3547 + $0xac] sm:$0xf]
        %v3592 = vld [vmem:[%s3547 + $0xb0] sm:$0xf]
        %v3593 = vld [vmem:[%s3547 + $0xb4] sm:$0xf]
        %v3594 = vld [vmem:[%s3547 + $0xb8] sm:$0xf]
        %v3595 = vld [vmem:[%s3547 + $0xbc] sm:$0xf]
        %v3644 = vunpack.c.l.b16 %v3548
        %v3645 = vunpack.c.l.b16 %v3549
        %v3646 = vunpack.c.l.b16 %v3550
        %v3647 = vunpack.c.l.b16 %v3551
        %v3648 = vunpack.c.l.b16 %v3552
        %v3649 = vunpack.c.l.b16 %v3553
        %v3650 = vunpack.c.l.b16 %v3554
        %v3651 = vunpack.c.l.b16 %v3555
        %v3652 = vunpack.c.l.b16 %v3556
        %v3653 = vunpack.c.l.b16 %v3557
        %v3654 = vunpack.c.l.b16 %v3558
        %v3655 = vunpack.c.l.b16 %v3559
        %v3656 = vunpack.c.l.b16 %v3560
        %v3657 = vunpack.c.l.b16 %v3561
        %v3658 = vunpack.c.l.b16 %v3562
        %v3659 = vunpack.c.l.b16 %v3563
        %v3660 = vunpack.c.l.b16 %v3564
        %v3661 = vunpack.c.l.b16 %v3565
        %v3662 = vunpack.c.l.b16 %v3566
        %v3663 = vunpack.c.l.b16 %v3567
        %v3664 = vunpack.c.l.b16 %v3568
        %v3665 = vunpack.c.l.b16 %v3569
        %v3666 = vunpack.c.l.b16 %v3570
        %v3667 = vunpack.c.l.b16 %v3571
        %v3668 = vunpack.c.l.b16 %v3572
        %v3669 = vunpack.c.l.b16 %v3573
        %v3670 = vunpack.c.l.b16 %v3574
        %v3671 = vunpack.c.l.b16 %v3575
        %v3672 = vunpack.c.l.b16 %v3576
        %v3673 = vunpack.c.l.b16 %v3577
        %v3674 = vunpack.c.l.b16 %v3578
        %v3675 = vunpack.c.l.b16 %v3579
        %v3676 = vunpack.c.l.b16 %v3580
        %v3677 = vunpack.c.l.b16 %v3581
        %v3678 = vunpack.c.l.b16 %v3582
        %v3679 = vunpack.c.l.b16 %v3583
        %v3680 = vunpack.c.l.b16 %v3584
        %v3681 = vunpack.c.l.b16 %v3585
        %v3682 = vunpack.c.l.b16 %v3586
        %v3683 = vunpack.c.l.b16 %v3587
        %v3684 = vunpack.c.l.b16 %v3588
        %v3685 = vunpack.c.l.b16 %v3589
        %v3686 = vunpack.c.l.b16 %v3590
        %v3687 = vunpack.c.l.b16 %v3591
        %v3688 = vunpack.c.l.b16 %v3592
        %v3689 = vunpack.c.l.b16 %v3593
        %v3690 = vunpack.c.l.b16 %v3594
        %v3691 = vunpack.c.l.b16 %v3595
        %v3692 = vpack.c.b16 %v3645, %v3644
        %v3693 = vpack.c.b16 %v3647, %v3646
        %v3694 = vpack.c.b16 %v3649, %v3648
        %v3695 = vpack.c.b16 %v3651, %v3650
        %v3696 = vpack.c.b16 %v3653, %v3652
        %v3697 = vpack.c.b16 %v3655, %v3654
        %v3698 = vpack.c.b16 %v3657, %v3656
        %v3699 = vpack.c.b16 %v3659, %v3658
        %v3700 = vpack.c.b16 %v3661, %v3660
        %v3701 = vpack.c.b16 %v3663, %v3662
        %v3702 = vpack.c.b16 %v3665, %v3664
        %v3703 = vpack.c.b16 %v3667, %v3666
        %v3704 = vpack.c.b16 %v3669, %v3668
        %v3705 = vpack.c.b16 %v3671, %v3670
        %v3706 = vpack.c.b16 %v3673, %v3672
        %v3707 = vpack.c.b16 %v3675, %v3674
        %v3708 = vpack.c.b16 %v3677, %v3676
        %v3709 = vpack.c.b16 %v3679, %v3678
        %v3710 = vpack.c.b16 %v3681, %v3680
        %v3711 = vpack.c.b16 %v3683, %v3682
        %v3712 = vpack.c.b16 %v3685, %v3684
        %v3713 = vpack.c.b16 %v3687, %v3686
        %v3714 = vpack.c.b16 %v3689, %v3688
        %v3715 = vpack.c.b16 %v3691, %v3690
        %3740 = vmatprep.subr.bf16.mxu0 0
        %3741 = vmatpush1.bf16.msra.mxu0 %v3692
        %3742 = vmatprep.subr.bf16.mxu0 0
        %3743 = vmatpush1.bf16.msra.mxu0 %v3693
        %3744 = vmatprep.subr.bf16.mxu0 0
        %3745 = vmatpush1.bf16.msra.mxu0 %v3694
        %3746 = vmatprep.subr.bf16.mxu0 0
        %3747 = vmatpush1.bf16.msra.mxu0 %v3695
        %3748 = vmatprep.subr.bf16.mxu0 0
        %3749 = vmatpush1.bf16.msra.mxu0 %v3696
        %3750 = vmatprep.subr.bf16.mxu0 0
        %3751 = vmatpush1.bf16.msra.mxu0 %v3697
        %3752 = vmatprep.subr.bf16.mxu0 0
        %3753 = vmatpush1.bf16.msra.mxu0 %v3698
        %3754 = vmatprep.subr.bf16.mxu0 0
        %3755 = vmatpush1.bf16.msra.mxu0 %v3699
        %3756 = vmatprep.subr.bf16.mxu0 0
        %3757 = vmatpush1.bf16.msra.mxu0 %v3700
        %3758 = vmatprep.subr.bf16.mxu0 0
        %3759 = vmatpush1.bf16.msra.mxu0 %v3701
        %3760 = vmatprep.subr.bf16.mxu0 0
        %3761 = vmatpush1.bf16.msra.mxu0 %v3702
        %3762 = vmatprep.subr.bf16.mxu0 0
        %3763 = vmatpush1.bf16.msra.mxu0 %v3703
        %3764 = vmatprep.subr.bf16.mxu0 0
        %3765 = vmatpush1.bf16.msra.mxu0 %v3704
        %3766 = vmatprep.subr.bf16.mxu0 0
        %3767 = vmatpush1.bf16.msra.mxu0 %v3705
        %3768 = vmatprep.subr.bf16.mxu0 0
        %3769 = vmatpush1.bf16.msra.mxu0 %v3706
        %3770 = vmatprep.subr.bf16.mxu0 0
        %3771 = vmatpush1.bf16.msra.mxu0 %v3707
        %3772 = vmatprep.mubr.bf16.mxu0 %v1621
        %3773 = vmatmul.mubr.bf16.gmra.mrb[0].mxu0 %v1620
        %v3774 = vpop.f32.mrb[0].mxu0
        %v3775 = vadd.f32 0.0, %v3774
        %v3776 = vpop.f32.mrb[0].mxu0
        %v3777 = vpop.f32.mrb[0].mxu0
        %v3778 = vadd.f32 0.0, %v3777
        %v3779 = vpop.f32.mrb[0].mxu0
        %3780 = vdwg.mxu0
        %3781 = vmatprep.subr.bf16.mxu0 0
        %3782 = vmatpush1.bf16.msra.mxu0 %v3708
        %3783 = vmatprep.subr.bf16.mxu0 0
        %3784 = vmatpush1.bf16.msra.mxu0 %v3709
        %3785 = vmatprep.subr.bf16.mxu0 0
        %3786 = vmatpush1.bf16.msra.mxu0 %v3710
        %3787 = vmatprep.subr.bf16.mxu0 0
        %3788 = vmatpush1.bf16.msra.mxu0 %v3711
        %3789 = vmatprep.subr.bf16.mxu0 0
        %3790 = vmatpush1.bf16.msra.mxu0 %v3712
        %3791 = vmatprep.subr.bf16.mxu0 0
        %3792 = vmatpush1.bf16.msra.mxu0 %v3713
        %3793 = vmatprep.subr.bf16.mxu0 0
        %3794 = vmatpush1.bf16.msra.mxu0 %v3714
        %3795 = vmatprep.subr.bf16.mxu0 0
        %3796 = vmatpush1.bf16.msra.mxu0 %v3715
        %3797 = vmatprep.subr.bf16.mxu0 0
        %3798 = vmatpush1.bf16.msra.mxu0 0
        %3799 = vmatprep.subr.bf16.mxu0 0
        %3800 = vmatpush1.bf16.msra.mxu0 0
        %3801 = vmatprep.subr.bf16.mxu0 0
        %3802 = vmatpush1.bf16.msra.mxu0 0
        %3803 = vmatprep.subr.bf16.mxu0 0
        %3804 = vmatpush1.bf16.msra.mxu0 0
        %3805 = vmatprep.subr.bf16.mxu0 0
        %3806 = vmatpush1.bf16.msra.mxu0 0
        %3807 = vmatprep.subr.bf16.mxu0 0
        %3808 = vmatpush1.bf16.msra.mxu0 0
        %3809 = vmatprep.subr.bf16.mxu0 0
        %3810 = vmatpush1.bf16.msra.mxu0 0
        %3811 = vmatprep.subr.bf16.mxu0 0
        %3812 = vmatpush1.bf16.msra.mxu0 0
        %3813 = vmatprep.mubr.bf16.mxu0 0
        %3814 = vmatmul.mubr.bf16.gmra.mrb[0].mxu0 %v1622
        %v3815 = vpop.f32.mrb[0].mxu0
        %v3816 = vadd.f32 %v3775, %v3815
        %v3817 = vpop.f32.mrb[0].mxu0
        %v3818 = vpop.f32.mrb[0].mxu0
        %v3819 = vadd.f32 %v3778, %v3818
        %v3820 = vpop.f32.mrb[0].mxu0
        %3821 = vdwg.mxu0
        %s3822 = scalar_lea.vmem %s10, 1536
        %v3823 = vld [vmem:[%s3822] sm:$0xf]
        %v3824 = vld [vmem:[%s3822 + $0x4] sm:$0xf]
        %v3825 = vld [vmem:[%s3822 + $0x8] sm:$0xf]
        %v3826 = vld [vmem:[%s3822 + $0xc] sm:$0xf]
        %v3827 = vld [vmem:[%s3822 + $0x10] sm:$0xf]
        %v3828 = vld [vmem:[%s3822 + $0x14] sm:$0xf]
        %v3829 = vld [vmem:[%s3822 + $0x18] sm:$0xf]
        %v3830 = vld [vmem:[%s3822 + $0x1c] sm:$0xf]
        %v3831 = vld [vmem:[%s3822 + $0x20] sm:$0xf]
        %v3832 = vld [vmem:[%s3822 + $0x24] sm:$0xf]
        %v3833 = vld [vmem:[%s3822 + $0x28] sm:$0xf]
        %v3834 = vld [vmem:[%s3822 + $0x2c] sm:$0xf]
        %v3835 = vld [vmem:[%s3822 + $0x30] sm:$0xf]
        %v3836 = vld [vmem:[%s3822 + $0x34] sm:$0xf]
        %v3837 = vld [vmem:[%s3822 + $0x38] sm:$0xf]
        %v3838 = vld [vmem:[%s3822 + $0x3c] sm:$0xf]
        %v3839 = vld [vmem:[%s3822 + $0x40] sm:$0xf]
        %v3840 = vld [vmem:[%s3822 + $0x44] sm:$0xf]
        %v3841 = vld [vmem:[%s3822 + $0x48] sm:$0xf]
        %v3842 = vld [vmem:[%s3822 + $0x4c] sm:$0xf]
        %v3843 = vld [vmem:[%s3822 + $0x50] sm:$0xf]
        %v3844 = vld [vmem:[%s3822 + $0x54] sm:$0xf]
        %v3845 = vld [vmem:[%s3822 + $0x58] sm:$0xf]
        %v3846 = vld [vmem:[%s3822 + $0x5c] sm:$0xf]
        %v3847 = vld [vmem:[%s3822 + $0x60] sm:$0xf]
        %v3848 = vld [vmem:[%s3822 + $0x64] sm:$0xf]
        %v3849 = vld [vmem:[%s3822 + $0x68] sm:$0xf]
        %v3850 = vld [vmem:[%s3822 + $0x6c] sm:$0xf]
        %v3851 = vld [vmem:[%s3822 + $0x70] sm:$0xf]
        %v3852 = vld [vmem:[%s3822 + $0x74] sm:$0xf]
        %v3853 = vld [vmem:[%s3822 + $0x78] sm:$0xf]
        %v3854 = vld [vmem:[%s3822 + $0x7c] sm:$0xf]
        %v3855 = vld [vmem:[%s3822 + $0x80] sm:$0xf]
        %v3856 = vld [vmem:[%s3822 + $0x84] sm:$0xf]
        %v3857 = vld [vmem:[%s3822 + $0x88] sm:$0xf]
        %v3858 = vld [vmem:[%s3822 + $0x8c] sm:$0xf]
        %v3859 = vld [vmem:[%s3822 + $0x90] sm:$0xf]
        %v3860 = vld [vmem:[%s3822 + $0x94] sm:$0xf]
        %v3861 = vld [vmem:[%s3822 + $0x98] sm:$0xf]
        %v3862 = vld [vmem:[%s3822 + $0x9c] sm:$0xf]
        %v3863 = vld [vmem:[%s3822 + $0xa0] sm:$0xf]
        %v3864 = vld [vmem:[%s3822 + $0xa4] sm:$0xf]
        %v3865 = vld [vmem:[%s3822 + $0xa8] sm:$0xf]
        %v3866 = vld [vmem:[%s3822 + $0xac] sm:$0xf]
        %v3867 = vld [vmem:[%s3822 + $0xb0] sm:$0xf]
        %v3868 = vld [vmem:[%s3822 + $0xb4] sm:$0xf]
        %v3869 = vld [vmem:[%s3822 + $0xb8] sm:$0xf]
        %v3870 = vld [vmem:[%s3822 + $0xbc] sm:$0xf]
        %v3919 = vunpack.c.l.b16 %v3823
        %v3920 = vunpack.c.l.b16 %v3824
        %v3921 = vunpack.c.l.b16 %v3825
        %v3922 = vunpack.c.l.b16 %v3826
        %v3923 = vunpack.c.l.b16 %v3827
        %v3924 = vunpack.c.l.b16 %v3828
        %v3925 = vunpack.c.l.b16 %v3829
        %v3926 = vunpack.c.l.b16 %v3830
        %v3927 = vunpack.c.l.b16 %v3831
        %v3928 = vunpack.c.l.b16 %v3832
        %v3929 = vunpack.c.l.b16 %v3833
        %v3930 = vunpack.c.l.b16 %v3834
        %v3931 = vunpack.c.l.b16 %v3835
        %v3932 = vunpack.c.l.b16 %v3836
        %v3933 = vunpack.c.l.b16 %v3837
        %v3934 = vunpack.c.l.b16 %v3838
        %v3935 = vunpack.c.l.b16 %v3839
        %v3936 = vunpack.c.l.b16 %v3840
        %v3937 = vunpack.c.l.b16 %v3841
        %v3938 = vunpack.c.l.b16 %v3842
        %v3939 = vunpack.c.l.b16 %v3843
        %v3940 = vunpack.c.l.b16 %v3844
        %v3941 = vunpack.c.l.b16 %v3845
        %v3942 = vunpack.c.l.b16 %v3846
        %v3943 = vunpack.c.l.b16 %v3847
        %v3944 = vunpack.c.l.b16 %v3848
        %v3945 = vunpack.c.l.b16 %v3849
        %v3946 = vunpack.c.l.b16 %v3850
        %v3947 = vunpack.c.l.b16 %v3851
        %v3948 = vunpack.c.l.b16 %v3852
        %v3949 = vunpack.c.l.b16 %v3853
        %v3950 = vunpack.c.l.b16 %v3854
        %v3951 = vunpack.c.l.b16 %v3855
        %v3952 = vunpack.c.l.b16 %v3856
        %v3953 = vunpack.c.l.b16 %v3857
        %v3954 = vunpack.c.l.b16 %v3858
        %v3955 = vunpack.c.l.b16 %v3859
        %v3956 = vunpack.c.l.b16 %v3860
        %v3957 = vunpack.c.l.b16 %v3861
        %v3958 = vunpack.c.l.b16 %v3862
        %v3959 = vunpack.c.l.b16 %v3863
        %v3960 = vunpack.c.l.b16 %v3864
        %v3961 = vunpack.c.l.b16 %v3865
        %v3962 = vunpack.c.l.b16 %v3866
        %v3963 = vunpack.c.l.b16 %v3867
        %v3964 = vunpack.c.l.b16 %v3868
        %v3965 = vunpack.c.l.b16 %v3869
        %v3966 = vunpack.c.l.b16 %v3870
        %v3967 = vpack.c.b16 %v3920, %v3919
        %v3968 = vpack.c.b16 %v3922, %v3921
        %v3969 = vpack.c.b16 %v3924, %v3923
        %v3970 = vpack.c.b16 %v3926, %v3925
        %v3971 = vpack.c.b16 %v3928, %v3927
        %v3972 = vpack.c.b16 %v3930, %v3929
        %v3973 = vpack.c.b16 %v3932, %v3931
        %v3974 = vpack.c.b16 %v3934, %v3933
        %v3975 = vpack.c.b16 %v3936, %v3935
        %v3976 = vpack.c.b16 %v3938, %v3937
        %v3977 = vpack.c.b16 %v3940, %v3939
        %v3978 = vpack.c.b16 %v3942, %v3941
        %v3979 = vpack.c.b16 %v3944, %v3943
        %v3980 = vpack.c.b16 %v3946, %v3945
        %v3981 = vpack.c.b16 %v3948, %v3947
        %v3982 = vpack.c.b16 %v3950, %v3949
        %v3983 = vpack.c.b16 %v3952, %v3951
        %v3984 = vpack.c.b16 %v3954, %v3953
        %v3985 = vpack.c.b16 %v3956, %v3955
        %v3986 = vpack.c.b16 %v3958, %v3957
        %v3987 = vpack.c.b16 %v3960, %v3959
        %v3988 = vpack.c.b16 %v3962, %v3961
        %v3989 = vpack.c.b16 %v3964, %v3963
        %v3990 = vpack.c.b16 %v3966, %v3965
        %4015 = vmatprep.subr.bf16.mxu0 0
        %4016 = vmatpush1.bf16.msra.mxu0 %v3967
        %4017 = vmatprep.subr.bf16.mxu0 0
        %4018 = vmatpush1.bf16.msra.mxu0 %v3968
        %4019 = vmatprep.subr.bf16.mxu0 0
        %4020 = vmatpush1.bf16.msra.mxu0 %v3969
        %4021 = vmatprep.subr.bf16.mxu0 0
        %4022 = vmatpush1.bf16.msra.mxu0 %v3970
        %4023 = vmatprep.subr.bf16.mxu0 0
        %4024 = vmatpush1.bf16.msra.mxu0 %v3971
        %4025 = vmatprep.subr.bf16.mxu0 0
        %4026 = vmatpush1.bf16.msra.mxu0 %v3972
        %4027 = vmatprep.subr.bf16.mxu0 0
        %4028 = vmatpush1.bf16.msra.mxu0 %v3973
        %4029 = vmatprep.subr.bf16.mxu0 0
        %4030 = vmatpush1.bf16.msra.mxu0 %v3974
        %4031 = vmatprep.subr.bf16.mxu0 0
        %4032 = vmatpush1.bf16.msra.mxu0 %v3975
        %4033 = vmatprep.subr.bf16.mxu0 0
        %4034 = vmatpush1.bf16.msra.mxu0 %v3976
        %4035 = vmatprep.subr.bf16.mxu0 0
        %4036 = vmatpush1.bf16.msra.mxu0 %v3977
        %4037 = vmatprep.subr.bf16.mxu0 0
        %4038 = vmatpush1.bf16.msra.mxu0 %v3978
        %4039 = vmatprep.subr.bf16.mxu0 0
        %4040 = vmatpush1.bf16.msra.mxu0 %v3979
        %4041 = vmatprep.subr.bf16.mxu0 0
        %4042 = vmatpush1.bf16.msra.mxu0 %v3980
        %4043 = vmatprep.subr.bf16.mxu0 0
        %4044 = vmatpush1.bf16.msra.mxu0 %v3981
        %4045 = vmatprep.subr.bf16.mxu0 0
        %4046 = vmatpush1.bf16.msra.mxu0 %v3982
        %4047 = vmatprep.mubr.bf16.mxu0 %v1621
        %4048 = vmatmul.mubr.bf16.gmra.mrb[0].mxu0 %v1620
        %v4049 = vpop.f32.mrb[0].mxu0
        %v4050 = vadd.f32 0.0, %v4049
        %v4051 = vpop.f32.mrb[0].mxu0
        %v4052 = vpop.f32.mrb[0].mxu0
        %v4053 = vadd.f32 0.0, %v4052
        %v4054 = vpop.f32.mrb[0].mxu0
        %4055 = vdwg.mxu0
        %4056 = vmatprep.subr.bf16.mxu0 0
        %4057 = vmatpush1.bf16.msra.mxu0 %v3983
        %4058 = vmatprep.subr.bf16.mxu0 0
        %4059 = vmatpush1.bf16.msra.mxu0 %v3984
        %4060 = vmatprep.subr.bf16.mxu0 0
        %4061 = vmatpush1.bf16.msra.mxu0 %v3985
        %4062 = vmatprep.subr.bf16.mxu0 0
        %4063 = vmatpush1.bf16.msra.mxu0 %v3986
        %4064 = vmatprep.subr.bf16.mxu0 0
        %4065 = vmatpush1.bf16.msra.mxu0 %v3987
        %4066 = vmatprep.subr.bf16.mxu0 0
        %4067 = vmatpush1.bf16.msra.mxu0 %v3988
        %4068 = vmatprep.subr.bf16.mxu0 0
        %4069 = vmatpush1.bf16.msra.mxu0 %v3989
        %4070 = vmatprep.subr.bf16.mxu0 0
        %4071 = vmatpush1.bf16.msra.mxu0 %v3990
        %4072 = vmatprep.subr.bf16.mxu0 0
        %4073 = vmatpush1.bf16.msra.mxu0 0
        %4074 = vmatprep.subr.bf16.mxu0 0
        %4075 = vmatpush1.bf16.msra.mxu0 0
        %4076 = vmatprep.subr.bf16.mxu0 0
        %4077 = vmatpush1.bf16.msra.mxu0 0
        %4078 = vmatprep.subr.bf16.mxu0 0
        %4079 = vmatpush1.bf16.msra.mxu0 0
        %4080 = vmatprep.subr.bf16.mxu0 0
        %4081 = vmatpush1.bf16.msra.mxu0 0
        %4082 = vmatprep.subr.bf16.mxu0 0
        %4083 = vmatpush1.bf16.msra.mxu0 0
        %4084 = vmatprep.subr.bf16.mxu0 0
        %4085 = vmatpush1.bf16.msra.mxu0 0
        %4086 = vmatprep.subr.bf16.mxu0 0
        %4087 = vmatpush1.bf16.msra.mxu0 0
        %4088 = vmatprep.mubr.bf16.mxu0 0
        %4089 = vmatmul.mubr.bf16.gmra.mrb[0].mxu0 %v1622
        %v4090 = vpop.f32.mrb[0].mxu0
        %v4091 = vadd.f32 %v4050, %v4090
        %v4092 = vpop.f32.mrb[0].mxu0
        %v4093 = vpop.f32.mrb[0].mxu0
        %v4094 = vadd.f32 %v4053, %v4093
        %v4095 = vpop.f32.mrb[0].mxu0
        %4096 = vdwg.mxu0
        %v4097 = vpack.c.bf16 %v1894, %v1891
        %v4098 = vpack.c.bf16 %v2169, %v2166
        %v4099 = vpack.c.bf16 %v2444, %v2441
        %v4100 = vpack.c.bf16 %v2719, %v2716
        %v4101 = vpack.c.bf16 %v2994, %v2991
        %v4102 = vpack.c.bf16 %v3269, %v3266
        %v4103 = vpack.c.bf16 %v3544, %v3541
        %v4104 = vpack.c.bf16 %v3819, %v3816
        %v4105 = vpack.c.bf16 %v4094, %v4091
        %v4106 = vld [vmem:[%s11] sm:$0xff]
        %v4107 = vld [vmem:[%s11 + $0x8] sm:$0xff]
        %v4108 = vld [vmem:[%s11 + $0x10] sm:$0xff]
        %v4109 = vld [vmem:[%s11 + $0x18] sm:$0xff]
        %v4110 = vld [vmem:[%s11 + $0x20] sm:$0xff]
        %v4111 = vld [vmem:[%s11 + $0x28] sm:$0xff]
        %v4112 = vld [vmem:[%s11 + $0x30] sm:$0xff]
        %v4113 = vld [vmem:[%s11 + $0x38] sm:$0xff]
        %v4122 = vunpack.c.l.b16 %v4106
        %v4123 = vunpack.c.h.b16 %v4106
        %v4124 = vunpack.c.l.b16 %v4107
        %v4125 = vunpack.c.h.b16 %v4107
        %v4126 = vunpack.c.l.b16 %v4108
        %v4127 = vunpack.c.h.b16 %v4108
        %v4128 = vunpack.c.l.b16 %v4109
        %v4129 = vunpack.c.h.b16 %v4109
        %v4130 = vunpack.c.l.b16 %v4110
        %v4131 = vunpack.c.h.b16 %v4110
        %v4132 = vunpack.c.l.b16 %v4111
        %v4133 = vunpack.c.h.b16 %v4111
        %v4134 = vunpack.c.l.b16 %v4112
        %v4135 = vunpack.c.h.b16 %v4112
        %v4136 = vunpack.c.l.b16 %v4113
        %v4137 = vunpack.c.h.b16 %v4113
        %v4138 = vpack.c.b16 %v4124, %v4122
        %v4139 = vpack.c.b16 %v4125, %v4123
        %v4140 = vpack.c.b16 %v4128, %v4126
        %v4141 = vpack.c.b16 %v4129, %v4127
        %v4142 = vpack.c.b16 %v4132, %v4130
        %v4143 = vpack.c.b16 %v4133, %v4131
        %v4144 = vpack.c.b16 %v4136, %v4134
        %v4145 = vpack.c.b16 %v4137, %v4135
        %v4151 = vsel %vm911, %v4139, 0
        %v4154 = vsel %vm911, %v4141, 0
        %v4157 = vsel %vm911, %v4143, 0
        %v4160 = vsel %vm911, %v4145, 0
        %4162 = vmatprep.subr.bf16.mxu0 0
        %4163 = vmatpush1.bf16.msra.mxu0 %v4097
        %4164 = vmatprep.subr.bf16.mxu0 0
        %4165 = vmatpush1.bf16.msra.mxu0 %v4098
        %4166 = vmatprep.subr.bf16.mxu0 0
        %4167 = vmatpush1.bf16.msra.mxu0 %v4099
        %4168 = vmatprep.subr.bf16.mxu0 0
        %4169 = vmatpush1.bf16.msra.mxu0 %v4100
        %4170 = vmatprep.subr.bf16.mxu0 0
        %4171 = vmatpush1.bf16.msra.mxu0 %v4101
        %4172 = vmatprep.subr.bf16.mxu0 0
        %4173 = vmatpush1.bf16.msra.mxu0 %v4102
        %4174 = vmatprep.subr.bf16.mxu0 0
        %4175 = vmatpush1.bf16.msra.mxu0 %v4103
        %4176 = vmatprep.subr.bf16.mxu0 0
        %4177 = vmatpush1.bf16.msra.mxu0 %v4104
        %4178 = vmatprep.subr.bf16.mxu0 0
        %4179 = vmatpush1.bf16.msra.mxu0 %v4105
        %4180 = vmatprep.subr.bf16.mxu0 0
        %4181 = vmatpush1.bf16.msra.mxu0 0
        %4182 = vmatprep.subr.bf16.mxu0 0
        %4183 = vmatpush1.bf16.msra.mxu0 0
        %4184 = vmatprep.subr.bf16.mxu0 0
        %4185 = vmatpush1.bf16.msra.mxu0 0
        %4186 = vmatprep.subr.bf16.mxu0 0
        %4187 = vmatpush1.bf16.msra.mxu0 0
        %4188 = vmatprep.subr.bf16.mxu0 0
        %4189 = vmatpush1.bf16.msra.mxu0 0
        %4190 = vmatprep.subr.bf16.mxu0 0
        %4191 = vmatpush1.bf16.msra.mxu0 0
        %4192 = vmatprep.subr.bf16.mxu0 0
        %4193 = vmatpush1.bf16.msra.mxu0 0
        %4194 = vmatprep.mubr.bf16.mxu0 %v4151
        %4195 = vmatmul.mubr.bf16.gmra.mrb[0].mxu0 %v4138
        %v4196 = vpop.f32.mrb[0].mxu0
        %v4197 = vadd.f32 0.0, %v4196
        %v4198 = vpop.f32.mrb[0].mxu0
        %v4199 = vpop.f32.mrb[0].mxu0
        %v4200 = vadd.f32 0.0, %v4199
        %v4201 = vpop.f32.mrb[0].mxu0
        %4202 = vmatprep.mubr.bf16.mxu0 %v4154
        %4203 = vmatmul.mubr.bf16.gmra.mrb[0].mxu0 %v4140
        %v4204 = vpop.f32.mrb[0].mxu0
        %v4205 = vadd.f32 0.0, %v4204
        %v4206 = vpop.f32.mrb[0].mxu0
        %v4207 = vpop.f32.mrb[0].mxu0
        %v4208 = vadd.f32 0.0, %v4207
        %v4209 = vpop.f32.mrb[0].mxu0
        %4210 = vmatprep.mubr.bf16.mxu0 %v4157
        %4211 = vmatmul.mubr.bf16.gmra.mrb[0].mxu0 %v4142
        %v4212 = vpop.f32.mrb[0].mxu0
        %v4213 = vadd.f32 0.0, %v4212
        %v4214 = vpop.f32.mrb[0].mxu0
        %v4215 = vpop.f32.mrb[0].mxu0
        %v4216 = vadd.f32 0.0, %v4215
        %v4217 = vpop.f32.mrb[0].mxu0
        %4218 = vmatprep.mubr.bf16.mxu0 %v4160
        %4219 = vmatmul.mubr.bf16.gmra.mrb[0].mxu0 %v4144
        %v4220 = vpop.f32.mrb[0].mxu0
        %v4221 = vadd.f32 0.0, %v4220
        %v4222 = vpop.f32.mrb[0].mxu0
        %v4223 = vpop.f32.mrb[0].mxu0
        %v4224 = vadd.f32 0.0, %v4223
        %v4225 = vpop.f32.mrb[0].mxu0
        %4226 = vdwg.mxu0
        %v4227 = vld [vmem:[%s12] sm:$0xff]
        %v4228 = vld [vmem:[%s12 + $0x8] sm:$0xff]
        %v4229 = vld [vmem:[%s12 + $0x10] sm:$0xff]
        %v4230 = vld [vmem:[%s12 + $0x18] sm:$0xff]
        %4232 = vset.pattern.permute.xlu0 0
        %4233 = vperm.xlu0 %4232, %v4227
        %v4234 = vpop.permute.xlu0 %4233
        %4237 = vset.pattern.permute.xlu0 0
        %4238 = vperm.xlu0 %4237, %v4228
        %v4239 = vpop.permute.xlu0 %4238
        %4242 = vset.pattern.permute.xlu0 0
        %4243 = vperm.xlu0 %4242, %v4229
        %v4244 = vpop.permute.xlu0 %4243
        %4247 = vset.pattern.permute.xlu0 0
        %4248 = vperm.xlu0 %4247, %v4230
        %v4249 = vpop.permute.xlu0 %4248
        %v4251 = vadd.f32 %v4197, %v4234
        %v4252 = vadd.f32 %v4200, %v4239
        %v4253 = vadd.f32 %v4205, %v4244
        %v4254 = vadd.f32 %v4208, %v4249
        %v4255 = vmax.f32 %v4251, 0.0
        %v4256 = vmax.f32 %v4252, 0.0
        %v4257 = vmax.f32 %v4253, 0.0
        %v4258 = vmax.f32 %v4254, 0.0
        %v4260 = vlaneseq
        %v4261 = vshrl.u32 %v4260, 7
        %v4262 = vsub.s32 0, %v4261
        %v4263 = vrot.slane %v1619, %v4262
        %v4265 = vmul.f32 %v4255, %v4263
        %v4266 = vmul.f32 %v4256, %v4263
        %v4267 = vmul.f32 %v4257, %v4263
        %v4268 = vmul.f32 %v4258, %v4263
        %v4269 = vld [vmem:[%s14] sm:$0xff]
        %v4270 = vld [vmem:[%s14 + $0x8] sm:$0xf]
        %v4271 = vld [vmem:[%s14 + $0xc] sm:$0xff]
        %v4272 = vld [vmem:[%s14 + $0x14] sm:$0xf]
        %v4273 = vld [vmem:[%s14 + $0x18] sm:$0xff]
        %v4274 = vld [vmem:[%s14 + $0x20] sm:$0xf]
        %v4275 = vld [vmem:[%s14 + $0x24] sm:$0xff]
        %v4276 = vld [vmem:[%s14 + $0x2c] sm:$0xf]
        %4277 = vrot.lane.b32.xlu0 %v4265, 11
        %v4278 = vpop.permute.xlu0 %4277
        %4279 = vrot.lane.b32.xlu0 %v4266, 11
        %v4280 = vpop.permute.xlu0 %4279
        %4281 = vrot.lane.b32.xlu0 %v4267, 11
        %v4282 = vpop.permute.xlu0 %4281
        %4283 = vrot.lane.b32.xlu0 %v4268, 11
        %v4284 = vpop.permute.xlu0 %4283
        %4285 = vrot.lane.b32.xlu0 %v4265, 10
        %v4286 = vpop.permute.xlu0 %4285
        %4287 = vrot.lane.b32.xlu0 %v4266, 10
        %v4288 = vpop.permute.xlu0 %4287
        %4289 = vrot.lane.b32.xlu0 %v4267, 10
        %v4290 = vpop.permute.xlu0 %4289
        %4291 = vrot.lane.b32.xlu0 %v4268, 10
        %v4292 = vpop.permute.xlu0 %4291
        %4293 = vrot.lane.b32.xlu0 %v4265, 9
        %v4294 = vpop.permute.xlu0 %4293
        %4295 = vrot.lane.b32.xlu0 %v4266, 9
        %v4296 = vpop.permute.xlu0 %4295
        %4297 = vrot.lane.b32.xlu0 %v4267, 9
        %v4298 = vpop.permute.xlu0 %4297
        %4299 = vrot.lane.b32.xlu0 %v4268, 9
        %v4300 = vpop.permute.xlu0 %4299
        %4301 = vrot.lane.b32.xlu0 %v4265, 1
        %v4302 = vpop.permute.xlu0 %4301
        %4303 = vrot.lane.b32.xlu0 %v4266, 1
        %v4304 = vpop.permute.xlu0 %4303
        %4305 = vrot.lane.b32.xlu0 %v4267, 1
        %v4306 = vpop.permute.xlu0 %4305
        %4307 = vrot.lane.b32.xlu0 %v4268, 1
        %v4308 = vpop.permute.xlu0 %4307
        %4309 = vrot.lane.b32.xlu0 %v4265, 127
        %v4310 = vpop.permute.xlu0 %4309
        %4311 = vrot.lane.b32.xlu0 %v4266, 127
        %v4312 = vpop.permute.xlu0 %4311
        %4313 = vrot.lane.b32.xlu0 %v4267, 127
        %v4314 = vpop.permute.xlu0 %4313
        %4315 = vrot.lane.b32.xlu0 %v4268, 127
        %v4316 = vpop.permute.xlu0 %4315
        %4317 = vrot.lane.b32.xlu0 %v4265, 119
        %v4318 = vpop.permute.xlu0 %4317
        %4319 = vrot.lane.b32.xlu0 %v4266, 119
        %v4320 = vpop.permute.xlu0 %4319
        %4321 = vrot.lane.b32.xlu0 %v4267, 119
        %v4322 = vpop.permute.xlu0 %4321
        %4323 = vrot.lane.b32.xlu0 %v4268, 119
        %v4324 = vpop.permute.xlu0 %4323
        %4325 = vrot.lane.b32.xlu0 %v4265, 118
        %v4326 = vpop.permute.xlu0 %4325
        %4327 = vrot.lane.b32.xlu0 %v4266, 118
        %v4328 = vpop.permute.xlu0 %4327
        %4329 = vrot.lane.b32.xlu0 %v4267, 118
        %v4330 = vpop.permute.xlu0 %4329
        %4331 = vrot.lane.b32.xlu0 %v4268, 118
        %v4332 = vpop.permute.xlu0 %4331
        %4333 = vrot.lane.b32.xlu0 %v4265, 117
        %v4334 = vpop.permute.xlu0 %4333
        %4335 = vrot.lane.b32.xlu0 %v4266, 117
        %v4336 = vpop.permute.xlu0 %4335
        %4337 = vrot.lane.b32.xlu0 %v4267, 117
        %v4338 = vpop.permute.xlu0 %4337
        %4339 = vrot.lane.b32.xlu0 %v4268, 117
        %v4340 = vpop.permute.xlu0 %4339
        %v4341 = vpack.c.bf16 %v4280, %v4278
        %v4342 = vpack.c.bf16 %v4284, %v4282
        %v4343 = vpack.c.bf16 %v4288, %v4286
        %v4344 = vpack.c.bf16 %v4292, %v4290
        %v4345 = vpack.c.bf16 %v4296, %v4294
        %v4346 = vpack.c.bf16 %v4300, %v4298
        %v4347 = vpack.c.bf16 %v4304, %v4302
        %v4348 = vpack.c.bf16 %v4308, %v4306
        %v4349 = vpack.c.bf16 %v4266, %v4265
        %v4350 = vpack.c.bf16 %v4268, %v4267
        %v4351 = vpack.c.bf16 %v4312, %v4310
        %v4352 = vpack.c.bf16 %v4316, %v4314
        %v4353 = vpack.c.bf16 %v4320, %v4318
        %v4354 = vpack.c.bf16 %v4324, %v4322
        %v4355 = vpack.c.bf16 %v4328, %v4326
        %v4356 = vpack.c.bf16 %v4332, %v4330
        %v4357 = vpack.c.bf16 %v4336, %v4334
        %v4358 = vpack.c.bf16 %v4340, %v4338
        %v4359 = vld [vmem:[%s13] sm:$0xff]
        %v4360 = vld [vmem:[%s13 + $0x8] sm:$0xff]
        %v4361 = vld [vmem:[%s13 + $0x10] sm:$0xff]
        %v4362 = vld [vmem:[%s13 + $0x18] sm:$0xff]
        %4364 = vset.pattern.permute.xlu0 0
        %4365 = vperm.xlu0 %4364, %v4359
        %v4366 = vpop.permute.xlu0 %4365
        %4369 = vset.pattern.permute.xlu0 0
        %4370 = vperm.xlu0 %4369, %v4360
        %v4371 = vpop.permute.xlu0 %4370
        %4374 = vset.pattern.permute.xlu0 0
        %4375 = vperm.xlu0 %4374, %v4361
        %v4376 = vpop.permute.xlu0 %4375
        %4379 = vset.pattern.permute.xlu0 0
        %4380 = vperm.xlu0 %4379, %v4362
        %v4381 = vpop.permute.xlu0 %4380
        %v4383 = vadd.f32 %v4213, %v4366
        %v4384 = vadd.f32 %v4216, %v4371
        %v4385 = vadd.f32 %v4221, %v4376
        %v4386 = vadd.f32 %v4224, %v4381
        %v4387 = vld [vmem:[%s15] sm:$0xff]
        %v4388 = vld [vmem:[%s15 + $0x8] sm:$0xff]
        %v4389 = vld [vmem:[%s15 + $0x10] sm:$0xff]
        %v4390 = vld [vmem:[%s15 + $0x18] sm:$0xff]
        %4392 = vset.pattern.permute.xlu0 0
        %4393 = vperm.xlu0 %4392, %v4387
        %v4394 = vpop.permute.xlu0 %4393
        %4397 = vset.pattern.permute.xlu0 0
        %4398 = vperm.xlu0 %4397, %v4388
        %v4399 = vpop.permute.xlu0 %4398
        %4402 = vset.pattern.permute.xlu0 0
        %4403 = vperm.xlu0 %4402, %v4389
        %v4404 = vpop.permute.xlu0 %4403
        %4407 = vset.pattern.permute.xlu0 0
        %4408 = vperm.xlu0 %4407, %v4390
        %v4409 = vpop.permute.xlu0 %4408
        %v4419 = vunpack.c.l.b16 %v4269
        %v4420 = vunpack.c.h.b16 %v4269
        %v4421 = vunpack.c.l.b16 %v4270
        %v4422 = vunpack.c.l.b16 %v4271
        %v4423 = vunpack.c.h.b16 %v4271
        %v4424 = vunpack.c.l.b16 %v4272
        %v4425 = vunpack.c.l.b16 %v4273
        %v4426 = vunpack.c.h.b16 %v4273
        %v4427 = vunpack.c.l.b16 %v4274
        %v4428 = vunpack.c.l.b16 %v4275
        %v4429 = vunpack.c.h.b16 %v4275
        %v4430 = vunpack.c.l.b16 %v4276
        %v4431 = vpack.c.b16 %v4422, %v4419
        %v4432 = vpack.c.b16 %v4423, %v4420
        %v4433 = vpack.c.b16 %v4424, %v4421
        %v4434 = vpack.c.b16 %v4428, %v4425
        %v4435 = vpack.c.b16 %v4429, %v4426
        %v4436 = vpack.c.b16 %v4430, %v4427
        %vm4441 = vcmask 261120
        %v4443 = vsel %vm4441, %v4433, 0
        %v4446 = vsel %vm4441, %v4436, 0
        %4448 = vmatprep.subr.bf16.mxu0 0
        %4449 = vmatpush1.bf16.msra.mxu0 %v4341
        %4450 = vmatprep.subr.bf16.mxu0 0
        %4451 = vmatpush1.bf16.msra.mxu0 %v4342
        %4452 = vmatprep.subr.bf16.mxu0 0
        %4453 = vmatpush1.bf16.msra.mxu0 %v4343
        %4454 = vmatprep.subr.bf16.mxu0 0
        %4455 = vmatpush1.bf16.msra.mxu0 %v4344
        %4456 = vmatprep.subr.bf16.mxu0 0
        %4457 = vmatpush1.bf16.msra.mxu0 %v4345
        %4458 = vmatprep.subr.bf16.mxu0 0
        %4459 = vmatpush1.bf16.msra.mxu0 %v4346
        %4460 = vmatprep.subr.bf16.mxu0 0
        %4461 = vmatpush1.bf16.msra.mxu0 %v4347
        %4462 = vmatprep.subr.bf16.mxu0 0
        %4463 = vmatpush1.bf16.msra.mxu0 %v4348
        %4464 = vmatprep.subr.bf16.mxu0 0
        %4465 = vmatpush1.bf16.msra.mxu0 %v4349
        %4466 = vmatprep.subr.bf16.mxu0 0
        %4467 = vmatpush1.bf16.msra.mxu0 %v4350
        %4468 = vmatprep.subr.bf16.mxu0 0
        %4469 = vmatpush1.bf16.msra.mxu0 %v4351
        %4470 = vmatprep.subr.bf16.mxu0 0
        %4471 = vmatpush1.bf16.msra.mxu0 %v4352
        %4472 = vmatprep.subr.bf16.mxu0 0
        %4473 = vmatpush1.bf16.msra.mxu0 %v4353
        %4474 = vmatprep.subr.bf16.mxu0 0
        %4475 = vmatpush1.bf16.msra.mxu0 %v4354
        %4476 = vmatprep.subr.bf16.mxu0 0
        %4477 = vmatpush1.bf16.msra.mxu0 %v4355
        %4478 = vmatprep.subr.bf16.mxu0 0
        %4479 = vmatpush1.bf16.msra.mxu0 %v4356
        %4480 = vmatprep.mubr.bf16.mxu0 %v4432
        %4481 = vmatmul.mubr.bf16.gmra.mrb[0].mxu0 %v4431
        %v4482 = vpop.f32.mrb[0].mxu0
        %v4483 = vadd.f32 %v4394, %v4482
        %v4484 = vpop.f32.mrb[0].mxu0
        %v4485 = vpop.f32.mrb[0].mxu0
        %v4486 = vadd.f32 %v4399, %v4485
        %v4487 = vpop.f32.mrb[0].mxu0
        %4488 = vmatprep.mubr.bf16.mxu0 %v4435
        %4489 = vmatmul.mubr.bf16.gmra.mrb[0].mxu0 %v4434
        %v4490 = vpop.f32.mrb[0].mxu0
        %v4491 = vadd.f32 %v4404, %v4490
        %v4492 = vpop.f32.mrb[0].mxu0
        %v4493 = vpop.f32.mrb[0].mxu0
        %v4494 = vadd.f32 %v4409, %v4493
        %v4495 = vpop.f32.mrb[0].mxu0
        %4496 = vdwg.mxu0
        %4497 = vmatprep.subr.bf16.mxu0 0
        %4498 = vmatpush1.bf16.msra.mxu0 %v4357
        %4499 = vmatprep.subr.bf16.mxu0 0
        %4500 = vmatpush1.bf16.msra.mxu0 %v4358
        %4501 = vmatprep.subr.bf16.mxu0 0
        %4502 = vmatpush1.bf16.msra.mxu0 0
        %4503 = vmatprep.subr.bf16.mxu0 0
        %4504 = vmatpush1.bf16.msra.mxu0 0
        %4505 = vmatprep.subr.bf16.mxu0 0
        %4506 = vmatpush1.bf16.msra.mxu0 0
        %4507 = vmatprep.subr.bf16.mxu0 0
        %4508 = vmatpush1.bf16.msra.mxu0 0
        %4509 = vmatprep.subr.bf16.mxu0 0
        %4510 = vmatpush1.bf16.msra.mxu0 0
        %4511 = vmatprep.subr.bf16.mxu0 0
        %4512 = vmatpush1.bf16.msra.mxu0 0
        %4513 = vmatprep.subr.bf16.mxu0 0
        %4514 = vmatpush1.bf16.msra.mxu0 0
        %4515 = vmatprep.subr.bf16.mxu0 0
        %4516 = vmatpush1.bf16.msra.mxu0 0
        %4517 = vmatprep.subr.bf16.mxu0 0
        %4518 = vmatpush1.bf16.msra.mxu0 0
        %4519 = vmatprep.subr.bf16.mxu0 0
        %4520 = vmatpush1.bf16.msra.mxu0 0
        %4521 = vmatprep.subr.bf16.mxu0 0
        %4522 = vmatpush1.bf16.msra.mxu0 0
        %4523 = vmatprep.subr.bf16.mxu0 0
        %4524 = vmatpush1.bf16.msra.mxu0 0
        %4525 = vmatprep.subr.bf16.mxu0 0
        %4526 = vmatpush1.bf16.msra.mxu0 0
        %4527 = vmatprep.subr.bf16.mxu0 0
        %4528 = vmatpush1.bf16.msra.mxu0 0
        %4529 = vmatprep.mubr.bf16.mxu0 0
        %4530 = vmatmul.mubr.bf16.gmra.mrb[0].mxu0 %v4443
        %v4531 = vpop.f32.mrb[0].mxu0
        %v4532 = vadd.f32 %v4483, %v4531
        %v4533 = vpop.f32.mrb[0].mxu0
        %v4534 = vpop.f32.mrb[0].mxu0
        %v4535 = vadd.f32 %v4486, %v4534
        %v4536 = vpop.f32.mrb[0].mxu0
        %4537 = vmatprep.mubr.bf16.mxu0 0
        %4538 = vmatmul.mubr.bf16.gmra.mrb[0].mxu0 %v4446
        %v4539 = vpop.f32.mrb[0].mxu0
        %v4540 = vadd.f32 %v4491, %v4539
        %v4541 = vpop.f32.mrb[0].mxu0
        %v4542 = vpop.f32.mrb[0].mxu0
        %v4543 = vadd.f32 %v4494, %v4542
        %v4544 = vpop.f32.mrb[0].mxu0
        %4545 = vdwg.mxu0
        %v4546 = vadd.f32 %v4532, %v4383
        %v4547 = vadd.f32 %v4535, %v4384
        %v4548 = vadd.f32 %v4540, %v4385
        %v4549 = vadd.f32 %v4543, %v4386
        %v4550 = vmax.f32 %v4546, 0.0
        %v4551 = vmax.f32 %v4547, 0.0
        %v4552 = vmax.f32 %v4548, 0.0
        %v4553 = vmax.f32 %v4549, 0.0
        %v4554 = vmul.f32 %v4550, %v4263
        %v4555 = vmul.f32 %v4551, %v4263
        %v4556 = vmul.f32 %v4552, %v4263
        %v4557 = vmul.f32 %v4553, %v4263
        %v4558 = vld [vmem:[%s3] sm:$0x1]
        %v4559 = vpack.c.bf16 %v4555, %v4554
        %v4560 = vpack.c.bf16 %v4557, %v4556
        %v4561 = vld [vmem:[#allocation2] sm:$0xf]
        %v4562 = vld [vmem:[#allocation2 + $0x4] sm:$0xf]
        %v4563 = vld [vmem:[#allocation2 + $0x8] sm:$0xf]
        %v4564 = vld [vmem:[#allocation2 + $0xc] sm:$0xf]
        %v4565 = vld [vmem:[#allocation2 + $0x10] sm:$0xf]
        %v4566 = vld [vmem:[#allocation2 + $0x14] sm:$0xf]
        %v4567 = vld [vmem:[#allocation2 + $0x18] sm:$0xf]
        %v4568 = vld [vmem:[#allocation2 + $0x1c] sm:$0xf]
        %v4569 = vld [vmem:[#allocation2 + $0x20] sm:$0xf]
        %v4570 = vld [vmem:[#allocation2 + $0x24] sm:$0xf]
        %v4571 = vld [vmem:[#allocation2 + $0x28] sm:$0xf]
        %v4572 = vld [vmem:[#allocation2 + $0x2c] sm:$0xf]
        %v4573 = vld [vmem:[#allocation2 + $0x30] sm:$0xf]
        %v4574 = vld [vmem:[#allocation2 + $0x34] sm:$0xf]
        %v4575 = vld [vmem:[#allocation2 + $0x38] sm:$0xf]
        %v4576 = vld [vmem:[#allocation2 + $0x3c] sm:$0xf]
        %v4593 = vunpack.c.l.b16 %v4561
        %v4594 = vunpack.c.l.b16 %v4562
        %v4595 = vunpack.c.l.b16 %v4563
        %v4596 = vunpack.c.l.b16 %v4564
        %v4597 = vunpack.c.l.b16 %v4565
        %v4598 = vunpack.c.l.b16 %v4566
        %v4599 = vunpack.c.l.b16 %v4567
        %v4600 = vunpack.c.l.b16 %v4568
        %v4601 = vunpack.c.l.b16 %v4569
        %v4602 = vunpack.c.l.b16 %v4570
        %v4603 = vunpack.c.l.b16 %v4571
        %v4604 = vunpack.c.l.b16 %v4572
        %v4605 = vunpack.c.l.b16 %v4573
        %v4606 = vunpack.c.l.b16 %v4574
        %v4607 = vunpack.c.l.b16 %v4575
        %v4608 = vunpack.c.l.b16 %v4576
        %v4609 = vpack.c.b16 %v4594, %v4593
        %v4610 = vpack.c.b16 %v4596, %v4595
        %v4611 = vpack.c.b16 %v4598, %v4597
        %v4612 = vpack.c.b16 %v4600, %v4599
        %v4613 = vpack.c.b16 %v4602, %v4601
        %v4614 = vpack.c.b16 %v4604, %v4603
        %v4615 = vpack.c.b16 %v4606, %v4605
        %v4616 = vpack.c.b16 %v4608, %v4607
        %4625 = vmatprep.subr.bf16.mxu0 0
        %4626 = vmatpush1.bf16.msra.mxu0 %v4609
        %4627 = vmatprep.subr.bf16.mxu0 0
        %4628 = vmatpush1.bf16.msra.mxu0 %v4610
        %4629 = vmatprep.subr.bf16.mxu0 0
        %4630 = vmatpush1.bf16.msra.mxu0 %v4611
        %4631 = vmatprep.subr.bf16.mxu0 0
        %4632 = vmatpush1.bf16.msra.mxu0 %v4612
        %4633 = vmatprep.subr.bf16.mxu0 0
        %4634 = vmatpush1.bf16.msra.mxu0 %v4613
        %4635 = vmatprep.subr.bf16.mxu0 0
        %4636 = vmatpush1.bf16.msra.mxu0 %v4614
        %4637 = vmatprep.subr.bf16.mxu0 0
        %4638 = vmatpush1.bf16.msra.mxu0 %v4615
        %4639 = vmatprep.subr.bf16.mxu0 0
        %4640 = vmatpush1.bf16.msra.mxu0 %v4616
        %4641 = vmatprep.subr.bf16.mxu0 0
        %4642 = vmatpush1.bf16.msra.mxu0 0
        %4643 = vmatprep.subr.bf16.mxu0 0
        %4644 = vmatpush1.bf16.msra.mxu0 0
        %4645 = vmatprep.subr.bf16.mxu0 0
        %4646 = vmatpush1.bf16.msra.mxu0 0
        %4647 = vmatprep.subr.bf16.mxu0 0
        %4648 = vmatpush1.bf16.msra.mxu0 0
        %4649 = vmatprep.subr.bf16.mxu0 0
        %4650 = vmatpush1.bf16.msra.mxu0 0
        %4651 = vmatprep.subr.bf16.mxu0 0
        %4652 = vmatpush1.bf16.msra.mxu0 0
        %4653 = vmatprep.subr.bf16.mxu0 0
        %4654 = vmatpush1.bf16.msra.mxu0 0
        %4655 = vmatprep.subr.bf16.mxu0 0
        %4656 = vmatpush1.bf16.msra.mxu0 0
        %4657 = vmatprep.mubr.bf16.mxu0 0
        %4658 = vmatmul.mubr.bf16.gmra.mrb[0].mxu0 %v4559
        %v4659 = vpop.f32.mrb[0].mxu0
        %v4660 = vadd.f32 0.0, %v4659
        %v4661 = vpop.f32.mrb[0].mxu0
        %v4662 = vpop.f32.mrb[0].mxu0
        %v4663 = vadd.f32 0.0, %v4662
        %v4664 = vpop.f32.mrb[0].mxu0
        %4665 = vmatprep.mubr.bf16.mxu0 0
        %4666 = vmatmul.mubr.bf16.gmra.mrb[0].mxu0 %v4560
        %v4667 = vpop.f32.mrb[0].mxu0
        %v4668 = vadd.f32 0.0, %v4667
        %v4669 = vpop.f32.mrb[0].mxu0
        %v4670 = vpop.f32.mrb[0].mxu0
        %v4671 = vadd.f32 0.0, %v4670
        %v4672 = vpop.f32.mrb[0].mxu0
        %4673 = vdwg.mxu0
        %s4674 = scalar_lea.vmem [#allocation2], 64
        %v4675 = vld [vmem:[%s4674] sm:$0xf]
        %v4676 = vld [vmem:[%s4674 + $0x4] sm:$0xf]
        %v4677 = vld [vmem:[%s4674 + $0x8] sm:$0xf]
        %v4678 = vld [vmem:[%s4674 + $0xc] sm:$0xf]
        %v4679 = vld [vmem:[%s4674 + $0x10] sm:$0xf]
        %v4680 = vld [vmem:[%s4674 + $0x14] sm:$0xf]
        %v4681 = vld [vmem:[%s4674 + $0x18] sm:$0xf]
        %v4682 = vld [vmem:[%s4674 + $0x1c] sm:$0xf]
        %v4683 = vld [vmem:[%s4674 + $0x20] sm:$0xf]
        %v4684 = vld [vmem:[%s4674 + $0x24] sm:$0xf]
        %v4685 = vld [vmem:[%s4674 + $0x28] sm:$0xf]
        %v4686 = vld [vmem:[%s4674 + $0x2c] sm:$0xf]
        %v4687 = vld [vmem:[%s4674 + $0x30] sm:$0xf]
        %v4688 = vld [vmem:[%s4674 + $0x34] sm:$0xf]
        %v4689 = vld [vmem:[%s4674 + $0x38] sm:$0xf]
        %v4690 = vld [vmem:[%s4674 + $0x3c] sm:$0xf]
        %v4707 = vunpack.c.l.b16 %v4675
        %v4708 = vunpack.c.l.b16 %v4676
        %v4709 = vunpack.c.l.b16 %v4677
        %v4710 = vunpack.c.l.b16 %v4678
        %v4711 = vunpack.c.l.b16 %v4679
        %v4712 = vunpack.c.l.b16 %v4680
        %v4713 = vunpack.c.l.b16 %v4681
        %v4714 = vunpack.c.l.b16 %v4682
        %v4715 = vunpack.c.l.b16 %v4683
        %v4716 = vunpack.c.l.b16 %v4684
        %v4717 = vunpack.c.l.b16 %v4685
        %v4718 = vunpack.c.l.b16 %v4686
        %v4719 = vunpack.c.l.b16 %v4687
        %v4720 = vunpack.c.l.b16 %v4688
        %v4721 = vunpack.c.l.b16 %v4689
        %v4722 = vunpack.c.l.b16 %v4690
        %v4723 = vpack.c.b16 %v4708, %v4707
        %v4724 = vpack.c.b16 %v4710, %v4709
        %v4725 = vpack.c.b16 %v4712, %v4711
        %v4726 = vpack.c.b16 %v4714, %v4713
        %v4727 = vpack.c.b16 %v4716, %v4715
        %v4728 = vpack.c.b16 %v4718, %v4717
        %v4729 = vpack.c.b16 %v4720, %v4719
        %v4730 = vpack.c.b16 %v4722, %v4721
        %4739 = vmatprep.subr.bf16.mxu0 0
        %4740 = vmatpush1.bf16.msra.mxu0 %v4723
        %4741 = vmatprep.subr.bf16.mxu0 0
        %4742 = vmatpush1.bf16.msra.mxu0 %v4724
        %4743 = vmatprep.subr.bf16.mxu0 0
        %4744 = vmatpush1.bf16.msra.mxu0 %v4725
        %4745 = vmatprep.subr.bf16.mxu0 0
        %4746 = vmatpush1.bf16.msra.mxu0 %v4726
        %4747 = vmatprep.subr.bf16.mxu0 0
        %4748 = vmatpush1.bf16.msra.mxu0 %v4727
        %4749 = vmatprep.subr.bf16.mxu0 0
        %4750 = vmatpush1.bf16.msra.mxu0 %v4728
        %4751 = vmatprep.subr.bf16.mxu0 0
        %4752 = vmatpush1.bf16.msra.mxu0 %v4729
        %4753 = vmatprep.subr.bf16.mxu0 0
        %4754 = vmatpush1.bf16.msra.mxu0 %v4730
        %4755 = vmatprep.subr.bf16.mxu0 0
        %4756 = vmatpush1.bf16.msra.mxu0 0
        %4757 = vmatprep.subr.bf16.mxu0 0
        %4758 = vmatpush1.bf16.msra.mxu0 0
        %4759 = vmatprep.subr.bf16.mxu0 0
        %4760 = vmatpush1.bf16.msra.mxu0 0
        %4761 = vmatprep.subr.bf16.mxu0 0
        %4762 = vmatpush1.bf16.msra.mxu0 0
        %4763 = vmatprep.subr.bf16.mxu0 0
        %4764 = vmatpush1.bf16.msra.mxu0 0
        %4765 = vmatprep.subr.bf16.mxu0 0
        %4766 = vmatpush1.bf16.msra.mxu0 0
        %4767 = vmatprep.subr.bf16.mxu0 0
        %4768 = vmatpush1.bf16.msra.mxu0 0
        %4769 = vmatprep.subr.bf16.mxu0 0
        %4770 = vmatpush1.bf16.msra.mxu0 0
        %4771 = vmatprep.mubr.bf16.mxu0 0
        %4772 = vmatmul.mubr.bf16.gmra.mrb[0].mxu0 %v4559
        %v4773 = vpop.f32.mrb[0].mxu0
        %v4774 = vadd.f32 0.0, %v4773
        %v4775 = vpop.f32.mrb[0].mxu0
        %v4776 = vpop.f32.mrb[0].mxu0
        %v4777 = vadd.f32 0.0, %v4776
        %v4778 = vpop.f32.mrb[0].mxu0
        %4779 = vmatprep.mubr.bf16.mxu0 0
        %4780 = vmatmul.mubr.bf16.gmra.mrb[0].mxu0 %v4560
        %v4781 = vpop.f32.mrb[0].mxu0
        %v4782 = vadd.f32 0.0, %v4781
        %v4783 = vpop.f32.mrb[0].mxu0
        %v4784 = vpop.f32.mrb[0].mxu0
        %v4785 = vadd.f32 0.0, %v4784
        %v4786 = vpop.f32.mrb[0].mxu0
        %4787 = vdwg.mxu0
        %s4788 = scalar_lea.vmem [#allocation2], 128
        %v4789 = vld [vmem:[%s4788] sm:$0xf]
        %v4790 = vld [vmem:[%s4788 + $0x4] sm:$0xf]
        %v4791 = vld [vmem:[%s4788 + $0x8] sm:$0xf]
        %v4792 = vld [vmem:[%s4788 + $0xc] sm:$0xf]
        %v4793 = vld [vmem:[%s4788 + $0x10] sm:$0xf]
        %v4794 = vld [vmem:[%s4788 + $0x14] sm:$0xf]
        %v4795 = vld [vmem:[%s4788 + $0x18] sm:$0xf]
        %v4796 = vld [vmem:[%s4788 + $0x1c] sm:$0xf]
        %v4797 = vld [vmem:[%s4788 + $0x20] sm:$0xf]
        %v4798 = vld [vmem:[%s4788 + $0x24] sm:$0xf]
        %v4799 = vld [vmem:[%s4788 + $0x28] sm:$0xf]
        %v4800 = vld [vmem:[%s4788 + $0x2c] sm:$0xf]
        %v4801 = vld [vmem:[%s4788 + $0x30] sm:$0xf]
        %v4802 = vld [vmem:[%s4788 + $0x34] sm:$0xf]
        %v4803 = vld [vmem:[%s4788 + $0x38] sm:$0xf]
        %v4804 = vld [vmem:[%s4788 + $0x3c] sm:$0xf]
        %v4821 = vunpack.c.l.b16 %v4789
        %v4822 = vunpack.c.l.b16 %v4790
        %v4823 = vunpack.c.l.b16 %v4791
        %v4824 = vunpack.c.l.b16 %v4792
        %v4825 = vunpack.c.l.b16 %v4793
        %v4826 = vunpack.c.l.b16 %v4794
        %v4827 = vunpack.c.l.b16 %v4795
        %v4828 = vunpack.c.l.b16 %v4796
        %v4829 = vunpack.c.l.b16 %v4797
        %v4830 = vunpack.c.l.b16 %v4798
        %v4831 = vunpack.c.l.b16 %v4799
        %v4832 = vunpack.c.l.b16 %v4800
        %v4833 = vunpack.c.l.b16 %v4801
        %v4834 = vunpack.c.l.b16 %v4802
        %v4835 = vunpack.c.l.b16 %v4803
        %v4836 = vunpack.c.l.b16 %v4804
        %v4837 = vpack.c.b16 %v4822, %v4821
        %v4838 = vpack.c.b16 %v4824, %v4823
        %v4839 = vpack.c.b16 %v4826, %v4825
        %v4840 = vpack.c.b16 %v4828, %v4827
        %v4841 = vpack.c.b16 %v4830, %v4829
        %v4842 = vpack.c.b16 %v4832, %v4831
        %v4843 = vpack.c.b16 %v4834, %v4833
        %v4844 = vpack.c.b16 %v4836, %v4835
        %4853 = vmatprep.subr.bf16.mxu0 0
        %4854 = vmatpush1.bf16.msra.mxu0 %v4837
        %4855 = vmatprep.subr.bf16.mxu0 0
        %4856 = vmatpush1.bf16.msra.mxu0 %v4838
        %4857 = vmatprep.subr.bf16.mxu0 0
        %4858 = vmatpush1.bf16.msra.mxu0 %v4839
        %4859 = vmatprep.subr.bf16.mxu0 0
        %4860 = vmatpush1.bf16.msra.mxu0 %v4840
        %4861 = vmatprep.subr.bf16.mxu0 0
        %4862 = vmatpush1.bf16.msra.mxu0 %v4841
        %4863 = vmatprep.subr.bf16.mxu0 0
        %4864 = vmatpush1.bf16.msra.mxu0 %v4842
        %4865 = vmatprep.subr.bf16.mxu0 0
        %4866 = vmatpush1.bf16.msra.mxu0 %v4843
        %4867 = vmatprep.subr.bf16.mxu0 0
        %4868 = vmatpush1.bf16.msra.mxu0 %v4844
        %4869 = vmatprep.subr.bf16.mxu0 0
        %4870 = vmatpush1.bf16.msra.mxu0 0
        %4871 = vmatprep.subr.bf16.mxu0 0
        %4872 = vmatpush1.bf16.msra.mxu0 0
        %4873 = vmatprep.subr.bf16.mxu0 0
        %4874 = vmatpush1.bf16.msra.mxu0 0
        %4875 = vmatprep.subr.bf16.mxu0 0
        %4876 = vmatpush1.bf16.msra.mxu0 0
        %4877 = vmatprep.subr.bf16.mxu0 0
        %4878 = vmatpush1.bf16.msra.mxu0 0
        %4879 = vmatprep.subr.bf16.mxu0 0
        %4880 = vmatpush1.bf16.msra.mxu0 0
        %4881 = vmatprep.subr.bf16.mxu0 0
        %4882 = vmatpush1.bf16.msra.mxu0 0
        %4883 = vmatprep.subr.bf16.mxu0 0
        %4884 = vmatpush1.bf16.msra.mxu0 0
        %4885 = vmatprep.mubr.bf16.mxu0 0
        %4886 = vmatmul.mubr.bf16.gmra.mrb[0].mxu0 %v4559
        %v4887 = vpop.f32.mrb[0].mxu0
        %v4888 = vadd.f32 0.0, %v4887
        %v4889 = vpop.f32.mrb[0].mxu0
        %v4890 = vpop.f32.mrb[0].mxu0
        %v4891 = vadd.f32 0.0, %v4890
        %v4892 = vpop.f32.mrb[0].mxu0
        %4893 = vmatprep.mubr.bf16.mxu0 0
        %4894 = vmatmul.mubr.bf16.gmra.mrb[0].mxu0 %v4560
        %v4895 = vpop.f32.mrb[0].mxu0
        %v4896 = vadd.f32 0.0, %v4895
        %v4897 = vpop.f32.mrb[0].mxu0
        %v4898 = vpop.f32.mrb[0].mxu0
        %v4899 = vadd.f32 0.0, %v4898
        %v4900 = vpop.f32.mrb[0].mxu0
        %4901 = vdwg.mxu0
        %s4902 = scalar_lea.vmem [#allocation2], 192
        %v4903 = vld [vmem:[%s4902] sm:$0xf]
        %v4904 = vld [vmem:[%s4902 + $0x4] sm:$0xf]
        %v4905 = vld [vmem:[%s4902 + $0x8] sm:$0xf]
        %v4906 = vld [vmem:[%s4902 + $0xc] sm:$0xf]
        %v4907 = vld [vmem:[%s4902 + $0x10] sm:$0xf]
        %v4908 = vld [vmem:[%s4902 + $0x14] sm:$0xf]
        %v4909 = vld [vmem:[%s4902 + $0x18] sm:$0xf]
        %v4910 = vld [vmem:[%s4902 + $0x1c] sm:$0xf]
        %v4911 = vld [vmem:[%s4902 + $0x20] sm:$0xf]
        %v4912 = vld [vmem:[%s4902 + $0x24] sm:$0xf]
        %v4913 = vld [vmem:[%s4902 + $0x28] sm:$0xf]
        %v4914 = vld [vmem:[%s4902 + $0x2c] sm:$0xf]
        %v4915 = vld [vmem:[%s4902 + $0x30] sm:$0xf]
        %v4916 = vld [vmem:[%s4902 + $0x34] sm:$0xf]
        %v4917 = vld [vmem:[%s4902 + $0x38] sm:$0xf]
        %v4918 = vld [vmem:[%s4902 + $0x3c] sm:$0xf]
        %v4935 = vunpack.c.l.b16 %v4903
        %v4936 = vunpack.c.l.b16 %v4904
        %v4937 = vunpack.c.l.b16 %v4905
        %v4938 = vunpack.c.l.b16 %v4906
        %v4939 = vunpack.c.l.b16 %v4907
        %v4940 = vunpack.c.l.b16 %v4908
        %v4941 = vunpack.c.l.b16 %v4909
        %v4942 = vunpack.c.l.b16 %v4910
        %v4943 = vunpack.c.l.b16 %v4911
        %v4944 = vunpack.c.l.b16 %v4912
        %v4945 = vunpack.c.l.b16 %v4913
        %v4946 = vunpack.c.l.b16 %v4914
        %v4947 = vunpack.c.l.b16 %v4915
        %v4948 = vunpack.c.l.b16 %v4916
        %v4949 = vunpack.c.l.b16 %v4917
        %v4950 = vunpack.c.l.b16 %v4918
        %v4951 = vpack.c.b16 %v4936, %v4935
        %v4952 = vpack.c.b16 %v4938, %v4937
        %v4953 = vpack.c.b16 %v4940, %v4939
        %v4954 = vpack.c.b16 %v4942, %v4941
        %v4955 = vpack.c.b16 %v4944, %v4943
        %v4956 = vpack.c.b16 %v4946, %v4945
        %v4957 = vpack.c.b16 %v4948, %v4947
        %v4958 = vpack.c.b16 %v4950, %v4949
        %4967 = vmatprep.subr.bf16.mxu0 0
        %4968 = vmatpush1.bf16.msra.mxu0 %v4951
        %4969 = vmatprep.subr.bf16.mxu0 0
        %4970 = vmatpush1.bf16.msra.mxu0 %v4952
        %4971 = vmatprep.subr.bf16.mxu0 0
        %4972 = vmatpush1.bf16.msra.mxu0 %v4953
        %4973 = vmatprep.subr.bf16.mxu0 0
        %4974 = vmatpush1.bf16.msra.mxu0 %v4954
        %4975 = vmatprep.subr.bf16.mxu0 0
        %4976 = vmatpush1.bf16.msra.mxu0 %v4955
        %4977 = vmatprep.subr.bf16.mxu0 0
        %4978 = vmatpush1.bf16.msra.mxu0 %v4956
        %4979 = vmatprep.subr.bf16.mxu0 0
        %4980 = vmatpush1.bf16.msra.mxu0 %v4957
        %4981 = vmatprep.subr.bf16.mxu0 0
        %4982 = vmatpush1.bf16.msra.mxu0 %v4958
        %4983 = vmatprep.subr.bf16.mxu0 0
        %4984 = vmatpush1.bf16.msra.mxu0 0
        %4985 = vmatprep.subr.bf16.mxu0 0
        %4986 = vmatpush1.bf16.msra.mxu0 0
        %4987 = vmatprep.subr.bf16.mxu0 0
        %4988 = vmatpush1.bf16.msra.mxu0 0
        %4989 = vmatprep.subr.bf16.mxu0 0
        %4990 = vmatpush1.bf16.msra.mxu0 0
        %4991 = vmatprep.subr.bf16.mxu0 0
        %4992 = vmatpush1.bf16.msra.mxu0 0
        %4993 = vmatprep.subr.bf16.mxu0 0
        %4994 = vmatpush1.bf16.msra.mxu0 0
        %4995 = vmatprep.subr.bf16.mxu0 0
        %4996 = vmatpush1.bf16.msra.mxu0 0
        %4997 = vmatprep.subr.bf16.mxu0 0
        %4998 = vmatpush1.bf16.msra.mxu0 0
        %4999 = vmatprep.mubr.bf16.mxu0 0
        %5000 = vmatmul.mubr.bf16.gmra.mrb[0].mxu0 %v4559
        %v5001 = vpop.f32.mrb[0].mxu0
        %v5002 = vadd.f32 0.0, %v5001
        %v5003 = vpop.f32.mrb[0].mxu0
        %v5004 = vpop.f32.mrb[0].mxu0
        %v5005 = vadd.f32 0.0, %v5004
        %v5006 = vpop.f32.mrb[0].mxu0
        %5007 = vmatprep.mubr.bf16.mxu0 0
        %5008 = vmatmul.mubr.bf16.gmra.mrb[0].mxu0 %v4560
        %v5009 = vpop.f32.mrb[0].mxu0
        %v5010 = vadd.f32 0.0, %v5009
        %v5011 = vpop.f32.mrb[0].mxu0
        %v5012 = vpop.f32.mrb[0].mxu0
        %v5013 = vadd.f32 0.0, %v5012
        %v5014 = vpop.f32.mrb[0].mxu0
        %5015 = vdwg.mxu0
        %s5016 = scalar_lea.vmem [#allocation2], 256
        %v5017 = vld [vmem:[%s5016] sm:$0xf]
        %v5018 = vld [vmem:[%s5016 + $0x4] sm:$0xf]
        %v5019 = vld [vmem:[%s5016 + $0x8] sm:$0xf]
        %v5020 = vld [vmem:[%s5016 + $0xc] sm:$0xf]
        %v5021 = vld [vmem:[%s5016 + $0x10] sm:$0xf]
        %v5022 = vld [vmem:[%s5016 + $0x14] sm:$0xf]
        %v5023 = vld [vmem:[%s5016 + $0x18] sm:$0xf]
        %v5024 = vld [vmem:[%s5016 + $0x1c] sm:$0xf]
        %v5025 = vld [vmem:[%s5016 + $0x20] sm:$0xf]
        %v5026 = vld [vmem:[%s5016 + $0x24] sm:$0xf]
        %v5027 = vld [vmem:[%s5016 + $0x28] sm:$0xf]
        %v5028 = vld [vmem:[%s5016 + $0x2c] sm:$0xf]
        %v5029 = vld [vmem:[%s5016 + $0x30] sm:$0xf]
        %v5030 = vld [vmem:[%s5016 + $0x34] sm:$0xf]
        %v5031 = vld [vmem:[%s5016 + $0x38] sm:$0xf]
        %v5032 = vld [vmem:[%s5016 + $0x3c] sm:$0xf]
        %v5049 = vunpack.c.l.b16 %v5017
        %v5050 = vunpack.c.l.b16 %v5018
        %v5051 = vunpack.c.l.b16 %v5019
        %v5052 = vunpack.c.l.b16 %v5020
        %v5053 = vunpack.c.l.b16 %v5021
        %v5054 = vunpack.c.l.b16 %v5022
        %v5055 = vunpack.c.l.b16 %v5023
        %v5056 = vunpack.c.l.b16 %v5024
        %v5057 = vunpack.c.l.b16 %v5025
        %v5058 = vunpack.c.l.b16 %v5026
        %v5059 = vunpack.c.l.b16 %v5027
        %v5060 = vunpack.c.l.b16 %v5028
        %v5061 = vunpack.c.l.b16 %v5029
        %v5062 = vunpack.c.l.b16 %v5030
        %v5063 = vunpack.c.l.b16 %v5031
        %v5064 = vunpack.c.l.b16 %v5032
        %v5065 = vpack.c.b16 %v5050, %v5049
        %v5066 = vpack.c.b16 %v5052, %v5051
        %v5067 = vpack.c.b16 %v5054, %v5053
        %v5068 = vpack.c.b16 %v5056, %v5055
        %v5069 = vpack.c.b16 %v5058, %v5057
        %v5070 = vpack.c.b16 %v5060, %v5059
        %v5071 = vpack.c.b16 %v5062, %v5061
        %v5072 = vpack.c.b16 %v5064, %v5063
        %5081 = vmatprep.subr.bf16.mxu0 0
        %5082 = vmatpush1.bf16.msra.mxu0 %v5065
        %5083 = vmatprep.subr.bf16.mxu0 0
        %5084 = vmatpush1.bf16.msra.mxu0 %v5066
        %5085 = vmatprep.subr.bf16.mxu0 0
        %5086 = vmatpush1.bf16.msra.mxu0 %v5067
        %5087 = vmatprep.subr.bf16.mxu0 0
        %5088 = vmatpush1.bf16.msra.mxu0 %v5068
        %5089 = vmatprep.subr.bf16.mxu0 0
        %5090 = vmatpush1.bf16.msra.mxu0 %v5069
        %5091 = vmatprep.subr.bf16.mxu0 0
        %5092 = vmatpush1.bf16.msra.mxu0 %v5070
        %5093 = vmatprep.subr.bf16.mxu0 0
        %5094 = vmatpush1.bf16.msra.mxu0 %v5071
        %5095 = vmatprep.subr.bf16.mxu0 0
        %5096 = vmatpush1.bf16.msra.mxu0 %v5072
        %5097 = vmatprep.subr.bf16.mxu0 0
        %5098 = vmatpush1.bf16.msra.mxu0 0
        %5099 = vmatprep.subr.bf16.mxu0 0
        %5100 = vmatpush1.bf16.msra.mxu0 0
        %5101 = vmatprep.subr.bf16.mxu0 0
        %5102 = vmatpush1.bf16.msra.mxu0 0
        %5103 = vmatprep.subr.bf16.mxu0 0
        %5104 = vmatpush1.bf16.msra.mxu0 0
        %5105 = vmatprep.subr.bf16.mxu0 0
        %5106 = vmatpush1.bf16.msra.mxu0 0
        %5107 = vmatprep.subr.bf16.mxu0 0
        %5108 = vmatpush1.bf16.msra.mxu0 0
        %5109 = vmatprep.subr.bf16.mxu0 0
        %5110 = vmatpush1.bf16.msra.mxu0 0
        %5111 = vmatprep.subr.bf16.mxu0 0
        %5112 = vmatpush1.bf16.msra.mxu0 0
        %5113 = vmatprep.mubr.bf16.mxu0 0
        %5114 = vmatmul.mubr.bf16.gmra.mrb[0].mxu0 %v4559
        %v5115 = vpop.f32.mrb[0].mxu0
        %v5116 = vadd.f32 0.0, %v5115
        %v5117 = vpop.f32.mrb[0].mxu0
        %v5118 = vpop.f32.mrb[0].mxu0
        %v5119 = vadd.f32 0.0, %v5118
        %v5120 = vpop.f32.mrb[0].mxu0
        %5121 = vmatprep.mubr.bf16.mxu0 0
        %5122 = vmatmul.mubr.bf16.gmra.mrb[0].mxu0 %v4560
        %v5123 = vpop.f32.mrb[0].mxu0
        %v5124 = vadd.f32 0.0, %v5123
        %v5125 = vpop.f32.mrb[0].mxu0
        %v5126 = vpop.f32.mrb[0].mxu0
        %v5127 = vadd.f32 0.0, %v5126
        %v5128 = vpop.f32.mrb[0].mxu0
        %5129 = vdwg.mxu0
        %s5130 = scalar_lea.vmem [#allocation2], 320
        %v5131 = vld [vmem:[%s5130] sm:$0xf]
        %v5132 = vld [vmem:[%s5130 + $0x4] sm:$0xf]
        %v5133 = vld [vmem:[%s5130 + $0x8] sm:$0xf]
        %v5134 = vld [vmem:[%s5130 + $0xc] sm:$0xf]
        %v5135 = vld [vmem:[%s5130 + $0x10] sm:$0xf]
        %v5136 = vld [vmem:[%s5130 + $0x14] sm:$0xf]
        %v5137 = vld [vmem:[%s5130 + $0x18] sm:$0xf]
        %v5138 = vld [vmem:[%s5130 + $0x1c] sm:$0xf]
        %v5139 = vld [vmem:[%s5130 + $0x20] sm:$0xf]
        %v5140 = vld [vmem:[%s5130 + $0x24] sm:$0xf]
        %v5141 = vld [vmem:[%s5130 + $0x28] sm:$0xf]
        %v5142 = vld [vmem:[%s5130 + $0x2c] sm:$0xf]
        %v5143 = vld [vmem:[%s5130 + $0x30] sm:$0xf]
        %v5144 = vld [vmem:[%s5130 + $0x34] sm:$0xf]
        %v5145 = vld [vmem:[%s5130 + $0x38] sm:$0xf]
        %v5146 = vld [vmem:[%s5130 + $0x3c] sm:$0xf]
        %v5163 = vunpack.c.l.b16 %v5131
        %v5164 = vunpack.c.l.b16 %v5132
        %v5165 = vunpack.c.l.b16 %v5133
        %v5166 = vunpack.c.l.b16 %v5134
        %v5167 = vunpack.c.l.b16 %v5135
        %v5168 = vunpack.c.l.b16 %v5136
        %v5169 = vunpack.c.l.b16 %v5137
        %v5170 = vunpack.c.l.b16 %v5138
        %v5171 = vunpack.c.l.b16 %v5139
        %v5172 = vunpack.c.l.b16 %v5140
        %v5173 = vunpack.c.l.b16 %v5141
        %v5174 = vunpack.c.l.b16 %v5142
        %v5175 = vunpack.c.l.b16 %v5143
        %v5176 = vunpack.c.l.b16 %v5144
        %v5177 = vunpack.c.l.b16 %v5145
        %v5178 = vunpack.c.l.b16 %v5146
        %v5179 = vpack.c.b16 %v5164, %v5163
        %v5180 = vpack.c.b16 %v5166, %v5165
        %v5181 = vpack.c.b16 %v5168, %v5167
        %v5182 = vpack.c.b16 %v5170, %v5169
        %v5183 = vpack.c.b16 %v5172, %v5171
        %v5184 = vpack.c.b16 %v5174, %v5173
        %v5185 = vpack.c.b16 %v5176, %v5175
        %v5186 = vpack.c.b16 %v5178, %v5177
        %5195 = vmatprep.subr.bf16.mxu0 0
        %5196 = vmatpush1.bf16.msra.mxu0 %v5179
        %5197 = vmatprep.subr.bf16.mxu0 0
        %5198 = vmatpush1.bf16.msra.mxu0 %v5180
        %5199 = vmatprep.subr.bf16.mxu0 0
        %5200 = vmatpush1.bf16.msra.mxu0 %v5181
        %5201 = vmatprep.subr.bf16.mxu0 0
        %5202 = vmatpush1.bf16.msra.mxu0 %v5182
        %5203 = vmatprep.subr.bf16.mxu0 0
        %5204 = vmatpush1.bf16.msra.mxu0 %v5183
        %5205 = vmatprep.subr.bf16.mxu0 0
        %5206 = vmatpush1.bf16.msra.mxu0 %v5184
        %5207 = vmatprep.subr.bf16.mxu0 0
        %5208 = vmatpush1.bf16.msra.mxu0 %v5185
        %5209 = vmatprep.subr.bf16.mxu0 0
        %5210 = vmatpush1.bf16.msra.mxu0 %v5186
        %5211 = vmatprep.subr.bf16.mxu0 0
        %5212 = vmatpush1.bf16.msra.mxu0 0
        %5213 = vmatprep.subr.bf16.mxu0 0
        %5214 = vmatpush1.bf16.msra.mxu0 0
        %5215 = vmatprep.subr.bf16.mxu0 0
        %5216 = vmatpush1.bf16.msra.mxu0 0
        %5217 = vmatprep.subr.bf16.mxu0 0
        %5218 = vmatpush1.bf16.msra.mxu0 0
        %5219 = vmatprep.subr.bf16.mxu0 0
        %5220 = vmatpush1.bf16.msra.mxu0 0
        %5221 = vmatprep.subr.bf16.mxu0 0
        %5222 = vmatpush1.bf16.msra.mxu0 0
        %5223 = vmatprep.subr.bf16.mxu0 0
        %5224 = vmatpush1.bf16.msra.mxu0 0
        %5225 = vmatprep.subr.bf16.mxu0 0
        %5226 = vmatpush1.bf16.msra.mxu0 0
        %5227 = vmatprep.mubr.bf16.mxu0 0
        %5228 = vmatmul.mubr.bf16.gmra.mrb[0].mxu0 %v4559
        %v5229 = vpop.f32.mrb[0].mxu0
        %v5230 = vadd.f32 0.0, %v5229
        %v5231 = vpop.f32.mrb[0].mxu0
        %v5232 = vpop.f32.mrb[0].mxu0
        %v5233 = vadd.f32 0.0, %v5232
        %v5234 = vpop.f32.mrb[0].mxu0
        %5235 = vmatprep.mubr.bf16.mxu0 0
        %5236 = vmatmul.mubr.bf16.gmra.mrb[0].mxu0 %v4560
        %v5237 = vpop.f32.mrb[0].mxu0
        %v5238 = vadd.f32 0.0, %v5237
        %v5239 = vpop.f32.mrb[0].mxu0
        %v5240 = vpop.f32.mrb[0].mxu0
        %v5241 = vadd.f32 0.0, %v5240
        %v5242 = vpop.f32.mrb[0].mxu0
        %5243 = vdwg.mxu0
        %s5244 = scalar_lea.vmem [#allocation2], 384
        %v5245 = vld [vmem:[%s5244] sm:$0xf]
        %v5246 = vld [vmem:[%s5244 + $0x4] sm:$0xf]
        %v5247 = vld [vmem:[%s5244 + $0x8] sm:$0xf]
        %v5248 = vld [vmem:[%s5244 + $0xc] sm:$0xf]
        %v5249 = vld [vmem:[%s5244 + $0x10] sm:$0xf]
        %v5250 = vld [vmem:[%s5244 + $0x14] sm:$0xf]
        %v5251 = vld [vmem:[%s5244 + $0x18] sm:$0xf]
        %v5252 = vld [vmem:[%s5244 + $0x1c] sm:$0xf]
        %v5253 = vld [vmem:[%s5244 + $0x20] sm:$0xf]
        %v5254 = vld [vmem:[%s5244 + $0x24] sm:$0xf]
        %v5255 = vld [vmem:[%s5244 + $0x28] sm:$0xf]
        %v5256 = vld [vmem:[%s5244 + $0x2c] sm:$0xf]
        %v5257 = vld [vmem:[%s5244 + $0x30] sm:$0xf]
        %v5258 = vld [vmem:[%s5244 + $0x34] sm:$0xf]
        %v5259 = vld [vmem:[%s5244 + $0x38] sm:$0xf]
        %v5260 = vld [vmem:[%s5244 + $0x3c] sm:$0xf]
        %v5277 = vunpack.c.l.b16 %v5245
        %v5278 = vunpack.c.l.b16 %v5246
        %v5279 = vunpack.c.l.b16 %v5247
        %v5280 = vunpack.c.l.b16 %v5248
        %v5281 = vunpack.c.l.b16 %v5249
        %v5282 = vunpack.c.l.b16 %v5250
        %v5283 = vunpack.c.l.b16 %v5251
        %v5284 = vunpack.c.l.b16 %v5252
        %v5285 = vunpack.c.l.b16 %v5253
        %v5286 = vunpack.c.l.b16 %v5254
        %v5287 = vunpack.c.l.b16 %v5255
        %v5288 = vunpack.c.l.b16 %v5256
        %v5289 = vunpack.c.l.b16 %v5257
        %v5290 = vunpack.c.l.b16 %v5258
        %v5291 = vunpack.c.l.b16 %v5259
        %v5292 = vunpack.c.l.b16 %v5260
        %v5293 = vpack.c.b16 %v5278, %v5277
        %v5294 = vpack.c.b16 %v5280, %v5279
        %v5295 = vpack.c.b16 %v5282, %v5281
        %v5296 = vpack.c.b16 %v5284, %v5283
        %v5297 = vpack.c.b16 %v5286, %v5285
        %v5298 = vpack.c.b16 %v5288, %v5287
        %v5299 = vpack.c.b16 %v5290, %v5289
        %v5300 = vpack.c.b16 %v5292, %v5291
        %5309 = vmatprep.subr.bf16.mxu0 0
        %5310 = vmatpush1.bf16.msra.mxu0 %v5293
        %5311 = vmatprep.subr.bf16.mxu0 0
        %5312 = vmatpush1.bf16.msra.mxu0 %v5294
        %5313 = vmatprep.subr.bf16.mxu0 0
        %5314 = vmatpush1.bf16.msra.mxu0 %v5295
        %5315 = vmatprep.subr.bf16.mxu0 0
        %5316 = vmatpush1.bf16.msra.mxu0 %v5296
        %5317 = vmatprep.subr.bf16.mxu0 0
        %5318 = vmatpush1.bf16.msra.mxu0 %v5297
        %5319 = vmatprep.subr.bf16.mxu0 0
        %5320 = vmatpush1.bf16.msra.mxu0 %v5298
        %5321 = vmatprep.subr.bf16.mxu0 0
        %5322 = vmatpush1.bf16.msra.mxu0 %v5299
        %5323 = vmatprep.subr.bf16.mxu0 0
        %5324 = vmatpush1.bf16.msra.mxu0 %v5300
        %5325 = vmatprep.subr.bf16.mxu0 0
        %5326 = vmatpush1.bf16.msra.mxu0 0
        %5327 = vmatprep.subr.bf16.mxu0 0
        %5328 = vmatpush1.bf16.msra.mxu0 0
        %5329 = vmatprep.subr.bf16.mxu0 0
        %5330 = vmatpush1.bf16.msra.mxu0 0
        %5331 = vmatprep.subr.bf16.mxu0 0
        %5332 = vmatpush1.bf16.msra.mxu0 0
        %5333 = vmatprep.subr.bf16.mxu0 0
        %5334 = vmatpush1.bf16.msra.mxu0 0
        %5335 = vmatprep.subr.bf16.mxu0 0
        %5336 = vmatpush1.bf16.msra.mxu0 0
        %5337 = vmatprep.subr.bf16.mxu0 0
        %5338 = vmatpush1.bf16.msra.mxu0 0
        %5339 = vmatprep.subr.bf16.mxu0 0
        %5340 = vmatpush1.bf16.msra.mxu0 0
        %5341 = vmatprep.mubr.bf16.mxu0 0
        %5342 = vmatmul.mubr.bf16.gmra.mrb[0].mxu0 %v4559
        %v5343 = vpop.f32.mrb[0].mxu0
        %v5344 = vadd.f32 0.0, %v5343
        %v5345 = vpop.f32.mrb[0].mxu0
        %v5346 = vpop.f32.mrb[0].mxu0
        %v5347 = vadd.f32 0.0, %v5346
        %v5348 = vpop.f32.mrb[0].mxu0
        %5349 = vmatprep.mubr.bf16.mxu0 0
        %5350 = vmatmul.mubr.bf16.gmra.mrb[0].mxu0 %v4560
        %v5351 = vpop.f32.mrb[0].mxu0
        %v5352 = vadd.f32 0.0, %v5351
        %v5353 = vpop.f32.mrb[0].mxu0
        %v5354 = vpop.f32.mrb[0].mxu0
        %v5355 = vadd.f32 0.0, %v5354
        %v5356 = vpop.f32.mrb[0].mxu0
        %5357 = vdwg.mxu0
        %s5358 = scalar_lea.vmem [#allocation2], 448
        %v5359 = vld [vmem:[%s5358] sm:$0xf]
        %v5360 = vld [vmem:[%s5358 + $0x4] sm:$0xf]
        %v5361 = vld [vmem:[%s5358 + $0x8] sm:$0xf]
        %v5362 = vld [vmem:[%s5358 + $0xc] sm:$0xf]
        %v5363 = vld [vmem:[%s5358 + $0x10] sm:$0xf]
        %v5364 = vld [vmem:[%s5358 + $0x14] sm:$0xf]
        %v5365 = vld [vmem:[%s5358 + $0x18] sm:$0xf]
        %v5366 = vld [vmem:[%s5358 + $0x1c] sm:$0xf]
        %v5367 = vld [vmem:[%s5358 + $0x20] sm:$0xf]
        %v5368 = vld [vmem:[%s5358 + $0x24] sm:$0xf]
        %v5369 = vld [vmem:[%s5358 + $0x28] sm:$0xf]
        %v5370 = vld [vmem:[%s5358 + $0x2c] sm:$0xf]
        %v5371 = vld [vmem:[%s5358 + $0x30] sm:$0xf]
        %v5372 = vld [vmem:[%s5358 + $0x34] sm:$0xf]
        %v5373 = vld [vmem:[%s5358 + $0x38] sm:$0xf]
        %v5374 = vld [vmem:[%s5358 + $0x3c] sm:$0xf]
        %v5391 = vunpack.c.l.b16 %v5359
        %v5392 = vunpack.c.l.b16 %v5360
        %v5393 = vunpack.c.l.b16 %v5361
        %v5394 = vunpack.c.l.b16 %v5362
        %v5395 = vunpack.c.l.b16 %v5363
        %v5396 = vunpack.c.l.b16 %v5364
        %v5397 = vunpack.c.l.b16 %v5365
        %v5398 = vunpack.c.l.b16 %v5366
        %v5399 = vunpack.c.l.b16 %v5367
        %v5400 = vunpack.c.l.b16 %v5368
        %v5401 = vunpack.c.l.b16 %v5369
        %v5402 = vunpack.c.l.b16 %v5370
        %v5403 = vunpack.c.l.b16 %v5371
        %v5404 = vunpack.c.l.b16 %v5372
        %v5405 = vunpack.c.l.b16 %v5373
        %v5406 = vunpack.c.l.b16 %v5374
        %v5407 = vpack.c.b16 %v5392, %v5391
        %v5408 = vpack.c.b16 %v5394, %v5393
        %v5409 = vpack.c.b16 %v5396, %v5395
        %v5410 = vpack.c.b16 %v5398, %v5397
        %v5411 = vpack.c.b16 %v5400, %v5399
        %v5412 = vpack.c.b16 %v5402, %v5401
        %v5413 = vpack.c.b16 %v5404, %v5403
        %v5414 = vpack.c.b16 %v5406, %v5405
        %5423 = vmatprep.subr.bf16.mxu0 0
        %5424 = vmatpush1.bf16.msra.mxu0 %v5407
        %5425 = vmatprep.subr.bf16.mxu0 0
        %5426 = vmatpush1.bf16.msra.mxu0 %v5408
        %5427 = vmatprep.subr.bf16.mxu0 0
        %5428 = vmatpush1.bf16.msra.mxu0 %v5409
        %5429 = vmatprep.subr.bf16.mxu0 0
        %5430 = vmatpush1.bf16.msra.mxu0 %v5410
        %5431 = vmatprep.subr.bf16.mxu0 0
        %5432 = vmatpush1.bf16.msra.mxu0 %v5411
        %5433 = vmatprep.subr.bf16.mxu0 0
        %5434 = vmatpush1.bf16.msra.mxu0 %v5412
        %5435 = vmatprep.subr.bf16.mxu0 0
        %5436 = vmatpush1.bf16.msra.mxu0 %v5413
        %5437 = vmatprep.subr.bf16.mxu0 0
        %5438 = vmatpush1.bf16.msra.mxu0 %v5414
        %5439 = vmatprep.subr.bf16.mxu0 0
        %5440 = vmatpush1.bf16.msra.mxu0 0
        %5441 = vmatprep.subr.bf16.mxu0 0
        %5442 = vmatpush1.bf16.msra.mxu0 0
        %5443 = vmatprep.subr.bf16.mxu0 0
        %5444 = vmatpush1.bf16.msra.mxu0 0
        %5445 = vmatprep.subr.bf16.mxu0 0
        %5446 = vmatpush1.bf16.msra.mxu0 0
        %5447 = vmatprep.subr.bf16.mxu0 0
        %5448 = vmatpush1.bf16.msra.mxu0 0
        %5449 = vmatprep.subr.bf16.mxu0 0
        %5450 = vmatpush1.bf16.msra.mxu0 0
        %5451 = vmatprep.subr.bf16.mxu0 0
        %5452 = vmatpush1.bf16.msra.mxu0 0
        %5453 = vmatprep.subr.bf16.mxu0 0
        %5454 = vmatpush1.bf16.msra.mxu0 0
        %5455 = vmatprep.mubr.bf16.mxu0 0
        %5456 = vmatmul.mubr.bf16.gmra.mrb[0].mxu0 %v4559
        %v5457 = vpop.f32.mrb[0].mxu0
        %v5458 = vadd.f32 0.0, %v5457
        %v5459 = vpop.f32.mrb[0].mxu0
        %v5460 = vpop.f32.mrb[0].mxu0
        %v5461 = vadd.f32 0.0, %v5460
        %v5462 = vpop.f32.mrb[0].mxu0
        %5463 = vmatprep.mubr.bf16.mxu0 0
        %5464 = vmatmul.mubr.bf16.gmra.mrb[0].mxu0 %v4560
        %v5465 = vpop.f32.mrb[0].mxu0
        %v5466 = vadd.f32 0.0, %v5465
        %v5467 = vpop.f32.mrb[0].mxu0
        %v5468 = vpop.f32.mrb[0].mxu0
        %v5469 = vadd.f32 0.0, %v5468
        %v5470 = vpop.f32.mrb[0].mxu0
        %5471 = vdwg.mxu0
        %s5472 = scalar_lea.vmem [#allocation2], 512
        %v5473 = vld [vmem:[%s5472] sm:$0xf]
        %v5474 = vld [vmem:[%s5472 + $0x4] sm:$0xf]
        %v5475 = vld [vmem:[%s5472 + $0x8] sm:$0xf]
        %v5476 = vld [vmem:[%s5472 + $0xc] sm:$0xf]
        %v5477 = vld [vmem:[%s5472 + $0x10] sm:$0xf]
        %v5478 = vld [vmem:[%s5472 + $0x14] sm:$0xf]
        %v5479 = vld [vmem:[%s5472 + $0x18] sm:$0xf]
        %v5480 = vld [vmem:[%s5472 + $0x1c] sm:$0xf]
        %v5481 = vld [vmem:[%s5472 + $0x20] sm:$0xf]
        %v5482 = vld [vmem:[%s5472 + $0x24] sm:$0xf]
        %v5483 = vld [vmem:[%s5472 + $0x28] sm:$0xf]
        %v5484 = vld [vmem:[%s5472 + $0x2c] sm:$0xf]
        %v5485 = vld [vmem:[%s5472 + $0x30] sm:$0xf]
        %v5486 = vld [vmem:[%s5472 + $0x34] sm:$0xf]
        %v5487 = vld [vmem:[%s5472 + $0x38] sm:$0xf]
        %v5488 = vld [vmem:[%s5472 + $0x3c] sm:$0xf]
        %v5505 = vunpack.c.l.b16 %v5473
        %v5506 = vunpack.c.l.b16 %v5474
        %v5507 = vunpack.c.l.b16 %v5475
        %v5508 = vunpack.c.l.b16 %v5476
        %v5509 = vunpack.c.l.b16 %v5477
        %v5510 = vunpack.c.l.b16 %v5478
        %v5511 = vunpack.c.l.b16 %v5479
        %v5512 = vunpack.c.l.b16 %v5480
        %v5513 = vunpack.c.l.b16 %v5481
        %v5514 = vunpack.c.l.b16 %v5482
        %v5515 = vunpack.c.l.b16 %v5483
        %v5516 = vunpack.c.l.b16 %v5484
        %v5517 = vunpack.c.l.b16 %v5485
        %v5518 = vunpack.c.l.b16 %v5486
        %v5519 = vunpack.c.l.b16 %v5487
        %v5520 = vunpack.c.l.b16 %v5488
        %v5521 = vpack.c.b16 %v5506, %v5505
        %v5522 = vpack.c.b16 %v5508, %v5507
        %v5523 = vpack.c.b16 %v5510, %v5509
        %v5524 = vpack.c.b16 %v5512, %v5511
        %v5525 = vpack.c.b16 %v5514, %v5513
        %v5526 = vpack.c.b16 %v5516, %v5515
        %v5527 = vpack.c.b16 %v5518, %v5517
        %v5528 = vpack.c.b16 %v5520, %v5519
        %5537 = vmatprep.subr.bf16.mxu0 0
        %5538 = vmatpush1.bf16.msra.mxu0 %v5521
        %5539 = vmatprep.subr.bf16.mxu0 0
        %5540 = vmatpush1.bf16.msra.mxu0 %v5522
        %5541 = vmatprep.subr.bf16.mxu0 0
        %5542 = vmatpush1.bf16.msra.mxu0 %v5523
        %5543 = vmatprep.subr.bf16.mxu0 0
        %5544 = vmatpush1.bf16.msra.mxu0 %v5524
        %5545 = vmatprep.subr.bf16.mxu0 0
        %5546 = vmatpush1.bf16.msra.mxu0 %v5525
        %5547 = vmatprep.subr.bf16.mxu0 0
        %5548 = vmatpush1.bf16.msra.mxu0 %v5526
        %5549 = vmatprep.subr.bf16.mxu0 0
        %5550 = vmatpush1.bf16.msra.mxu0 %v5527
        %5551 = vmatprep.subr.bf16.mxu0 0
        %5552 = vmatpush1.bf16.msra.mxu0 %v5528
        %5553 = vmatprep.subr.bf16.mxu0 0
        %5554 = vmatpush1.bf16.msra.mxu0 0
        %5555 = vmatprep.subr.bf16.mxu0 0
        %5556 = vmatpush1.bf16.msra.mxu0 0
        %5557 = vmatprep.subr.bf16.mxu0 0
        %5558 = vmatpush1.bf16.msra.mxu0 0
        %5559 = vmatprep.subr.bf16.mxu0 0
        %5560 = vmatpush1.bf16.msra.mxu0 0
        %5561 = vmatprep.subr.bf16.mxu0 0
        %5562 = vmatpush1.bf16.msra.mxu0 0
        %5563 = vmatprep.subr.bf16.mxu0 0
        %5564 = vmatpush1.bf16.msra.mxu0 0
        %5565 = vmatprep.subr.bf16.mxu0 0
        %5566 = vmatpush1.bf16.msra.mxu0 0
        %5567 = vmatprep.subr.bf16.mxu0 0
        %5568 = vmatpush1.bf16.msra.mxu0 0
        %5569 = vmatprep.mubr.bf16.mxu0 0
        %5570 = vmatmul.mubr.bf16.gmra.mrb[0].mxu0 %v4559
        %v5571 = vpop.f32.mrb[0].mxu0
        %v5572 = vadd.f32 0.0, %v5571
        %v5573 = vpop.f32.mrb[0].mxu0
        %v5574 = vpop.f32.mrb[0].mxu0
        %v5575 = vadd.f32 0.0, %v5574
        %v5576 = vpop.f32.mrb[0].mxu0
        %5577 = vmatprep.mubr.bf16.mxu0 0
        %5578 = vmatmul.mubr.bf16.gmra.mrb[0].mxu0 %v4560
        %v5579 = vpop.f32.mrb[0].mxu0
        %v5580 = vadd.f32 0.0, %v5579
        %v5581 = vpop.f32.mrb[0].mxu0
        %v5582 = vpop.f32.mrb[0].mxu0
        %v5583 = vadd.f32 0.0, %v5582
        %v5584 = vpop.f32.mrb[0].mxu0
        %5585 = vdwg.mxu0
        %v5586 = vpack.c.bf16 %v4663, %v4660
        %v5587 = vpack.c.bf16 %v4671, %v4668
        %v5588 = vpack.c.bf16 %v4777, %v4774
        %v5589 = vpack.c.bf16 %v4785, %v4782
        %v5590 = vpack.c.bf16 %v4891, %v4888
        %v5591 = vpack.c.bf16 %v4899, %v4896
        %v5592 = vpack.c.bf16 %v5005, %v5002
        %v5593 = vpack.c.bf16 %v5013, %v5010
        %v5594 = vpack.c.bf16 %v5119, %v5116
        %v5595 = vpack.c.bf16 %v5127, %v5124
        %v5596 = vpack.c.bf16 %v5233, %v5230
        %v5597 = vpack.c.bf16 %v5241, %v5238
        %v5598 = vpack.c.bf16 %v5347, %v5344
        %v5599 = vpack.c.bf16 %v5355, %v5352
        %v5600 = vpack.c.bf16 %v5461, %v5458
        %v5601 = vpack.c.bf16 %v5469, %v5466
        %v5602 = vpack.c.bf16 %v5575, %v5572
        %v5603 = vpack.c.bf16 %v5583, %v5580
        %v5604 = vld [vmem:[%s17] sm:$0xff]
        %v5605 = vld [vmem:[%s17 + $0x8] sm:$0xf]
        %v5606 = vld [vmem:[%s17 + $0xc] sm:$0xff]
        %v5607 = vld [vmem:[%s17 + $0x14] sm:$0xf]
        %v5608 = vld [vmem:[%s17 + $0x18] sm:$0xff]
        %v5609 = vld [vmem:[%s17 + $0x20] sm:$0xf]
        %v5610 = vld [vmem:[%s17 + $0x24] sm:$0xff]
        %v5611 = vld [vmem:[%s17 + $0x2c] sm:$0xf]
        %v5612 = vld [vmem:[%s17 + $0x30] sm:$0xff]
        %v5613 = vld [vmem:[%s17 + $0x38] sm:$0xf]
        %v5614 = vld [vmem:[%s17 + $0x3c] sm:$0xff]
        %v5615 = vld [vmem:[%s17 + $0x44] sm:$0xf]
        %v5616 = vld [vmem:[%s17 + $0x48] sm:$0xff]
        %v5617 = vld [vmem:[%s17 + $0x50] sm:$0xf]
        %v5618 = vld [vmem:[%s17 + $0x54] sm:$0xff]
        %v5619 = vld [vmem:[%s17 + $0x5c] sm:$0xf]
        %v5620 = vld [vmem:[%s17 + $0x60] sm:$0xff]
        %v5621 = vld [vmem:[%s17 + $0x68] sm:$0xf]
        %v5622 = vld [vmem:[%s17 + $0x6c] sm:$0xff]
        %v5623 = vld [vmem:[%s17 + $0x74] sm:$0xf]
        %v5624 = vld [vmem:[%s17 + $0x78] sm:$0xff]
        %v5625 = vld [vmem:[%s17 + $0x80] sm:$0xf]
        %v5626 = vld [vmem:[%s17 + $0x84] sm:$0xff]
        %v5627 = vld [vmem:[%s17 + $0x8c] sm:$0xf]
        %v5628 = vld [vmem:[%s17 + $0x90] sm:$0xff]
        %v5629 = vld [vmem:[%s17 + $0x98] sm:$0xf]
        %v5630 = vld [vmem:[%s17 + $0x9c] sm:$0xff]
        %v5631 = vld [vmem:[%s17 + $0xa4] sm:$0xf]
        %v5632 = vld [vmem:[%s17 + $0xa8] sm:$0xff]
        %v5633 = vld [vmem:[%s17 + $0xb0] sm:$0xf]
        %v5634 = vld [vmem:[%s17 + $0xb4] sm:$0xff]
        %v5635 = vld [vmem:[%s17 + $0xbc] sm:$0xf]
        %v5668 = vunpack.c.l.b16 %v5604
        %v5669 = vunpack.c.h.b16 %v5604
        %v5670 = vunpack.c.l.b16 %v5605
        %v5671 = vunpack.c.l.b16 %v5606
        %v5672 = vunpack.c.h.b16 %v5606
        %v5673 = vunpack.c.l.b16 %v5607
        %v5674 = vunpack.c.l.b16 %v5608
        %v5675 = vunpack.c.h.b16 %v5608
        %v5676 = vunpack.c.l.b16 %v5609
        %v5677 = vunpack.c.l.b16 %v5610
        %v5678 = vunpack.c.h.b16 %v5610
        %v5679 = vunpack.c.l.b16 %v5611
        %v5680 = vunpack.c.l.b16 %v5612
        %v5681 = vunpack.c.h.b16 %v5612
        %v5682 = vunpack.c.l.b16 %v5613
        %v5683 = vunpack.c.l.b16 %v5614
        %v5684 = vunpack.c.h.b16 %v5614
        %v5685 = vunpack.c.l.b16 %v5615
        %v5686 = vunpack.c.l.b16 %v5616
        %v5687 = vunpack.c.h.b16 %v5616
        %v5688 = vunpack.c.l.b16 %v5617
        %v5689 = vunpack.c.l.b16 %v5618
        %v5690 = vunpack.c.h.b16 %v5618
        %v5691 = vunpack.c.l.b16 %v5619
        %v5692 = vunpack.c.l.b16 %v5620
        %v5693 = vunpack.c.h.b16 %v5620
        %v5694 = vunpack.c.l.b16 %v5621
        %v5695 = vunpack.c.l.b16 %v5622
        %v5696 = vunpack.c.h.b16 %v5622
        %v5697 = vunpack.c.l.b16 %v5623
        %v5698 = vunpack.c.l.b16 %v5624
        %v5699 = vunpack.c.h.b16 %v5624
        %v5700 = vunpack.c.l.b16 %v5625
        %v5701 = vunpack.c.l.b16 %v5626
        %v5702 = vunpack.c.h.b16 %v5626
        %v5703 = vunpack.c.l.b16 %v5627
        %v5704 = vunpack.c.l.b16 %v5628
        %v5705 = vunpack.c.h.b16 %v5628
        %v5706 = vunpack.c.l.b16 %v5629
        %v5707 = vunpack.c.l.b16 %v5630
        %v5708 = vunpack.c.h.b16 %v5630
        %v5709 = vunpack.c.l.b16 %v5631
        %v5710 = vunpack.c.l.b16 %v5632
        %v5711 = vunpack.c.h.b16 %v5632
        %v5712 = vunpack.c.l.b16 %v5633
        %v5713 = vunpack.c.l.b16 %v5634
        %v5714 = vunpack.c.h.b16 %v5634
        %v5715 = vunpack.c.l.b16 %v5635
        %v5716 = vpack.c.b16 %v5671, %v5668
        %v5717 = vpack.c.b16 %v5672, %v5669
        %v5718 = vpack.c.b16 %v5673, %v5670
        %v5719 = vpack.c.b16 %v5677, %v5674
        %v5720 = vpack.c.b16 %v5678, %v5675
        %v5721 = vpack.c.b16 %v5679, %v5676
        %v5722 = vpack.c.b16 %v5683, %v5680
        %v5723 = vpack.c.b16 %v5684, %v5681
        %v5724 = vpack.c.b16 %v5685, %v5682
        %v5725 = vpack.c.b16 %v5689, %v5686
        %v5726 = vpack.c.b16 %v5690, %v5687
        %v5727 = vpack.c.b16 %v5691, %v5688
        %v5728 = vpack.c.b16 %v5695, %v5692
        %v5729 = vpack.c.b16 %v5696, %v5693
        %v5730 = vpack.c.b16 %v5697, %v5694
        %v5731 = vpack.c.b16 %v5701, %v5698
        %v5732 = vpack.c.b16 %v5702, %v5699
        %v5733 = vpack.c.b16 %v5703, %v5700
        %v5734 = vpack.c.b16 %v5707, %v5704
        %v5735 = vpack.c.b16 %v5708, %v5705
        %v5736 = vpack.c.b16 %v5709, %v5706
        %v5737 = vpack.c.b16 %v5713, %v5710
        %v5738 = vpack.c.b16 %v5714, %v5711
        %v5739 = vpack.c.b16 %v5715, %v5712
        %v5757 = vsel %vm4441, %v5718, 0
        %v5760 = vsel %vm4441, %v5721, 0
        %v5763 = vsel %vm4441, %v5724, 0
        %v5766 = vsel %vm4441, %v5727, 0
        %v5769 = vsel %vm4441, %v5730, 0
        %v5772 = vsel %vm4441, %v5733, 0
        %v5775 = vsel %vm4441, %v5736, 0
        %v5778 = vsel %vm4441, %v5739, 0
        %5780 = vmatprep.subr.bf16.mxu0 0
        %5781 = vmatpush1.bf16.msra.mxu0 %v5586
        %5782 = vmatprep.subr.bf16.mxu0 0
        %5783 = vmatpush1.bf16.msra.mxu0 %v5587
        %5784 = vmatprep.subr.bf16.mxu0 0
        %5785 = vmatpush1.bf16.msra.mxu0 %v5588
        %5786 = vmatprep.subr.bf16.mxu0 0
        %5787 = vmatpush1.bf16.msra.mxu0 %v5589
        %5788 = vmatprep.subr.bf16.mxu0 0
        %5789 = vmatpush1.bf16.msra.mxu0 %v5590
        %5790 = vmatprep.subr.bf16.mxu0 0
        %5791 = vmatpush1.bf16.msra.mxu0 %v5591
        %5792 = vmatprep.subr.bf16.mxu0 0
        %5793 = vmatpush1.bf16.msra.mxu0 %v5592
        %5794 = vmatprep.subr.bf16.mxu0 0
        %5795 = vmatpush1.bf16.msra.mxu0 %v5593
        %5796 = vmatprep.subr.bf16.mxu0 0
        %5797 = vmatpush1.bf16.msra.mxu0 %v5594
        %5798 = vmatprep.subr.bf16.mxu0 0
        %5799 = vmatpush1.bf16.msra.mxu0 %v5595
        %5800 = vmatprep.subr.bf16.mxu0 0
        %5801 = vmatpush1.bf16.msra.mxu0 %v5596
        %5802 = vmatprep.subr.bf16.mxu0 0
        %5803 = vmatpush1.bf16.msra.mxu0 %v5597
        %5804 = vmatprep.subr.bf16.mxu0 0
        %5805 = vmatpush1.bf16.msra.mxu0 %v5598
        %5806 = vmatprep.subr.bf16.mxu0 0
        %5807 = vmatpush1.bf16.msra.mxu0 %v5599
        %5808 = vmatprep.subr.bf16.mxu0 0
        %5809 = vmatpush1.bf16.msra.mxu0 %v5600
        %5810 = vmatprep.subr.bf16.mxu0 0
        %5811 = vmatpush1.bf16.msra.mxu0 %v5601
        %5812 = vmatprep.mubr.bf16.mxu0 %v5717
        %5813 = vmatmul.mubr.bf16.gmra.mrb[0].mxu0 %v5716
        %v5814 = vpop.f32.mrb[0].mxu0
        %v5815 = vadd.f32 0.0, %v5814
        %v5816 = vpop.f32.mrb[0].mxu0
        %v5817 = vpop.f32.mrb[0].mxu0
        %v5818 = vadd.f32 0.0, %v5817
        %v5819 = vpop.f32.mrb[0].mxu0
        %5820 = vmatprep.mubr.bf16.mxu0 %v5720
        %5821 = vmatmul.mubr.bf16.gmra.mrb[0].mxu0 %v5719
        %v5822 = vpop.f32.mrb[0].mxu0
        %v5823 = vadd.f32 0.0, %v5822
        %v5824 = vpop.f32.mrb[0].mxu0
        %v5825 = vpop.f32.mrb[0].mxu0
        %v5826 = vadd.f32 0.0, %v5825
        %v5827 = vpop.f32.mrb[0].mxu0
        %5828 = vmatprep.mubr.bf16.mxu0 %v5723
        %5829 = vmatmul.mubr.bf16.gmra.mrb[0].mxu0 %v5722
        %v5830 = vpop.f32.mrb[0].mxu0
        %v5831 = vadd.f32 0.0, %v5830
        %v5832 = vpop.f32.mrb[0].mxu0
        %v5833 = vpop.f32.mrb[0].mxu0
        %v5834 = vadd.f32 0.0, %v5833
        %v5835 = vpop.f32.mrb[0].mxu0
        %5836 = vmatprep.mubr.bf16.mxu0 %v5726
        %5837 = vmatmul.mubr.bf16.gmra.mrb[0].mxu0 %v5725
        %v5838 = vpop.f32.mrb[0].mxu0
        %v5839 = vadd.f32 0.0, %v5838
        %v5840 = vpop.f32.mrb[0].mxu0
        %v5841 = vpop.f32.mrb[0].mxu0
        %v5842 = vadd.f32 0.0, %v5841
        %v5843 = vpop.f32.mrb[0].mxu0
        %5844 = vmatprep.mubr.bf16.mxu0 %v5729
        %5845 = vmatmul.mubr.bf16.gmra.mrb[0].mxu0 %v5728
        %v5846 = vpop.f32.mrb[0].mxu0
        %v5847 = vadd.f32 0.0, %v5846
        %v5848 = vpop.f32.mrb[0].mxu0
        %v5849 = vpop.f32.mrb[0].mxu0
        %v5850 = vadd.f32 0.0, %v5849
        %v5851 = vpop.f32.mrb[0].mxu0
        %5852 = vmatprep.mubr.bf16.mxu0 %v5732
        %5853 = vmatmul.mubr.bf16.gmra.mrb[0].mxu0 %v5731
        %v5854 = vpop.f32.mrb[0].mxu0
        %v5855 = vadd.f32 0.0, %v5854
        %v5856 = vpop.f32.mrb[0].mxu0
        %v5857 = vpop.f32.mrb[0].mxu0
        %v5858 = vadd.f32 0.0, %v5857
        %v5859 = vpop.f32.mrb[0].mxu0
        %5860 = vmatprep.mubr.bf16.mxu0 %v5735
        %5861 = vmatmul.mubr.bf16.gmra.mrb[0].mxu0 %v5734
        %v5862 = vpop.f32.mrb[0].mxu0
        %v5863 = vadd.f32 0.0, %v5862
        %v5864 = vpop.f32.mrb[0].mxu0
        %v5865 = vpop.f32.mrb[0].mxu0
        %v5866 = vadd.f32 0.0, %v5865
        %v5867 = vpop.f32.mrb[0].mxu0
        %5868 = vmatprep.mubr.bf16.mxu0 %v5738
        %5869 = vmatmul.mubr.bf16.gmra.mrb[0].mxu0 %v5737
        %v5870 = vpop.f32.mrb[0].mxu0
        %v5871 = vadd.f32 0.0, %v5870
        %v5872 = vpop.f32.mrb[0].mxu0
        %v5873 = vpop.f32.mrb[0].mxu0
        %v5874 = vadd.f32 0.0, %v5873
        %v5875 = vpop.f32.mrb[0].mxu0
        %5876 = vdwg.mxu0
        %5877 = vmatprep.subr.bf16.mxu0 0
        %5878 = vmatpush1.bf16.msra.mxu0 %v5602
        %5879 = vmatprep.subr.bf16.mxu0 0
        %5880 = vmatpush1.bf16.msra.mxu0 %v5603
        %5881 = vmatprep.subr.bf16.mxu0 0
        %5882 = vmatpush1.bf16.msra.mxu0 0
        %5883 = vmatprep.subr.bf16.mxu0 0
        %5884 = vmatpush1.bf16.msra.mxu0 0
        %5885 = vmatprep.subr.bf16.mxu0 0
        %5886 = vmatpush1.bf16.msra.mxu0 0
        %5887 = vmatprep.subr.bf16.mxu0 0
        %5888 = vmatpush1.bf16.msra.mxu0 0
        %5889 = vmatprep.subr.bf16.mxu0 0
        %5890 = vmatpush1.bf16.msra.mxu0 0
        %5891 = vmatprep.subr.bf16.mxu0 0
        %5892 = vmatpush1.bf16.msra.mxu0 0
        %5893 = vmatprep.subr.bf16.mxu0 0
        %5894 = vmatpush1.bf16.msra.mxu0 0
        %5895 = vmatprep.subr.bf16.mxu0 0
        %5896 = vmatpush1.bf16.msra.mxu0 0
        %5897 = vmatprep.subr.bf16.mxu0 0
        %5898 = vmatpush1.bf16.msra.mxu0 0
        %5899 = vmatprep.subr.bf16.mxu0 0
        %5900 = vmatpush1.bf16.msra.mxu0 0
        %5901 = vmatprep.subr.bf16.mxu0 0
        %5902 = vmatpush1.bf16.msra.mxu0 0
        %5903 = vmatprep.subr.bf16.mxu0 0
        %5904 = vmatpush1.bf16.msra.mxu0 0
        %5905 = vmatprep.subr.bf16.mxu0 0
        %5906 = vmatpush1.bf16.msra.mxu0 0
        %5907 = vmatprep.subr.bf16.mxu0 0
        %5908 = vmatpush1.bf16.msra.mxu0 0
        %5909 = vmatprep.mubr.bf16.mxu0 0
        %5910 = vmatmul.mubr.bf16.gmra.mrb[0].mxu0 %v5757
        %v5911 = vpop.f32.mrb[0].mxu0
        %v5912 = vadd.f32 %v5815, %v5911
        %v5913 = vpop.f32.mrb[0].mxu0
        %v5914 = vpop.f32.mrb[0].mxu0
        %v5915 = vadd.f32 %v5818, %v5914
        %v5916 = vpop.f32.mrb[0].mxu0
        %5917 = vmatprep.mubr.bf16.mxu0 0
        %5918 = vmatmul.mubr.bf16.gmra.mrb[0].mxu0 %v5760
        %v5919 = vpop.f32.mrb[0].mxu0
        %v5920 = vadd.f32 %v5823, %v5919
        %v5921 = vpop.f32.mrb[0].mxu0
        %v5922 = vpop.f32.mrb[0].mxu0
        %v5923 = vadd.f32 %v5826, %v5922
        %v5924 = vpop.f32.mrb[0].mxu0
        %5925 = vmatprep.mubr.bf16.mxu0 0
        %5926 = vmatmul.mubr.bf16.gmra.mrb[0].mxu0 %v5763
        %v5927 = vpop.f32.mrb[0].mxu0
        %v5928 = vadd.f32 %v5831, %v5927
        %v5929 = vpop.f32.mrb[0].mxu0
        %v5930 = vpop.f32.mrb[0].mxu0
        %v5931 = vadd.f32 %v5834, %v5930
        %v5932 = vpop.f32.mrb[0].mxu0
        %5933 = vmatprep.mubr.bf16.mxu0 0
        %5934 = vmatmul.mubr.bf16.gmra.mrb[0].mxu0 %v5766
        %v5935 = vpop.f32.mrb[0].mxu0
        %v5936 = vadd.f32 %v5839, %v5935
        %v5937 = vpop.f32.mrb[0].mxu0
        %v5938 = vpop.f32.mrb[0].mxu0
        %v5939 = vadd.f32 %v5842, %v5938
        %v5940 = vpop.f32.mrb[0].mxu0
        %5941 = vmatprep.mubr.bf16.mxu0 0
        %5942 = vmatmul.mubr.bf16.gmra.mrb[0].mxu0 %v5769
        %v5943 = vpop.f32.mrb[0].mxu0
        %v5944 = vadd.f32 %v5847, %v5943
        %v5945 = vpop.f32.mrb[0].mxu0
        %v5946 = vpop.f32.mrb[0].mxu0
        %v5947 = vadd.f32 %v5850, %v5946
        %v5948 = vpop.f32.mrb[0].mxu0
        %5949 = vmatprep.mubr.bf16.mxu0 0
        %5950 = vmatmul.mubr.bf16.gmra.mrb[0].mxu0 %v5772
        %v5951 = vpop.f32.mrb[0].mxu0
        %v5952 = vadd.f32 %v5855, %v5951
        %v5953 = vpop.f32.mrb[0].mxu0
        %v5954 = vpop.f32.mrb[0].mxu0
        %v5955 = vadd.f32 %v5858, %v5954
        %v5956 = vpop.f32.mrb[0].mxu0
        %5957 = vmatprep.mubr.bf16.mxu0 0
        %5958 = vmatmul.mubr.bf16.gmra.mrb[0].mxu0 %v5775
        %v5959 = vpop.f32.mrb[0].mxu0
        %v5960 = vadd.f32 %v5863, %v5959
        %v5961 = vpop.f32.mrb[0].mxu0
        %v5962 = vpop.f32.mrb[0].mxu0
        %v5963 = vadd.f32 %v5866, %v5962
        %v5964 = vpop.f32.mrb[0].mxu0
        %5965 = vmatprep.mubr.bf16.mxu0 0
        %5966 = vmatmul.mubr.bf16.gmra.mrb[0].mxu0 %v5778
        %v5967 = vpop.f32.mrb[0].mxu0
        %v5968 = vadd.f32 %v5871, %v5967
        %v5969 = vpop.f32.mrb[0].mxu0
        %v5970 = vpop.f32.mrb[0].mxu0
        %v5971 = vadd.f32 %v5874, %v5970
        %v5972 = vpop.f32.mrb[0].mxu0
        %5973 = vdwg.mxu0
        %v5974 = vld [vmem:[%s18] sm:$0xff]
        %v5975 = vld [vmem:[%s18 + $0x8] sm:$0xff]
        %v5976 = vld [vmem:[%s18 + $0x10] sm:$0xff]
        %v5977 = vld [vmem:[%s18 + $0x18] sm:$0xff]
        %v5978 = vld [vmem:[%s18 + $0x20] sm:$0xff]
        %v5979 = vld [vmem:[%s18 + $0x28] sm:$0xff]
        %v5980 = vld [vmem:[%s18 + $0x30] sm:$0xff]
        %v5981 = vld [vmem:[%s18 + $0x38] sm:$0xff]
        %5983 = vset.pattern.permute.xlu0 0
        %5984 = vperm.xlu0 %5983, %v5974
        %v5985 = vpop.permute.xlu0 %5984
        %5988 = vset.pattern.permute.xlu0 0
        %5989 = vperm.xlu0 %5988, %v5975
        %v5990 = vpop.permute.xlu0 %5989
        %5993 = vset.pattern.permute.xlu0 0
        %5994 = vperm.xlu0 %5993, %v5976
        %v5995 = vpop.permute.xlu0 %5994
        %5998 = vset.pattern.permute.xlu0 0
        %5999 = vperm.xlu0 %5998, %v5977
        %v6000 = vpop.permute.xlu0 %5999
        %6003 = vset.pattern.permute.xlu0 0
        %6004 = vperm.xlu0 %6003, %v5978
        %v6005 = vpop.permute.xlu0 %6004
        %6008 = vset.pattern.permute.xlu0 0
        %6009 = vperm.xlu0 %6008, %v5979
        %v6010 = vpop.permute.xlu0 %6009
        %6013 = vset.pattern.permute.xlu0 0
        %6014 = vperm.xlu0 %6013, %v5980
        %v6015 = vpop.permute.xlu0 %6014
        %6018 = vset.pattern.permute.xlu0 0
        %6019 = vperm.xlu0 %6018, %v5981
        %v6020 = vpop.permute.xlu0 %6019
        %v6022 = vadd.f32 %v5912, %v5985
        %v6023 = vadd.f32 %v5915, %v5990
        %v6024 = vadd.f32 %v5920, %v5995
        %v6025 = vadd.f32 %v5923, %v6000
        %v6026 = vadd.f32 %v5928, %v6005
        %v6027 = vadd.f32 %v5931, %v6010
        %v6028 = vadd.f32 %v5936, %v6015
        %v6029 = vadd.f32 %v5939, %v6020
        %v6030 = vmax.f32 %v6022, 0.0
        %v6031 = vmax.f32 %v6023, 0.0
        %v6032 = vmax.f32 %v6024, 0.0
        %v6033 = vmax.f32 %v6025, 0.0
        %v6034 = vmax.f32 %v6026, 0.0
        %v6035 = vmax.f32 %v6027, 0.0
        %v6036 = vmax.f32 %v6028, 0.0
        %v6037 = vmax.f32 %v6029, 0.0
        %v6039 = vlaneseq
        %v6040 = vshrl.u32 %v6039, 7
        %v6041 = vsub.s32 0, %v6040
        %v6042 = vrot.slane %v4558, %v6041
        %v6044 = vmul.f32 %v6030, %v6042
        %v6045 = vmul.f32 %v6031, %v6042
        %v6046 = vmul.f32 %v6032, %v6042
        %v6047 = vmul.f32 %v6033, %v6042
        %v6048 = vmul.f32 %v6034, %v6042
        %v6049 = vmul.f32 %v6035, %v6042
        %v6050 = vmul.f32 %v6036, %v6042
        %v6051 = vmul.f32 %v6037, %v6042
        %v6052 = vld [vmem:[%s20] sm:$0xff]
        %v6053 = vld [vmem:[%s20 + $0x8] sm:$0xff]
        %v6054 = vld [vmem:[%s20 + $0x10] sm:$0xf]
        %v6055 = vld [vmem:[%s20 + $0x14] sm:$0xff]
        %v6056 = vld [vmem:[%s20 + $0x1c] sm:$0xff]
        %v6057 = vld [vmem:[%s20 + $0x24] sm:$0xf]
        %v6058 = vld [vmem:[%s20 + $0x28] sm:$0xff]
        %v6059 = vld [vmem:[%s20 + $0x30] sm:$0xff]
        %v6060 = vld [vmem:[%s20 + $0x38] sm:$0xf]
        %v6061 = vld [vmem:[%s20 + $0x3c] sm:$0xff]
        %v6062 = vld [vmem:[%s20 + $0x44] sm:$0xff]
        %v6063 = vld [vmem:[%s20 + $0x4c] sm:$0xf]
        %v6064 = vld [vmem:[%s20 + $0x50] sm:$0xff]
        %v6065 = vld [vmem:[%s20 + $0x58] sm:$0xff]
        %v6066 = vld [vmem:[%s20 + $0x60] sm:$0xf]
        %v6067 = vld [vmem:[%s20 + $0x64] sm:$0xff]
        %v6068 = vld [vmem:[%s20 + $0x6c] sm:$0xff]
        %v6069 = vld [vmem:[%s20 + $0x74] sm:$0xf]
        %v6070 = vld [vmem:[%s20 + $0x78] sm:$0xff]
        %v6071 = vld [vmem:[%s20 + $0x80] sm:$0xff]
        %v6072 = vld [vmem:[%s20 + $0x88] sm:$0xf]
        %v6073 = vld [vmem:[%s20 + $0x8c] sm:$0xff]
        %v6074 = vld [vmem:[%s20 + $0x94] sm:$0xff]
        %v6075 = vld [vmem:[%s20 + $0x9c] sm:$0xf]
        %6076 = vrot.lane.b32.xlu0 %v6044, 7
        %v6077 = vpop.permute.xlu0 %6076
        %6078 = vrot.lane.b32.xlu0 %v6045, 7
        %v6079 = vpop.permute.xlu0 %6078
        %6080 = vrot.lane.b32.xlu0 %v6046, 7
        %v6081 = vpop.permute.xlu0 %6080
        %6082 = vrot.lane.b32.xlu0 %v6047, 7
        %v6083 = vpop.permute.xlu0 %6082
        %6084 = vrot.lane.b32.xlu0 %v6048, 7
        %v6085 = vpop.permute.xlu0 %6084
        %6086 = vrot.lane.b32.xlu0 %v6049, 7
        %v6087 = vpop.permute.xlu0 %6086
        %6088 = vrot.lane.b32.xlu0 %v6050, 7
        %v6089 = vpop.permute.xlu0 %6088
        %6090 = vrot.lane.b32.xlu0 %v6051, 7
        %v6091 = vpop.permute.xlu0 %6090
        %6092 = vrot.lane.b32.xlu0 %v6044, 6
        %v6093 = vpop.permute.xlu0 %6092
        %6094 = vrot.lane.b32.xlu0 %v6045, 6
        %v6095 = vpop.permute.xlu0 %6094
        %6096 = vrot.lane.b32.xlu0 %v6046, 6
        %v6097 = vpop.permute.xlu0 %6096
        %6098 = vrot.lane.b32.xlu0 %v6047, 6
        %v6099 = vpop.permute.xlu0 %6098
        %6100 = vrot.lane.b32.xlu0 %v6048, 6
        %v6101 = vpop.permute.xlu0 %6100
        %6102 = vrot.lane.b32.xlu0 %v6049, 6
        %v6103 = vpop.permute.xlu0 %6102
        %6104 = vrot.lane.b32.xlu0 %v6050, 6
        %v6105 = vpop.permute.xlu0 %6104
        %6106 = vrot.lane.b32.xlu0 %v6051, 6
        %v6107 = vpop.permute.xlu0 %6106
        %6108 = vrot.lane.b32.xlu0 %v6044, 5
        %v6109 = vpop.permute.xlu0 %6108
        %6110 = vrot.lane.b32.xlu0 %v6045, 5
        %v6111 = vpop.permute.xlu0 %6110
        %6112 = vrot.lane.b32.xlu0 %v6046, 5
        %v6113 = vpop.permute.xlu0 %6112
        %6114 = vrot.lane.b32.xlu0 %v6047, 5
        %v6115 = vpop.permute.xlu0 %6114
        %6116 = vrot.lane.b32.xlu0 %v6048, 5
        %v6117 = vpop.permute.xlu0 %6116
        %6118 = vrot.lane.b32.xlu0 %v6049, 5
        %v6119 = vpop.permute.xlu0 %6118
        %6120 = vrot.lane.b32.xlu0 %v6050, 5
        %v6121 = vpop.permute.xlu0 %6120
        %6122 = vrot.lane.b32.xlu0 %v6051, 5
        %v6123 = vpop.permute.xlu0 %6122
        %6124 = vrot.lane.b32.xlu0 %v6044, 1
        %v6125 = vpop.permute.xlu0 %6124
        %6126 = vrot.lane.b32.xlu0 %v6045, 1
        %v6127 = vpop.permute.xlu0 %6126
        %6128 = vrot.lane.b32.xlu0 %v6046, 1
        %v6129 = vpop.permute.xlu0 %6128
        %6130 = vrot.lane.b32.xlu0 %v6047, 1
        %v6131 = vpop.permute.xlu0 %6130
        %6132 = vrot.lane.b32.xlu0 %v6048, 1
        %v6133 = vpop.permute.xlu0 %6132
        %6134 = vrot.lane.b32.xlu0 %v6049, 1
        %v6135 = vpop.permute.xlu0 %6134
        %6136 = vrot.lane.b32.xlu0 %v6050, 1
        %v6137 = vpop.permute.xlu0 %6136
        %6138 = vrot.lane.b32.xlu0 %v6051, 1
        %v6139 = vpop.permute.xlu0 %6138
        %6140 = vrot.lane.b32.xlu0 %v6044, 127
        %v6141 = vpop.permute.xlu0 %6140
        %6142 = vrot.lane.b32.xlu0 %v6045, 127
        %v6143 = vpop.permute.xlu0 %6142
        %6144 = vrot.lane.b32.xlu0 %v6046, 127
        %v6145 = vpop.permute.xlu0 %6144
        %6146 = vrot.lane.b32.xlu0 %v6047, 127
        %v6147 = vpop.permute.xlu0 %6146
        %6148 = vrot.lane.b32.xlu0 %v6048, 127
        %v6149 = vpop.permute.xlu0 %6148
        %6150 = vrot.lane.b32.xlu0 %v6049, 127
        %v6151 = vpop.permute.xlu0 %6150
        %6152 = vrot.lane.b32.xlu0 %v6050, 127
        %v6153 = vpop.permute.xlu0 %6152
        %6154 = vrot.lane.b32.xlu0 %v6051, 127
        %v6155 = vpop.permute.xlu0 %6154
        %6156 = vrot.lane.b32.xlu0 %v6044, 123
        %v6157 = vpop.permute.xlu0 %6156
        %6158 = vrot.lane.b32.xlu0 %v6045, 123
        %v6159 = vpop.permute.xlu0 %6158
        %6160 = vrot.lane.b32.xlu0 %v6046, 123
        %v6161 = vpop.permute.xlu0 %6160
        %6162 = vrot.lane.b32.xlu0 %v6047, 123
        %v6163 = vpop.permute.xlu0 %6162
        %6164 = vrot.lane.b32.xlu0 %v6048, 123
        %v6165 = vpop.permute.xlu0 %6164
        %6166 = vrot.lane.b32.xlu0 %v6049, 123
        %v6167 = vpop.permute.xlu0 %6166
        %6168 = vrot.lane.b32.xlu0 %v6050, 123
        %v6169 = vpop.permute.xlu0 %6168
        %6170 = vrot.lane.b32.xlu0 %v6051, 123
        %v6171 = vpop.permute.xlu0 %6170
        %6172 = vrot.lane.b32.xlu0 %v6044, 122
        %v6173 = vpop.permute.xlu0 %6172
        %6174 = vrot.lane.b32.xlu0 %v6045, 122
        %v6175 = vpop.permute.xlu0 %6174
        %6176 = vrot.lane.b32.xlu0 %v6046, 122
        %v6177 = vpop.permute.xlu0 %6176
        %6178 = vrot.lane.b32.xlu0 %v6047, 122
        %v6179 = vpop.permute.xlu0 %6178
        %6180 = vrot.lane.b32.xlu0 %v6048, 122
        %v6181 = vpop.permute.xlu0 %6180
        %6182 = vrot.lane.b32.xlu0 %v6049, 122
        %v6183 = vpop.permute.xlu0 %6182
        %6184 = vrot.lane.b32.xlu0 %v6050, 122
        %v6185 = vpop.permute.xlu0 %6184
        %6186 = vrot.lane.b32.xlu0 %v6051, 122
        %v6187 = vpop.permute.xlu0 %6186
        %6188 = vrot.lane.b32.xlu0 %v6044, 121
        %v6189 = vpop.permute.xlu0 %6188
        %6190 = vrot.lane.b32.xlu0 %v6045, 121
        %v6191 = vpop.permute.xlu0 %6190
        %6192 = vrot.lane.b32.xlu0 %v6046, 121
        %v6193 = vpop.permute.xlu0 %6192
        %6194 = vrot.lane.b32.xlu0 %v6047, 121
        %v6195 = vpop.permute.xlu0 %6194
        %6196 = vrot.lane.b32.xlu0 %v6048, 121
        %v6197 = vpop.permute.xlu0 %6196
        %6198 = vrot.lane.b32.xlu0 %v6049, 121
        %v6199 = vpop.permute.xlu0 %6198
        %6200 = vrot.lane.b32.xlu0 %v6050, 121
        %v6201 = vpop.permute.xlu0 %6200
        %6202 = vrot.lane.b32.xlu0 %v6051, 121
        %v6203 = vpop.permute.xlu0 %6202
        %v6204 = vpack.c.bf16 %v6079, %v6077
        %v6205 = vpack.c.bf16 %v6083, %v6081
        %v6206 = vpack.c.bf16 %v6087, %v6085
        %v6207 = vpack.c.bf16 %v6091, %v6089
        %v6208 = vpack.c.bf16 %v6095, %v6093
        %v6209 = vpack.c.bf16 %v6099, %v6097
        %v6210 = vpack.c.bf16 %v6103, %v6101
        %v6211 = vpack.c.bf16 %v6107, %v6105
        %v6212 = vpack.c.bf16 %v6111, %v6109
        %v6213 = vpack.c.bf16 %v6115, %v6113
        %v6214 = vpack.c.bf16 %v6119, %v6117
        %v6215 = vpack.c.bf16 %v6123, %v6121
        %v6216 = vpack.c.bf16 %v6127, %v6125
        %v6217 = vpack.c.bf16 %v6131, %v6129
        %v6218 = vpack.c.bf16 %v6135, %v6133
        %v6219 = vpack.c.bf16 %v6139, %v6137
        %v6220 = vpack.c.bf16 %v6045, %v6044
        %v6221 = vpack.c.bf16 %v6047, %v6046
        %v6222 = vpack.c.bf16 %v6049, %v6048
        %v6223 = vpack.c.bf16 %v6051, %v6050
        %v6224 = vpack.c.bf16 %v6143, %v6141
        %v6225 = vpack.c.bf16 %v6147, %v6145
        %v6226 = vpack.c.bf16 %v6151, %v6149
        %v6227 = vpack.c.bf16 %v6155, %v6153
        %v6228 = vpack.c.bf16 %v6159, %v6157
        %v6229 = vpack.c.bf16 %v6163, %v6161
        %v6230 = vpack.c.bf16 %v6167, %v6165
        %v6231 = vpack.c.bf16 %v6171, %v6169
        %v6232 = vpack.c.bf16 %v6175, %v6173
        %v6233 = vpack.c.bf16 %v6179, %v6177
        %v6234 = vpack.c.bf16 %v6183, %v6181
        %v6235 = vpack.c.bf16 %v6187, %v6185
        %v6236 = vpack.c.bf16 %v6191, %v6189
        %v6237 = vpack.c.bf16 %v6195, %v6193
        %v6238 = vpack.c.bf16 %v6199, %v6197
        %v6239 = vpack.c.bf16 %v6203, %v6201
        %v6240 = vld [vmem:[%s19] sm:$0xff]
        %v6241 = vld [vmem:[%s19 + $0x8] sm:$0xff]
        %v6242 = vld [vmem:[%s19 + $0x10] sm:$0xff]
        %v6243 = vld [vmem:[%s19 + $0x18] sm:$0xff]
        %v6244 = vld [vmem:[%s19 + $0x20] sm:$0xff]
        %v6245 = vld [vmem:[%s19 + $0x28] sm:$0xff]
        %v6246 = vld [vmem:[%s19 + $0x30] sm:$0xff]
        %v6247 = vld [vmem:[%s19 + $0x38] sm:$0xff]
        %6249 = vset.pattern.permute.xlu0 0
        %6250 = vperm.xlu0 %6249, %v6240
        %v6251 = vpop.permute.xlu0 %6250
        %6254 = vset.pattern.permute.xlu0 0
        %6255 = vperm.xlu0 %6254, %v6241
        %v6256 = vpop.permute.xlu0 %6255
        %6259 = vset.pattern.permute.xlu0 0
        %6260 = vperm.xlu0 %6259, %v6242
        %v6261 = vpop.permute.xlu0 %6260
        %6264 = vset.pattern.permute.xlu0 0
        %6265 = vperm.xlu0 %6264, %v6243
        %v6266 = vpop.permute.xlu0 %6265
        %6269 = vset.pattern.permute.xlu0 0
        %6270 = vperm.xlu0 %6269, %v6244
        %v6271 = vpop.permute.xlu0 %6270
        %6274 = vset.pattern.permute.xlu0 0
        %6275 = vperm.xlu0 %6274, %v6245
        %v6276 = vpop.permute.xlu0 %6275
        %6279 = vset.pattern.permute.xlu0 0
        %6280 = vperm.xlu0 %6279, %v6246
        %v6281 = vpop.permute.xlu0 %6280
        %6284 = vset.pattern.permute.xlu0 0
        %6285 = vperm.xlu0 %6284, %v6247
        %v6286 = vpop.permute.xlu0 %6285
        %v6288 = vadd.f32 %v5944, %v6251
        %v6289 = vadd.f32 %v5947, %v6256
        %v6290 = vadd.f32 %v5952, %v6261
        %v6291 = vadd.f32 %v5955, %v6266
        %v6292 = vadd.f32 %v5960, %v6271
        %v6293 = vadd.f32 %v5963, %v6276
        %v6294 = vadd.f32 %v5968, %v6281
        %v6295 = vadd.f32 %v5971, %v6286
        %v6296 = vld [vmem:[%s21] sm:$0xff]
        %v6297 = vld [vmem:[%s21 + $0x8] sm:$0xff]
        %v6298 = vld [vmem:[%s21 + $0x10] sm:$0xff]
        %v6299 = vld [vmem:[%s21 + $0x18] sm:$0xff]
        %v6300 = vld [vmem:[%s21 + $0x20] sm:$0xff]
        %v6301 = vld [vmem:[%s21 + $0x28] sm:$0xff]
        %v6302 = vld [vmem:[%s21 + $0x30] sm:$0xff]
        %v6303 = vld [vmem:[%s21 + $0x38] sm:$0xff]
        %6305 = vset.pattern.permute.xlu0 0
        %6306 = vperm.xlu0 %6305, %v6296
        %v6307 = vpop.permute.xlu0 %6306
        %6310 = vset.pattern.permute.xlu0 0
        %6311 = vperm.xlu0 %6310, %v6297
        %v6312 = vpop.permute.xlu0 %6311
        %6315 = vset.pattern.permute.xlu0 0
        %6316 = vperm.xlu0 %6315, %v6298
        %v6317 = vpop.permute.xlu0 %6316
        %6320 = vset.pattern.permute.xlu0 0
        %6321 = vperm.xlu0 %6320, %v6299
        %v6322 = vpop.permute.xlu0 %6321
        %6325 = vset.pattern.permute.xlu0 0
        %6326 = vperm.xlu0 %6325, %v6300
        %v6327 = vpop.permute.xlu0 %6326
        %6330 = vset.pattern.permute.xlu0 0
        %6331 = vperm.xlu0 %6330, %v6301
        %v6332 = vpop.permute.xlu0 %6331
        %6335 = vset.pattern.permute.xlu0 0
        %6336 = vperm.xlu0 %6335, %v6302
        %v6337 = vpop.permute.xlu0 %6336
        %6340 = vset.pattern.permute.xlu0 0
        %6341 = vperm.xlu0 %6340, %v6303
        %v6342 = vpop.permute.xlu0 %6341
        %v6368 = vunpack.c.l.b16 %v6052
        %v6369 = vunpack.c.h.b16 %v6052
        %v6370 = vunpack.c.l.b16 %v6053
        %v6371 = vunpack.c.h.b16 %v6053
        %v6372 = vunpack.c.l.b16 %v6054
        %v6373 = vunpack.c.l.b16 %v6055
        %v6374 = vunpack.c.h.b16 %v6055
        %v6375 = vunpack.c.l.b16 %v6056
        %v6376 = vunpack.c.h.b16 %v6056
        %v6377 = vunpack.c.l.b16 %v6057
        %v6378 = vunpack.c.l.b16 %v6058
        %v6379 = vunpack.c.h.b16 %v6058
        %v6380 = vunpack.c.l.b16 %v6059
        %v6381 = vunpack.c.h.b16 %v6059
        %v6382 = vunpack.c.l.b16 %v6060
        %v6383 = vunpack.c.l.b16 %v6061
        %v6384 = vunpack.c.h.b16 %v6061
        %v6385 = vunpack.c.l.b16 %v6062
        %v6386 = vunpack.c.h.b16 %v6062
        %v6387 = vunpack.c.l.b16 %v6063
        %v6388 = vunpack.c.l.b16 %v6064
        %v6389 = vunpack.c.h.b16 %v6064
        %v6390 = vunpack.c.l.b16 %v6065
        %v6391 = vunpack.c.h.b16 %v6065
        %v6392 = vunpack.c.l.b16 %v6066
        %v6393 = vunpack.c.l.b16 %v6067
        %v6394 = vunpack.c.h.b16 %v6067
        %v6395 = vunpack.c.l.b16 %v6068
        %v6396 = vunpack.c.h.b16 %v6068
        %v6397 = vunpack.c.l.b16 %v6069
        %v6398 = vunpack.c.l.b16 %v6070
        %v6399 = vunpack.c.h.b16 %v6070
        %v6400 = vunpack.c.l.b16 %v6071
        %v6401 = vunpack.c.h.b16 %v6071
        %v6402 = vunpack.c.l.b16 %v6072
        %v6403 = vunpack.c.l.b16 %v6073
        %v6404 = vunpack.c.h.b16 %v6073
        %v6405 = vunpack.c.l.b16 %v6074
        %v6406 = vunpack.c.h.b16 %v6074
        %v6407 = vunpack.c.l.b16 %v6075
        %v6408 = vpack.c.b16 %v6373, %v6368
        %v6409 = vpack.c.b16 %v6374, %v6369
        %v6410 = vpack.c.b16 %v6375, %v6370
        %v6411 = vpack.c.b16 %v6376, %v6371
        %v6412 = vpack.c.b16 %v6377, %v6372
        %v6413 = vpack.c.b16 %v6383, %v6378
        %v6414 = vpack.c.b16 %v6384, %v6379
        %v6415 = vpack.c.b16 %v6385, %v6380
        %v6416 = vpack.c.b16 %v6386, %v6381
        %v6417 = vpack.c.b16 %v6387, %v6382
        %v6418 = vpack.c.b16 %v6393, %v6388
        %v6419 = vpack.c.b16 %v6394, %v6389
        %v6420 = vpack.c.b16 %v6395, %v6390
        %v6421 = vpack.c.b16 %v6396, %v6391
        %v6422 = vpack.c.b16 %v6397, %v6392
        %v6423 = vpack.c.b16 %v6403, %v6398
        %v6424 = vpack.c.b16 %v6404, %v6399
        %v6425 = vpack.c.b16 %v6405, %v6400
        %v6426 = vpack.c.b16 %v6406, %v6401
        %v6427 = vpack.c.b16 %v6407, %v6402
        %vm6444 = vcmask 523264
        %v6446 = vsel %vm6444, %v6412, 0
        %v6449 = vsel %vm6444, %v6417, 0
        %v6452 = vsel %vm6444, %v6422, 0
        %v6455 = vsel %vm6444, %v6427, 0
        %6457 = vmatprep.subr.bf16.mxu0 0
        %6458 = vmatpush1.bf16.msra.mxu0 %v6204
        %6459 = vmatprep.subr.bf16.mxu0 0
        %6460 = vmatpush1.bf16.msra.mxu0 %v6205
        %6461 = vmatprep.subr.bf16.mxu0 0
        %6462 = vmatpush1.bf16.msra.mxu0 %v6206
        %6463 = vmatprep.subr.bf16.mxu0 0
        %6464 = vmatpush1.bf16.msra.mxu0 %v6207
        %6465 = vmatprep.subr.bf16.mxu0 0
        %6466 = vmatpush1.bf16.msra.mxu0 %v6208
        %6467 = vmatprep.subr.bf16.mxu0 0
        %6468 = vmatpush1.bf16.msra.mxu0 %v6209
        %6469 = vmatprep.subr.bf16.mxu0 0
        %6470 = vmatpush1.bf16.msra.mxu0 %v6210
        %6471 = vmatprep.subr.bf16.mxu0 0
        %6472 = vmatpush1.bf16.msra.mxu0 %v6211
        %6473 = vmatprep.subr.bf16.mxu0 0
        %6474 = vmatpush1.bf16.msra.mxu0 %v6212
        %6475 = vmatprep.subr.bf16.mxu0 0
        %6476 = vmatpush1.bf16.msra.mxu0 %v6213
        %6477 = vmatprep.subr.bf16.mxu0 0
        %6478 = vmatpush1.bf16.msra.mxu0 %v6214
        %6479 = vmatprep.subr.bf16.mxu0 0
        %6480 = vmatpush1.bf16.msra.mxu0 %v6215
        %6481 = vmatprep.subr.bf16.mxu0 0
        %6482 = vmatpush1.bf16.msra.mxu0 %v6216
        %6483 = vmatprep.subr.bf16.mxu0 0
        %6484 = vmatpush1.bf16.msra.mxu0 %v6217
        %6485 = vmatprep.subr.bf16.mxu0 0
        %6486 = vmatpush1.bf16.msra.mxu0 %v6218
        %6487 = vmatprep.subr.bf16.mxu0 0
        %6488 = vmatpush1.bf16.msra.mxu0 %v6219
        %6489 = vmatprep.mubr.bf16.mxu0 %v6409
        %6490 = vmatmul.mubr.bf16.gmra.mrb[0].mxu0 %v6408
        %v6491 = vpop.f32.mrb[0].mxu0
        %v6492 = vadd.f32 %v6307, %v6491
        %v6493 = vpop.f32.mrb[0].mxu0
        %v6494 = vpop.f32.mrb[0].mxu0
        %v6495 = vadd.f32 %v6312, %v6494
        %v6496 = vpop.f32.mrb[0].mxu0
        %6497 = vmatprep.mubr.bf16.mxu0 %v6414
        %6498 = vmatmul.mubr.bf16.gmra.mrb[0].mxu0 %v6413
        %v6499 = vpop.f32.mrb[0].mxu0
        %v6500 = vadd.f32 %v6317, %v6499
        %v6501 = vpop.f32.mrb[0].mxu0
        %v6502 = vpop.f32.mrb[0].mxu0
        %v6503 = vadd.f32 %v6322, %v6502
        %v6504 = vpop.f32.mrb[0].mxu0
        %6505 = vmatprep.mubr.bf16.mxu0 %v6419
        %6506 = vmatmul.mubr.bf16.gmra.mrb[0].mxu0 %v6418
        %v6507 = vpop.f32.mrb[0].mxu0
        %v6508 = vadd.f32 %v6327, %v6507
        %v6509 = vpop.f32.mrb[0].mxu0
        %v6510 = vpop.f32.mrb[0].mxu0
        %v6511 = vadd.f32 %v6332, %v6510
        %v6512 = vpop.f32.mrb[0].mxu0
        %6513 = vmatprep.mubr.bf16.mxu0 %v6424
        %6514 = vmatmul.mubr.bf16.gmra.mrb[0].mxu0 %v6423
        %v6515 = vpop.f32.mrb[0].mxu0
        %v6516 = vadd.f32 %v6337, %v6515
        %v6517 = vpop.f32.mrb[0].mxu0
        %v6518 = vpop.f32.mrb[0].mxu0
        %v6519 = vadd.f32 %v6342, %v6518
        %v6520 = vpop.f32.mrb[0].mxu0
        %6521 = vdwg.mxu0
        %6522 = vmatprep.subr.bf16.mxu0 0
        %6523 = vmatpush1.bf16.msra.mxu0 %v6220
        %6524 = vmatprep.subr.bf16.mxu0 0
        %6525 = vmatpush1.bf16.msra.mxu0 %v6221
        %6526 = vmatprep.subr.bf16.mxu0 0
        %6527 = vmatpush1.bf16.msra.mxu0 %v6222
        %6528 = vmatprep.subr.bf16.mxu0 0
        %6529 = vmatpush1.bf16.msra.mxu0 %v6223
        %6530 = vmatprep.subr.bf16.mxu0 0
        %6531 = vmatpush1.bf16.msra.mxu0 %v6224
        %6532 = vmatprep.subr.bf16.mxu0 0
        %6533 = vmatpush1.bf16.msra.mxu0 %v6225
        %6534 = vmatprep.subr.bf16.mxu0 0
        %6535 = vmatpush1.bf16.msra.mxu0 %v6226
        %6536 = vmatprep.subr.bf16.mxu0 0
        %6537 = vmatpush1.bf16.msra.mxu0 %v6227
        %6538 = vmatprep.subr.bf16.mxu0 0
        %6539 = vmatpush1.bf16.msra.mxu0 %v6228
        %6540 = vmatprep.subr.bf16.mxu0 0
        %6541 = vmatpush1.bf16.msra.mxu0 %v6229
        %6542 = vmatprep.subr.bf16.mxu0 0
        %6543 = vmatpush1.bf16.msra.mxu0 %v6230
        %6544 = vmatprep.subr.bf16.mxu0 0
        %6545 = vmatpush1.bf16.msra.mxu0 %v6231
        %6546 = vmatprep.subr.bf16.mxu0 0
        %6547 = vmatpush1.bf16.msra.mxu0 %v6232
        %6548 = vmatprep.subr.bf16.mxu0 0
        %6549 = vmatpush1.bf16.msra.mxu0 %v6233
        %6550 = vmatprep.subr.bf16.mxu0 0
        %6551 = vmatpush1.bf16.msra.mxu0 %v6234
        %6552 = vmatprep.subr.bf16.mxu0 0
        %6553 = vmatpush1.bf16.msra.mxu0 %v6235
        %6554 = vmatprep.mubr.bf16.mxu0 %v6411
        %6555 = vmatmul.mubr.bf16.gmra.mrb[0].mxu0 %v6410
        %v6556 = vpop.f32.mrb[0].mxu0
        %v6557 = vadd.f32 %v6492, %v6556
        %v6558 = vpop.f32.mrb[0].mxu0
        %v6559 = vpop.f32.mrb[0].mxu0
        %v6560 = vadd.f32 %v6495, %v6559
        %v6561 = vpop.f32.mrb[0].mxu0
        %6562 = vmatprep.mubr.bf16.mxu0 %v6416
        %6563 = vmatmul.mubr.bf16.gmra.mrb[0].mxu0 %v6415
        %v6564 = vpop.f32.mrb[0].mxu0
        %v6565 = vadd.f32 %v6500, %v6564
        %v6566 = vpop.f32.mrb[0].mxu0
        %v6567 = vpop.f32.mrb[0].mxu0
        %v6568 = vadd.f32 %v6503, %v6567
        %v6569 = vpop.f32.mrb[0].mxu0
        %6570 = vmatprep.mubr.bf16.mxu0 %v6421
        %6571 = vmatmul.mubr.bf16.gmra.mrb[0].mxu0 %v6420
        %v6572 = vpop.f32.mrb[0].mxu0
        %v6573 = vadd.f32 %v6508, %v6572
        %v6574 = vpop.f32.mrb[0].mxu0
        %v6575 = vpop.f32.mrb[0].mxu0
        %v6576 = vadd.f32 %v6511, %v6575
        %v6577 = vpop.f32.mrb[0].mxu0
        %6578 = vmatprep.mubr.bf16.mxu0 %v6426
        %6579 = vmatmul.mubr.bf16.gmra.mrb[0].mxu0 %v6425
        %v6580 = vpop.f32.mrb[0].mxu0
        %v6581 = vadd.f32 %v6516, %v6580
        %v6582 = vpop.f32.mrb[0].mxu0
        %v6583 = vpop.f32.mrb[0].mxu0
        %v6584 = vadd.f32 %v6519, %v6583
        %v6585 = vpop.f32.mrb[0].mxu0
        %6586 = vdwg.mxu0
        %6587 = vmatprep.subr.bf16.mxu0 0
        %6588 = vmatpush1.bf16.msra.mxu0 %v6236
        %6589 = vmatprep.subr.bf16.mxu0 0
        %6590 = vmatpush1.bf16.msra.mxu0 %v6237
        %6591 = vmatprep.subr.bf16.mxu0 0
        %6592 = vmatpush1.bf16.msra.mxu0 %v6238
        %6593 = vmatprep.subr.bf16.mxu0 0
        %6594 = vmatpush1.bf16.msra.mxu0 %v6239
        %6595 = vmatprep.subr.bf16.mxu0 0
        %6596 = vmatpush1.bf16.msra.mxu0 0
        %6597 = vmatprep.subr.bf16.mxu0 0
        %6598 = vmatpush1.bf16.msra.mxu0 0
        %6599 = vmatprep.subr.bf16.mxu0 0
        %6600 = vmatpush1.bf16.msra.mxu0 0
        %6601 = vmatprep.subr.bf16.mxu0 0
        %6602 = vmatpush1.bf16.msra.mxu0 0
        %6603 = vmatprep.subr.bf16.mxu0 0
        %6604 = vmatpush1.bf16.msra.mxu0 0
        %6605 = vmatprep.subr.bf16.mxu0 0
        %6606 = vmatpush1.bf16.msra.mxu0 0
        %6607 = vmatprep.subr.bf16.mxu0 0
        %6608 = vmatpush1.bf16.msra.mxu0 0
        %6609 = vmatprep.subr.bf16.mxu0 0
        %6610 = vmatpush1.bf16.msra.mxu0 0
        %6611 = vmatprep.subr.bf16.mxu0 0
        %6612 = vmatpush1.bf16.msra.mxu0 0
        %6613 = vmatprep.subr.bf16.mxu0 0
        %6614 = vmatpush1.bf16.msra.mxu0 0
        %6615 = vmatprep.subr.bf16.mxu0 0
        %6616 = vmatpush1.bf16.msra.mxu0 0
        %6617 = vmatprep.subr.bf16.mxu0 0
        %6618 = vmatpush1.bf16.msra.mxu0 0
        %6619 = vmatprep.mubr.bf16.mxu0 0
        %6620 = vmatmul.mubr.bf16.gmra.mrb[0].mxu0 %v6446
        %v6621 = vpop.f32.mrb[0].mxu0
        %v6622 = vadd.f32 %v6557, %v6621
        %v6623 = vpop.f32.mrb[0].mxu0
        %v6624 = vpop.f32.mrb[0].mxu0
        %v6625 = vadd.f32 %v6560, %v6624
        %v6626 = vpop.f32.mrb[0].mxu0
        %6627 = vmatprep.mubr.bf16.mxu0 0
        %6628 = vmatmul.mubr.bf16.gmra.mrb[0].mxu0 %v6449
        %v6629 = vpop.f32.mrb[0].mxu0
        %v6630 = vadd.f32 %v6565, %v6629
        %v6631 = vpop.f32.mrb[0].mxu0
        %v6632 = vpop.f32.mrb[0].mxu0
        %v6633 = vadd.f32 %v6568, %v6632
        %v6634 = vpop.f32.mrb[0].mxu0
        %6635 = vmatprep.mubr.bf16.mxu0 0
        %6636 = vmatmul.mubr.bf16.gmra.mrb[0].mxu0 %v6452
        %v6637 = vpop.f32.mrb[0].mxu0
        %v6638 = vadd.f32 %v6573, %v6637
        %v6639 = vpop.f32.mrb[0].mxu0
        %v6640 = vpop.f32.mrb[0].mxu0
        %v6641 = vadd.f32 %v6576, %v6640
        %v6642 = vpop.f32.mrb[0].mxu0
        %6643 = vmatprep.mubr.bf16.mxu0 0
        %6644 = vmatmul.mubr.bf16.gmra.mrb[0].mxu0 %v6455
        %v6645 = vpop.f32.mrb[0].mxu0
        %v6646 = vadd.f32 %v6581, %v6645
        %v6647 = vpop.f32.mrb[0].mxu0
        %v6648 = vpop.f32.mrb[0].mxu0
        %v6649 = vadd.f32 %v6584, %v6648
        %v6650 = vpop.f32.mrb[0].mxu0
        %6651 = vdwg.mxu0
        %v6652 = vadd.f32 %v6622, %v6288
        %v6653 = vadd.f32 %v6625, %v6289
        %v6654 = vadd.f32 %v6630, %v6290
        %v6655 = vadd.f32 %v6633, %v6291
        %v6656 = vadd.f32 %v6638, %v6292
        %v6657 = vadd.f32 %v6641, %v6293
        %v6658 = vadd.f32 %v6646, %v6294
        %v6659 = vadd.f32 %v6649, %v6295
        %v6660 = vmax.f32 %v6652, 0.0
        %v6661 = vmax.f32 %v6653, 0.0
        %v6662 = vmax.f32 %v6654, 0.0
        %v6663 = vmax.f32 %v6655, 0.0
        %v6664 = vmax.f32 %v6656, 0.0
        %v6665 = vmax.f32 %v6657, 0.0
        %v6666 = vmax.f32 %v6658, 0.0
        %v6667 = vmax.f32 %v6659, 0.0
        %v6668 = vmul.f32 %v6660, %v6042
        %v6669 = vmul.f32 %v6661, %v6042
        %v6670 = vmul.f32 %v6662, %v6042
        %v6671 = vmul.f32 %v6663, %v6042
        %v6672 = vmul.f32 %v6664, %v6042
        %v6673 = vmul.f32 %v6665, %v6042
        %v6674 = vmul.f32 %v6666, %v6042
        %v6675 = vmul.f32 %v6667, %v6042
        %6676 = vst [vmem:[%s698] sm:$0xff] %v6668
        %6677 = vst [vmem:[%s698 + $0x8] sm:$0xff] %v6669
        %6678 = vst [vmem:[%s698 + $0x10] sm:$0xff] %v6670
        %6679 = vst [vmem:[%s698 + $0x18] sm:$0xff] %v6671
        %6680 = vst [vmem:[%s698 + $0x20] sm:$0xff] %v6672
        %6681 = vst [vmem:[%s698 + $0x28] sm:$0xff] %v6673
        %6682 = vst [vmem:[%s698 + $0x30] sm:$0xff] %v6674
        %6683 = vst [vmem:[%s698 + $0x38] sm:$0xff] %v6675
        %p6684 = scmp.lt.s32.totalorder %s34, 1
        %s6685 = scalar_select %p6684, %s34, 1
        %s6686 = smul.addr %s6685, 8
        %s6687 = smul.addr %s6686, 8
        %s6688 = scalar_lea.vmem %s22, %s6687
        // Predicated region
        $region113: #{_lambda_.1} parent=107 // pred_check
          %p6689 = pneg %p519
        $region114: #{_lambda_.1} parent=107 // pred_check_branch
          %6691 = sbr.rel (%p6689) target = $region116
        $region115: #{_lambda_.1} parent=107 // pred_region
          _
        $region116: #{_lambda_.1} parent=107 // pred_fallthru
          _
      $region108: #{_lambda_.1} parent=5 // pred_fallthru
        _
      %p6692 = scmp.le.s32.totalorder 2, %s29
      // Predicated region
      $region117: #{_lambda_.1} parent=5 // pred_check
        %p6693 = pneg %p6692
      $region118: #{_lambda_.1} parent=5 // pred_check_branch
        %6695 = sbr.rel (%p6693) target = $region120
      $region119: #{_lambda_.1} parent=5 // pred_region
        %s6696 = ssub.s32 %s29, 2
        // Predicated region
        $region121: #{_lambda_.1} parent=119 // pred_check
          %p6697 = pneg %p525
        $region122: #{_lambda_.1} parent=119 // pred_check_branch
          %6699 = sbr.rel (%p6697) target = $region124
        $region123: #{_lambda_.1} parent=119 // pred_region
          %p6700 = scmp.lt.s32.totalorder %s35, 1
          %s6701 = scalar_select %p6700, %s35, 1
          %s6702 = smul.addr %s6701, 8
          %s6703 = smul.addr %s6702, 8
          %s6704 = scalar_lea.vmem %s22, %s6703
        $region124: #{_lambda_.1} parent=119 // pred_fallthru
          _
      $region120: #{_lambda_.1} parent=5 // pred_fallthru
        _
    $region6: #{_lambda_.1} parent=1 // loop_footer
      %s33 = sadd.s32 1, %s29
    $region7: #{_lambda_.1} parent=1 // loop_footer_branch
      %28 = sbr.rel target = $region3
    $region8: #{_lambda_.1} parent=1 // loop_exit
      _
    %6705 = vsyncpa [#allocation3], 1
    %s6706 = scalar_lea.sflag [#allocation3], 1
    %6707 = vsyncpa %s6706, 1

</llo_original>
